<compile_context>
chip_gen: v5e
topology: v5e:2x2
jax: 0.10.0
libtpu: 0.0.40
codegen_flags: <defaults>
</compile_context>

<pallas_src>
import jax
import jax.numpy as jnp
from jax.experimental import pallas as pl
from jax.experimental.pallas import tpu as pltpu

# ----- model dimensions (from the PyTorch __init__) -------------------------
B = 2
N_NODES = 50                 # Flatten gives 450 = 50 nodes * 9 classes
N_FEAT = 9                   # nfeat
N_HID = 256                  # nid
N_CLASS = 9                  # nclass
FC1_IN = N_NODES * N_CLASS   # 450
FC_HID = 1024
NUM_CENTER_PTS = 10          # args.num_center_pts (chosen; args not given)
GRIL_LEN = NUM_CENTER_PTS * 6  # args.use_only_lambda_0 = False -> 60
N_OUT = 5


def _full_spec(shape):
    zeros = (0,) * len(shape)
    return pl.BlockSpec(shape, lambda i: zeros)


# --------------------------- fused forward kernel ----------------------------
# TODO(synk): StdpGCN_context source is not provided; it is modeled as a
# standard 2-layer GCN  gc = A @ relu(A @ x @ W1 + b1) @ W2 + b2  with a fixed,
# deterministically-built normalized adjacency.
def _fused_kernel(xT_ref, gril_ref, adjB_ref, gw1T_ref, gb1_ref, gw2T_ref,
                  gb2_ref, w1r_ref, b1_ref, w2_ref, b2_ref, w4_ref, b4_ref,
                  w3a_ref, w3b_ref, b3_ref, out_ref):
    f32 = jnp.float32
    bf16 = jnp.bfloat16

    adjB = adjB_ref[...]                     # (B, N, N)   A replicated per batch
    xT = xT_ref[...]                         # (B, F, N)   node axis on lanes

    # ---- GCN layer 1, reassociated:  h = relu((A x) W1 + b1)  (transposed) ----
    # axT[b, f, n] = (A @ x[b])[n, f]
    axT = jnp.einsum("bfm,bnm->bfn", xT, adjB, preferred_element_type=f32)
    # hT[b, k, n] = h[b, n, k]
    hT = jnp.einsum("bkf,bfn->bkn", gw1T_ref[...], axT, preferred_element_type=f32)
    hT = jnp.maximum(hT + gb1_ref[...], 0.0)            # relu; GCN dropout = identity

    # ---- GCN layer 2:  gc = A (h W2) + b2  (transposed) ----
    s2T = jnp.einsum("bck,bkn->bcn", gw2T_ref[...], hT, preferred_element_type=f32)
    gcT = jnp.einsum("bcm,bnm->bcn", s2T, adjB, preferred_element_type=f32) \
        + gb2_ref[...]                                   # (B, C, N) == gc[b, n, c]

    # ---- Flatten + fc1 without any in-kernel relayout:
    #      flatten(gc[b]) @ W_fc1 == sum_c gc[b, :, c] @ W_fc1[n*C + c, :]
    #      with the fc1 weight pre-arranged as w1r[c, n, :] (done at init). ----
    acc = jnp.zeros((B, FC_HID), dtype=f32)
    for c in range(N_CLASS):                             # static unroll (9 steps)
        blk = gcT[:, c, :].astype(bf16)                  # (B, N) -- batch folded into M
        acc = acc + jnp.dot(blk, w1r_ref[c], preferred_element_type=f32)
    h1 = jnp.maximum(acc + b1_ref[...], 0.0)             # relu; dropout = identity

    # ---- fc2 -> relu ----
    h2 = jnp.dot(h1.astype(bf16), w2_ref[...], preferred_element_type=f32) + b2_ref[...]
    h2 = jnp.maximum(h2, 0.0)                            # relu; dropout = identity

    # ---- fc4 on gril ----
    g = jnp.dot(gril_ref[...], w4_ref[...], preferred_element_type=f32) + b4_ref[...]

    # ---- fc3: cat((h2, g), dim=1) @ W3 + b3 == h2 @ W3[:1024] + g @ W3[1024:] + b3
    out = (jnp.dot(h2.astype(bf16), w3a_ref[...], preferred_element_type=f32)
           + jnp.dot(g, w3b_ref[...], preferred_element_type=f32)
           + b3_ref[...])
    out_ref[...] = out.astype(out_ref.dtype)


@jax.jit
def model_forward(x, gril, p):
    # Layout plumbing only: present the node axis on lanes for the GCN stage.
    xT = jnp.transpose(x, (0, 2, 1))                     # (B, F, N)
    args = (xT, gril.astype(jnp.float32),
            p["adjB"], p["gw1T"], p["gb1"], p["gw2T"], p["gb2"],
            p["w1r"], p["b1"], p["w2"], p["b2"],
            p["w4"], p["b4"], p["w3a"], p["w3b"], p["b3"])
    return pl.pallas_call(
        _fused_kernel,
        out_shape=jax.ShapeDtypeStruct((B, N_OUT), jnp.float32),
        grid=(1,),
        in_specs=[_full_spec(a.shape) for a in args],
        out_specs=_full_spec((B, N_OUT)),
        compiler_params=pltpu.CompilerParams(dimension_semantics=("arbitrary",)),
    )(*args)


# ----------------------------- parameter init --------------------------------
def init_params(key):
    ks = jax.random.split(key, 8)

    def lin(k, fan_in, fan_out):
        return (jax.random.normal(k, (fan_in, fan_out), jnp.float32)
                * (1.0 / jnp.sqrt(jnp.float32(fan_in))))

    # deterministic symmetric-normalized adjacency for the (fabricated) GCN
    a0 = jnp.abs(jax.random.normal(ks[0], (N_NODES, N_NODES), jnp.float32))
    a = a0 + a0.T + jnp.eye(N_NODES, dtype=jnp.float32)
    dinv = 1.0 / jnp.sqrt(jnp.sum(a, axis=1))
    adj = a * dinv[:, None] * dinv[None, :]

    gw1 = lin(ks[1], N_FEAT, N_HID)          # (9, 256)
    gw2 = lin(ks[2], N_HID, N_CLASS)         # (256, 9)
    w_fc1 = lin(ks[3], FC1_IN, FC_HID)       # (450, 1024), node-major flatten order
    w_fc2 = lin(ks[4], FC_HID, FC_HID)       # (1024, 1024)
    w_fc4 = lin(ks[5], GRIL_LEN, GRIL_LEN)   # (60, 60)
    w_fc3 = lin(ks[6], FC_HID + GRIL_LEN, N_OUT)

    # Kernel-layout parameters (pure re-layout / dtype casts, done once):
    #   * adjacency and small GCN weights replicated over batch for batched einsums
    #   * fc1 weight rearranged to (C, N, H): w1r[c, n, :] = W_fc1[n*C + c, :]
    #   * big FC weights cast to bf16 (f32 accumulation in-kernel)
    return {
        "adjB": jnp.broadcast_to(adj[None], (B, N_NODES, N_NODES)),
        "gw1T": jnp.broadcast_to(gw1.T[None], (B, N_HID, N_FEAT)),
        "gb1": jnp.zeros((1, N_HID, 1), jnp.float32),
        "gw2T": jnp.broadcast_to(gw2.T[None], (B, N_CLASS, N_HID)),
        "gb2": jnp.zeros((1, N_CLASS, 1), jnp.float32),
        "w1r": jnp.transpose(w_fc1.reshape(N_NODES, N_CLASS, FC_HID),
                             (1, 0, 2)).astype(jnp.bfloat16),
        "b1": 0.01 * jnp.ones((1, FC_HID), jnp.float32),
        "w2": w_fc2.astype(jnp.bfloat16),
        "b2": 0.01 * jnp.ones((1, FC_HID), jnp.float32),
        "w4": w_fc4,
        "b4": 0.01 * jnp.ones((1, GRIL_LEN), jnp.float32),
        "w3a": w_fc3[:FC_HID].astype(jnp.bfloat16),
        "w3b": w_fc3[FC_HID:],
        "b3": jnp.zeros((1, N_OUT), jnp.float32),
    }


if __name__ == "__main__":
    key = jax.random.PRNGKey(0)
    kx, kg, kp = jax.random.split(key, 3)

    x = jax.random.normal(kx, (B, N_NODES, N_FEAT), jnp.float32)   # GCN input
    gril = jax.random.normal(kg, (B, GRIL_LEN), jnp.float32)       # GRIL vector
    params = init_params(kp)

    out = jax.block_until_ready(model_forward(x, gril, params))
    assert out.shape == (B, N_OUT) and out.dtype == jnp.float32
    print("KERNEL_OK")
</pallas_src>

<mosaic_0001>
module attributes {stable_mosaic.version = 11 : i64} {
  func.func @_fused_kernel(%arg0: i32, %arg1: memref<2x9x50xf32, #tpu.memory_space<vmem>>, %arg2: memref<2x60xf32, #tpu.memory_space<vmem>>, %arg3: memref<2x50x50xf32, #tpu.memory_space<vmem>>, %arg4: memref<2x256x9xf32, #tpu.memory_space<vmem>>, %arg5: memref<1x256x1xf32, #tpu.memory_space<vmem>>, %arg6: memref<2x9x256xf32, #tpu.memory_space<vmem>>, %arg7: memref<1x9x1xf32, #tpu.memory_space<vmem>>, %arg8: memref<9x50x1024xbf16, #tpu.memory_space<vmem>>, %arg9: memref<1x1024xf32, #tpu.memory_space<vmem>>, %arg10: memref<1024x1024xbf16, #tpu.memory_space<vmem>>, %arg11: memref<1x1024xf32, #tpu.memory_space<vmem>>, %arg12: memref<60x60xf32, #tpu.memory_space<vmem>>, %arg13: memref<1x60xf32, #tpu.memory_space<vmem>>, %arg14: memref<1024x5xbf16, #tpu.memory_space<vmem>>, %arg15: memref<60x5xf32, #tpu.memory_space<vmem>>, %arg16: memref<1x5xf32, #tpu.memory_space<vmem>>, %arg17: memref<2x5xf32, #tpu.memory_space<vmem>>) attributes {dimension_semantics = [#tpu.dimension_semantics<arbitrary>], iteration_bounds = array<i64: 1>, scalar_prefetch = 0 : i64, scratch_operands = 0 : i64, tpu.core_type = #tpu.core_type<tc>, window_params = [{pipeline_mode = #tpu.pipeline_mode<synchronous>, transform_indices = @transform_0, window_bounds = array<i64: 2, 9, 50>}, {pipeline_mode = #tpu.pipeline_mode<synchronous>, transform_indices = @transform_1, window_bounds = array<i64: 2, 60>}, {pipeline_mode = #tpu.pipeline_mode<synchronous>, transform_indices = @transform_2, window_bounds = array<i64: 2, 50, 50>}, {pipeline_mode = #tpu.pipeline_mode<synchronous>, transform_indices = @transform_3, window_bounds = array<i64: 2, 256, 9>}, {pipeline_mode = #tpu.pipeline_mode<synchronous>, transform_indices = @transform_4, window_bounds = array<i64: 1, 256, 1>}, {pipeline_mode = #tpu.pipeline_mode<synchronous>, transform_indices = @transform_5, window_bounds = array<i64: 2, 9, 256>}, {pipeline_mode = #tpu.pipeline_mode<synchronous>, transform_indices = @transform_6, window_bounds = array<i64: 1, 9, 1>}, {pipeline_mode = #tpu.pipeline_mode<synchronous>, transform_indices = @transform_7, window_bounds = array<i64: 9, 50, 1024>}, {pipeline_mode = #tpu.pipeline_mode<synchronous>, transform_indices = @transform_8, window_bounds = array<i64: 1, 1024>}, {pipeline_mode = #tpu.pipeline_mode<synchronous>, transform_indices = @transform_9, window_bounds = array<i64: 1024, 1024>}, {pipeline_mode = #tpu.pipeline_mode<synchronous>, transform_indices = @transform_10, window_bounds = array<i64: 1, 1024>}, {pipeline_mode = #tpu.pipeline_mode<synchronous>, transform_indices = @transform_11, window_bounds = array<i64: 60, 60>}, {pipeline_mode = #tpu.pipeline_mode<synchronous>, transform_indices = @transform_12, window_bounds = array<i64: 1, 60>}, {pipeline_mode = #tpu.pipeline_mode<synchronous>, transform_indices = @transform_13, window_bounds = array<i64: 1024, 5>}, {pipeline_mode = #tpu.pipeline_mode<synchronous>, transform_indices = @transform_14, window_bounds = array<i64: 60, 5>}, {pipeline_mode = #tpu.pipeline_mode<synchronous>, transform_indices = @transform_15, window_bounds = array<i64: 1, 5>}, {pipeline_mode = #tpu.pipeline_mode<synchronous>, transform_indices = @transform_16, window_bounds = array<i64: 2, 5>}]} {
    %c0 = arith.constant 0 : index
    %c0_0 = arith.constant 0 : index
    %c0_1 = arith.constant 0 : index
    %0 = vector.load %arg3[%c0, %c0_0, %c0_1] : memref<2x50x50xf32, #tpu.memory_space<vmem>>, vector<2x50x50xf32>
    %c0_2 = arith.constant 0 : index
    %c0_3 = arith.constant 0 : index
    %c0_4 = arith.constant 0 : index
    %1 = vector.load %arg1[%c0_2, %c0_3, %c0_4] : memref<2x9x50xf32, #tpu.memory_space<vmem>>, vector<2x9x50xf32>
    "tpu.trace_start"() <{level = 10 : i32, message = "bfm,bnm->bfn"}> : () -> ()
    %cst = arith.constant dense<0.000000e+00> : vector<2x9x50xf32>
    %2 = tpu.matmul %1, %0, %cst {dimension_numbers = #tpu.dot_dimension_numbers<[2], [2], [1], [1], [0, 0, 0, 1, 1, 1], [0], [0]>} : vector<2x9x50xf32>, vector<2x50x50xf32>, vector<2x9x50xf32> -> vector<2x9x50xf32>
    "tpu.trace_stop"() : () -> ()
    %c0_5 = arith.constant 0 : index
    %c0_6 = arith.constant 0 : index
    %c0_7 = arith.constant 0 : index
    %3 = vector.load %arg4[%c0_5, %c0_6, %c0_7] : memref<2x256x9xf32, #tpu.memory_space<vmem>>, vector<2x256x9xf32>
    "tpu.trace_start"() <{level = 10 : i32, message = "bkf,bfn->bkn"}> : () -> ()
    %cst_8 = arith.constant dense<0.000000e+00> : vector<2x256x50xf32>
    %4 = tpu.matmul %3, %2, %cst_8 {dimension_numbers = #tpu.dot_dimension_numbers<[2], [1], [1], [2], [0, 0, 0, 1, 1, 2], [0], [0]>} : vector<2x256x9xf32>, vector<2x9x50xf32>, vector<2x256x50xf32> -> vector<2x256x50xf32>
    "tpu.trace_stop"() : () -> ()
    %c0_9 = arith.constant 0 : index
    %c0_10 = arith.constant 0 : index
    %c0_11 = arith.constant 0 : index
    %5 = vector.load %arg5[%c0_9, %c0_10, %c0_11] : memref<1x256x1xf32, #tpu.memory_space<vmem>>, vector<1x256x1xf32>
    %6 = vector.broadcast %5 : vector<1x256x1xf32> to vector<2x256x50xf32>
    %7 = arith.addf %4, %6 : vector<2x256x50xf32>
    %cst_12 = arith.constant 0.000000e+00 : f32
    %8 = vector.broadcast %cst_12 : f32 to vector<2x256x50xf32>
    %9 = arith.maximumf %7, %8 : vector<2x256x50xf32>
    %c0_13 = arith.constant 0 : index
    %c0_14 = arith.constant 0 : index
    %c0_15 = arith.constant 0 : index
    %10 = vector.load %arg6[%c0_13, %c0_14, %c0_15] : memref<2x9x256xf32, #tpu.memory_space<vmem>>, vector<2x9x256xf32>
    "tpu.trace_start"() <{level = 10 : i32, message = "bck,bkn->bcn"}> : () -> ()
    %cst_16 = arith.constant dense<0.000000e+00> : vector<2x9x50xf32>
    %11 = tpu.matmul %10, %9, %cst_16 {dimension_numbers = #tpu.dot_dimension_numbers<[2], [1], [1], [2], [0, 0, 0, 1, 1, 2], [0], [0]>} : vector<2x9x256xf32>, vector<2x256x50xf32>, vector<2x9x50xf32> -> vector<2x9x50xf32>
    "tpu.trace_stop"() : () -> ()
    "tpu.trace_start"() <{level = 10 : i32, message = "bcm,bnm->bcn"}> : () -> ()
    %cst_17 = arith.constant dense<0.000000e+00> : vector<2x9x50xf32>
    %12 = tpu.matmul %11, %0, %cst_17 {dimension_numbers = #tpu.dot_dimension_numbers<[2], [2], [1], [1], [0, 0, 0, 1, 1, 1], [0], [0]>} : vector<2x9x50xf32>, vector<2x50x50xf32>, vector<2x9x50xf32> -> vector<2x9x50xf32>
    "tpu.trace_stop"() : () -> ()
    %c0_18 = arith.constant 0 : index
    %c0_19 = arith.constant 0 : index
    %c0_20 = arith.constant 0 : index
    %13 = vector.load %arg7[%c0_18, %c0_19, %c0_20] : memref<1x9x1xf32, #tpu.memory_space<vmem>>, vector<1x9x1xf32>
    %14 = vector.broadcast %13 : vector<1x9x1xf32> to vector<2x9x50xf32>
    %15 = arith.addf %12, %14 : vector<2x9x50xf32>
    %cst_21 = arith.constant 0.000000e+00 : f32
    %16 = vector.broadcast %cst_21 : f32 to vector<2x1024xf32>
    %17 = vector.extract_strided_slice %15 {offsets = [0, 0, 0], sizes = [2, 1, 50], strides = [1, 1, 1]} : vector<2x9x50xf32> to vector<2x1x50xf32>
    %18 = vector.shape_cast %17 : vector<2x1x50xf32> to vector<2x50xf32>
    %19 = arith.truncf %18 : vector<2x50xf32> to vector<2x50xbf16>
    %c0_22 = arith.constant 0 : index
    %c0_23 = arith.constant 0 : index
    %c0_24 = arith.constant 0 : index
    %20 = vector.load %arg8[%c0_22, %c0_23, %c0_24] : memref<9x50x1024xbf16, #tpu.memory_space<vmem>>, vector<1x50x1024xbf16>
    %21 = vector.shape_cast %20 : vector<1x50x1024xbf16> to vector<50x1024xbf16>
    %cst_25 = arith.constant dense<0.000000e+00> : vector<2x1024xf32>
    %22 = tpu.matmul %19, %21, %cst_25 {dimension_numbers = #tpu.dot_dimension_numbers<[1], [0], [0], [1], [0, 0, 1, 1], [], []>} : vector<2x50xbf16>, vector<50x1024xbf16>, vector<2x1024xf32> -> vector<2x1024xf32>
    %23 = arith.addf %16, %22 : vector<2x1024xf32>
    %24 = vector.extract_strided_slice %15 {offsets = [0, 1, 0], sizes = [2, 1, 50], strides = [1, 1, 1]} : vector<2x9x50xf32> to vector<2x1x50xf32>
    %25 = vector.shape_cast %24 : vector<2x1x50xf32> to vector<2x50xf32>
    %26 = arith.truncf %25 : vector<2x50xf32> to vector<2x50xbf16>
    %c1 = arith.constant 1 : index
    %c0_26 = arith.constant 0 : index
    %c0_27 = arith.constant 0 : index
    %27 = vector.load %arg8[%c1, %c0_26, %c0_27] : memref<9x50x1024xbf16, #tpu.memory_space<vmem>>, vector<1x50x1024xbf16>
    %28 = vector.shape_cast %27 : vector<1x50x1024xbf16> to vector<50x1024xbf16>
    %cst_28 = arith.constant dense<0.000000e+00> : vector<2x1024xf32>
    %29 = tpu.matmul %26, %28, %cst_28 {dimension_numbers = #tpu.dot_dimension_numbers<[1], [0], [0], [1], [0, 0, 1, 1], [], []>} : vector<2x50xbf16>, vector<50x1024xbf16>, vector<2x1024xf32> -> vector<2x1024xf32>
    %30 = arith.addf %23, %29 : vector<2x1024xf32>
    %31 = vector.extract_strided_slice %15 {offsets = [0, 2, 0], sizes = [2, 1, 50], strides = [1, 1, 1]} : vector<2x9x50xf32> to vector<2x1x50xf32>
    %32 = vector.shape_cast %31 : vector<2x1x50xf32> to vector<2x50xf32>
    %33 = arith.truncf %32 : vector<2x50xf32> to vector<2x50xbf16>
    %c2 = arith.constant 2 : index
    %c0_29 = arith.constant 0 : index
    %c0_30 = arith.constant 0 : index
    %34 = vector.load %arg8[%c2, %c0_29, %c0_30] : memref<9x50x1024xbf16, #tpu.memory_space<vmem>>, vector<1x50x1024xbf16>
    %35 = vector.shape_cast %34 : vector<1x50x1024xbf16> to vector<50x1024xbf16>
    %cst_31 = arith.constant dense<0.000000e+00> : vector<2x1024xf32>
    %36 = tpu.matmul %33, %35, %cst_31 {dimension_numbers = #tpu.dot_dimension_numbers<[1], [0], [0], [1], [0, 0, 1, 1], [], []>} : vector<2x50xbf16>, vector<50x1024xbf16>, vector<2x1024xf32> -> vector<2x1024xf32>
    %37 = arith.addf %30, %36 : vector<2x1024xf32>
    %38 = vector.extract_strided_slice %15 {offsets = [0, 3, 0], sizes = [2, 1, 50], strides = [1, 1, 1]} : vector<2x9x50xf32> to vector<2x1x50xf32>
    %39 = vector.shape_cast %38 : vector<2x1x50xf32> to vector<2x50xf32>
    %40 = arith.truncf %39 : vector<2x50xf32> to vector<2x50xbf16>
    %c3 = arith.constant 3 : index
    %c0_32 = arith.constant 0 : index
    %c0_33 = arith.constant 0 : index
    %41 = vector.load %arg8[%c3, %c0_32, %c0_33] : memref<9x50x1024xbf16, #tpu.memory_space<vmem>>, vector<1x50x1024xbf16>
    %42 = vector.shape_cast %41 : vector<1x50x1024xbf16> to vector<50x1024xbf16>
    %cst_34 = arith.constant dense<0.000000e+00> : vector<2x1024xf32>
    %43 = tpu.matmul %40, %42, %cst_34 {dimension_numbers = #tpu.dot_dimension_numbers<[1], [0], [0], [1], [0, 0, 1, 1], [], []>} : vector<2x50xbf16>, vector<50x1024xbf16>, vector<2x1024xf32> -> vector<2x1024xf32>
    %44 = arith.addf %37, %43 : vector<2x1024xf32>
    %45 = vector.extract_strided_slice %15 {offsets = [0, 4, 0], sizes = [2, 1, 50], strides = [1, 1, 1]} : vector<2x9x50xf32> to vector<2x1x50xf32>
    %46 = vector.shape_cast %45 : vector<2x1x50xf32> to vector<2x50xf32>
    %47 = arith.truncf %46 : vector<2x50xf32> to vector<2x50xbf16>
    %c4 = arith.constant 4 : index
    %c0_35 = arith.constant 0 : index
    %c0_36 = arith.constant 0 : index
    %48 = vector.load %arg8[%c4, %c0_35, %c0_36] : memref<9x50x1024xbf16, #tpu.memory_space<vmem>>, vector<1x50x1024xbf16>
    %49 = vector.shape_cast %48 : vector<1x50x1024xbf16> to vector<50x1024xbf16>
    %cst_37 = arith.constant dense<0.000000e+00> : vector<2x1024xf32>
    %50 = tpu.matmul %47, %49, %cst_37 {dimension_numbers = #tpu.dot_dimension_numbers<[1], [0], [0], [1], [0, 0, 1, 1], [], []>} : vector<2x50xbf16>, vector<50x1024xbf16>, vector<2x1024xf32> -> vector<2x1024xf32>
    %51 = arith.addf %44, %50 : vector<2x1024xf32>
    %52 = vector.extract_strided_slice %15 {offsets = [0, 5, 0], sizes = [2, 1, 50], strides = [1, 1, 1]} : vector<2x9x50xf32> to vector<2x1x50xf32>
    %53 = vector.shape_cast %52 : vector<2x1x50xf32> to vector<2x50xf32>
    %54 = arith.truncf %53 : vector<2x50xf32> to vector<2x50xbf16>
    %c5 = arith.constant 5 : index
    %c0_38 = arith.constant 0 : index
    %c0_39 = arith.constant 0 : index
    %55 = vector.load %arg8[%c5, %c0_38, %c0_39] : memref<9x50x1024xbf16, #tpu.memory_space<vmem>>, vector<1x50x1024xbf16>
    %56 = vector.shape_cast %55 : vector<1x50x1024xbf16> to vector<50x1024xbf16>
    %cst_40 = arith.constant dense<0.000000e+00> : vector<2x1024xf32>
    %57 = tpu.matmul %54, %56, %cst_40 {dimension_numbers = #tpu.dot_dimension_numbers<[1], [0], [0], [1], [0, 0, 1, 1], [], []>} : vector<2x50xbf16>, vector<50x1024xbf16>, vector<2x1024xf32> -> vector<2x1024xf32>
    %58 = arith.addf %51, %57 : vector<2x1024xf32>
    %59 = vector.extract_strided_slice %15 {offsets = [0, 6, 0], sizes = [2, 1, 50], strides = [1, 1, 1]} : vector<2x9x50xf32> to vector<2x1x50xf32>
    %60 = vector.shape_cast %59 : vector<2x1x50xf32> to vector<2x50xf32>
    %61 = arith.truncf %60 : vector<2x50xf32> to vector<2x50xbf16>
    %c6 = arith.constant 6 : index
    %c0_41 = arith.constant 0 : index
    %c0_42 = arith.constant 0 : index
    %62 = vector.load %arg8[%c6, %c0_41, %c0_42] : memref<9x50x1024xbf16, #tpu.memory_space<vmem>>, vector<1x50x1024xbf16>
    %63 = vector.shape_cast %62 : vector<1x50x1024xbf16> to vector<50x1024xbf16>
    %cst_43 = arith.constant dense<0.000000e+00> : vector<2x1024xf32>
    %64 = tpu.matmul %61, %63, %cst_43 {dimension_numbers = #tpu.dot_dimension_numbers<[1], [0], [0], [1], [0, 0, 1, 1], [], []>} : vector<2x50xbf16>, vector<50x1024xbf16>, vector<2x1024xf32> -> vector<2x1024xf32>
    %65 = arith.addf %58, %64 : vector<2x1024xf32>
    %66 = vector.extract_strided_slice %15 {offsets = [0, 7, 0], sizes = [2, 1, 50], strides = [1, 1, 1]} : vector<2x9x50xf32> to vector<2x1x50xf32>
    %67 = vector.shape_cast %66 : vector<2x1x50xf32> to vector<2x50xf32>
    %68 = arith.truncf %67 : vector<2x50xf32> to vector<2x50xbf16>
    %c7 = arith.constant 7 : index
    %c0_44 = arith.constant 0 : index
    %c0_45 = arith.constant 0 : index
    %69 = vector.load %arg8[%c7, %c0_44, %c0_45] : memref<9x50x1024xbf16, #tpu.memory_space<vmem>>, vector<1x50x1024xbf16>
    %70 = vector.shape_cast %69 : vector<1x50x1024xbf16> to vector<50x1024xbf16>
    %cst_46 = arith.constant dense<0.000000e+00> : vector<2x1024xf32>
    %71 = tpu.matmul %68, %70, %cst_46 {dimension_numbers = #tpu.dot_dimension_numbers<[1], [0], [0], [1], [0, 0, 1, 1], [], []>} : vector<2x50xbf16>, vector<50x1024xbf16>, vector<2x1024xf32> -> vector<2x1024xf32>
    %72 = arith.addf %65, %71 : vector<2x1024xf32>
    %73 = vector.extract_strided_slice %15 {offsets = [0, 8, 0], sizes = [2, 1, 50], strides = [1, 1, 1]} : vector<2x9x50xf32> to vector<2x1x50xf32>
    %74 = vector.shape_cast %73 : vector<2x1x50xf32> to vector<2x50xf32>
    %75 = arith.truncf %74 : vector<2x50xf32> to vector<2x50xbf16>
    %c8 = arith.constant 8 : index
    %c0_47 = arith.constant 0 : index
    %c0_48 = arith.constant 0 : index
    %76 = vector.load %arg8[%c8, %c0_47, %c0_48] : memref<9x50x1024xbf16, #tpu.memory_space<vmem>>, vector<1x50x1024xbf16>
    %77 = vector.shape_cast %76 : vector<1x50x1024xbf16> to vector<50x1024xbf16>
    %cst_49 = arith.constant dense<0.000000e+00> : vector<2x1024xf32>
    %78 = tpu.matmul %75, %77, %cst_49 {dimension_numbers = #tpu.dot_dimension_numbers<[1], [0], [0], [1], [0, 0, 1, 1], [], []>} : vector<2x50xbf16>, vector<50x1024xbf16>, vector<2x1024xf32> -> vector<2x1024xf32>
    %79 = arith.addf %72, %78 : vector<2x1024xf32>
    %c0_50 = arith.constant 0 : index
    %c0_51 = arith.constant 0 : index
    %80 = vector.load %arg9[%c0_50, %c0_51] : memref<1x1024xf32, #tpu.memory_space<vmem>>, vector<1x1024xf32>
    %81 = vector.broadcast %80 : vector<1x1024xf32> to vector<2x1024xf32>
    %82 = arith.addf %79, %81 : vector<2x1024xf32>
    %cst_52 = arith.constant 0.000000e+00 : f32
    %83 = vector.broadcast %cst_52 : f32 to vector<2x1024xf32>
    %84 = arith.maximumf %82, %83 : vector<2x1024xf32>
    %85 = arith.truncf %84 : vector<2x1024xf32> to vector<2x1024xbf16>
    %c0_53 = arith.constant 0 : index
    %c0_54 = arith.constant 0 : index
    %86 = vector.load %arg10[%c0_53, %c0_54] : memref<1024x1024xbf16, #tpu.memory_space<vmem>>, vector<1024x1024xbf16>
    %cst_55 = arith.constant dense<0.000000e+00> : vector<2x1024xf32>
    %87 = tpu.matmul %85, %86, %cst_55 {dimension_numbers = #tpu.dot_dimension_numbers<[1], [0], [0], [1], [0, 0, 1, 1], [], []>} : vector<2x1024xbf16>, vector<1024x1024xbf16>, vector<2x1024xf32> -> vector<2x1024xf32>
    %c0_56 = arith.constant 0 : index
    %c0_57 = arith.constant 0 : index
    %88 = vector.load %arg11[%c0_56, %c0_57] : memref<1x1024xf32, #tpu.memory_space<vmem>>, vector<1x1024xf32>
    %89 = vector.broadcast %88 : vector<1x1024xf32> to vector<2x1024xf32>
    %90 = arith.addf %87, %89 : vector<2x1024xf32>
    %cst_58 = arith.constant 0.000000e+00 : f32
    %91 = vector.broadcast %cst_58 : f32 to vector<2x1024xf32>
    %92 = arith.maximumf %90, %91 : vector<2x1024xf32>
    %c0_59 = arith.constant 0 : index
    %c0_60 = arith.constant 0 : index
    %93 = vector.load %arg2[%c0_59, %c0_60] : memref<2x60xf32, #tpu.memory_space<vmem>>, vector<2x60xf32>
    %c0_61 = arith.constant 0 : index
    %c0_62 = arith.constant 0 : index
    %94 = vector.load %arg12[%c0_61, %c0_62] : memref<60x60xf32, #tpu.memory_space<vmem>>, vector<60x60xf32>
    %cst_63 = arith.constant dense<0.000000e+00> : vector<2x60xf32>
    %95 = tpu.matmul %93, %94, %cst_63 {dimension_numbers = #tpu.dot_dimension_numbers<[1], [0], [0], [1], [0, 0, 1, 1], [], []>} : vector<2x60xf32>, vector<60x60xf32>, vector<2x60xf32> -> vector<2x60xf32>
    %c0_64 = arith.constant 0 : index
    %c0_65 = arith.constant 0 : index
    %96 = vector.load %arg13[%c0_64, %c0_65] : memref<1x60xf32, #tpu.memory_space<vmem>>, vector<1x60xf32>
    %97 = vector.broadcast %96 : vector<1x60xf32> to vector<2x60xf32>
    %98 = arith.addf %95, %97 : vector<2x60xf32>
    %99 = arith.truncf %92 : vector<2x1024xf32> to vector<2x1024xbf16>
    %c0_66 = arith.constant 0 : index
    %c0_67 = arith.constant 0 : index
    %100 = vector.load %arg14[%c0_66, %c0_67] : memref<1024x5xbf16, #tpu.memory_space<vmem>>, vector<1024x5xbf16>
    %cst_68 = arith.constant dense<0.000000e+00> : vector<2x5xf32>
    %101 = tpu.matmul %99, %100, %cst_68 {dimension_numbers = #tpu.dot_dimension_numbers<[1], [0], [0], [1], [0, 0, 1, 1], [], []>} : vector<2x1024xbf16>, vector<1024x5xbf16>, vector<2x5xf32> -> vector<2x5xf32>
    %c0_69 = arith.constant 0 : index
    %c0_70 = arith.constant 0 : index
    %102 = vector.load %arg15[%c0_69, %c0_70] : memref<60x5xf32, #tpu.memory_space<vmem>>, vector<60x5xf32>
    %cst_71 = arith.constant dense<0.000000e+00> : vector<2x5xf32>
    %103 = tpu.matmul %98, %102, %cst_71 {dimension_numbers = #tpu.dot_dimension_numbers<[1], [0], [0], [1], [0, 0, 1, 1], [], []>} : vector<2x60xf32>, vector<60x5xf32>, vector<2x5xf32> -> vector<2x5xf32>
    %104 = arith.addf %101, %103 : vector<2x5xf32>
    %c0_72 = arith.constant 0 : index
    %c0_73 = arith.constant 0 : index
    %105 = vector.load %arg16[%c0_72, %c0_73] : memref<1x5xf32, #tpu.memory_space<vmem>>, vector<1x5xf32>
    %106 = vector.broadcast %105 : vector<1x5xf32> to vector<2x5xf32>
    %107 = arith.addf %104, %106 : vector<2x5xf32>
    %c0_74 = arith.constant 0 : index
    %c0_75 = arith.constant 0 : index
    %108 = vector.load %arg17[%c0_74, %c0_75] : memref<2x5xf32, #tpu.memory_space<vmem>>, vector<2x5xf32>
    tpu.vector_store %arg17[%c0_74, %c0_75], %107 {strides = array<i32>} : memref<2x5xf32, #tpu.memory_space<vmem>>, vector<2x5xf32>,
    return
  }
  func.func @transform_0(%arg0: i32) -> (i32, i32, i32) {
    %c0_i32 = arith.constant 0 : i32
    %c0_i32_0 = arith.constant 0 : i32
    %c0_i32_1 = arith.constant 0 : i32
    %c0_i32_2 = arith.constant 0 : i32
    return %c0_i32, %c0_i32_0, %c0_i32_1 : i32, i32, i32
  }
  func.func @transform_1(%arg0: i32) -> (i32, i32) {
    %c0_i32 = arith.constant 0 : i32
    %c0_i32_0 = arith.constant 0 : i32
    %c0_i32_1 = arith.constant 0 : i32
    return %c0_i32, %c0_i32_0 : i32, i32
  }
  func.func @transform_2(%arg0: i32) -> (i32, i32, i32) {
    %c0_i32 = arith.constant 0 : i32
    %c0_i32_0 = arith.constant 0 : i32
    %c0_i32_1 = arith.constant 0 : i32
    %c0_i32_2 = arith.constant 0 : i32
    return %c0_i32, %c0_i32_0, %c0_i32_1 : i32, i32, i32
  }
  func.func @transform_3(%arg0: i32) -> (i32, i32, i32) {
    %c0_i32 = arith.constant 0 : i32
    %c0_i32_0 = arith.constant 0 : i32
    %c0_i32_1 = arith.constant 0 : i32
    %c0_i32_2 = arith.constant 0 : i32
    return %c0_i32, %c0_i32_0, %c0_i32_1 : i32, i32, i32
  }
  func.func @transform_4(%arg0: i32) -> (i32, i32, i32) {
    %c0_i32 = arith.constant 0 : i32
    %c0_i32_0 = arith.constant 0 : i32
    %c0_i32_1 = arith.constant 0 : i32
    %c0_i32_2 = arith.constant 0 : i32
    return %c0_i32, %c0_i32_0, %c0_i32_1 : i32, i32, i32
  }
  func.func @transform_5(%arg0: i32) -> (i32, i32, i32) {
    %c0_i32 = arith.constant 0 : i32
    %c0_i32_0 = arith.constant 0 : i32
    %c0_i32_1 = arith.constant 0 : i32
    %c0_i32_2 = arith.constant 0 : i32
    return %c0_i32, %c0_i32_0, %c0_i32_1 : i32, i32, i32
  }
  func.func @transform_6(%arg0: i32) -> (i32, i32, i32) {
    %c0_i32 = arith.constant 0 : i32
    %c0_i32_0 = arith.constant 0 : i32
    %c0_i32_1 = arith.constant 0 : i32
    %c0_i32_2 = arith.constant 0 : i32
    return %c0_i32, %c0_i32_0, %c0_i32_1 : i32, i32, i32
  }
  func.func @transform_7(%arg0: i32) -> (i32, i32, i32) {
    %c0_i32 = arith.constant 0 : i32
    %c0_i32_0 = arith.constant 0 : i32
    %c0_i32_1 = arith.constant 0 : i32
    %c0_i32_2 = arith.constant 0 : i32
    return %c0_i32, %c0_i32_0, %c0_i32_1 : i32, i32, i32
  }
  func.func @transform_8(%arg0: i32) -> (i32, i32) {
    %c0_i32 = arith.constant 0 : i32
    %c0_i32_0 = arith.constant 0 : i32
    %c0_i32_1 = arith.constant 0 : i32
    return %c0_i32, %c0_i32_0 : i32, i32
  }
  func.func @transform_9(%arg0: i32) -> (i32, i32) {
    %c0_i32 = arith.constant 0 : i32
    %c0_i32_0 = arith.constant 0 : i32
    %c0_i32_1 = arith.constant 0 : i32
    return %c0_i32, %c0_i32_0 : i32, i32
  }
  func.func @transform_10(%arg0: i32) -> (i32, i32) {
    %c0_i32 = arith.constant 0 : i32
    %c0_i32_0 = arith.constant 0 : i32
    %c0_i32_1 = arith.constant 0 : i32
    return %c0_i32, %c0_i32_0 : i32, i32
  }
  func.func @transform_11(%arg0: i32) -> (i32, i32) {
    %c0_i32 = arith.constant 0 : i32
    %c0_i32_0 = arith.constant 0 : i32
    %c0_i32_1 = arith.constant 0 : i32
    return %c0_i32, %c0_i32_0 : i32, i32
  }
  func.func @transform_12(%arg0: i32) -> (i32, i32) {
    %c0_i32 = arith.constant 0 : i32
    %c0_i32_0 = arith.constant 0 : i32
    %c0_i32_1 = arith.constant 0 : i32
    return %c0_i32, %c0_i32_0 : i32, i32
  }
  func.func @transform_13(%arg0: i32) -> (i32, i32) {
    %c0_i32 = arith.constant 0 : i32
    %c0_i32_0 = arith.constant 0 : i32
    %c0_i32_1 = arith.constant 0 : i32
    return %c0_i32, %c0_i32_0 : i32, i32
  }
  func.func @transform_14(%arg0: i32) -> (i32, i32) {
    %c0_i32 = arith.constant 0 : i32
    %c0_i32_0 = arith.constant 0 : i32
    %c0_i32_1 = arith.constant 0 : i32
    return %c0_i32, %c0_i32_0 : i32, i32
  }
  func.func @transform_15(%arg0: i32) -> (i32, i32) {
    %c0_i32 = arith.constant 0 : i32
    %c0_i32_0 = arith.constant 0 : i32
    %c0_i32_1 = arith.constant 0 : i32
    return %c0_i32, %c0_i32_0 : i32, i32
  }
  func.func @transform_16(%arg0: i32) -> (i32, i32) {
    %c0_i32 = arith.constant 0 : i32
    %c0_i32_0 = arith.constant 0 : i32
    %c0_i32_1 = arith.constant 0 : i32
    return %c0_i32, %c0_i32_0 : i32, i32
  }
}

</mosaic_0001>

<llo_original>
// kernel: model_forward.1
$region0: #{model_forward.1}
  #allocation0 [shape = 'u32[]', space=smem, size = 0x4, offset = 0x4, fixed_abs, tag = 'smem constant byte address 0x4 - core index']
  #allocation1 [shape = 'u32[72,128]{1,0:T(1,128)}', space=vmem, size = 0x9000, scoped, tag = 'internal scratch']
  %s0 = inlined_call_operand.vmem [shape: f32[2,9,50], index: 0, kind: input, shape index: {}]
  %s1 = inlined_call_operand.hbm [shape: f32[2,60], index: 1, kind: input, shape index: {}]
  %s2 = inlined_call_operand.vmem [shape: f32[2,50,50], index: 2, kind: input, shape index: {}]
  %s3 = inlined_call_operand.vmem [shape: f32[2,256,9], index: 3, kind: input, shape index: {}]
  %s4 = inlined_call_operand.vmem [shape: f32[1,256,1], index: 4, kind: input, shape index: {}]
  %s5 = inlined_call_operand.vmem [shape: f32[2,9,256], index: 5, kind: input, shape index: {}]
  %s6 = inlined_call_operand.vmem [shape: f32[1,9,1], index: 6, kind: input, shape index: {}]
  %s7 = inlined_call_operand.hbm [shape: bf16[9,50,1024], index: 7, kind: input, shape index: {}]
  %s8 = inlined_call_operand.hbm [shape: f32[1,1024], index: 8, kind: input, shape index: {}]
  %s9 = inlined_call_operand.hbm [shape: bf16[1024,1024], index: 9, kind: input, shape index: {}]
  %s10 = inlined_call_operand.hbm [shape: f32[1,1024], index: 10, kind: input, shape index: {}]
  %s11 = inlined_call_operand.hbm [shape: f32[60,60], index: 11, kind: input, shape index: {}]
  %s12 = inlined_call_operand.hbm [shape: f32[1,60], index: 12, kind: input, shape index: {}]
  %s13 = inlined_call_operand.vmem [shape: bf16[1024,5], index: 13, kind: input, shape index: {}]
  %s14 = inlined_call_operand.vmem [shape: f32[60,5], index: 14, kind: input, shape index: {}]
  %s15 = inlined_call_operand.hbm [shape: f32[1,5], index: 15, kind: input, shape index: {}]
  %s16 = inlined_call_operand.hbm [shape: f32[2,5], index: 16, kind: output, shape index: {}]
  %s17 = sld [smem:[#allocation0]]
  $region106: #{model_forward.1} parent=0
    _
  %s19 = ssub.s32 1, %s17
  %s20 = scalar_select 0, %s19, %s17
  $region1: #{model_forward.1} parent=0
    #allocation2 [shape = 'u8[1024]{0}', space=vmem, size = 0x400, scoped, tag = 'input window, operand 1, single buffered']
    #allocation3 [shape = 's32[1]{0}', space=sflag, size = 0x4, scoped, tag = 'scoped memory for model_forward.1']
    #allocation4 [shape = 's32[1]{0}', space=sflag, size = 0x4, scoped, tag = 'scoped memory for model_forward.1']
    #allocation5 [shape = 'u8[1032192]{0}', space=vmem, size = 0xfc000, scoped, tag = 'input window, operand 7, single buffered']
    #allocation6 [shape = 's32[1]{0}', space=sflag, size = 0x4, scoped, tag = 'scoped memory for model_forward.1']
    #allocation7 [shape = 'u8[4096]{0}', space=vmem, size = 0x1000, scoped, tag = 'input window, operand 8, single buffered']
    #allocation8 [shape = 'u8[2097152]{0}', space=vmem, size = 0x200000, scoped, tag = 'input window, operand 9, single buffered']
    #allocation9 [shape = 's32[1]{0}', space=sflag, size = 0x4, scoped, tag = 'scoped memory for model_forward.1']
    #allocation10 [shape = 'u8[4096]{0}', space=vmem, size = 0x1000, scoped, tag = 'input window, operand 10, single buffered']
    #allocation11 [shape = 'u8[32768]{0}', space=vmem, size = 0x8000, scoped, tag = 'input window, operand 11, single buffered']
    #allocation12 [shape = 's32[1]{0}', space=sflag, size = 0x4, scoped, tag = 'scoped memory for model_forward.1']
    #allocation13 [shape = 'u8[512]{0}', space=vmem, size = 0x400, scoped, tag = 'input window, operand 12, single buffered']
    #allocation14 [shape = 'u8[512]{0}', space=vmem, size = 0x400, scoped, tag = 'input window, operand 15, single buffered']
    #allocation15 [shape = 's32[1]{0}', space=sflag, size = 0x4, scoped, tag = 'scoped memory for model_forward.1']
    #allocation16 [shape = 'u8[1024]{0}', space=vmem, size = 0x400, scoped, tag = 'output window, operand 0, single buffered']
    %21 = vsyncpa [#allocation3], 0
    %22 = vsyncpa [#allocation6], 0
    %23 = vsyncpa [#allocation9], 0
    %24 = vsyncpa [#allocation12], 0
    %25 = vsyncpa [#allocation15], 0
    %26 = vsyncpa [#allocation4], 0
    // Predicated region
    $region2: #{model_forward.1} parent=1 // pred_check
      _
    $region3: #{model_forward.1} parent=1 // pred_check_branch
      %28 = sbr.rel (0) target = $region5
    $region4: #{model_forward.1} parent=1 // pred_region
      _
    $region5: #{model_forward.1} parent=1 // pred_fallthru
      _
    // Predicated region
    $region6: #{model_forward.1} parent=1 // pred_check
      _
    $region7: #{model_forward.1} parent=1 // pred_check_branch
      %30 = sbr.rel (0) target = $region9
    $region8: #{model_forward.1} parent=1 // pred_region
      %32 = vsyncadd [#allocation3], 0
      %s34 = sshll.u32 %s1, 4
      %s35 = int_to_ptr.hbm [resolvable:$true] %s34
      %s36 = sshll.u32 [#allocation2], 4
      %s37 = int_to_ptr.vmem [resolvable:$true] %s36
      %39 = dma.hbm_to_vmem [thread:$0]  %s35, 32, %s37, [#allocation3]
    $region9: #{model_forward.1} parent=1 // pred_fallthru
      _
    // Predicated region
    $region10: #{model_forward.1} parent=1 // pred_check
      _
    $region11: #{model_forward.1} parent=1 // pred_check_branch
      %41 = sbr.rel (0) target = $region13
    $region12: #{model_forward.1} parent=1 // pred_region
      _
    $region13: #{model_forward.1} parent=1 // pred_fallthru
      _
    // Predicated region
    $region14: #{model_forward.1} parent=1 // pred_check
      _
    $region15: #{model_forward.1} parent=1 // pred_check_branch
      %43 = sbr.rel (0) target = $region17
    $region16: #{model_forward.1} parent=1 // pred_region
      _
    $region17: #{model_forward.1} parent=1 // pred_fallthru
      _
    // Predicated region
    $region18: #{model_forward.1} parent=1 // pred_check
      _
    $region19: #{model_forward.1} parent=1 // pred_check_branch
      %45 = sbr.rel (0) target = $region21
    $region20: #{model_forward.1} parent=1 // pred_region
      _
    $region21: #{model_forward.1} parent=1 // pred_fallthru
      _
    // Predicated region
    $region22: #{model_forward.1} parent=1 // pred_check
      _
    $region23: #{model_forward.1} parent=1 // pred_check_branch
      %47 = sbr.rel (0) target = $region25
    $region24: #{model_forward.1} parent=1 // pred_region
      _
    $region25: #{model_forward.1} parent=1 // pred_fallthru
      _
    // Predicated region
    $region26: #{model_forward.1} parent=1 // pred_check
      _
    $region27: #{model_forward.1} parent=1 // pred_check_branch
      %49 = sbr.rel (0) target = $region29
    $region28: #{model_forward.1} parent=1 // pred_region
      _
    $region29: #{model_forward.1} parent=1 // pred_fallthru
      _
    // Predicated region
    $region30: #{model_forward.1} parent=1 // pred_check
      _
    $region31: #{model_forward.1} parent=1 // pred_check_branch
      %51 = sbr.rel (0) target = $region33
    $region32: #{model_forward.1} parent=1 // pred_region
      %53 = vsyncadd [#allocation6], 0
      %s54 = sshll.u32 %s7, 4
      %s55 = int_to_ptr.hbm [resolvable:$true] %s54
      %s56 = sshll.u32 [#allocation5], 4
      %s57 = int_to_ptr.vmem [resolvable:$true] %s56
      %62 = dma.hbm_to_vmem [thread:$0]  %s55, 32256, %s57, [#allocation6], 512, 512, 32
    $region33: #{model_forward.1} parent=1 // pred_fallthru
      _
    // Predicated region
    $region34: #{model_forward.1} parent=1 // pred_check
      _
    $region35: #{model_forward.1} parent=1 // pred_check_branch
      %64 = sbr.rel (0) target = $region37
    $region36: #{model_forward.1} parent=1 // pred_region
      %66 = vsyncadd [#allocation6], 0
      %s68 = sshll.u32 %s8, 4
      %s69 = int_to_ptr.hbm [resolvable:$true] %s68
      %s70 = sshll.u32 [#allocation7], 4
      %s71 = int_to_ptr.vmem [resolvable:$true] %s70
      %73 = dma.hbm_to_vmem [thread:$0]  %s69, 128, %s71, [#allocation6]
    $region37: #{model_forward.1} parent=1 // pred_fallthru
      _
    // Predicated region
    $region38: #{model_forward.1} parent=1 // pred_check
      _
    $region39: #{model_forward.1} parent=1 // pred_check_branch
      %75 = sbr.rel (0) target = $region41
    $region40: #{model_forward.1} parent=1 // pred_region
      %77 = vsyncadd [#allocation9], 0
      %s78 = sshll.u32 %s9, 4
      %s79 = int_to_ptr.hbm [resolvable:$true] %s78
      %s80 = sshll.u32 [#allocation8], 4
      %s81 = int_to_ptr.vmem [resolvable:$true] %s80
      %86 = dma.hbm_to_vmem [thread:$0]  %s79, 65536, %s81, [#allocation9], 512, 512, 32
    $region41: #{model_forward.1} parent=1 // pred_fallthru
      _
    // Predicated region
    $region42: #{model_forward.1} parent=1 // pred_check
      _
    $region43: #{model_forward.1} parent=1 // pred_check_branch
      %88 = sbr.rel (0) target = $region45
    $region44: #{model_forward.1} parent=1 // pred_region
      %90 = vsyncadd [#allocation9], 0
      %s92 = sshll.u32 %s10, 4
      %s93 = int_to_ptr.hbm [resolvable:$true] %s92
      %s94 = sshll.u32 [#allocation10], 4
      %s95 = int_to_ptr.vmem [resolvable:$true] %s94
      %97 = dma.hbm_to_vmem [thread:$0]  %s93, 128, %s95, [#allocation9]
    $region45: #{model_forward.1} parent=1 // pred_fallthru
      _
    // Predicated region
    $region46: #{model_forward.1} parent=1 // pred_check
      _
    $region47: #{model_forward.1} parent=1 // pred_check_branch
      %99 = sbr.rel (0) target = $region49
    $region48: #{model_forward.1} parent=1 // pred_region
      %101 = vsyncadd [#allocation12], 0
      %s102 = sshll.u32 %s11, 4
      %s103 = int_to_ptr.hbm [resolvable:$true] %s102
      %s104 = sshll.u32 [#allocation11], 4
      %s105 = int_to_ptr.vmem [resolvable:$true] %s104
      %110 = dma.hbm_to_vmem [thread:$0]  %s103, 1024, %s105, [#allocation12], 128, 128, 8
    $region49: #{model_forward.1} parent=1 // pred_fallthru
      _
    // Predicated region
    $region50: #{model_forward.1} parent=1 // pred_check
      _
    $region51: #{model_forward.1} parent=1 // pred_check_branch
      %112 = sbr.rel (0) target = $region53
    $region52: #{model_forward.1} parent=1 // pred_region
      %114 = vsyncadd [#allocation12], 0
      %s116 = sshll.u32 %s12, 4
      %s117 = int_to_ptr.hbm [resolvable:$true] %s116
      %s118 = sshll.u32 [#allocation13], 4
      %s119 = int_to_ptr.vmem [resolvable:$true] %s118
      %121 = dma.hbm_to_vmem [thread:$0]  %s117, 16, %s119, [#allocation12]
    $region53: #{model_forward.1} parent=1 // pred_fallthru
      _
    // Predicated region
    $region54: #{model_forward.1} parent=1 // pred_check
      _
    $region55: #{model_forward.1} parent=1 // pred_check_branch
      %123 = sbr.rel (0) target = $region57
    $region56: #{model_forward.1} parent=1 // pred_region
      _
    $region57: #{model_forward.1} parent=1 // pred_fallthru
      _
    // Predicated region
    $region58: #{model_forward.1} parent=1 // pred_check
      _
    $region59: #{model_forward.1} parent=1 // pred_check_branch
      %125 = sbr.rel (0) target = $region61
    $region60: #{model_forward.1} parent=1 // pred_region
      _
    $region61: #{model_forward.1} parent=1 // pred_fallthru
      _
    // Predicated region
    $region62: #{model_forward.1} parent=1 // pred_check
      _
    $region63: #{model_forward.1} parent=1 // pred_check_branch
      %127 = sbr.rel (0) target = $region65
    $region64: #{model_forward.1} parent=1 // pred_region
      %129 = vsyncadd [#allocation15], 0
      %s131 = sshll.u32 %s15, 4
      %s132 = int_to_ptr.hbm [resolvable:$true] %s131
      %s133 = sshll.u32 [#allocation14], 4
      %s134 = int_to_ptr.vmem [resolvable:$true] %s133
      %136 = dma.hbm_to_vmem [thread:$0]  %s132, 16, %s134, [#allocation15]
    $region65: #{model_forward.1} parent=1 // pred_fallthru
      _
    // Predicated region
    $region66: #{model_forward.1} parent=1 // pred_check
      _
    $region67: #{model_forward.1} parent=1 // pred_check_branch
      %138 = sbr.rel (0) target = $region69
    $region68: #{model_forward.1} parent=1 // pred_region
      %140 = dma.done [#allocation3], 32
    $region69: #{model_forward.1} parent=1 // pred_fallthru
      _
    // Predicated region
    $region70: #{model_forward.1} parent=1 // pred_check
      _
    $region71: #{model_forward.1} parent=1 // pred_check_branch
      %142 = sbr.rel (0) target = $region73
    $region72: #{model_forward.1} parent=1 // pred_region
      %144 = dma.done [#allocation6], 32256
    $region73: #{model_forward.1} parent=1 // pred_fallthru
      _
    // Predicated region
    $region74: #{model_forward.1} parent=1 // pred_check
      _
    $region75: #{model_forward.1} parent=1 // pred_check_branch
      %146 = sbr.rel (0) target = $region77
    $region76: #{model_forward.1} parent=1 // pred_region
      %148 = dma.done [#allocation6], 128
    $region77: #{model_forward.1} parent=1 // pred_fallthru
      _
    // Predicated region
    $region78: #{model_forward.1} parent=1 // pred_check
      _
    $region79: #{model_forward.1} parent=1 // pred_check_branch
      %150 = sbr.rel (0) target = $region81
    $region80: #{model_forward.1} parent=1 // pred_region
      %152 = dma.done [#allocation9], 65536
    $region81: #{model_forward.1} parent=1 // pred_fallthru
      _
    // Predicated region
    $region82: #{model_forward.1} parent=1 // pred_check
      _
    $region83: #{model_forward.1} parent=1 // pred_check_branch
      %154 = sbr.rel (0) target = $region85
    $region84: #{model_forward.1} parent=1 // pred_region
      %156 = dma.done [#allocation9], 128
    $region85: #{model_forward.1} parent=1 // pred_fallthru
      _
    // Predicated region
    $region86: #{model_forward.1} parent=1 // pred_check
      _
    $region87: #{model_forward.1} parent=1 // pred_check_branch
      %158 = sbr.rel (0) target = $region89
    $region88: #{model_forward.1} parent=1 // pred_region
      %160 = dma.done [#allocation12], 1024
    $region89: #{model_forward.1} parent=1 // pred_fallthru
      _
    // Predicated region
    $region90: #{model_forward.1} parent=1 // pred_check
      _
    $region91: #{model_forward.1} parent=1 // pred_check_branch
      %162 = sbr.rel (0) target = $region93
    $region92: #{model_forward.1} parent=1 // pred_region
      %164 = dma.done [#allocation12], 16
    $region93: #{model_forward.1} parent=1 // pred_fallthru
      _
    // Predicated region
    $region94: #{model_forward.1} parent=1 // pred_check
      _
    $region95: #{model_forward.1} parent=1 // pred_check_branch
      %166 = sbr.rel (0) target = $region97
    $region96: #{model_forward.1} parent=1 // pred_region
      %168 = dma.done [#allocation15], 16
    $region97: #{model_forward.1} parent=1 // pred_fallthru
      _
    %v170 = vld [vmem:[%s2] sm:$0xff]
    %v171 = vld [vmem:[%s2 + $0x8] sm:$0xff]
    %v172 = vld [vmem:[%s2 + $0x10] sm:$0xff]
    %v173 = vld [vmem:[%s2 + $0x18] sm:$0xff]
    %v174 = vld [vmem:[%s2 + $0x20] sm:$0xff]
    %v175 = vld [vmem:[%s2 + $0x28] sm:$0xff]
    %v176 = vld [vmem:[%s2 + $0x30] sm:$0x3]
    %v177 = vld [vmem:[%s2 + $0x38] sm:$0xff]
    %v178 = vld [vmem:[%s2 + $0x40] sm:$0xff]
    %v179 = vld [vmem:[%s2 + $0x48] sm:$0xff]
    %v180 = vld [vmem:[%s2 + $0x50] sm:$0xff]
    %v181 = vld [vmem:[%s2 + $0x58] sm:$0xff]
    %v182 = vld [vmem:[%s2 + $0x60] sm:$0xff]
    %v183 = vld [vmem:[%s2 + $0x68] sm:$0x3]
    %v184 = vld [vmem:[%s0] sm:$0xff]
    %v185 = vld [vmem:[%s0 + $0x8] sm:$0x1]
    %v186 = vld [vmem:[%s0 + $0x10] sm:$0xff]
    %v187 = vld [vmem:[%s0 + $0x18] sm:$0x1]
    %vm188 = vcmask 408576
    %v190 = vsel %vm188, %v184, 0
    %v193 = vsel %vm188, %v185, 0
    %v196 = vsel %vm188, %v170, 0
    %v199 = vsel %vm188, %v171, 0
    %v202 = vsel %vm188, %v172, 0
    %v205 = vsel %vm188, %v173, 0
    %v208 = vsel %vm188, %v174, 0
    %v211 = vsel %vm188, %v175, 0
    %v214 = vsel %vm188, %v176, 0
    %216 = vmatpush.xpose.msra.mxu0 0.0
    %217 = vmatpush.xpose.msra.mxu0 0.0
    %218 = vmatpush.xpose.msra.mxu0 0.0
    %219 = vmatpush.xpose.msra.mxu0 0.0
    %220 = vmatpush.xpose.msra.mxu0 0.0
    %221 = vmatpush.xpose.msra.mxu0 0.0
    %222 = vmatpush.xpose.msra.mxu0 0.0
    %223 = vmatpush.xpose.msra.mxu0 0.0
    %224 = vmatpush.xpose.msra.mxu0 0.0
    %225 = vmatpush.xpose.msra.mxu0 %v214
    %226 = vmatpush.xpose.msra.mxu0 %v211
    %227 = vmatpush.xpose.msra.mxu0 %v208
    %228 = vmatpush.xpose.msra.mxu0 %v205
    %229 = vmatpush.xpose.msra.mxu0 %v202
    %230 = vmatpush.xpose.msra.mxu0 %v199
    %231 = vmatpush.xpose.msra.mxu0 %v196
    %232 = vmatmul.f32.gmra.mxu0 %v190
    %v233 = vpop.f32.mrf.mxu0
    %v234 = vadd.f32 0.0, %v233
    %235 = vmatmul.f32.gmra.mxu0 %v193
    %v236 = vpop.f32.mrf.mxu0
    %v237 = vadd.f32 0.0, %v236
    %238 = vdwg.mxu0
    %v240 = vsel %vm188, %v186, 0
    %v243 = vsel %vm188, %v187, 0
    %v246 = vsel %vm188, %v177, 0
    %v249 = vsel %vm188, %v178, 0
    %v252 = vsel %vm188, %v179, 0
    %v255 = vsel %vm188, %v180, 0
    %v258 = vsel %vm188, %v181, 0
    %v261 = vsel %vm188, %v182, 0
    %v264 = vsel %vm188, %v183, 0
    %266 = vmatpush.xpose.msra.mxu0 0.0
    %267 = vmatpush.xpose.msra.mxu0 0.0
    %268 = vmatpush.xpose.msra.mxu0 0.0
    %269 = vmatpush.xpose.msra.mxu0 0.0
    %270 = vmatpush.xpose.msra.mxu0 0.0
    %271 = vmatpush.xpose.msra.mxu0 0.0
    %272 = vmatpush.xpose.msra.mxu0 0.0
    %273 = vmatpush.xpose.msra.mxu0 0.0
    %274 = vmatpush.xpose.msra.mxu0 0.0
    %275 = vmatpush.xpose.msra.mxu0 %v264
    %276 = vmatpush.xpose.msra.mxu0 %v261
    %277 = vmatpush.xpose.msra.mxu0 %v258
    %278 = vmatpush.xpose.msra.mxu0 %v255
    %279 = vmatpush.xpose.msra.mxu0 %v252
    %280 = vmatpush.xpose.msra.mxu0 %v249
    %281 = vmatpush.xpose.msra.mxu0 %v246
    %282 = vmatmul.f32.gmra.mxu0 %v240
    %v283 = vpop.f32.mrf.mxu0
    %v284 = vadd.f32 0.0, %v283
    %285 = vmatmul.f32.gmra.mxu0 %v243
    %v286 = vpop.f32.mrf.mxu0
    %v287 = vadd.f32 0.0, %v286
    %288 = vdwg.mxu0
    %v289 = vld [vmem:[%s3] sm:$0xff]
    %v290 = vld [vmem:[%s3 + $0x8] sm:$0xff]
    %v291 = vld [vmem:[%s3 + $0x10] sm:$0xff]
    %v292 = vld [vmem:[%s3 + $0x18] sm:$0xff]
    %v293 = vld [vmem:[%s3 + $0x20] sm:$0xff]
    %v294 = vld [vmem:[%s3 + $0x28] sm:$0xff]
    %v295 = vld [vmem:[%s3 + $0x30] sm:$0xff]
    %v296 = vld [vmem:[%s3 + $0x38] sm:$0xff]
    %v297 = vld [vmem:[%s3 + $0x40] sm:$0xff]
    %v298 = vld [vmem:[%s3 + $0x48] sm:$0xff]
    %v299 = vld [vmem:[%s3 + $0x50] sm:$0xff]
    %v300 = vld [vmem:[%s3 + $0x58] sm:$0xff]
    %v301 = vld [vmem:[%s3 + $0x60] sm:$0xff]
    %v302 = vld [vmem:[%s3 + $0x68] sm:$0xff]
    %v303 = vld [vmem:[%s3 + $0x70] sm:$0xff]
    %v304 = vld [vmem:[%s3 + $0x78] sm:$0xff]
    %v305 = vld [vmem:[%s3 + $0x80] sm:$0xff]
    %v306 = vld [vmem:[%s3 + $0x88] sm:$0xff]
    %v307 = vld [vmem:[%s3 + $0x90] sm:$0xff]
    %v308 = vld [vmem:[%s3 + $0x98] sm:$0xff]
    %v309 = vld [vmem:[%s3 + $0xa0] sm:$0xff]
    %v310 = vld [vmem:[%s3 + $0xa8] sm:$0xff]
    %v311 = vld [vmem:[%s3 + $0xb0] sm:$0xff]
    %v312 = vld [vmem:[%s3 + $0xb8] sm:$0xff]
    %v313 = vld [vmem:[%s3 + $0xc0] sm:$0xff]
    %v314 = vld [vmem:[%s3 + $0xc8] sm:$0xff]
    %v315 = vld [vmem:[%s3 + $0xd0] sm:$0xff]
    %v316 = vld [vmem:[%s3 + $0xd8] sm:$0xff]
    %v317 = vld [vmem:[%s3 + $0xe0] sm:$0xff]
    %v318 = vld [vmem:[%s3 + $0xe8] sm:$0xff]
    %v319 = vld [vmem:[%s3 + $0xf0] sm:$0xff]
    %v320 = vld [vmem:[%s3 + $0xf8] sm:$0xff]
    %v321 = vld [vmem:[%s3 + $0x100] sm:$0xff]
    %v322 = vld [vmem:[%s3 + $0x108] sm:$0xff]
    %v323 = vld [vmem:[%s3 + $0x110] sm:$0xff]
    %v324 = vld [vmem:[%s3 + $0x118] sm:$0xff]
    %v325 = vld [vmem:[%s3 + $0x120] sm:$0xff]
    %v326 = vld [vmem:[%s3 + $0x128] sm:$0xff]
    %v327 = vld [vmem:[%s3 + $0x130] sm:$0xff]
    %v328 = vld [vmem:[%s3 + $0x138] sm:$0xff]
    %v329 = vld [vmem:[%s3 + $0x140] sm:$0xff]
    %v330 = vld [vmem:[%s3 + $0x148] sm:$0xff]
    %v331 = vld [vmem:[%s3 + $0x150] sm:$0xff]
    %v332 = vld [vmem:[%s3 + $0x158] sm:$0xff]
    %v333 = vld [vmem:[%s3 + $0x160] sm:$0xff]
    %v334 = vld [vmem:[%s3 + $0x168] sm:$0xff]
    %v335 = vld [vmem:[%s3 + $0x170] sm:$0xff]
    %v336 = vld [vmem:[%s3 + $0x178] sm:$0xff]
    %v337 = vld [vmem:[%s3 + $0x180] sm:$0xff]
    %v338 = vld [vmem:[%s3 + $0x188] sm:$0xff]
    %v339 = vld [vmem:[%s3 + $0x190] sm:$0xff]
    %v340 = vld [vmem:[%s3 + $0x198] sm:$0xff]
    %v341 = vld [vmem:[%s3 + $0x1a0] sm:$0xff]
    %v342 = vld [vmem:[%s3 + $0x1a8] sm:$0xff]
    %v343 = vld [vmem:[%s3 + $0x1b0] sm:$0xff]
    %v344 = vld [vmem:[%s3 + $0x1b8] sm:$0xff]
    %v345 = vld [vmem:[%s3 + $0x1c0] sm:$0xff]
    %v346 = vld [vmem:[%s3 + $0x1c8] sm:$0xff]
    %v347 = vld [vmem:[%s3 + $0x1d0] sm:$0xff]
    %v348 = vld [vmem:[%s3 + $0x1d8] sm:$0xff]
    %v349 = vld [vmem:[%s3 + $0x1e0] sm:$0xff]
    %v350 = vld [vmem:[%s3 + $0x1e8] sm:$0xff]
    %v351 = vld [vmem:[%s3 + $0x1f0] sm:$0xff]
    %v352 = vld [vmem:[%s3 + $0x1f8] sm:$0xff]
    %v353 = vld [vmem:[%s4] sm:$0xff]
    %v354 = vld [vmem:[%s4 + $0x8] sm:$0xff]
    %v355 = vld [vmem:[%s4 + $0x10] sm:$0xff]
    %v356 = vld [vmem:[%s4 + $0x18] sm:$0xff]
    %v357 = vld [vmem:[%s4 + $0x20] sm:$0xff]
    %v358 = vld [vmem:[%s4 + $0x28] sm:$0xff]
    %v359 = vld [vmem:[%s4 + $0x30] sm:$0xff]
    %v360 = vld [vmem:[%s4 + $0x38] sm:$0xff]
    %v361 = vld [vmem:[%s4 + $0x40] sm:$0xff]
    %v362 = vld [vmem:[%s4 + $0x48] sm:$0xff]
    %v363 = vld [vmem:[%s4 + $0x50] sm:$0xff]
    %v364 = vld [vmem:[%s4 + $0x58] sm:$0xff]
    %v365 = vld [vmem:[%s4 + $0x60] sm:$0xff]
    %v366 = vld [vmem:[%s4 + $0x68] sm:$0xff]
    %v367 = vld [vmem:[%s4 + $0x70] sm:$0xff]
    %v368 = vld [vmem:[%s4 + $0x78] sm:$0xff]
    %v369 = vld [vmem:[%s4 + $0x80] sm:$0xff]
    %v370 = vld [vmem:[%s4 + $0x88] sm:$0xff]
    %v371 = vld [vmem:[%s4 + $0x90] sm:$0xff]
    %v372 = vld [vmem:[%s4 + $0x98] sm:$0xff]
    %v373 = vld [vmem:[%s4 + $0xa0] sm:$0xff]
    %v374 = vld [vmem:[%s4 + $0xa8] sm:$0xff]
    %v375 = vld [vmem:[%s4 + $0xb0] sm:$0xff]
    %v376 = vld [vmem:[%s4 + $0xb8] sm:$0xff]
    %v377 = vld [vmem:[%s4 + $0xc0] sm:$0xff]
    %v378 = vld [vmem:[%s4 + $0xc8] sm:$0xff]
    %v379 = vld [vmem:[%s4 + $0xd0] sm:$0xff]
    %v380 = vld [vmem:[%s4 + $0xd8] sm:$0xff]
    %v381 = vld [vmem:[%s4 + $0xe0] sm:$0xff]
    %v382 = vld [vmem:[%s4 + $0xe8] sm:$0xff]
    %v383 = vld [vmem:[%s4 + $0xf0] sm:$0xff]
    %v384 = vld [vmem:[%s4 + $0xf8] sm:$0xff]
    %386 = vset.pattern.permute.xlu0 0
    %387 = vperm.xlu0 %386, %v353
    %v388 = vpop.permute.xlu0 %387
    %391 = vset.pattern.permute.xlu0 0
    %392 = vperm.xlu0 %391, %v354
    %v393 = vpop.permute.xlu0 %392
    %396 = vset.pattern.permute.xlu0 0
    %397 = vperm.xlu0 %396, %v355
    %v398 = vpop.permute.xlu0 %397
    %401 = vset.pattern.permute.xlu0 0
    %402 = vperm.xlu0 %401, %v356
    %v403 = vpop.permute.xlu0 %402
    %406 = vset.pattern.permute.xlu0 0
    %407 = vperm.xlu0 %406, %v357
    %v408 = vpop.permute.xlu0 %407
    %411 = vset.pattern.permute.xlu0 0
    %412 = vperm.xlu0 %411, %v358
    %v413 = vpop.permute.xlu0 %412
    %416 = vset.pattern.permute.xlu0 0
    %417 = vperm.xlu0 %416, %v359
    %v418 = vpop.permute.xlu0 %417
    %421 = vset.pattern.permute.xlu0 0
    %422 = vperm.xlu0 %421, %v360
    %v423 = vpop.permute.xlu0 %422
    %426 = vset.pattern.permute.xlu0 0
    %427 = vperm.xlu0 %426, %v361
    %v428 = vpop.permute.xlu0 %427
    %431 = vset.pattern.permute.xlu0 0
    %432 = vperm.xlu0 %431, %v362
    %v433 = vpop.permute.xlu0 %432
    %436 = vset.pattern.permute.xlu0 0
    %437 = vperm.xlu0 %436, %v363
    %v438 = vpop.permute.xlu0 %437
    %441 = vset.pattern.permute.xlu0 0
    %442 = vperm.xlu0 %441, %v364
    %v443 = vpop.permute.xlu0 %442
    %446 = vset.pattern.permute.xlu0 0
    %447 = vperm.xlu0 %446, %v365
    %v448 = vpop.permute.xlu0 %447
    %451 = vset.pattern.permute.xlu0 0
    %452 = vperm.xlu0 %451, %v366
    %v453 = vpop.permute.xlu0 %452
    %456 = vset.pattern.permute.xlu0 0
    %457 = vperm.xlu0 %456, %v367
    %v458 = vpop.permute.xlu0 %457
    %461 = vset.pattern.permute.xlu0 0
    %462 = vperm.xlu0 %461, %v368
    %v463 = vpop.permute.xlu0 %462
    %466 = vset.pattern.permute.xlu0 0
    %467 = vperm.xlu0 %466, %v369
    %v468 = vpop.permute.xlu0 %467
    %471 = vset.pattern.permute.xlu0 0
    %472 = vperm.xlu0 %471, %v370
    %v473 = vpop.permute.xlu0 %472
    %476 = vset.pattern.permute.xlu0 0
    %477 = vperm.xlu0 %476, %v371
    %v478 = vpop.permute.xlu0 %477
    %481 = vset.pattern.permute.xlu0 0
    %482 = vperm.xlu0 %481, %v372
    %v483 = vpop.permute.xlu0 %482
    %486 = vset.pattern.permute.xlu0 0
    %487 = vperm.xlu0 %486, %v373
    %v488 = vpop.permute.xlu0 %487
    %491 = vset.pattern.permute.xlu0 0
    %492 = vperm.xlu0 %491, %v374
    %v493 = vpop.permute.xlu0 %492
    %496 = vset.pattern.permute.xlu0 0
    %497 = vperm.xlu0 %496, %v375
    %v498 = vpop.permute.xlu0 %497
    %501 = vset.pattern.permute.xlu0 0
    %502 = vperm.xlu0 %501, %v376
    %v503 = vpop.permute.xlu0 %502
    %506 = vset.pattern.permute.xlu0 0
    %507 = vperm.xlu0 %506, %v377
    %v508 = vpop.permute.xlu0 %507
    %511 = vset.pattern.permute.xlu0 0
    %512 = vperm.xlu0 %511, %v378
    %v513 = vpop.permute.xlu0 %512
    %516 = vset.pattern.permute.xlu0 0
    %517 = vperm.xlu0 %516, %v379
    %v518 = vpop.permute.xlu0 %517
    %521 = vset.pattern.permute.xlu0 0
    %522 = vperm.xlu0 %521, %v380
    %v523 = vpop.permute.xlu0 %522
    %526 = vset.pattern.permute.xlu0 0
    %527 = vperm.xlu0 %526, %v381
    %v528 = vpop.permute.xlu0 %527
    %531 = vset.pattern.permute.xlu0 0
    %532 = vperm.xlu0 %531, %v382
    %v533 = vpop.permute.xlu0 %532
    %536 = vset.pattern.permute.xlu0 0
    %537 = vperm.xlu0 %536, %v383
    %v538 = vpop.permute.xlu0 %537
    %541 = vset.pattern.permute.xlu0 0
    %542 = vperm.xlu0 %541, %v384
    %v543 = vpop.permute.xlu0 %542
    %vm545 = vcmask 72704
    %v547 = vsel %vm545, %v289, 0
    %v550 = vsel %vm545, %v290, 0
    %v553 = vsel %vm545, %v291, 0
    %v556 = vsel %vm545, %v292, 0
    %v559 = vsel %vm545, %v293, 0
    %v562 = vsel %vm545, %v294, 0
    %v565 = vsel %vm545, %v295, 0
    %v568 = vsel %vm545, %v296, 0
    %v571 = vsel %vm545, %v297, 0
    %v574 = vsel %vm545, %v298, 0
    %v577 = vsel %vm545, %v299, 0
    %v580 = vsel %vm545, %v300, 0
    %v583 = vsel %vm545, %v301, 0
    %v586 = vsel %vm545, %v302, 0
    %v589 = vsel %vm545, %v303, 0
    %v592 = vsel %vm545, %v304, 0
    %v595 = vsel %vm545, %v305, 0
    %v598 = vsel %vm545, %v306, 0
    %v601 = vsel %vm545, %v307, 0
    %v604 = vsel %vm545, %v308, 0
    %v607 = vsel %vm545, %v309, 0
    %v610 = vsel %vm545, %v310, 0
    %v613 = vsel %vm545, %v311, 0
    %v616 = vsel %vm545, %v312, 0
    %v619 = vsel %vm545, %v313, 0
    %v622 = vsel %vm545, %v314, 0
    %v625 = vsel %vm545, %v315, 0
    %v628 = vsel %vm545, %v316, 0
    %v631 = vsel %vm545, %v317, 0
    %v634 = vsel %vm545, %v318, 0
    %v637 = vsel %vm545, %v319, 0
    %v640 = vsel %vm545, %v320, 0
    %vm642 = vcmask 1040384
    %v644 = vsel %vm642, %v237, 0
    %646 = vmatpush.msra.mxu0 0.0
    %647 = vmatpush.msra.mxu0 0.0
    %648 = vmatpush.msra.mxu0 0.0
    %649 = vmatpush.msra.mxu0 0.0
    %650 = vmatpush.msra.mxu0 0.0
    %651 = vmatpush.msra.mxu0 0.0
    %652 = vmatpush.msra.mxu0 0.0
    %653 = vmatpush.msra.mxu0 0.0
    %654 = vmatpush.msra.mxu0 0.0
    %655 = vmatpush.msra.mxu0 0.0
    %656 = vmatpush.msra.mxu0 0.0
    %657 = vmatpush.msra.mxu0 0.0
    %658 = vmatpush.msra.mxu0 0.0
    %659 = vmatpush.msra.mxu0 0.0
    %660 = vmatpush.msra.mxu0 %v644
    %661 = vmatpush.msra.mxu0 %v234
    %662 = vmatmul.f32.gmra.mxu0 %v547
    %v663 = vpop.f32.mrf.mxu0
    %v664 = vadd.f32 %v388, %v663
    %665 = vmatmul.f32.gmra.mxu0 %v550
    %v666 = vpop.f32.mrf.mxu0
    %v667 = vadd.f32 %v393, %v666
    %668 = vmatmul.f32.gmra.mxu0 %v553
    %v669 = vpop.f32.mrf.mxu0
    %v670 = vadd.f32 %v398, %v669
    %671 = vmatmul.f32.gmra.mxu0 %v556
    %v672 = vpop.f32.mrf.mxu0
    %v673 = vadd.f32 %v403, %v672
    %674 = vmatmul.f32.gmra.mxu0 %v559
    %v675 = vpop.f32.mrf.mxu0
    %v676 = vadd.f32 %v408, %v675
    %677 = vmatmul.f32.gmra.mxu0 %v562
    %v678 = vpop.f32.mrf.mxu0
    %v679 = vadd.f32 %v413, %v678
    %680 = vmatmul.f32.gmra.mxu0 %v565
    %v681 = vpop.f32.mrf.mxu0
    %v682 = vadd.f32 %v418, %v681
    %683 = vmatmul.f32.gmra.mxu0 %v568
    %v684 = vpop.f32.mrf.mxu0
    %v685 = vadd.f32 %v423, %v684
    %686 = vmatmul.f32.gmra.mxu0 %v571
    %v687 = vpop.f32.mrf.mxu0
    %v688 = vadd.f32 %v428, %v687
    %689 = vmatmul.f32.gmra.mxu0 %v574
    %v690 = vpop.f32.mrf.mxu0
    %v691 = vadd.f32 %v433, %v690
    %692 = vmatmul.f32.gmra.mxu0 %v577
    %v693 = vpop.f32.mrf.mxu0
    %v694 = vadd.f32 %v438, %v693
    %695 = vmatmul.f32.gmra.mxu0 %v580
    %v696 = vpop.f32.mrf.mxu0
    %v697 = vadd.f32 %v443, %v696
    %698 = vmatmul.f32.gmra.mxu0 %v583
    %v699 = vpop.f32.mrf.mxu0
    %v700 = vadd.f32 %v448, %v699
    %701 = vmatmul.f32.gmra.mxu0 %v586
    %v702 = vpop.f32.mrf.mxu0
    %v703 = vadd.f32 %v453, %v702
    %704 = vmatmul.f32.gmra.mxu0 %v589
    %v705 = vpop.f32.mrf.mxu0
    %v706 = vadd.f32 %v458, %v705
    %707 = vmatmul.f32.gmra.mxu0 %v592
    %v708 = vpop.f32.mrf.mxu0
    %v709 = vadd.f32 %v463, %v708
    %710 = vmatmul.f32.gmra.mxu0 %v595
    %v711 = vpop.f32.mrf.mxu0
    %v712 = vadd.f32 %v468, %v711
    %713 = vmatmul.f32.gmra.mxu0 %v598
    %v714 = vpop.f32.mrf.mxu0
    %v715 = vadd.f32 %v473, %v714
    %716 = vmatmul.f32.gmra.mxu0 %v601
    %v717 = vpop.f32.mrf.mxu0
    %v718 = vadd.f32 %v478, %v717
    %719 = vmatmul.f32.gmra.mxu0 %v604
    %v720 = vpop.f32.mrf.mxu0
    %v721 = vadd.f32 %v483, %v720
    %722 = vmatmul.f32.gmra.mxu0 %v607
    %v723 = vpop.f32.mrf.mxu0
    %v724 = vadd.f32 %v488, %v723
    %725 = vmatmul.f32.gmra.mxu0 %v610
    %v726 = vpop.f32.mrf.mxu0
    %v727 = vadd.f32 %v493, %v726
    %728 = vmatmul.f32.gmra.mxu0 %v613
    %v729 = vpop.f32.mrf.mxu0
    %v730 = vadd.f32 %v498, %v729
    %731 = vmatmul.f32.gmra.mxu0 %v616
    %v732 = vpop.f32.mrf.mxu0
    %v733 = vadd.f32 %v503, %v732
    %734 = vmatmul.f32.gmra.mxu0 %v619
    %v735 = vpop.f32.mrf.mxu0
    %v736 = vadd.f32 %v508, %v735
    %737 = vmatmul.f32.gmra.mxu0 %v622
    %v738 = vpop.f32.mrf.mxu0
    %v739 = vadd.f32 %v513, %v738
    %740 = vmatmul.f32.gmra.mxu0 %v625
    %v741 = vpop.f32.mrf.mxu0
    %v742 = vadd.f32 %v518, %v741
    %743 = vmatmul.f32.gmra.mxu0 %v628
    %v744 = vpop.f32.mrf.mxu0
    %v745 = vadd.f32 %v523, %v744
    %746 = vmatmul.f32.gmra.mxu0 %v631
    %v747 = vpop.f32.mrf.mxu0
    %v748 = vadd.f32 %v528, %v747
    %749 = vmatmul.f32.gmra.mxu0 %v634
    %v750 = vpop.f32.mrf.mxu0
    %v751 = vadd.f32 %v533, %v750
    %752 = vmatmul.f32.gmra.mxu0 %v637
    %v753 = vpop.f32.mrf.mxu0
    %v754 = vadd.f32 %v538, %v753
    %755 = vmatmul.f32.gmra.mxu0 %v640
    %v756 = vpop.f32.mrf.mxu0
    %v757 = vadd.f32 %v543, %v756
    %758 = vdwg.mxu0
    %v760 = vsel %vm545, %v321, 0
    %v763 = vsel %vm545, %v322, 0
    %v766 = vsel %vm545, %v323, 0
    %v769 = vsel %vm545, %v324, 0
    %v772 = vsel %vm545, %v325, 0
    %v775 = vsel %vm545, %v326, 0
    %v778 = vsel %vm545, %v327, 0
    %v781 = vsel %vm545, %v328, 0
    %v784 = vsel %vm545, %v329, 0
    %v787 = vsel %vm545, %v330, 0
    %v790 = vsel %vm545, %v331, 0
    %v793 = vsel %vm545, %v332, 0
    %v796 = vsel %vm545, %v333, 0
    %v799 = vsel %vm545, %v334, 0
    %v802 = vsel %vm545, %v335, 0
    %v805 = vsel %vm545, %v336, 0
    %v808 = vsel %vm545, %v337, 0
    %v811 = vsel %vm545, %v338, 0
    %v814 = vsel %vm545, %v339, 0
    %v817 = vsel %vm545, %v340, 0
    %v820 = vsel %vm545, %v341, 0
    %v823 = vsel %vm545, %v342, 0
    %v826 = vsel %vm545, %v343, 0
    %v829 = vsel %vm545, %v344, 0
    %v832 = vsel %vm545, %v345, 0
    %v835 = vsel %vm545, %v346, 0
    %v838 = vsel %vm545, %v347, 0
    %v841 = vsel %vm545, %v348, 0
    %v844 = vsel %vm545, %v349, 0
    %v847 = vsel %vm545, %v350, 0
    %v850 = vsel %vm545, %v351, 0
    %v853 = vsel %vm545, %v352, 0
    %v856 = vsel %vm642, %v287, 0
    %858 = vmatpush.msra.mxu0 0.0
    %859 = vmatpush.msra.mxu0 0.0
    %860 = vmatpush.msra.mxu0 0.0
    %861 = vmatpush.msra.mxu0 0.0
    %862 = vmatpush.msra.mxu0 0.0
    %863 = vmatpush.msra.mxu0 0.0
    %864 = vmatpush.msra.mxu0 0.0
    %865 = vmatpush.msra.mxu0 0.0
    %866 = vmatpush.msra.mxu0 0.0
    %867 = vmatpush.msra.mxu0 0.0
    %868 = vmatpush.msra.mxu0 0.0
    %869 = vmatpush.msra.mxu0 0.0
    %870 = vmatpush.msra.mxu0 0.0
    %871 = vmatpush.msra.mxu0 0.0
    %872 = vmatpush.msra.mxu0 %v856
    %873 = vmatpush.msra.mxu0 %v284
    %874 = vmatmul.f32.gmra.mxu0 %v760
    %v875 = vpop.f32.mrf.mxu0
    %v876 = vadd.f32 %v388, %v875
    %877 = vmatmul.f32.gmra.mxu0 %v763
    %v878 = vpop.f32.mrf.mxu0
    %v879 = vadd.f32 %v393, %v878
    %880 = vmatmul.f32.gmra.mxu0 %v766
    %v881 = vpop.f32.mrf.mxu0
    %v882 = vadd.f32 %v398, %v881
    %883 = vmatmul.f32.gmra.mxu0 %v769
    %v884 = vpop.f32.mrf.mxu0
    %v885 = vadd.f32 %v403, %v884
    %886 = vmatmul.f32.gmra.mxu0 %v772
    %v887 = vpop.f32.mrf.mxu0
    %v888 = vadd.f32 %v408, %v887
    %889 = vmatmul.f32.gmra.mxu0 %v775
    %v890 = vpop.f32.mrf.mxu0
    %v891 = vadd.f32 %v413, %v890
    %892 = vmatmul.f32.gmra.mxu0 %v778
    %v893 = vpop.f32.mrf.mxu0
    %v894 = vadd.f32 %v418, %v893
    %895 = vmatmul.f32.gmra.mxu0 %v781
    %v896 = vpop.f32.mrf.mxu0
    %v897 = vadd.f32 %v423, %v896
    %898 = vmatmul.f32.gmra.mxu0 %v784
    %v899 = vpop.f32.mrf.mxu0
    %v900 = vadd.f32 %v428, %v899
    %901 = vmatmul.f32.gmra.mxu0 %v787
    %v902 = vpop.f32.mrf.mxu0
    %v903 = vadd.f32 %v433, %v902
    %904 = vmatmul.f32.gmra.mxu0 %v790
    %v905 = vpop.f32.mrf.mxu0
    %v906 = vadd.f32 %v438, %v905
    %907 = vmatmul.f32.gmra.mxu0 %v793
    %v908 = vpop.f32.mrf.mxu0
    %v909 = vadd.f32 %v443, %v908
    %910 = vmatmul.f32.gmra.mxu0 %v796
    %v911 = vpop.f32.mrf.mxu0
    %v912 = vadd.f32 %v448, %v911
    %913 = vmatmul.f32.gmra.mxu0 %v799
    %v914 = vpop.f32.mrf.mxu0
    %v915 = vadd.f32 %v453, %v914
    %916 = vmatmul.f32.gmra.mxu0 %v802
    %v917 = vpop.f32.mrf.mxu0
    %v918 = vadd.f32 %v458, %v917
    %919 = vmatmul.f32.gmra.mxu0 %v805
    %v920 = vpop.f32.mrf.mxu0
    %v921 = vadd.f32 %v463, %v920
    %922 = vmatmul.f32.gmra.mxu0 %v808
    %v923 = vpop.f32.mrf.mxu0
    %v924 = vadd.f32 %v468, %v923
    %925 = vmatmul.f32.gmra.mxu0 %v811
    %v926 = vpop.f32.mrf.mxu0
    %v927 = vadd.f32 %v473, %v926
    %928 = vmatmul.f32.gmra.mxu0 %v814
    %v929 = vpop.f32.mrf.mxu0
    %v930 = vadd.f32 %v478, %v929
    %931 = vmatmul.f32.gmra.mxu0 %v817
    %v932 = vpop.f32.mrf.mxu0
    %v933 = vadd.f32 %v483, %v932
    %934 = vmatmul.f32.gmra.mxu0 %v820
    %v935 = vpop.f32.mrf.mxu0
    %v936 = vadd.f32 %v488, %v935
    %937 = vmatmul.f32.gmra.mxu0 %v823
    %v938 = vpop.f32.mrf.mxu0
    %v939 = vadd.f32 %v493, %v938
    %940 = vmatmul.f32.gmra.mxu0 %v826
    %v941 = vpop.f32.mrf.mxu0
    %v942 = vadd.f32 %v498, %v941
    %943 = vmatmul.f32.gmra.mxu0 %v829
    %v944 = vpop.f32.mrf.mxu0
    %v945 = vadd.f32 %v503, %v944
    %946 = vmatmul.f32.gmra.mxu0 %v832
    %v947 = vpop.f32.mrf.mxu0
    %v948 = vadd.f32 %v508, %v947
    %949 = vmatmul.f32.gmra.mxu0 %v835
    %v950 = vpop.f32.mrf.mxu0
    %v951 = vadd.f32 %v513, %v950
    %952 = vmatmul.f32.gmra.mxu0 %v838
    %v953 = vpop.f32.mrf.mxu0
    %v954 = vadd.f32 %v518, %v953
    %955 = vmatmul.f32.gmra.mxu0 %v841
    %v956 = vpop.f32.mrf.mxu0
    %v957 = vadd.f32 %v523, %v956
    %958 = vmatmul.f32.gmra.mxu0 %v844
    %v959 = vpop.f32.mrf.mxu0
    %v960 = vadd.f32 %v528, %v959
    %961 = vmatmul.f32.gmra.mxu0 %v847
    %v962 = vpop.f32.mrf.mxu0
    %v963 = vadd.f32 %v533, %v962
    %964 = vmatmul.f32.gmra.mxu0 %v850
    %v965 = vpop.f32.mrf.mxu0
    %v966 = vadd.f32 %v538, %v965
    %967 = vmatmul.f32.gmra.mxu0 %v853
    %v968 = vpop.f32.mrf.mxu0
    %v969 = vadd.f32 %v543, %v968
    %970 = vdwg.mxu0
    %v971 = vmax.f32 %v664, 0.0
    %v972 = vmax.f32 %v667, 0.0
    %v973 = vmax.f32 %v670, 0.0
    %v974 = vmax.f32 %v673, 0.0
    %v975 = vmax.f32 %v676, 0.0
    %v976 = vmax.f32 %v679, 0.0
    %v977 = vmax.f32 %v682, 0.0
    %v978 = vmax.f32 %v685, 0.0
    %v979 = vmax.f32 %v688, 0.0
    %v980 = vmax.f32 %v691, 0.0
    %v981 = vmax.f32 %v694, 0.0
    %v982 = vmax.f32 %v697, 0.0
    %v983 = vmax.f32 %v700, 0.0
    %v984 = vmax.f32 %v703, 0.0
    %v985 = vmax.f32 %v706, 0.0
    %v986 = vmax.f32 %v709, 0.0
    %v987 = vmax.f32 %v712, 0.0
    %v988 = vmax.f32 %v715, 0.0
    %v989 = vmax.f32 %v718, 0.0
    %v990 = vmax.f32 %v721, 0.0
    %v991 = vmax.f32 %v724, 0.0
    %v992 = vmax.f32 %v727, 0.0
    %v993 = vmax.f32 %v730, 0.0
    %v994 = vmax.f32 %v733, 0.0
    %v995 = vmax.f32 %v736, 0.0
    %v996 = vmax.f32 %v739, 0.0
    %v997 = vmax.f32 %v742, 0.0
    %v998 = vmax.f32 %v745, 0.0
    %v999 = vmax.f32 %v748, 0.0
    %v1000 = vmax.f32 %v751, 0.0
    %v1001 = vmax.f32 %v754, 0.0
    %v1002 = vmax.f32 %v757, 0.0
    %v1003 = vmax.f32 %v876, 0.0
    %v1004 = vmax.f32 %v879, 0.0
    %v1005 = vmax.f32 %v882, 0.0
    %v1006 = vmax.f32 %v885, 0.0
    %v1007 = vmax.f32 %v888, 0.0
    %v1008 = vmax.f32 %v891, 0.0
    %v1009 = vmax.f32 %v894, 0.0
    %v1010 = vmax.f32 %v897, 0.0
    %v1011 = vmax.f32 %v900, 0.0
    %v1012 = vmax.f32 %v903, 0.0
    %v1013 = vmax.f32 %v906, 0.0
    %v1014 = vmax.f32 %v909, 0.0
    %v1015 = vmax.f32 %v912, 0.0
    %v1016 = vmax.f32 %v915, 0.0
    %v1017 = vmax.f32 %v918, 0.0
    %v1018 = vmax.f32 %v921, 0.0
    %v1019 = vmax.f32 %v924, 0.0
    %v1020 = vmax.f32 %v927, 0.0
    %v1021 = vmax.f32 %v930, 0.0
    %v1022 = vmax.f32 %v933, 0.0
    %v1023 = vmax.f32 %v936, 0.0
    %v1024 = vmax.f32 %v939, 0.0
    %v1025 = vmax.f32 %v942, 0.0
    %v1026 = vmax.f32 %v945, 0.0
    %v1027 = vmax.f32 %v948, 0.0
    %v1028 = vmax.f32 %v951, 0.0
    %v1029 = vmax.f32 %v954, 0.0
    %v1030 = vmax.f32 %v957, 0.0
    %v1031 = vmax.f32 %v960, 0.0
    %v1032 = vmax.f32 %v963, 0.0
    %v1033 = vmax.f32 %v966, 0.0
    %v1034 = vmax.f32 %v969, 0.0
    %v1035 = vld [vmem:[%s5] sm:$0xff]
    %v1036 = vld [vmem:[%s5 + $0x8] sm:$0xff]
    %v1037 = vld [vmem:[%s5 + $0x10] sm:$0x1]
    %v1038 = vld [vmem:[%s5 + $0x18] sm:$0x1]
    %v1039 = vld [vmem:[%s5 + $0x20] sm:$0xff]
    %v1040 = vld [vmem:[%s5 + $0x28] sm:$0xff]
    %v1041 = vld [vmem:[%s5 + $0x30] sm:$0x1]
    %v1042 = vld [vmem:[%s5 + $0x38] sm:$0x1]
    %1043 = vmatpush.msra.mxu0 %v986
    %1044 = vmatpush.msra.mxu0 %v985
    %1045 = vmatpush.msra.mxu0 %v984
    %1046 = vmatpush.msra.mxu0 %v983
    %1047 = vmatpush.msra.mxu0 %v982
    %1048 = vmatpush.msra.mxu0 %v981
    %1049 = vmatpush.msra.mxu0 %v980
    %1050 = vmatpush.msra.mxu0 %v979
    %1051 = vmatpush.msra.mxu0 %v978
    %1052 = vmatpush.msra.mxu0 %v977
    %1053 = vmatpush.msra.mxu0 %v976
    %1054 = vmatpush.msra.mxu0 %v975
    %1055 = vmatpush.msra.mxu0 %v974
    %1056 = vmatpush.msra.mxu0 %v973
    %1057 = vmatpush.msra.mxu0 %v972
    %1058 = vmatpush.msra.mxu0 %v971
    %1059 = vmatmul.f32.gmra.mxu0 %v1035
    %v1060 = vpop.f32.mrf.mxu0
    %v1061 = vadd.f32 0.0, %v1060
    %1062 = vmatmul.f32.gmra.mxu0 %v1037
    %v1063 = vpop.f32.mrf.mxu0
    %v1064 = vadd.f32 0.0, %v1063
    %1065 = vdwg.mxu0
    %1066 = vmatpush.msra.mxu0 %v1002
    %1067 = vmatpush.msra.mxu0 %v1001
    %1068 = vmatpush.msra.mxu0 %v1000
    %1069 = vmatpush.msra.mxu0 %v999
    %1070 = vmatpush.msra.mxu0 %v998
    %1071 = vmatpush.msra.mxu0 %v997
    %1072 = vmatpush.msra.mxu0 %v996
    %1073 = vmatpush.msra.mxu0 %v995
    %1074 = vmatpush.msra.mxu0 %v994
    %1075 = vmatpush.msra.mxu0 %v993
    %1076 = vmatpush.msra.mxu0 %v992
    %1077 = vmatpush.msra.mxu0 %v991
    %1078 = vmatpush.msra.mxu0 %v990
    %1079 = vmatpush.msra.mxu0 %v989
    %1080 = vmatpush.msra.mxu0 %v988
    %1081 = vmatpush.msra.mxu0 %v987
    %1082 = vmatmul.f32.gmra.mxu0 %v1036
    %v1083 = vpop.f32.mrf.mxu0
    %v1084 = vadd.f32 %v1061, %v1083
    %1085 = vmatmul.f32.gmra.mxu0 %v1038
    %v1086 = vpop.f32.mrf.mxu0
    %v1087 = vadd.f32 %v1064, %v1086
    %1088 = vdwg.mxu0
    %1089 = vmatpush.msra.mxu0 %v1018
    %1090 = vmatpush.msra.mxu0 %v1017
    %1091 = vmatpush.msra.mxu0 %v1016
    %1092 = vmatpush.msra.mxu0 %v1015
    %1093 = vmatpush.msra.mxu0 %v1014
    %1094 = vmatpush.msra.mxu0 %v1013
    %1095 = vmatpush.msra.mxu0 %v1012
    %1096 = vmatpush.msra.mxu0 %v1011
    %1097 = vmatpush.msra.mxu0 %v1010
    %1098 = vmatpush.msra.mxu0 %v1009
    %1099 = vmatpush.msra.mxu0 %v1008
    %1100 = vmatpush.msra.mxu0 %v1007
    %1101 = vmatpush.msra.mxu0 %v1006
    %1102 = vmatpush.msra.mxu0 %v1005
    %1103 = vmatpush.msra.mxu0 %v1004
    %1104 = vmatpush.msra.mxu0 %v1003
    %1105 = vmatmul.f32.gmra.mxu0 %v1039
    %v1106 = vpop.f32.mrf.mxu0
    %v1107 = vadd.f32 0.0, %v1106
    %1108 = vmatmul.f32.gmra.mxu0 %v1041
    %v1109 = vpop.f32.mrf.mxu0
    %v1110 = vadd.f32 0.0, %v1109
    %1111 = vdwg.mxu0
    %1112 = vmatpush.msra.mxu0 %v1034
    %1113 = vmatpush.msra.mxu0 %v1033
    %1114 = vmatpush.msra.mxu0 %v1032
    %1115 = vmatpush.msra.mxu0 %v1031
    %1116 = vmatpush.msra.mxu0 %v1030
    %1117 = vmatpush.msra.mxu0 %v1029
    %1118 = vmatpush.msra.mxu0 %v1028
    %1119 = vmatpush.msra.mxu0 %v1027
    %1120 = vmatpush.msra.mxu0 %v1026
    %1121 = vmatpush.msra.mxu0 %v1025
    %1122 = vmatpush.msra.mxu0 %v1024
    %1123 = vmatpush.msra.mxu0 %v1023
    %1124 = vmatpush.msra.mxu0 %v1022
    %1125 = vmatpush.msra.mxu0 %v1021
    %1126 = vmatpush.msra.mxu0 %v1020
    %1127 = vmatpush.msra.mxu0 %v1019
    %1128 = vmatmul.f32.gmra.mxu0 %v1040
    %v1129 = vpop.f32.mrf.mxu0
    %v1130 = vadd.f32 %v1107, %v1129
    %1131 = vmatmul.f32.gmra.mxu0 %v1042
    %v1132 = vpop.f32.mrf.mxu0
    %v1133 = vadd.f32 %v1110, %v1132
    %1134 = vdwg.mxu0
    %v1135 = vld [vmem:[%s6] sm:$0xff]
    %v1136 = vld [vmem:[%s6 + $0x8] sm:$0x1]
    %1138 = vset.pattern.permute.xlu0 0
    %1139 = vperm.xlu0 %1138, %v1135
    %v1140 = vpop.permute.xlu0 %1139
    %1143 = vset.pattern.permute.xlu0 0
    %1144 = vperm.xlu0 %1143, %v1136
    %v1145 = vpop.permute.xlu0 %1144
    %v1148 = vsel %vm188, %v1084, 0
    %v1151 = vsel %vm188, %v1087, 0
    %1153 = vmatpush.xpose.msra.mxu0 0.0
    %1154 = vmatpush.xpose.msra.mxu0 0.0
    %1155 = vmatpush.xpose.msra.mxu0 0.0
    %1156 = vmatpush.xpose.msra.mxu0 0.0
    %1157 = vmatpush.xpose.msra.mxu0 0.0
    %1158 = vmatpush.xpose.msra.mxu0 0.0
    %1159 = vmatpush.xpose.msra.mxu0 0.0
    %1160 = vmatpush.xpose.msra.mxu0 0.0
    %1161 = vmatpush.xpose.msra.mxu0 0.0
    %1162 = vmatpush.xpose.msra.mxu0 %v214
    %1163 = vmatpush.xpose.msra.mxu0 %v211
    %1164 = vmatpush.xpose.msra.mxu0 %v208
    %1165 = vmatpush.xpose.msra.mxu0 %v205
    %1166 = vmatpush.xpose.msra.mxu0 %v202
    %1167 = vmatpush.xpose.msra.mxu0 %v199
    %1168 = vmatpush.xpose.msra.mxu0 %v196
    %1169 = vmatmul.f32.gmra.mxu0 %v1148
    %v1170 = vpop.f32.mrf.mxu0
    %v1171 = vadd.f32 %v1140, %v1170
    %1172 = vmatmul.f32.gmra.mxu0 %v1151
    %v1173 = vpop.f32.mrf.mxu0
    %v1174 = vadd.f32 %v1145, %v1173
    %1175 = vdwg.mxu0
    %v1177 = vsel %vm188, %v1130, 0
    %v1180 = vsel %vm188, %v1133, 0
    %1182 = vmatpush.xpose.msra.mxu0 0.0
    %1183 = vmatpush.xpose.msra.mxu0 0.0
    %1184 = vmatpush.xpose.msra.mxu0 0.0
    %1185 = vmatpush.xpose.msra.mxu0 0.0
    %1186 = vmatpush.xpose.msra.mxu0 0.0
    %1187 = vmatpush.xpose.msra.mxu0 0.0
    %1188 = vmatpush.xpose.msra.mxu0 0.0
    %1189 = vmatpush.xpose.msra.mxu0 0.0
    %1190 = vmatpush.xpose.msra.mxu0 0.0
    %1191 = vmatpush.xpose.msra.mxu0 %v264
    %1192 = vmatpush.xpose.msra.mxu0 %v261
    %1193 = vmatpush.xpose.msra.mxu0 %v258
    %1194 = vmatpush.xpose.msra.mxu0 %v255
    %1195 = vmatpush.xpose.msra.mxu0 %v252
    %1196 = vmatpush.xpose.msra.mxu0 %v249
    %1197 = vmatpush.xpose.msra.mxu0 %v246
    %1198 = vmatmul.f32.gmra.mxu0 %v1177
    %v1199 = vpop.f32.mrf.mxu0
    %v1200 = vadd.f32 %v1140, %v1199
    %1201 = vmatmul.f32.gmra.mxu0 %v1180
    %v1202 = vpop.f32.mrf.mxu0
    %v1203 = vadd.f32 %v1145, %v1202
    %1204 = vdwg.mxu0
    %v1205 = vpack.c.bf16 %v1171, %v1171
    %v1206 = vpack.c.bf16 %v1200, %v1200
    %v1207 = vld [vmem:[#allocation5] sm:$0xff]
    %v1208 = vld [vmem:[#allocation5 + $0x8] sm:$0xff]
    %v1209 = vld [vmem:[#allocation5 + $0x10] sm:$0xff]
    %v1210 = vld [vmem:[#allocation5 + $0x18] sm:$0xff]
    %v1211 = vld [vmem:[#allocation5 + $0x20] sm:$0xff]
    %v1212 = vld [vmem:[#allocation5 + $0x28] sm:$0xff]
    %v1213 = vld [vmem:[#allocation5 + $0x30] sm:$0xff]
    %v1214 = vld [vmem:[#allocation5 + $0x38] sm:$0xff]
    %v1215 = vld [vmem:[#allocation5 + $0x40] sm:$0xff]
    %v1216 = vld [vmem:[#allocation5 + $0x48] sm:$0xff]
    %v1217 = vld [vmem:[#allocation5 + $0x50] sm:$0xff]
    %v1218 = vld [vmem:[#allocation5 + $0x58] sm:$0xff]
    %v1219 = vld [vmem:[#allocation5 + $0x60] sm:$0xff]
    %v1220 = vld [vmem:[#allocation5 + $0x68] sm:$0xff]
    %v1221 = vld [vmem:[#allocation5 + $0x70] sm:$0xff]
    %v1222 = vld [vmem:[#allocation5 + $0x78] sm:$0xff]
    %v1223 = vld [vmem:[#allocation5 + $0x80] sm:$0xff]
    %v1224 = vld [vmem:[#allocation5 + $0x88] sm:$0xff]
    %v1225 = vld [vmem:[#allocation5 + $0x90] sm:$0xff]
    %v1226 = vld [vmem:[#allocation5 + $0x98] sm:$0xff]
    %v1227 = vld [vmem:[#allocation5 + $0xa0] sm:$0xff]
    %v1228 = vld [vmem:[#allocation5 + $0xa8] sm:$0xff]
    %v1229 = vld [vmem:[#allocation5 + $0xb0] sm:$0xff]
    %v1230 = vld [vmem:[#allocation5 + $0xb8] sm:$0xff]
    %v1231 = vld [vmem:[#allocation5 + $0xc0] sm:$0x11]
    %v1232 = vld [vmem:[#allocation5 + $0xc8] sm:$0x11]
    %v1233 = vld [vmem:[#allocation5 + $0xd0] sm:$0x11]
    %v1234 = vld [vmem:[#allocation5 + $0xd8] sm:$0x11]
    %s1235 = scalar_lea.vmem [#allocation5], 224
    %v1236 = vld [vmem:[%s1235] sm:$0xff]
    %v1237 = vld [vmem:[%s1235 + $0x8] sm:$0xff]
    %v1238 = vld [vmem:[%s1235 + $0x10] sm:$0xff]
    %v1239 = vld [vmem:[%s1235 + $0x18] sm:$0xff]
    %v1240 = vld [vmem:[%s1235 + $0x20] sm:$0xff]
    %v1241 = vld [vmem:[%s1235 + $0x28] sm:$0xff]
    %v1242 = vld [vmem:[%s1235 + $0x30] sm:$0xff]
    %v1243 = vld [vmem:[%s1235 + $0x38] sm:$0xff]
    %v1244 = vld [vmem:[%s1235 + $0x40] sm:$0xff]
    %v1245 = vld [vmem:[%s1235 + $0x48] sm:$0xff]
    %v1246 = vld [vmem:[%s1235 + $0x50] sm:$0xff]
    %v1247 = vld [vmem:[%s1235 + $0x58] sm:$0xff]
    %v1248 = vld [vmem:[%s1235 + $0x60] sm:$0xff]
    %v1249 = vld [vmem:[%s1235 + $0x68] sm:$0xff]
    %v1250 = vld [vmem:[%s1235 + $0x70] sm:$0xff]
    %v1251 = vld [vmem:[%s1235 + $0x78] sm:$0xff]
    %v1252 = vld [vmem:[%s1235 + $0x80] sm:$0xff]
    %v1253 = vld [vmem:[%s1235 + $0x88] sm:$0xff]
    %v1254 = vld [vmem:[%s1235 + $0x90] sm:$0xff]
    %v1255 = vld [vmem:[%s1235 + $0x98] sm:$0xff]
    %v1256 = vld [vmem:[%s1235 + $0xa0] sm:$0xff]
    %v1257 = vld [vmem:[%s1235 + $0xa8] sm:$0xff]
    %v1258 = vld [vmem:[%s1235 + $0xb0] sm:$0xff]
    %v1259 = vld [vmem:[%s1235 + $0xb8] sm:$0xff]
    %v1260 = vld [vmem:[%s1235 + $0xc0] sm:$0x11]
    %v1261 = vld [vmem:[%s1235 + $0xc8] sm:$0x11]
    %v1262 = vld [vmem:[%s1235 + $0xd0] sm:$0x11]
    %v1263 = vld [vmem:[%s1235 + $0xd8] sm:$0x11]
    %v1266 = vunpack.c.l.b16 %v1205
    %v1267 = vunpack.c.l.b16 %v1206
    %v1268 = vrot.slane %v1266, 1
    %vm1269 = vcmask 1041409
    %v1270 = vsel %vm1269, %v1267, %v1268
    %v1271 = vpack.c.b16 %v1270, %v1270
    %v1300 = vunpack.c.l.b16 %v1236
    %v1301 = vunpack.c.h.b16 %v1236
    %v1302 = vunpack.c.l.b16 %v1237
    %v1303 = vunpack.c.h.b16 %v1237
    %v1304 = vunpack.c.l.b16 %v1238
    %v1305 = vunpack.c.h.b16 %v1238
    %v1306 = vunpack.c.l.b16 %v1239
    %v1307 = vunpack.c.h.b16 %v1239
    %v1308 = vunpack.c.l.b16 %v1240
    %v1309 = vunpack.c.h.b16 %v1240
    %v1310 = vunpack.c.l.b16 %v1241
    %v1311 = vunpack.c.h.b16 %v1241
    %v1312 = vunpack.c.l.b16 %v1242
    %v1313 = vunpack.c.h.b16 %v1242
    %v1314 = vunpack.c.l.b16 %v1243
    %v1315 = vunpack.c.h.b16 %v1243
    %v1316 = vunpack.c.l.b16 %v1244
    %v1317 = vunpack.c.h.b16 %v1244
    %v1318 = vunpack.c.l.b16 %v1245
    %v1319 = vunpack.c.h.b16 %v1245
    %v1320 = vunpack.c.l.b16 %v1246
    %v1321 = vunpack.c.h.b16 %v1246
    %v1322 = vunpack.c.l.b16 %v1247
    %v1323 = vunpack.c.h.b16 %v1247
    %v1324 = vunpack.c.l.b16 %v1248
    %v1325 = vunpack.c.h.b16 %v1248
    %v1326 = vunpack.c.l.b16 %v1249
    %v1327 = vunpack.c.h.b16 %v1249
    %v1328 = vunpack.c.l.b16 %v1250
    %v1329 = vunpack.c.h.b16 %v1250
    %v1330 = vunpack.c.l.b16 %v1251
    %v1331 = vunpack.c.h.b16 %v1251
    %v1332 = vunpack.c.l.b16 %v1252
    %v1333 = vunpack.c.h.b16 %v1252
    %v1334 = vunpack.c.l.b16 %v1253
    %v1335 = vunpack.c.h.b16 %v1253
    %v1336 = vunpack.c.l.b16 %v1254
    %v1337 = vunpack.c.h.b16 %v1254
    %v1338 = vunpack.c.l.b16 %v1255
    %v1339 = vunpack.c.h.b16 %v1255
    %v1340 = vunpack.c.l.b16 %v1256
    %v1341 = vunpack.c.h.b16 %v1256
    %v1342 = vunpack.c.l.b16 %v1257
    %v1343 = vunpack.c.h.b16 %v1257
    %v1344 = vunpack.c.l.b16 %v1258
    %v1345 = vunpack.c.h.b16 %v1258
    %v1346 = vunpack.c.l.b16 %v1259
    %v1347 = vunpack.c.h.b16 %v1259
    %v1348 = vunpack.c.l.b16 %v1260
    %v1349 = vunpack.c.h.b16 %v1260
    %v1350 = vunpack.c.l.b16 %v1261
    %v1351 = vunpack.c.h.b16 %v1261
    %v1352 = vunpack.c.l.b16 %v1262
    %v1353 = vunpack.c.h.b16 %v1262
    %v1354 = vunpack.c.l.b16 %v1263
    %v1355 = vunpack.c.h.b16 %v1263
    %v1356 = vpack.c.b16 %v1308, %v1300
    %v1357 = vpack.c.b16 %v1309, %v1301
    %v1358 = vpack.c.b16 %v1310, %v1302
    %v1359 = vpack.c.b16 %v1311, %v1303
    %v1360 = vpack.c.b16 %v1312, %v1304
    %v1361 = vpack.c.b16 %v1313, %v1305
    %v1362 = vpack.c.b16 %v1314, %v1306
    %v1363 = vpack.c.b16 %v1315, %v1307
    %v1364 = vpack.c.b16 %v1324, %v1316
    %v1365 = vpack.c.b16 %v1325, %v1317
    %v1366 = vpack.c.b16 %v1326, %v1318
    %v1367 = vpack.c.b16 %v1327, %v1319
    %v1368 = vpack.c.b16 %v1328, %v1320
    %v1369 = vpack.c.b16 %v1329, %v1321
    %v1370 = vpack.c.b16 %v1330, %v1322
    %v1371 = vpack.c.b16 %v1331, %v1323
    %v1372 = vpack.c.b16 %v1340, %v1332
    %v1373 = vpack.c.b16 %v1341, %v1333
    %v1374 = vpack.c.b16 %v1342, %v1334
    %v1375 = vpack.c.b16 %v1343, %v1335
    %v1376 = vpack.c.b16 %v1344, %v1336
    %v1377 = vpack.c.b16 %v1345, %v1337
    %v1378 = vpack.c.b16 %v1346, %v1338
    %v1379 = vpack.c.b16 %v1347, %v1339
    %v1380 = vpack.c.b16 %v1348, %v1348
    %v1381 = vpack.c.b16 %v1349, %v1349
    %v1382 = vpack.c.b16 %v1350, %v1350
    %v1383 = vpack.c.b16 %v1351, %v1351
    %v1384 = vpack.c.b16 %v1352, %v1352
    %v1385 = vpack.c.b16 %v1353, %v1353
    %v1386 = vpack.c.b16 %v1354, %v1354
    %v1387 = vpack.c.b16 %v1355, %v1355
    %v1413 = vsel %vm188, %v1271, 0
    %v1416 = vsel %vm642, %v1380, 0
    %v1419 = vsel %vm642, %v1381, 0
    %v1422 = vsel %vm642, %v1382, 0
    %v1425 = vsel %vm642, %v1383, 0
    %v1428 = vsel %vm642, %v1384, 0
    %v1431 = vsel %vm642, %v1385, 0
    %v1434 = vsel %vm642, %v1386, 0
    %v1437 = vsel %vm642, %v1387, 0
    %1439 = vmatpush.bf16.msra.mxu0 0
    %1440 = vmatpush.bf16.msra.mxu0 0
    %1441 = vmatpush.bf16.msra.mxu0 0
    %1442 = vmatpush.bf16.msra.mxu0 0
    %1443 = vmatpush.bf16.msra.mxu0 %v1416
    %1444 = vmatpush.bf16.msra.mxu0 %v1372
    %1445 = vmatpush.bf16.msra.mxu0 %v1364
    %1446 = vmatpush.bf16.msra.mxu0 %v1356
    %1447 = vmatmul.bf16.gmra.mxu0 %v1413
    %v1448 = vpop.f32.mrf.mxu0
    %v1449 = vadd.f32 0.0, %v1448
    %v1450 = vpop.f32.mrf.mxu0
    %1451 = vdwg.mxu0
    %1452 = vmatpush.bf16.msra.mxu0 0
    %1453 = vmatpush.bf16.msra.mxu0 0
    %1454 = vmatpush.bf16.msra.mxu0 0
    %1455 = vmatpush.bf16.msra.mxu0 0
    %1456 = vmatpush.bf16.msra.mxu0 %v1419
    %1457 = vmatpush.bf16.msra.mxu0 %v1373
    %1458 = vmatpush.bf16.msra.mxu0 %v1365
    %1459 = vmatpush.bf16.msra.mxu0 %v1357
    %1460 = vmatmul.bf16.gmra.mxu0 %v1413
    %v1461 = vpop.f32.mrf.mxu0
    %v1462 = vadd.f32 0.0, %v1461
    %v1463 = vpop.f32.mrf.mxu0
    %1464 = vdwg.mxu0
    %1465 = vmatpush.bf16.msra.mxu0 0
    %1466 = vmatpush.bf16.msra.mxu0 0
    %1467 = vmatpush.bf16.msra.mxu0 0
    %1468 = vmatpush.bf16.msra.mxu0 0
    %1469 = vmatpush.bf16.msra.mxu0 %v1422
    %1470 = vmatpush.bf16.msra.mxu0 %v1374
    %1471 = vmatpush.bf16.msra.mxu0 %v1366
    %1472 = vmatpush.bf16.msra.mxu0 %v1358
    %1473 = vmatmul.bf16.gmra.mxu0 %v1413
    %v1474 = vpop.f32.mrf.mxu0
    %v1475 = vadd.f32 0.0, %v1474
    %v1476 = vpop.f32.mrf.mxu0
    %1477 = vdwg.mxu0
    %1478 = vmatpush.bf16.msra.mxu0 0
    %1479 = vmatpush.bf16.msra.mxu0 0
    %1480 = vmatpush.bf16.msra.mxu0 0
    %1481 = vmatpush.bf16.msra.mxu0 0
    %1482 = vmatpush.bf16.msra.mxu0 %v1425
    %1483 = vmatpush.bf16.msra.mxu0 %v1375
    %1484 = vmatpush.bf16.msra.mxu0 %v1367
    %1485 = vmatpush.bf16.msra.mxu0 %v1359
    %1486 = vmatmul.bf16.gmra.mxu0 %v1413
    %v1487 = vpop.f32.mrf.mxu0
    %v1488 = vadd.f32 0.0, %v1487
    %v1489 = vpop.f32.mrf.mxu0
    %1490 = vdwg.mxu0
    %1491 = vmatpush.bf16.msra.mxu0 0
    %1492 = vmatpush.bf16.msra.mxu0 0
    %1493 = vmatpush.bf16.msra.mxu0 0
    %1494 = vmatpush.bf16.msra.mxu0 0
    %1495 = vmatpush.bf16.msra.mxu0 %v1428
    %1496 = vmatpush.bf16.msra.mxu0 %v1376
    %1497 = vmatpush.bf16.msra.mxu0 %v1368
    %1498 = vmatpush.bf16.msra.mxu0 %v1360
    %1499 = vmatmul.bf16.gmra.mxu0 %v1413
    %v1500 = vpop.f32.mrf.mxu0
    %v1501 = vadd.f32 0.0, %v1500
    %v1502 = vpop.f32.mrf.mxu0
    %1503 = vdwg.mxu0
    %1504 = vmatpush.bf16.msra.mxu0 0
    %1505 = vmatpush.bf16.msra.mxu0 0
    %1506 = vmatpush.bf16.msra.mxu0 0
    %1507 = vmatpush.bf16.msra.mxu0 0
    %1508 = vmatpush.bf16.msra.mxu0 %v1431
    %1509 = vmatpush.bf16.msra.mxu0 %v1377
    %1510 = vmatpush.bf16.msra.mxu0 %v1369
    %1511 = vmatpush.bf16.msra.mxu0 %v1361
    %1512 = vmatmul.bf16.gmra.mxu0 %v1413
    %v1513 = vpop.f32.mrf.mxu0
    %v1514 = vadd.f32 0.0, %v1513
    %v1515 = vpop.f32.mrf.mxu0
    %1516 = vdwg.mxu0
    %1517 = vmatpush.bf16.msra.mxu0 0
    %1518 = vmatpush.bf16.msra.mxu0 0
    %1519 = vmatpush.bf16.msra.mxu0 0
    %1520 = vmatpush.bf16.msra.mxu0 0
    %1521 = vmatpush.bf16.msra.mxu0 %v1434
    %1522 = vmatpush.bf16.msra.mxu0 %v1378
    %1523 = vmatpush.bf16.msra.mxu0 %v1370
    %1524 = vmatpush.bf16.msra.mxu0 %v1362
    %1525 = vmatmul.bf16.gmra.mxu0 %v1413
    %v1526 = vpop.f32.mrf.mxu0
    %v1527 = vadd.f32 0.0, %v1526
    %v1528 = vpop.f32.mrf.mxu0
    %1529 = vdwg.mxu0
    %1530 = vmatpush.bf16.msra.mxu0 0
    %1531 = vmatpush.bf16.msra.mxu0 0
    %1532 = vmatpush.bf16.msra.mxu0 0
    %1533 = vmatpush.bf16.msra.mxu0 0
    %1534 = vmatpush.bf16.msra.mxu0 %v1437
    %1535 = vmatpush.bf16.msra.mxu0 %v1379
    %1536 = vmatpush.bf16.msra.mxu0 %v1371
    %1537 = vmatpush.bf16.msra.mxu0 %v1363
    %1538 = vmatmul.bf16.gmra.mxu0 %v1413
    %v1539 = vpop.f32.mrf.mxu0
    %v1540 = vadd.f32 0.0, %v1539
    %v1541 = vpop.f32.mrf.mxu0
    %1542 = vdwg.mxu0
    %v1543 = vrot.slane %v1267, 7
    %v1544 = vsel %vm1269, %v1543, %v1266
    %v1545 = vpack.c.b16 %v1544, %v1544
    %v1574 = vunpack.c.l.b16 %v1207
    %v1575 = vunpack.c.h.b16 %v1207
    %v1576 = vunpack.c.l.b16 %v1208
    %v1577 = vunpack.c.h.b16 %v1208
    %v1578 = vunpack.c.l.b16 %v1209
    %v1579 = vunpack.c.h.b16 %v1209
    %v1580 = vunpack.c.l.b16 %v1210
    %v1581 = vunpack.c.h.b16 %v1210
    %v1582 = vunpack.c.l.b16 %v1211
    %v1583 = vunpack.c.h.b16 %v1211
    %v1584 = vunpack.c.l.b16 %v1212
    %v1585 = vunpack.c.h.b16 %v1212
    %v1586 = vunpack.c.l.b16 %v1213
    %v1587 = vunpack.c.h.b16 %v1213
    %v1588 = vunpack.c.l.b16 %v1214
    %v1589 = vunpack.c.h.b16 %v1214
    %v1590 = vunpack.c.l.b16 %v1215
    %v1591 = vunpack.c.h.b16 %v1215
    %v1592 = vunpack.c.l.b16 %v1216
    %v1593 = vunpack.c.h.b16 %v1216
    %v1594 = vunpack.c.l.b16 %v1217
    %v1595 = vunpack.c.h.b16 %v1217
    %v1596 = vunpack.c.l.b16 %v1218
    %v1597 = vunpack.c.h.b16 %v1218
    %v1598 = vunpack.c.l.b16 %v1219
    %v1599 = vunpack.c.h.b16 %v1219
    %v1600 = vunpack.c.l.b16 %v1220
    %v1601 = vunpack.c.h.b16 %v1220
    %v1602 = vunpack.c.l.b16 %v1221
    %v1603 = vunpack.c.h.b16 %v1221
    %v1604 = vunpack.c.l.b16 %v1222
    %v1605 = vunpack.c.h.b16 %v1222
    %v1606 = vunpack.c.l.b16 %v1223
    %v1607 = vunpack.c.h.b16 %v1223
    %v1608 = vunpack.c.l.b16 %v1224
    %v1609 = vunpack.c.h.b16 %v1224
    %v1610 = vunpack.c.l.b16 %v1225
    %v1611 = vunpack.c.h.b16 %v1225
    %v1612 = vunpack.c.l.b16 %v1226
    %v1613 = vunpack.c.h.b16 %v1226
    %v1614 = vunpack.c.l.b16 %v1227
    %v1615 = vunpack.c.h.b16 %v1227
    %v1616 = vunpack.c.l.b16 %v1228
    %v1617 = vunpack.c.h.b16 %v1228
    %v1618 = vunpack.c.l.b16 %v1229
    %v1619 = vunpack.c.h.b16 %v1229
    %v1620 = vunpack.c.l.b16 %v1230
    %v1621 = vunpack.c.h.b16 %v1230
    %v1622 = vunpack.c.l.b16 %v1231
    %v1623 = vunpack.c.h.b16 %v1231
    %v1624 = vunpack.c.l.b16 %v1232
    %v1625 = vunpack.c.h.b16 %v1232
    %v1626 = vunpack.c.l.b16 %v1233
    %v1627 = vunpack.c.h.b16 %v1233
    %v1628 = vunpack.c.l.b16 %v1234
    %v1629 = vunpack.c.h.b16 %v1234
    %v1630 = vpack.c.b16 %v1582, %v1574
    %v1631 = vpack.c.b16 %v1583, %v1575
    %v1632 = vpack.c.b16 %v1584, %v1576
    %v1633 = vpack.c.b16 %v1585, %v1577
    %v1634 = vpack.c.b16 %v1586, %v1578
    %v1635 = vpack.c.b16 %v1587, %v1579
    %v1636 = vpack.c.b16 %v1588, %v1580
    %v1637 = vpack.c.b16 %v1589, %v1581
    %v1638 = vpack.c.b16 %v1598, %v1590
    %v1639 = vpack.c.b16 %v1599, %v1591
    %v1640 = vpack.c.b16 %v1600, %v1592
    %v1641 = vpack.c.b16 %v1601, %v1593
    %v1642 = vpack.c.b16 %v1602, %v1594
    %v1643 = vpack.c.b16 %v1603, %v1595
    %v1644 = vpack.c.b16 %v1604, %v1596
    %v1645 = vpack.c.b16 %v1605, %v1597
    %v1646 = vpack.c.b16 %v1614, %v1606
    %v1647 = vpack.c.b16 %v1615, %v1607
    %v1648 = vpack.c.b16 %v1616, %v1608
    %v1649 = vpack.c.b16 %v1617, %v1609
    %v1650 = vpack.c.b16 %v1618, %v1610
    %v1651 = vpack.c.b16 %v1619, %v1611
    %v1652 = vpack.c.b16 %v1620, %v1612
    %v1653 = vpack.c.b16 %v1621, %v1613
    %v1654 = vpack.c.b16 %v1622, %v1622
    %v1655 = vpack.c.b16 %v1623, %v1623
    %v1656 = vpack.c.b16 %v1624, %v1624
    %v1657 = vpack.c.b16 %v1625, %v1625
    %v1658 = vpack.c.b16 %v1626, %v1626
    %v1659 = vpack.c.b16 %v1627, %v1627
    %v1660 = vpack.c.b16 %v1628, %v1628
    %v1661 = vpack.c.b16 %v1629, %v1629
    %v1687 = vsel %vm188, %v1545, 0
    %v1690 = vsel %vm642, %v1654, 0
    %v1693 = vsel %vm642, %v1655, 0
    %v1696 = vsel %vm642, %v1656, 0
    %v1699 = vsel %vm642, %v1657, 0
    %v1702 = vsel %vm642, %v1658, 0
    %v1705 = vsel %vm642, %v1659, 0
    %v1708 = vsel %vm642, %v1660, 0
    %v1711 = vsel %vm642, %v1661, 0
    %1713 = vmatpush.bf16.msra.mxu0 0
    %1714 = vmatpush.bf16.msra.mxu0 0
    %1715 = vmatpush.bf16.msra.mxu0 0
    %1716 = vmatpush.bf16.msra.mxu0 0
    %1717 = vmatpush.bf16.msra.mxu0 %v1690
    %1718 = vmatpush.bf16.msra.mxu0 %v1646
    %1719 = vmatpush.bf16.msra.mxu0 %v1638
    %1720 = vmatpush.bf16.msra.mxu0 %v1630
    %1721 = vmatmul.bf16.gmra.mxu0 %v1687
    %v1722 = vpop.f32.mrf.mxu0
    %v1723 = vadd.f32 %v1449, %v1722
    %v1724 = vpop.f32.mrf.mxu0
    %1725 = vdwg.mxu0
    %1726 = vmatpush.bf16.msra.mxu0 0
    %1727 = vmatpush.bf16.msra.mxu0 0
    %1728 = vmatpush.bf16.msra.mxu0 0
    %1729 = vmatpush.bf16.msra.mxu0 0
    %1730 = vmatpush.bf16.msra.mxu0 %v1693
    %1731 = vmatpush.bf16.msra.mxu0 %v1647
    %1732 = vmatpush.bf16.msra.mxu0 %v1639
    %1733 = vmatpush.bf16.msra.mxu0 %v1631
    %1734 = vmatmul.bf16.gmra.mxu0 %v1687
    %v1735 = vpop.f32.mrf.mxu0
    %v1736 = vadd.f32 %v1462, %v1735
    %v1737 = vpop.f32.mrf.mxu0
    %1738 = vdwg.mxu0
    %1739 = vmatpush.bf16.msra.mxu0 0
    %1740 = vmatpush.bf16.msra.mxu0 0
    %1741 = vmatpush.bf16.msra.mxu0 0
    %1742 = vmatpush.bf16.msra.mxu0 0
    %1743 = vmatpush.bf16.msra.mxu0 %v1696
    %1744 = vmatpush.bf16.msra.mxu0 %v1648
    %1745 = vmatpush.bf16.msra.mxu0 %v1640
    %1746 = vmatpush.bf16.msra.mxu0 %v1632
    %1747 = vmatmul.bf16.gmra.mxu0 %v1687
    %v1748 = vpop.f32.mrf.mxu0
    %v1749 = vadd.f32 %v1475, %v1748
    %v1750 = vpop.f32.mrf.mxu0
    %1751 = vdwg.mxu0
    %1752 = vmatpush.bf16.msra.mxu0 0
    %1753 = vmatpush.bf16.msra.mxu0 0
    %1754 = vmatpush.bf16.msra.mxu0 0
    %1755 = vmatpush.bf16.msra.mxu0 0
    %1756 = vmatpush.bf16.msra.mxu0 %v1699
    %1757 = vmatpush.bf16.msra.mxu0 %v1649
    %1758 = vmatpush.bf16.msra.mxu0 %v1641
    %1759 = vmatpush.bf16.msra.mxu0 %v1633
    %1760 = vmatmul.bf16.gmra.mxu0 %v1687
    %v1761 = vpop.f32.mrf.mxu0
    %v1762 = vadd.f32 %v1488, %v1761
    %v1763 = vpop.f32.mrf.mxu0
    %1764 = vdwg.mxu0
    %1765 = vmatpush.bf16.msra.mxu0 0
    %1766 = vmatpush.bf16.msra.mxu0 0
    %1767 = vmatpush.bf16.msra.mxu0 0
    %1768 = vmatpush.bf16.msra.mxu0 0
    %1769 = vmatpush.bf16.msra.mxu0 %v1702
    %1770 = vmatpush.bf16.msra.mxu0 %v1650
    %1771 = vmatpush.bf16.msra.mxu0 %v1642
    %1772 = vmatpush.bf16.msra.mxu0 %v1634
    %1773 = vmatmul.bf16.gmra.mxu0 %v1687
    %v1774 = vpop.f32.mrf.mxu0
    %v1775 = vadd.f32 %v1501, %v1774
    %v1776 = vpop.f32.mrf.mxu0
    %1777 = vdwg.mxu0
    %1778 = vmatpush.bf16.msra.mxu0 0
    %1779 = vmatpush.bf16.msra.mxu0 0
    %1780 = vmatpush.bf16.msra.mxu0 0
    %1781 = vmatpush.bf16.msra.mxu0 0
    %1782 = vmatpush.bf16.msra.mxu0 %v1705
    %1783 = vmatpush.bf16.msra.mxu0 %v1651
    %1784 = vmatpush.bf16.msra.mxu0 %v1643
    %1785 = vmatpush.bf16.msra.mxu0 %v1635
    %1786 = vmatmul.bf16.gmra.mxu0 %v1687
    %v1787 = vpop.f32.mrf.mxu0
    %v1788 = vadd.f32 %v1514, %v1787
    %v1789 = vpop.f32.mrf.mxu0
    %1790 = vdwg.mxu0
    %1791 = vmatpush.bf16.msra.mxu0 0
    %1792 = vmatpush.bf16.msra.mxu0 0
    %1793 = vmatpush.bf16.msra.mxu0 0
    %1794 = vmatpush.bf16.msra.mxu0 0
    %1795 = vmatpush.bf16.msra.mxu0 %v1708
    %1796 = vmatpush.bf16.msra.mxu0 %v1652
    %1797 = vmatpush.bf16.msra.mxu0 %v1644
    %1798 = vmatpush.bf16.msra.mxu0 %v1636
    %1799 = vmatmul.bf16.gmra.mxu0 %v1687
    %v1800 = vpop.f32.mrf.mxu0
    %v1801 = vadd.f32 %v1527, %v1800
    %v1802 = vpop.f32.mrf.mxu0
    %1803 = vdwg.mxu0
    %1804 = vmatpush.bf16.msra.mxu0 0
    %1805 = vmatpush.bf16.msra.mxu0 0
    %1806 = vmatpush.bf16.msra.mxu0 0
    %1807 = vmatpush.bf16.msra.mxu0 0
    %1808 = vmatpush.bf16.msra.mxu0 %v1711
    %1809 = vmatpush.bf16.msra.mxu0 %v1653
    %1810 = vmatpush.bf16.msra.mxu0 %v1645
    %1811 = vmatpush.bf16.msra.mxu0 %v1637
    %1812 = vmatmul.bf16.gmra.mxu0 %v1687
    %v1813 = vpop.f32.mrf.mxu0
    %v1814 = vadd.f32 %v1540, %v1813
    %v1815 = vpop.f32.mrf.mxu0
    %1816 = vdwg.mxu0
    %s1817 = scalar_lea.vmem [#allocation5], 448
    %v1818 = vld [vmem:[%s1817] sm:$0xff]
    %v1819 = vld [vmem:[%s1817 + $0x8] sm:$0xff]
    %v1820 = vld [vmem:[%s1817 + $0x10] sm:$0xff]
    %v1821 = vld [vmem:[%s1817 + $0x18] sm:$0xff]
    %v1822 = vld [vmem:[%s1817 + $0x20] sm:$0xff]
    %v1823 = vld [vmem:[%s1817 + $0x28] sm:$0xff]
    %v1824 = vld [vmem:[%s1817 + $0x30] sm:$0xff]
    %v1825 = vld [vmem:[%s1817 + $0x38] sm:$0xff]
    %v1826 = vld [vmem:[%s1817 + $0x40] sm:$0xff]
    %v1827 = vld [vmem:[%s1817 + $0x48] sm:$0xff]
    %v1828 = vld [vmem:[%s1817 + $0x50] sm:$0xff]
    %v1829 = vld [vmem:[%s1817 + $0x58] sm:$0xff]
    %v1830 = vld [vmem:[%s1817 + $0x60] sm:$0xff]
    %v1831 = vld [vmem:[%s1817 + $0x68] sm:$0xff]
    %v1832 = vld [vmem:[%s1817 + $0x70] sm:$0xff]
    %v1833 = vld [vmem:[%s1817 + $0x78] sm:$0xff]
    %v1834 = vld [vmem:[%s1817 + $0x80] sm:$0xff]
    %v1835 = vld [vmem:[%s1817 + $0x88] sm:$0xff]
    %v1836 = vld [vmem:[%s1817 + $0x90] sm:$0xff]
    %v1837 = vld [vmem:[%s1817 + $0x98] sm:$0xff]
    %v1838 = vld [vmem:[%s1817 + $0xa0] sm:$0xff]
    %v1839 = vld [vmem:[%s1817 + $0xa8] sm:$0xff]
    %v1840 = vld [vmem:[%s1817 + $0xb0] sm:$0xff]
    %v1841 = vld [vmem:[%s1817 + $0xb8] sm:$0xff]
    %v1842 = vld [vmem:[%s1817 + $0xc0] sm:$0x11]
    %v1843 = vld [vmem:[%s1817 + $0xc8] sm:$0x11]
    %v1844 = vld [vmem:[%s1817 + $0xd0] sm:$0x11]
    %v1845 = vld [vmem:[%s1817 + $0xd8] sm:$0x11]
    %v1846 = vrot.slane %v1266, 2
    %v1847 = vrot.slane %v1267, 1
    %v1848 = vsel %vm1269, %v1847, %v1846
    %v1849 = vpack.c.b16 %v1848, %v1848
    %v1878 = vunpack.c.l.b16 %v1818
    %v1879 = vunpack.c.h.b16 %v1818
    %v1880 = vunpack.c.l.b16 %v1819
    %v1881 = vunpack.c.h.b16 %v1819
    %v1882 = vunpack.c.l.b16 %v1820
    %v1883 = vunpack.c.h.b16 %v1820
    %v1884 = vunpack.c.l.b16 %v1821
    %v1885 = vunpack.c.h.b16 %v1821
    %v1886 = vunpack.c.l.b16 %v1822
    %v1887 = vunpack.c.h.b16 %v1822
    %v1888 = vunpack.c.l.b16 %v1823
    %v1889 = vunpack.c.h.b16 %v1823
    %v1890 = vunpack.c.l.b16 %v1824
    %v1891 = vunpack.c.h.b16 %v1824
    %v1892 = vunpack.c.l.b16 %v1825
    %v1893 = vunpack.c.h.b16 %v1825
    %v1894 = vunpack.c.l.b16 %v1826
    %v1895 = vunpack.c.h.b16 %v1826
    %v1896 = vunpack.c.l.b16 %v1827
    %v1897 = vunpack.c.h.b16 %v1827
    %v1898 = vunpack.c.l.b16 %v1828
    %v1899 = vunpack.c.h.b16 %v1828
    %v1900 = vunpack.c.l.b16 %v1829
    %v1901 = vunpack.c.h.b16 %v1829
    %v1902 = vunpack.c.l.b16 %v1830
    %v1903 = vunpack.c.h.b16 %v1830
    %v1904 = vunpack.c.l.b16 %v1831
    %v1905 = vunpack.c.h.b16 %v1831
    %v1906 = vunpack.c.l.b16 %v1832
    %v1907 = vunpack.c.h.b16 %v1832
    %v1908 = vunpack.c.l.b16 %v1833
    %v1909 = vunpack.c.h.b16 %v1833
    %v1910 = vunpack.c.l.b16 %v1834
    %v1911 = vunpack.c.h.b16 %v1834
    %v1912 = vunpack.c.l.b16 %v1835
    %v1913 = vunpack.c.h.b16 %v1835
    %v1914 = vunpack.c.l.b16 %v1836
    %v1915 = vunpack.c.h.b16 %v1836
    %v1916 = vunpack.c.l.b16 %v1837
    %v1917 = vunpack.c.h.b16 %v1837
    %v1918 = vunpack.c.l.b16 %v1838
    %v1919 = vunpack.c.h.b16 %v1838
    %v1920 = vunpack.c.l.b16 %v1839
    %v1921 = vunpack.c.h.b16 %v1839
    %v1922 = vunpack.c.l.b16 %v1840
    %v1923 = vunpack.c.h.b16 %v1840
    %v1924 = vunpack.c.l.b16 %v1841
    %v1925 = vunpack.c.h.b16 %v1841
    %v1926 = vunpack.c.l.b16 %v1842
    %v1927 = vunpack.c.h.b16 %v1842
    %v1928 = vunpack.c.l.b16 %v1843
    %v1929 = vunpack.c.h.b16 %v1843
    %v1930 = vunpack.c.l.b16 %v1844
    %v1931 = vunpack.c.h.b16 %v1844
    %v1932 = vunpack.c.l.b16 %v1845
    %v1933 = vunpack.c.h.b16 %v1845
    %v1934 = vpack.c.b16 %v1886, %v1878
    %v1935 = vpack.c.b16 %v1887, %v1879
    %v1936 = vpack.c.b16 %v1888, %v1880
    %v1937 = vpack.c.b16 %v1889, %v1881
    %v1938 = vpack.c.b16 %v1890, %v1882
    %v1939 = vpack.c.b16 %v1891, %v1883
    %v1940 = vpack.c.b16 %v1892, %v1884
    %v1941 = vpack.c.b16 %v1893, %v1885
    %v1942 = vpack.c.b16 %v1902, %v1894
    %v1943 = vpack.c.b16 %v1903, %v1895
    %v1944 = vpack.c.b16 %v1904, %v1896
    %v1945 = vpack.c.b16 %v1905, %v1897
    %v1946 = vpack.c.b16 %v1906, %v1898
    %v1947 = vpack.c.b16 %v1907, %v1899
    %v1948 = vpack.c.b16 %v1908, %v1900
    %v1949 = vpack.c.b16 %v1909, %v1901
    %v1950 = vpack.c.b16 %v1918, %v1910
    %v1951 = vpack.c.b16 %v1919, %v1911
    %v1952 = vpack.c.b16 %v1920, %v1912
    %v1953 = vpack.c.b16 %v1921, %v1913
    %v1954 = vpack.c.b16 %v1922, %v1914
    %v1955 = vpack.c.b16 %v1923, %v1915
    %v1956 = vpack.c.b16 %v1924, %v1916
    %v1957 = vpack.c.b16 %v1925, %v1917
    %v1958 = vpack.c.b16 %v1926, %v1926
    %v1959 = vpack.c.b16 %v1927, %v1927
    %v1960 = vpack.c.b16 %v1928, %v1928
    %v1961 = vpack.c.b16 %v1929, %v1929
    %v1962 = vpack.c.b16 %v1930, %v1930
    %v1963 = vpack.c.b16 %v1931, %v1931
    %v1964 = vpack.c.b16 %v1932, %v1932
    %v1965 = vpack.c.b16 %v1933, %v1933
    %v1991 = vsel %vm188, %v1849, 0
    %v1994 = vsel %vm642, %v1958, 0
    %v1997 = vsel %vm642, %v1959, 0
    %v2000 = vsel %vm642, %v1960, 0
    %v2003 = vsel %vm642, %v1961, 0
    %v2006 = vsel %vm642, %v1962, 0
    %v2009 = vsel %vm642, %v1963, 0
    %v2012 = vsel %vm642, %v1964, 0
    %v2015 = vsel %vm642, %v1965, 0
    %2017 = vmatpush.bf16.msra.mxu0 0
    %2018 = vmatpush.bf16.msra.mxu0 0
    %2019 = vmatpush.bf16.msra.mxu0 0
    %2020 = vmatpush.bf16.msra.mxu0 0
    %2021 = vmatpush.bf16.msra.mxu0 %v1994
    %2022 = vmatpush.bf16.msra.mxu0 %v1950
    %2023 = vmatpush.bf16.msra.mxu0 %v1942
    %2024 = vmatpush.bf16.msra.mxu0 %v1934
    %2025 = vmatmul.bf16.gmra.mxu0 %v1991
    %v2026 = vpop.f32.mrf.mxu0
    %v2027 = vadd.f32 0.0, %v2026
    %v2028 = vpop.f32.mrf.mxu0
    %2029 = vdwg.mxu0
    %2030 = vmatpush.bf16.msra.mxu0 0
    %2031 = vmatpush.bf16.msra.mxu0 0
    %2032 = vmatpush.bf16.msra.mxu0 0
    %2033 = vmatpush.bf16.msra.mxu0 0
    %2034 = vmatpush.bf16.msra.mxu0 %v1997
    %2035 = vmatpush.bf16.msra.mxu0 %v1951
    %2036 = vmatpush.bf16.msra.mxu0 %v1943
    %2037 = vmatpush.bf16.msra.mxu0 %v1935
    %2038 = vmatmul.bf16.gmra.mxu0 %v1991
    %v2039 = vpop.f32.mrf.mxu0
    %v2040 = vadd.f32 0.0, %v2039
    %v2041 = vpop.f32.mrf.mxu0
    %2042 = vdwg.mxu0
    %2043 = vmatpush.bf16.msra.mxu0 0
    %2044 = vmatpush.bf16.msra.mxu0 0
    %2045 = vmatpush.bf16.msra.mxu0 0
    %2046 = vmatpush.bf16.msra.mxu0 0
    %2047 = vmatpush.bf16.msra.mxu0 %v2000
    %2048 = vmatpush.bf16.msra.mxu0 %v1952
    %2049 = vmatpush.bf16.msra.mxu0 %v1944
    %2050 = vmatpush.bf16.msra.mxu0 %v1936
    %2051 = vmatmul.bf16.gmra.mxu0 %v1991
    %v2052 = vpop.f32.mrf.mxu0
    %v2053 = vadd.f32 0.0, %v2052
    %v2054 = vpop.f32.mrf.mxu0
    %2055 = vdwg.mxu0
    %2056 = vmatpush.bf16.msra.mxu0 0
    %2057 = vmatpush.bf16.msra.mxu0 0
    %2058 = vmatpush.bf16.msra.mxu0 0
    %2059 = vmatpush.bf16.msra.mxu0 0
    %2060 = vmatpush.bf16.msra.mxu0 %v2003
    %2061 = vmatpush.bf16.msra.mxu0 %v1953
    %2062 = vmatpush.bf16.msra.mxu0 %v1945
    %2063 = vmatpush.bf16.msra.mxu0 %v1937
    %2064 = vmatmul.bf16.gmra.mxu0 %v1991
    %v2065 = vpop.f32.mrf.mxu0
    %v2066 = vadd.f32 0.0, %v2065
    %v2067 = vpop.f32.mrf.mxu0
    %2068 = vdwg.mxu0
    %2069 = vmatpush.bf16.msra.mxu0 0
    %2070 = vmatpush.bf16.msra.mxu0 0
    %2071 = vmatpush.bf16.msra.mxu0 0
    %2072 = vmatpush.bf16.msra.mxu0 0
    %2073 = vmatpush.bf16.msra.mxu0 %v2006
    %2074 = vmatpush.bf16.msra.mxu0 %v1954
    %2075 = vmatpush.bf16.msra.mxu0 %v1946
    %2076 = vmatpush.bf16.msra.mxu0 %v1938
    %2077 = vmatmul.bf16.gmra.mxu0 %v1991
    %v2078 = vpop.f32.mrf.mxu0
    %v2079 = vadd.f32 0.0, %v2078
    %v2080 = vpop.f32.mrf.mxu0
    %2081 = vdwg.mxu0
    %2082 = vmatpush.bf16.msra.mxu0 0
    %2083 = vmatpush.bf16.msra.mxu0 0
    %2084 = vmatpush.bf16.msra.mxu0 0
    %2085 = vmatpush.bf16.msra.mxu0 0
    %2086 = vmatpush.bf16.msra.mxu0 %v2009
    %2087 = vmatpush.bf16.msra.mxu0 %v1955
    %2088 = vmatpush.bf16.msra.mxu0 %v1947
    %2089 = vmatpush.bf16.msra.mxu0 %v1939
    %2090 = vmatmul.bf16.gmra.mxu0 %v1991
    %v2091 = vpop.f32.mrf.mxu0
    %v2092 = vadd.f32 0.0, %v2091
    %v2093 = vpop.f32.mrf.mxu0
    %2094 = vdwg.mxu0
    %2095 = vmatpush.bf16.msra.mxu0 0
    %2096 = vmatpush.bf16.msra.mxu0 0
    %2097 = vmatpush.bf16.msra.mxu0 0
    %2098 = vmatpush.bf16.msra.mxu0 0
    %2099 = vmatpush.bf16.msra.mxu0 %v2012
    %2100 = vmatpush.bf16.msra.mxu0 %v1956
    %2101 = vmatpush.bf16.msra.mxu0 %v1948
    %2102 = vmatpush.bf16.msra.mxu0 %v1940
    %2103 = vmatmul.bf16.gmra.mxu0 %v1991
    %v2104 = vpop.f32.mrf.mxu0
    %v2105 = vadd.f32 0.0, %v2104
    %v2106 = vpop.f32.mrf.mxu0
    %2107 = vdwg.mxu0
    %2108 = vmatpush.bf16.msra.mxu0 0
    %2109 = vmatpush.bf16.msra.mxu0 0
    %2110 = vmatpush.bf16.msra.mxu0 0
    %2111 = vmatpush.bf16.msra.mxu0 0
    %2112 = vmatpush.bf16.msra.mxu0 %v2015
    %2113 = vmatpush.bf16.msra.mxu0 %v1957
    %2114 = vmatpush.bf16.msra.mxu0 %v1949
    %2115 = vmatpush.bf16.msra.mxu0 %v1941
    %2116 = vmatmul.bf16.gmra.mxu0 %v1991
    %v2117 = vpop.f32.mrf.mxu0
    %v2118 = vadd.f32 0.0, %v2117
    %v2119 = vpop.f32.mrf.mxu0
    %2120 = vdwg.mxu0
    %v2121 = vadd.f32 %v1723, %v2027
    %v2122 = vadd.f32 %v1736, %v2040
    %v2123 = vadd.f32 %v1749, %v2053
    %v2124 = vadd.f32 %v1762, %v2066
    %v2125 = vadd.f32 %v1775, %v2079
    %v2126 = vadd.f32 %v1788, %v2092
    %v2127 = vadd.f32 %v1801, %v2105
    %v2128 = vadd.f32 %v1814, %v2118
    %s2129 = scalar_lea.vmem [#allocation5], 672
    %v2130 = vld [vmem:[%s2129] sm:$0xff]
    %v2131 = vld [vmem:[%s2129 + $0x8] sm:$0xff]
    %v2132 = vld [vmem:[%s2129 + $0x10] sm:$0xff]
    %v2133 = vld [vmem:[%s2129 + $0x18] sm:$0xff]
    %v2134 = vld [vmem:[%s2129 + $0x20] sm:$0xff]
    %v2135 = vld [vmem:[%s2129 + $0x28] sm:$0xff]
    %v2136 = vld [vmem:[%s2129 + $0x30] sm:$0xff]
    %v2137 = vld [vmem:[%s2129 + $0x38] sm:$0xff]
    %v2138 = vld [vmem:[%s2129 + $0x40] sm:$0xff]
    %v2139 = vld [vmem:[%s2129 + $0x48] sm:$0xff]
    %v2140 = vld [vmem:[%s2129 + $0x50] sm:$0xff]
    %v2141 = vld [vmem:[%s2129 + $0x58] sm:$0xff]
    %v2142 = vld [vmem:[%s2129 + $0x60] sm:$0xff]
    %v2143 = vld [vmem:[%s2129 + $0x68] sm:$0xff]
    %v2144 = vld [vmem:[%s2129 + $0x70] sm:$0xff]
    %v2145 = vld [vmem:[%s2129 + $0x78] sm:$0xff]
    %v2146 = vld [vmem:[%s2129 + $0x80] sm:$0xff]
    %v2147 = vld [vmem:[%s2129 + $0x88] sm:$0xff]
    %v2148 = vld [vmem:[%s2129 + $0x90] sm:$0xff]
    %v2149 = vld [vmem:[%s2129 + $0x98] sm:$0xff]
    %v2150 = vld [vmem:[%s2129 + $0xa0] sm:$0xff]
    %v2151 = vld [vmem:[%s2129 + $0xa8] sm:$0xff]
    %v2152 = vld [vmem:[%s2129 + $0xb0] sm:$0xff]
    %v2153 = vld [vmem:[%s2129 + $0xb8] sm:$0xff]
    %v2154 = vld [vmem:[%s2129 + $0xc0] sm:$0x11]
    %v2155 = vld [vmem:[%s2129 + $0xc8] sm:$0x11]
    %v2156 = vld [vmem:[%s2129 + $0xd0] sm:$0x11]
    %v2157 = vld [vmem:[%s2129 + $0xd8] sm:$0x11]
    %v2158 = vrot.slane %v1266, 3
    %v2159 = vrot.slane %v1267, 2
    %v2160 = vsel %vm1269, %v2159, %v2158
    %v2161 = vpack.c.b16 %v2160, %v2160
    %v2190 = vunpack.c.l.b16 %v2130
    %v2191 = vunpack.c.h.b16 %v2130
    %v2192 = vunpack.c.l.b16 %v2131
    %v2193 = vunpack.c.h.b16 %v2131
    %v2194 = vunpack.c.l.b16 %v2132
    %v2195 = vunpack.c.h.b16 %v2132
    %v2196 = vunpack.c.l.b16 %v2133
    %v2197 = vunpack.c.h.b16 %v2133
    %v2198 = vunpack.c.l.b16 %v2134
    %v2199 = vunpack.c.h.b16 %v2134
    %v2200 = vunpack.c.l.b16 %v2135
    %v2201 = vunpack.c.h.b16 %v2135
    %v2202 = vunpack.c.l.b16 %v2136
    %v2203 = vunpack.c.h.b16 %v2136
    %v2204 = vunpack.c.l.b16 %v2137
    %v2205 = vunpack.c.h.b16 %v2137
    %v2206 = vunpack.c.l.b16 %v2138
    %v2207 = vunpack.c.h.b16 %v2138
    %v2208 = vunpack.c.l.b16 %v2139
    %v2209 = vunpack.c.h.b16 %v2139
    %v2210 = vunpack.c.l.b16 %v2140
    %v2211 = vunpack.c.h.b16 %v2140
    %v2212 = vunpack.c.l.b16 %v2141
    %v2213 = vunpack.c.h.b16 %v2141
    %v2214 = vunpack.c.l.b16 %v2142
    %v2215 = vunpack.c.h.b16 %v2142
    %v2216 = vunpack.c.l.b16 %v2143
    %v2217 = vunpack.c.h.b16 %v2143
    %v2218 = vunpack.c.l.b16 %v2144
    %v2219 = vunpack.c.h.b16 %v2144
    %v2220 = vunpack.c.l.b16 %v2145
    %v2221 = vunpack.c.h.b16 %v2145
    %v2222 = vunpack.c.l.b16 %v2146
    %v2223 = vunpack.c.h.b16 %v2146
    %v2224 = vunpack.c.l.b16 %v2147
    %v2225 = vunpack.c.h.b16 %v2147
    %v2226 = vunpack.c.l.b16 %v2148
    %v2227 = vunpack.c.h.b16 %v2148
    %v2228 = vunpack.c.l.b16 %v2149
    %v2229 = vunpack.c.h.b16 %v2149
    %v2230 = vunpack.c.l.b16 %v2150
    %v2231 = vunpack.c.h.b16 %v2150
    %v2232 = vunpack.c.l.b16 %v2151
    %v2233 = vunpack.c.h.b16 %v2151
    %v2234 = vunpack.c.l.b16 %v2152
    %v2235 = vunpack.c.h.b16 %v2152
    %v2236 = vunpack.c.l.b16 %v2153
    %v2237 = vunpack.c.h.b16 %v2153
    %v2238 = vunpack.c.l.b16 %v2154
    %v2239 = vunpack.c.h.b16 %v2154
    %v2240 = vunpack.c.l.b16 %v2155
    %v2241 = vunpack.c.h.b16 %v2155
    %v2242 = vunpack.c.l.b16 %v2156
    %v2243 = vunpack.c.h.b16 %v2156
    %v2244 = vunpack.c.l.b16 %v2157
    %v2245 = vunpack.c.h.b16 %v2157
    %v2246 = vpack.c.b16 %v2198, %v2190
    %v2247 = vpack.c.b16 %v2199, %v2191
    %v2248 = vpack.c.b16 %v2200, %v2192
    %v2249 = vpack.c.b16 %v2201, %v2193
    %v2250 = vpack.c.b16 %v2202, %v2194
    %v2251 = vpack.c.b16 %v2203, %v2195
    %v2252 = vpack.c.b16 %v2204, %v2196
    %v2253 = vpack.c.b16 %v2205, %v2197
    %v2254 = vpack.c.b16 %v2214, %v2206
    %v2255 = vpack.c.b16 %v2215, %v2207
    %v2256 = vpack.c.b16 %v2216, %v2208
    %v2257 = vpack.c.b16 %v2217, %v2209
    %v2258 = vpack.c.b16 %v2218, %v2210
    %v2259 = vpack.c.b16 %v2219, %v2211
    %v2260 = vpack.c.b16 %v2220, %v2212
    %v2261 = vpack.c.b16 %v2221, %v2213
    %v2262 = vpack.c.b16 %v2230, %v2222
    %v2263 = vpack.c.b16 %v2231, %v2223
    %v2264 = vpack.c.b16 %v2232, %v2224
    %v2265 = vpack.c.b16 %v2233, %v2225
    %v2266 = vpack.c.b16 %v2234, %v2226
    %v2267 = vpack.c.b16 %v2235, %v2227
    %v2268 = vpack.c.b16 %v2236, %v2228
    %v2269 = vpack.c.b16 %v2237, %v2229
    %v2270 = vpack.c.b16 %v2238, %v2238
    %v2271 = vpack.c.b16 %v2239, %v2239
    %v2272 = vpack.c.b16 %v2240, %v2240
    %v2273 = vpack.c.b16 %v2241, %v2241
    %v2274 = vpack.c.b16 %v2242, %v2242
    %v2275 = vpack.c.b16 %v2243, %v2243
    %v2276 = vpack.c.b16 %v2244, %v2244
    %v2277 = vpack.c.b16 %v2245, %v2245
    %v2303 = vsel %vm188, %v2161, 0
    %v2306 = vsel %vm642, %v2270, 0
    %v2309 = vsel %vm642, %v2271, 0
    %v2312 = vsel %vm642, %v2272, 0
    %v2315 = vsel %vm642, %v2273, 0
    %v2318 = vsel %vm642, %v2274, 0
    %v2321 = vsel %vm642, %v2275, 0
    %v2324 = vsel %vm642, %v2276, 0
    %v2327 = vsel %vm642, %v2277, 0
    %2329 = vmatpush.bf16.msra.mxu0 0
    %2330 = vmatpush.bf16.msra.mxu0 0
    %2331 = vmatpush.bf16.msra.mxu0 0
    %2332 = vmatpush.bf16.msra.mxu0 0
    %2333 = vmatpush.bf16.msra.mxu0 %v2306
    %2334 = vmatpush.bf16.msra.mxu0 %v2262
    %2335 = vmatpush.bf16.msra.mxu0 %v2254
    %2336 = vmatpush.bf16.msra.mxu0 %v2246
    %2337 = vmatmul.bf16.gmra.mxu0 %v2303
    %v2338 = vpop.f32.mrf.mxu0
    %v2339 = vadd.f32 0.0, %v2338
    %v2340 = vpop.f32.mrf.mxu0
    %2341 = vdwg.mxu0
    %2342 = vmatpush.bf16.msra.mxu0 0
    %2343 = vmatpush.bf16.msra.mxu0 0
    %2344 = vmatpush.bf16.msra.mxu0 0
    %2345 = vmatpush.bf16.msra.mxu0 0
    %2346 = vmatpush.bf16.msra.mxu0 %v2309
    %2347 = vmatpush.bf16.msra.mxu0 %v2263
    %2348 = vmatpush.bf16.msra.mxu0 %v2255
    %2349 = vmatpush.bf16.msra.mxu0 %v2247
    %2350 = vmatmul.bf16.gmra.mxu0 %v2303
    %v2351 = vpop.f32.mrf.mxu0
    %v2352 = vadd.f32 0.0, %v2351
    %v2353 = vpop.f32.mrf.mxu0
    %2354 = vdwg.mxu0
    %2355 = vmatpush.bf16.msra.mxu0 0
    %2356 = vmatpush.bf16.msra.mxu0 0
    %2357 = vmatpush.bf16.msra.mxu0 0
    %2358 = vmatpush.bf16.msra.mxu0 0
    %2359 = vmatpush.bf16.msra.mxu0 %v2312
    %2360 = vmatpush.bf16.msra.mxu0 %v2264
    %2361 = vmatpush.bf16.msra.mxu0 %v2256
    %2362 = vmatpush.bf16.msra.mxu0 %v2248
    %2363 = vmatmul.bf16.gmra.mxu0 %v2303
    %v2364 = vpop.f32.mrf.mxu0
    %v2365 = vadd.f32 0.0, %v2364
    %v2366 = vpop.f32.mrf.mxu0
    %2367 = vdwg.mxu0
    %2368 = vmatpush.bf16.msra.mxu0 0
    %2369 = vmatpush.bf16.msra.mxu0 0
    %2370 = vmatpush.bf16.msra.mxu0 0
    %2371 = vmatpush.bf16.msra.mxu0 0
    %2372 = vmatpush.bf16.msra.mxu0 %v2315
    %2373 = vmatpush.bf16.msra.mxu0 %v2265
    %2374 = vmatpush.bf16.msra.mxu0 %v2257
    %2375 = vmatpush.bf16.msra.mxu0 %v2249
    %2376 = vmatmul.bf16.gmra.mxu0 %v2303
    %v2377 = vpop.f32.mrf.mxu0
    %v2378 = vadd.f32 0.0, %v2377
    %v2379 = vpop.f32.mrf.mxu0
    %2380 = vdwg.mxu0
    %2381 = vmatpush.bf16.msra.mxu0 0
    %2382 = vmatpush.bf16.msra.mxu0 0
    %2383 = vmatpush.bf16.msra.mxu0 0
    %2384 = vmatpush.bf16.msra.mxu0 0
    %2385 = vmatpush.bf16.msra.mxu0 %v2318
    %2386 = vmatpush.bf16.msra.mxu0 %v2266
    %2387 = vmatpush.bf16.msra.mxu0 %v2258
    %2388 = vmatpush.bf16.msra.mxu0 %v2250
    %2389 = vmatmul.bf16.gmra.mxu0 %v2303
    %v2390 = vpop.f32.mrf.mxu0
    %v2391 = vadd.f32 0.0, %v2390
    %v2392 = vpop.f32.mrf.mxu0
    %2393 = vdwg.mxu0
    %2394 = vmatpush.bf16.msra.mxu0 0
    %2395 = vmatpush.bf16.msra.mxu0 0
    %2396 = vmatpush.bf16.msra.mxu0 0
    %2397 = vmatpush.bf16.msra.mxu0 0
    %2398 = vmatpush.bf16.msra.mxu0 %v2321
    %2399 = vmatpush.bf16.msra.mxu0 %v2267
    %2400 = vmatpush.bf16.msra.mxu0 %v2259
    %2401 = vmatpush.bf16.msra.mxu0 %v2251
    %2402 = vmatmul.bf16.gmra.mxu0 %v2303
    %v2403 = vpop.f32.mrf.mxu0
    %v2404 = vadd.f32 0.0, %v2403
    %v2405 = vpop.f32.mrf.mxu0
    %2406 = vdwg.mxu0
    %2407 = vmatpush.bf16.msra.mxu0 0
    %2408 = vmatpush.bf16.msra.mxu0 0
    %2409 = vmatpush.bf16.msra.mxu0 0
    %2410 = vmatpush.bf16.msra.mxu0 0
    %2411 = vmatpush.bf16.msra.mxu0 %v2324
    %2412 = vmatpush.bf16.msra.mxu0 %v2268
    %2413 = vmatpush.bf16.msra.mxu0 %v2260
    %2414 = vmatpush.bf16.msra.mxu0 %v2252
    %2415 = vmatmul.bf16.gmra.mxu0 %v2303
    %v2416 = vpop.f32.mrf.mxu0
    %v2417 = vadd.f32 0.0, %v2416
    %v2418 = vpop.f32.mrf.mxu0
    %2419 = vdwg.mxu0
    %2420 = vmatpush.bf16.msra.mxu0 0
    %2421 = vmatpush.bf16.msra.mxu0 0
    %2422 = vmatpush.bf16.msra.mxu0 0
    %2423 = vmatpush.bf16.msra.mxu0 0
    %2424 = vmatpush.bf16.msra.mxu0 %v2327
    %2425 = vmatpush.bf16.msra.mxu0 %v2269
    %2426 = vmatpush.bf16.msra.mxu0 %v2261
    %2427 = vmatpush.bf16.msra.mxu0 %v2253
    %2428 = vmatmul.bf16.gmra.mxu0 %v2303
    %v2429 = vpop.f32.mrf.mxu0
    %v2430 = vadd.f32 0.0, %v2429
    %v2431 = vpop.f32.mrf.mxu0
    %2432 = vdwg.mxu0
    %v2433 = vadd.f32 %v2121, %v2339
    %v2434 = vadd.f32 %v2122, %v2352
    %v2435 = vadd.f32 %v2123, %v2365
    %v2436 = vadd.f32 %v2124, %v2378
    %v2437 = vadd.f32 %v2125, %v2391
    %v2438 = vadd.f32 %v2126, %v2404
    %v2439 = vadd.f32 %v2127, %v2417
    %v2440 = vadd.f32 %v2128, %v2430
    %s2441 = scalar_lea.vmem [#allocation5], 896
    %v2442 = vld [vmem:[%s2441] sm:$0xff]
    %v2443 = vld [vmem:[%s2441 + $0x8] sm:$0xff]
    %v2444 = vld [vmem:[%s2441 + $0x10] sm:$0xff]
    %v2445 = vld [vmem:[%s2441 + $0x18] sm:$0xff]
    %v2446 = vld [vmem:[%s2441 + $0x20] sm:$0xff]
    %v2447 = vld [vmem:[%s2441 + $0x28] sm:$0xff]
    %v2448 = vld [vmem:[%s2441 + $0x30] sm:$0xff]
    %v2449 = vld [vmem:[%s2441 + $0x38] sm:$0xff]
    %v2450 = vld [vmem:[%s2441 + $0x40] sm:$0xff]
    %v2451 = vld [vmem:[%s2441 + $0x48] sm:$0xff]
    %v2452 = vld [vmem:[%s2441 + $0x50] sm:$0xff]
    %v2453 = vld [vmem:[%s2441 + $0x58] sm:$0xff]
    %v2454 = vld [vmem:[%s2441 + $0x60] sm:$0xff]
    %v2455 = vld [vmem:[%s2441 + $0x68] sm:$0xff]
    %v2456 = vld [vmem:[%s2441 + $0x70] sm:$0xff]
    %v2457 = vld [vmem:[%s2441 + $0x78] sm:$0xff]
    %v2458 = vld [vmem:[%s2441 + $0x80] sm:$0xff]
    %v2459 = vld [vmem:[%s2441 + $0x88] sm:$0xff]
    %v2460 = vld [vmem:[%s2441 + $0x90] sm:$0xff]
    %v2461 = vld [vmem:[%s2441 + $0x98] sm:$0xff]
    %v2462 = vld [vmem:[%s2441 + $0xa0] sm:$0xff]
    %v2463 = vld [vmem:[%s2441 + $0xa8] sm:$0xff]
    %v2464 = vld [vmem:[%s2441 + $0xb0] sm:$0xff]
    %v2465 = vld [vmem:[%s2441 + $0xb8] sm:$0xff]
    %v2466 = vld [vmem:[%s2441 + $0xc0] sm:$0x11]
    %v2467 = vld [vmem:[%s2441 + $0xc8] sm:$0x11]
    %v2468 = vld [vmem:[%s2441 + $0xd0] sm:$0x11]
    %v2469 = vld [vmem:[%s2441 + $0xd8] sm:$0x11]
    %v2470 = vrot.slane %v1266, 4
    %v2471 = vrot.slane %v1267, 3
    %v2472 = vsel %vm1269, %v2471, %v2470
    %v2473 = vpack.c.b16 %v2472, %v2472
    %v2502 = vunpack.c.l.b16 %v2442
    %v2503 = vunpack.c.h.b16 %v2442
    %v2504 = vunpack.c.l.b16 %v2443
    %v2505 = vunpack.c.h.b16 %v2443
    %v2506 = vunpack.c.l.b16 %v2444
    %v2507 = vunpack.c.h.b16 %v2444
    %v2508 = vunpack.c.l.b16 %v2445
    %v2509 = vunpack.c.h.b16 %v2445
    %v2510 = vunpack.c.l.b16 %v2446
    %v2511 = vunpack.c.h.b16 %v2446
    %v2512 = vunpack.c.l.b16 %v2447
    %v2513 = vunpack.c.h.b16 %v2447
    %v2514 = vunpack.c.l.b16 %v2448
    %v2515 = vunpack.c.h.b16 %v2448
    %v2516 = vunpack.c.l.b16 %v2449
    %v2517 = vunpack.c.h.b16 %v2449
    %v2518 = vunpack.c.l.b16 %v2450
    %v2519 = vunpack.c.h.b16 %v2450
    %v2520 = vunpack.c.l.b16 %v2451
    %v2521 = vunpack.c.h.b16 %v2451
    %v2522 = vunpack.c.l.b16 %v2452
    %v2523 = vunpack.c.h.b16 %v2452
    %v2524 = vunpack.c.l.b16 %v2453
    %v2525 = vunpack.c.h.b16 %v2453
    %v2526 = vunpack.c.l.b16 %v2454
    %v2527 = vunpack.c.h.b16 %v2454
    %v2528 = vunpack.c.l.b16 %v2455
    %v2529 = vunpack.c.h.b16 %v2455
    %v2530 = vunpack.c.l.b16 %v2456
    %v2531 = vunpack.c.h.b16 %v2456
    %v2532 = vunpack.c.l.b16 %v2457
    %v2533 = vunpack.c.h.b16 %v2457
    %v2534 = vunpack.c.l.b16 %v2458
    %v2535 = vunpack.c.h.b16 %v2458
    %v2536 = vunpack.c.l.b16 %v2459
    %v2537 = vunpack.c.h.b16 %v2459
    %v2538 = vunpack.c.l.b16 %v2460
    %v2539 = vunpack.c.h.b16 %v2460
    %v2540 = vunpack.c.l.b16 %v2461
    %v2541 = vunpack.c.h.b16 %v2461
    %v2542 = vunpack.c.l.b16 %v2462
    %v2543 = vunpack.c.h.b16 %v2462
    %v2544 = vunpack.c.l.b16 %v2463
    %v2545 = vunpack.c.h.b16 %v2463
    %v2546 = vunpack.c.l.b16 %v2464
    %v2547 = vunpack.c.h.b16 %v2464
    %v2548 = vunpack.c.l.b16 %v2465
    %v2549 = vunpack.c.h.b16 %v2465
    %v2550 = vunpack.c.l.b16 %v2466
    %v2551 = vunpack.c.h.b16 %v2466
    %v2552 = vunpack.c.l.b16 %v2467
    %v2553 = vunpack.c.h.b16 %v2467
    %v2554 = vunpack.c.l.b16 %v2468
    %v2555 = vunpack.c.h.b16 %v2468
    %v2556 = vunpack.c.l.b16 %v2469
    %v2557 = vunpack.c.h.b16 %v2469
    %v2558 = vpack.c.b16 %v2510, %v2502
    %v2559 = vpack.c.b16 %v2511, %v2503
    %v2560 = vpack.c.b16 %v2512, %v2504
    %v2561 = vpack.c.b16 %v2513, %v2505
    %v2562 = vpack.c.b16 %v2514, %v2506
    %v2563 = vpack.c.b16 %v2515, %v2507
    %v2564 = vpack.c.b16 %v2516, %v2508
    %v2565 = vpack.c.b16 %v2517, %v2509
    %v2566 = vpack.c.b16 %v2526, %v2518
    %v2567 = vpack.c.b16 %v2527, %v2519
    %v2568 = vpack.c.b16 %v2528, %v2520
    %v2569 = vpack.c.b16 %v2529, %v2521
    %v2570 = vpack.c.b16 %v2530, %v2522
    %v2571 = vpack.c.b16 %v2531, %v2523
    %v2572 = vpack.c.b16 %v2532, %v2524
    %v2573 = vpack.c.b16 %v2533, %v2525
    %v2574 = vpack.c.b16 %v2542, %v2534
    %v2575 = vpack.c.b16 %v2543, %v2535
    %v2576 = vpack.c.b16 %v2544, %v2536
    %v2577 = vpack.c.b16 %v2545, %v2537
    %v2578 = vpack.c.b16 %v2546, %v2538
    %v2579 = vpack.c.b16 %v2547, %v2539
    %v2580 = vpack.c.b16 %v2548, %v2540
    %v2581 = vpack.c.b16 %v2549, %v2541
    %v2582 = vpack.c.b16 %v2550, %v2550
    %v2583 = vpack.c.b16 %v2551, %v2551
    %v2584 = vpack.c.b16 %v2552, %v2552
    %v2585 = vpack.c.b16 %v2553, %v2553
    %v2586 = vpack.c.b16 %v2554, %v2554
    %v2587 = vpack.c.b16 %v2555, %v2555
    %v2588 = vpack.c.b16 %v2556, %v2556
    %v2589 = vpack.c.b16 %v2557, %v2557
    %v2615 = vsel %vm188, %v2473, 0
    %v2618 = vsel %vm642, %v2582, 0
    %v2621 = vsel %vm642, %v2583, 0
    %v2624 = vsel %vm642, %v2584, 0
    %v2627 = vsel %vm642, %v2585, 0
    %v2630 = vsel %vm642, %v2586, 0
    %v2633 = vsel %vm642, %v2587, 0
    %v2636 = vsel %vm642, %v2588, 0
    %v2639 = vsel %vm642, %v2589, 0
    %2641 = vmatpush.bf16.msra.mxu0 0
    %2642 = vmatpush.bf16.msra.mxu0 0
    %2643 = vmatpush.bf16.msra.mxu0 0
    %2644 = vmatpush.bf16.msra.mxu0 0
    %2645 = vmatpush.bf16.msra.mxu0 %v2618
    %2646 = vmatpush.bf16.msra.mxu0 %v2574
    %2647 = vmatpush.bf16.msra.mxu0 %v2566
    %2648 = vmatpush.bf16.msra.mxu0 %v2558
    %2649 = vmatmul.bf16.gmra.mxu0 %v2615
    %v2650 = vpop.f32.mrf.mxu0
    %v2651 = vadd.f32 0.0, %v2650
    %v2652 = vpop.f32.mrf.mxu0
    %2653 = vdwg.mxu0
    %2654 = vmatpush.bf16.msra.mxu0 0
    %2655 = vmatpush.bf16.msra.mxu0 0
    %2656 = vmatpush.bf16.msra.mxu0 0
    %2657 = vmatpush.bf16.msra.mxu0 0
    %2658 = vmatpush.bf16.msra.mxu0 %v2621
    %2659 = vmatpush.bf16.msra.mxu0 %v2575
    %2660 = vmatpush.bf16.msra.mxu0 %v2567
    %2661 = vmatpush.bf16.msra.mxu0 %v2559
    %2662 = vmatmul.bf16.gmra.mxu0 %v2615
    %v2663 = vpop.f32.mrf.mxu0
    %v2664 = vadd.f32 0.0, %v2663
    %v2665 = vpop.f32.mrf.mxu0
    %2666 = vdwg.mxu0
    %2667 = vmatpush.bf16.msra.mxu0 0
    %2668 = vmatpush.bf16.msra.mxu0 0
    %2669 = vmatpush.bf16.msra.mxu0 0
    %2670 = vmatpush.bf16.msra.mxu0 0
    %2671 = vmatpush.bf16.msra.mxu0 %v2624
    %2672 = vmatpush.bf16.msra.mxu0 %v2576
    %2673 = vmatpush.bf16.msra.mxu0 %v2568
    %2674 = vmatpush.bf16.msra.mxu0 %v2560
    %2675 = vmatmul.bf16.gmra.mxu0 %v2615
    %v2676 = vpop.f32.mrf.mxu0
    %v2677 = vadd.f32 0.0, %v2676
    %v2678 = vpop.f32.mrf.mxu0
    %2679 = vdwg.mxu0
    %2680 = vmatpush.bf16.msra.mxu0 0
    %2681 = vmatpush.bf16.msra.mxu0 0
    %2682 = vmatpush.bf16.msra.mxu0 0
    %2683 = vmatpush.bf16.msra.mxu0 0
    %2684 = vmatpush.bf16.msra.mxu0 %v2627
    %2685 = vmatpush.bf16.msra.mxu0 %v2577
    %2686 = vmatpush.bf16.msra.mxu0 %v2569
    %2687 = vmatpush.bf16.msra.mxu0 %v2561
    %2688 = vmatmul.bf16.gmra.mxu0 %v2615
    %v2689 = vpop.f32.mrf.mxu0
    %v2690 = vadd.f32 0.0, %v2689
    %v2691 = vpop.f32.mrf.mxu0
    %2692 = vdwg.mxu0
    %2693 = vmatpush.bf16.msra.mxu0 0
    %2694 = vmatpush.bf16.msra.mxu0 0
    %2695 = vmatpush.bf16.msra.mxu0 0
    %2696 = vmatpush.bf16.msra.mxu0 0
    %2697 = vmatpush.bf16.msra.mxu0 %v2630
    %2698 = vmatpush.bf16.msra.mxu0 %v2578
    %2699 = vmatpush.bf16.msra.mxu0 %v2570
    %2700 = vmatpush.bf16.msra.mxu0 %v2562
    %2701 = vmatmul.bf16.gmra.mxu0 %v2615
    %v2702 = vpop.f32.mrf.mxu0
    %v2703 = vadd.f32 0.0, %v2702
    %v2704 = vpop.f32.mrf.mxu0
    %2705 = vdwg.mxu0
    %2706 = vmatpush.bf16.msra.mxu0 0
    %2707 = vmatpush.bf16.msra.mxu0 0
    %2708 = vmatpush.bf16.msra.mxu0 0
    %2709 = vmatpush.bf16.msra.mxu0 0
    %2710 = vmatpush.bf16.msra.mxu0 %v2633
    %2711 = vmatpush.bf16.msra.mxu0 %v2579
    %2712 = vmatpush.bf16.msra.mxu0 %v2571
    %2713 = vmatpush.bf16.msra.mxu0 %v2563
    %2714 = vmatmul.bf16.gmra.mxu0 %v2615
    %v2715 = vpop.f32.mrf.mxu0
    %v2716 = vadd.f32 0.0, %v2715
    %v2717 = vpop.f32.mrf.mxu0
    %2718 = vdwg.mxu0
    %2719 = vmatpush.bf16.msra.mxu0 0
    %2720 = vmatpush.bf16.msra.mxu0 0
    %2721 = vmatpush.bf16.msra.mxu0 0
    %2722 = vmatpush.bf16.msra.mxu0 0
    %2723 = vmatpush.bf16.msra.mxu0 %v2636
    %2724 = vmatpush.bf16.msra.mxu0 %v2580
    %2725 = vmatpush.bf16.msra.mxu0 %v2572
    %2726 = vmatpush.bf16.msra.mxu0 %v2564
    %2727 = vmatmul.bf16.gmra.mxu0 %v2615
    %v2728 = vpop.f32.mrf.mxu0
    %v2729 = vadd.f32 0.0, %v2728
    %v2730 = vpop.f32.mrf.mxu0
    %2731 = vdwg.mxu0
    %2732 = vmatpush.bf16.msra.mxu0 0
    %2733 = vmatpush.bf16.msra.mxu0 0
    %2734 = vmatpush.bf16.msra.mxu0 0
    %2735 = vmatpush.bf16.msra.mxu0 0
    %2736 = vmatpush.bf16.msra.mxu0 %v2639
    %2737 = vmatpush.bf16.msra.mxu0 %v2581
    %2738 = vmatpush.bf16.msra.mxu0 %v2573
    %2739 = vmatpush.bf16.msra.mxu0 %v2565
    %2740 = vmatmul.bf16.gmra.mxu0 %v2615
    %v2741 = vpop.f32.mrf.mxu0
    %v2742 = vadd.f32 0.0, %v2741
    %v2743 = vpop.f32.mrf.mxu0
    %2744 = vdwg.mxu0
    %v2745 = vadd.f32 %v2433, %v2651
    %v2746 = vadd.f32 %v2434, %v2664
    %v2747 = vadd.f32 %v2435, %v2677
    %v2748 = vadd.f32 %v2436, %v2690
    %v2749 = vadd.f32 %v2437, %v2703
    %v2750 = vadd.f32 %v2438, %v2716
    %v2751 = vadd.f32 %v2439, %v2729
    %v2752 = vadd.f32 %v2440, %v2742
    %s2753 = scalar_lea.vmem [#allocation5], 1120
    %v2754 = vld [vmem:[%s2753] sm:$0xff]
    %v2755 = vld [vmem:[%s2753 + $0x8] sm:$0xff]
    %v2756 = vld [vmem:[%s2753 + $0x10] sm:$0xff]
    %v2757 = vld [vmem:[%s2753 + $0x18] sm:$0xff]
    %v2758 = vld [vmem:[%s2753 + $0x20] sm:$0xff]
    %v2759 = vld [vmem:[%s2753 + $0x28] sm:$0xff]
    %v2760 = vld [vmem:[%s2753 + $0x30] sm:$0xff]
    %v2761 = vld [vmem:[%s2753 + $0x38] sm:$0xff]
    %v2762 = vld [vmem:[%s2753 + $0x40] sm:$0xff]
    %v2763 = vld [vmem:[%s2753 + $0x48] sm:$0xff]
    %v2764 = vld [vmem:[%s2753 + $0x50] sm:$0xff]
    %v2765 = vld [vmem:[%s2753 + $0x58] sm:$0xff]
    %v2766 = vld [vmem:[%s2753 + $0x60] sm:$0xff]
    %v2767 = vld [vmem:[%s2753 + $0x68] sm:$0xff]
    %v2768 = vld [vmem:[%s2753 + $0x70] sm:$0xff]
    %v2769 = vld [vmem:[%s2753 + $0x78] sm:$0xff]
    %v2770 = vld [vmem:[%s2753 + $0x80] sm:$0xff]
    %v2771 = vld [vmem:[%s2753 + $0x88] sm:$0xff]
    %v2772 = vld [vmem:[%s2753 + $0x90] sm:$0xff]
    %v2773 = vld [vmem:[%s2753 + $0x98] sm:$0xff]
    %v2774 = vld [vmem:[%s2753 + $0xa0] sm:$0xff]
    %v2775 = vld [vmem:[%s2753 + $0xa8] sm:$0xff]
    %v2776 = vld [vmem:[%s2753 + $0xb0] sm:$0xff]
    %v2777 = vld [vmem:[%s2753 + $0xb8] sm:$0xff]
    %v2778 = vld [vmem:[%s2753 + $0xc0] sm:$0x11]
    %v2779 = vld [vmem:[%s2753 + $0xc8] sm:$0x11]
    %v2780 = vld [vmem:[%s2753 + $0xd0] sm:$0x11]
    %v2781 = vld [vmem:[%s2753 + $0xd8] sm:$0x11]
    %v2782 = vrot.slane %v1266, 5
    %v2783 = vrot.slane %v1267, 4
    %v2784 = vsel %vm1269, %v2783, %v2782
    %v2785 = vpack.c.b16 %v2784, %v2784
    %v2814 = vunpack.c.l.b16 %v2754
    %v2815 = vunpack.c.h.b16 %v2754
    %v2816 = vunpack.c.l.b16 %v2755
    %v2817 = vunpack.c.h.b16 %v2755
    %v2818 = vunpack.c.l.b16 %v2756
    %v2819 = vunpack.c.h.b16 %v2756
    %v2820 = vunpack.c.l.b16 %v2757
    %v2821 = vunpack.c.h.b16 %v2757
    %v2822 = vunpack.c.l.b16 %v2758
    %v2823 = vunpack.c.h.b16 %v2758
    %v2824 = vunpack.c.l.b16 %v2759
    %v2825 = vunpack.c.h.b16 %v2759
    %v2826 = vunpack.c.l.b16 %v2760
    %v2827 = vunpack.c.h.b16 %v2760
    %v2828 = vunpack.c.l.b16 %v2761
    %v2829 = vunpack.c.h.b16 %v2761
    %v2830 = vunpack.c.l.b16 %v2762
    %v2831 = vunpack.c.h.b16 %v2762
    %v2832 = vunpack.c.l.b16 %v2763
    %v2833 = vunpack.c.h.b16 %v2763
    %v2834 = vunpack.c.l.b16 %v2764
    %v2835 = vunpack.c.h.b16 %v2764
    %v2836 = vunpack.c.l.b16 %v2765
    %v2837 = vunpack.c.h.b16 %v2765
    %v2838 = vunpack.c.l.b16 %v2766
    %v2839 = vunpack.c.h.b16 %v2766
    %v2840 = vunpack.c.l.b16 %v2767
    %v2841 = vunpack.c.h.b16 %v2767
    %v2842 = vunpack.c.l.b16 %v2768
    %v2843 = vunpack.c.h.b16 %v2768
    %v2844 = vunpack.c.l.b16 %v2769
    %v2845 = vunpack.c.h.b16 %v2769
    %v2846 = vunpack.c.l.b16 %v2770
    %v2847 = vunpack.c.h.b16 %v2770
    %v2848 = vunpack.c.l.b16 %v2771
    %v2849 = vunpack.c.h.b16 %v2771
    %v2850 = vunpack.c.l.b16 %v2772
    %v2851 = vunpack.c.h.b16 %v2772
    %v2852 = vunpack.c.l.b16 %v2773
    %v2853 = vunpack.c.h.b16 %v2773
    %v2854 = vunpack.c.l.b16 %v2774
    %v2855 = vunpack.c.h.b16 %v2774
    %v2856 = vunpack.c.l.b16 %v2775
    %v2857 = vunpack.c.h.b16 %v2775
    %v2858 = vunpack.c.l.b16 %v2776
    %v2859 = vunpack.c.h.b16 %v2776
    %v2860 = vunpack.c.l.b16 %v2777
    %v2861 = vunpack.c.h.b16 %v2777
    %v2862 = vunpack.c.l.b16 %v2778
    %v2863 = vunpack.c.h.b16 %v2778
    %v2864 = vunpack.c.l.b16 %v2779
    %v2865 = vunpack.c.h.b16 %v2779
    %v2866 = vunpack.c.l.b16 %v2780
    %v2867 = vunpack.c.h.b16 %v2780
    %v2868 = vunpack.c.l.b16 %v2781
    %v2869 = vunpack.c.h.b16 %v2781
    %v2870 = vpack.c.b16 %v2822, %v2814
    %v2871 = vpack.c.b16 %v2823, %v2815
    %v2872 = vpack.c.b16 %v2824, %v2816
    %v2873 = vpack.c.b16 %v2825, %v2817
    %v2874 = vpack.c.b16 %v2826, %v2818
    %v2875 = vpack.c.b16 %v2827, %v2819
    %v2876 = vpack.c.b16 %v2828, %v2820
    %v2877 = vpack.c.b16 %v2829, %v2821
    %v2878 = vpack.c.b16 %v2838, %v2830
    %v2879 = vpack.c.b16 %v2839, %v2831
    %v2880 = vpack.c.b16 %v2840, %v2832
    %v2881 = vpack.c.b16 %v2841, %v2833
    %v2882 = vpack.c.b16 %v2842, %v2834
    %v2883 = vpack.c.b16 %v2843, %v2835
    %v2884 = vpack.c.b16 %v2844, %v2836
    %v2885 = vpack.c.b16 %v2845, %v2837
    %v2886 = vpack.c.b16 %v2854, %v2846
    %v2887 = vpack.c.b16 %v2855, %v2847
    %v2888 = vpack.c.b16 %v2856, %v2848
    %v2889 = vpack.c.b16 %v2857, %v2849
    %v2890 = vpack.c.b16 %v2858, %v2850
    %v2891 = vpack.c.b16 %v2859, %v2851
    %v2892 = vpack.c.b16 %v2860, %v2852
    %v2893 = vpack.c.b16 %v2861, %v2853
    %v2894 = vpack.c.b16 %v2862, %v2862
    %v2895 = vpack.c.b16 %v2863, %v2863
    %v2896 = vpack.c.b16 %v2864, %v2864
    %v2897 = vpack.c.b16 %v2865, %v2865
    %v2898 = vpack.c.b16 %v2866, %v2866
    %v2899 = vpack.c.b16 %v2867, %v2867
    %v2900 = vpack.c.b16 %v2868, %v2868
    %v2901 = vpack.c.b16 %v2869, %v2869
    %v2927 = vsel %vm188, %v2785, 0
    %v2930 = vsel %vm642, %v2894, 0
    %v2933 = vsel %vm642, %v2895, 0
    %v2936 = vsel %vm642, %v2896, 0
    %v2939 = vsel %vm642, %v2897, 0
    %v2942 = vsel %vm642, %v2898, 0
    %v2945 = vsel %vm642, %v2899, 0
    %v2948 = vsel %vm642, %v2900, 0
    %v2951 = vsel %vm642, %v2901, 0
    %2953 = vmatpush.bf16.msra.mxu0 0
    %2954 = vmatpush.bf16.msra.mxu0 0
    %2955 = vmatpush.bf16.msra.mxu0 0
    %2956 = vmatpush.bf16.msra.mxu0 0
    %2957 = vmatpush.bf16.msra.mxu0 %v2930
    %2958 = vmatpush.bf16.msra.mxu0 %v2886
    %2959 = vmatpush.bf16.msra.mxu0 %v2878
    %2960 = vmatpush.bf16.msra.mxu0 %v2870
    %2961 = vmatmul.bf16.gmra.mxu0 %v2927
    %v2962 = vpop.f32.mrf.mxu0
    %v2963 = vadd.f32 0.0, %v2962
    %v2964 = vpop.f32.mrf.mxu0
    %2965 = vdwg.mxu0
    %2966 = vmatpush.bf16.msra.mxu0 0
    %2967 = vmatpush.bf16.msra.mxu0 0
    %2968 = vmatpush.bf16.msra.mxu0 0
    %2969 = vmatpush.bf16.msra.mxu0 0
    %2970 = vmatpush.bf16.msra.mxu0 %v2933
    %2971 = vmatpush.bf16.msra.mxu0 %v2887
    %2972 = vmatpush.bf16.msra.mxu0 %v2879
    %2973 = vmatpush.bf16.msra.mxu0 %v2871
    %2974 = vmatmul.bf16.gmra.mxu0 %v2927
    %v2975 = vpop.f32.mrf.mxu0
    %v2976 = vadd.f32 0.0, %v2975
    %v2977 = vpop.f32.mrf.mxu0
    %2978 = vdwg.mxu0
    %2979 = vmatpush.bf16.msra.mxu0 0
    %2980 = vmatpush.bf16.msra.mxu0 0
    %2981 = vmatpush.bf16.msra.mxu0 0
    %2982 = vmatpush.bf16.msra.mxu0 0
    %2983 = vmatpush.bf16.msra.mxu0 %v2936
    %2984 = vmatpush.bf16.msra.mxu0 %v2888
    %2985 = vmatpush.bf16.msra.mxu0 %v2880
    %2986 = vmatpush.bf16.msra.mxu0 %v2872
    %2987 = vmatmul.bf16.gmra.mxu0 %v2927
    %v2988 = vpop.f32.mrf.mxu0
    %v2989 = vadd.f32 0.0, %v2988
    %v2990 = vpop.f32.mrf.mxu0
    %2991 = vdwg.mxu0
    %2992 = vmatpush.bf16.msra.mxu0 0
    %2993 = vmatpush.bf16.msra.mxu0 0
    %2994 = vmatpush.bf16.msra.mxu0 0
    %2995 = vmatpush.bf16.msra.mxu0 0
    %2996 = vmatpush.bf16.msra.mxu0 %v2939
    %2997 = vmatpush.bf16.msra.mxu0 %v2889
    %2998 = vmatpush.bf16.msra.mxu0 %v2881
    %2999 = vmatpush.bf16.msra.mxu0 %v2873
    %3000 = vmatmul.bf16.gmra.mxu0 %v2927
    %v3001 = vpop.f32.mrf.mxu0
    %v3002 = vadd.f32 0.0, %v3001
    %v3003 = vpop.f32.mrf.mxu0
    %3004 = vdwg.mxu0
    %3005 = vmatpush.bf16.msra.mxu0 0
    %3006 = vmatpush.bf16.msra.mxu0 0
    %3007 = vmatpush.bf16.msra.mxu0 0
    %3008 = vmatpush.bf16.msra.mxu0 0
    %3009 = vmatpush.bf16.msra.mxu0 %v2942
    %3010 = vmatpush.bf16.msra.mxu0 %v2890
    %3011 = vmatpush.bf16.msra.mxu0 %v2882
    %3012 = vmatpush.bf16.msra.mxu0 %v2874
    %3013 = vmatmul.bf16.gmra.mxu0 %v2927
    %v3014 = vpop.f32.mrf.mxu0
    %v3015 = vadd.f32 0.0, %v3014
    %v3016 = vpop.f32.mrf.mxu0
    %3017 = vdwg.mxu0
    %3018 = vmatpush.bf16.msra.mxu0 0
    %3019 = vmatpush.bf16.msra.mxu0 0
    %3020 = vmatpush.bf16.msra.mxu0 0
    %3021 = vmatpush.bf16.msra.mxu0 0
    %3022 = vmatpush.bf16.msra.mxu0 %v2945
    %3023 = vmatpush.bf16.msra.mxu0 %v2891
    %3024 = vmatpush.bf16.msra.mxu0 %v2883
    %3025 = vmatpush.bf16.msra.mxu0 %v2875
    %3026 = vmatmul.bf16.gmra.mxu0 %v2927
    %v3027 = vpop.f32.mrf.mxu0
    %v3028 = vadd.f32 0.0, %v3027
    %v3029 = vpop.f32.mrf.mxu0
    %3030 = vdwg.mxu0
    %3031 = vmatpush.bf16.msra.mxu0 0
    %3032 = vmatpush.bf16.msra.mxu0 0
    %3033 = vmatpush.bf16.msra.mxu0 0
    %3034 = vmatpush.bf16.msra.mxu0 0
    %3035 = vmatpush.bf16.msra.mxu0 %v2948
    %3036 = vmatpush.bf16.msra.mxu0 %v2892
    %3037 = vmatpush.bf16.msra.mxu0 %v2884
    %3038 = vmatpush.bf16.msra.mxu0 %v2876
    %3039 = vmatmul.bf16.gmra.mxu0 %v2927
    %v3040 = vpop.f32.mrf.mxu0
    %v3041 = vadd.f32 0.0, %v3040
    %v3042 = vpop.f32.mrf.mxu0
    %3043 = vdwg.mxu0
    %3044 = vmatpush.bf16.msra.mxu0 0
    %3045 = vmatpush.bf16.msra.mxu0 0
    %3046 = vmatpush.bf16.msra.mxu0 0
    %3047 = vmatpush.bf16.msra.mxu0 0
    %3048 = vmatpush.bf16.msra.mxu0 %v2951
    %3049 = vmatpush.bf16.msra.mxu0 %v2893
    %3050 = vmatpush.bf16.msra.mxu0 %v2885
    %3051 = vmatpush.bf16.msra.mxu0 %v2877
    %3052 = vmatmul.bf16.gmra.mxu0 %v2927
    %v3053 = vpop.f32.mrf.mxu0
    %v3054 = vadd.f32 0.0, %v3053
    %v3055 = vpop.f32.mrf.mxu0
    %3056 = vdwg.mxu0
    %v3057 = vadd.f32 %v2745, %v2963
    %v3058 = vadd.f32 %v2746, %v2976
    %v3059 = vadd.f32 %v2747, %v2989
    %v3060 = vadd.f32 %v2748, %v3002
    %v3061 = vadd.f32 %v2749, %v3015
    %v3062 = vadd.f32 %v2750, %v3028
    %v3063 = vadd.f32 %v2751, %v3041
    %v3064 = vadd.f32 %v2752, %v3054
    %s3065 = scalar_lea.vmem [#allocation5], 1344
    %v3066 = vld [vmem:[%s3065] sm:$0xff]
    %v3067 = vld [vmem:[%s3065 + $0x8] sm:$0xff]
    %v3068 = vld [vmem:[%s3065 + $0x10] sm:$0xff]
    %v3069 = vld [vmem:[%s3065 + $0x18] sm:$0xff]
    %v3070 = vld [vmem:[%s3065 + $0x20] sm:$0xff]
    %v3071 = vld [vmem:[%s3065 + $0x28] sm:$0xff]
    %v3072 = vld [vmem:[%s3065 + $0x30] sm:$0xff]
    %v3073 = vld [vmem:[%s3065 + $0x38] sm:$0xff]
    %v3074 = vld [vmem:[%s3065 + $0x40] sm:$0xff]
    %v3075 = vld [vmem:[%s3065 + $0x48] sm:$0xff]
    %v3076 = vld [vmem:[%s3065 + $0x50] sm:$0xff]
    %v3077 = vld [vmem:[%s3065 + $0x58] sm:$0xff]
    %v3078 = vld [vmem:[%s3065 + $0x60] sm:$0xff]
    %v3079 = vld [vmem:[%s3065 + $0x68] sm:$0xff]
    %v3080 = vld [vmem:[%s3065 + $0x70] sm:$0xff]
    %v3081 = vld [vmem:[%s3065 + $0x78] sm:$0xff]
    %v3082 = vld [vmem:[%s3065 + $0x80] sm:$0xff]
    %v3083 = vld [vmem:[%s3065 + $0x88] sm:$0xff]
    %v3084 = vld [vmem:[%s3065 + $0x90] sm:$0xff]
    %v3085 = vld [vmem:[%s3065 + $0x98] sm:$0xff]
    %v3086 = vld [vmem:[%s3065 + $0xa0] sm:$0xff]
    %v3087 = vld [vmem:[%s3065 + $0xa8] sm:$0xff]
    %v3088 = vld [vmem:[%s3065 + $0xb0] sm:$0xff]
    %v3089 = vld [vmem:[%s3065 + $0xb8] sm:$0xff]
    %v3090 = vld [vmem:[%s3065 + $0xc0] sm:$0x11]
    %v3091 = vld [vmem:[%s3065 + $0xc8] sm:$0x11]
    %v3092 = vld [vmem:[%s3065 + $0xd0] sm:$0x11]
    %v3093 = vld [vmem:[%s3065 + $0xd8] sm:$0x11]
    %v3094 = vrot.slane %v1266, 6
    %v3095 = vrot.slane %v1267, 5
    %v3096 = vsel %vm1269, %v3095, %v3094
    %v3097 = vpack.c.b16 %v3096, %v3096
    %v3126 = vunpack.c.l.b16 %v3066
    %v3127 = vunpack.c.h.b16 %v3066
    %v3128 = vunpack.c.l.b16 %v3067
    %v3129 = vunpack.c.h.b16 %v3067
    %v3130 = vunpack.c.l.b16 %v3068
    %v3131 = vunpack.c.h.b16 %v3068
    %v3132 = vunpack.c.l.b16 %v3069
    %v3133 = vunpack.c.h.b16 %v3069
    %v3134 = vunpack.c.l.b16 %v3070
    %v3135 = vunpack.c.h.b16 %v3070
    %v3136 = vunpack.c.l.b16 %v3071
    %v3137 = vunpack.c.h.b16 %v3071
    %v3138 = vunpack.c.l.b16 %v3072
    %v3139 = vunpack.c.h.b16 %v3072
    %v3140 = vunpack.c.l.b16 %v3073
    %v3141 = vunpack.c.h.b16 %v3073
    %v3142 = vunpack.c.l.b16 %v3074
    %v3143 = vunpack.c.h.b16 %v3074
    %v3144 = vunpack.c.l.b16 %v3075
    %v3145 = vunpack.c.h.b16 %v3075
    %v3146 = vunpack.c.l.b16 %v3076
    %v3147 = vunpack.c.h.b16 %v3076
    %v3148 = vunpack.c.l.b16 %v3077
    %v3149 = vunpack.c.h.b16 %v3077
    %v3150 = vunpack.c.l.b16 %v3078
    %v3151 = vunpack.c.h.b16 %v3078
    %v3152 = vunpack.c.l.b16 %v3079
    %v3153 = vunpack.c.h.b16 %v3079
    %v3154 = vunpack.c.l.b16 %v3080
    %v3155 = vunpack.c.h.b16 %v3080
    %v3156 = vunpack.c.l.b16 %v3081
    %v3157 = vunpack.c.h.b16 %v3081
    %v3158 = vunpack.c.l.b16 %v3082
    %v3159 = vunpack.c.h.b16 %v3082
    %v3160 = vunpack.c.l.b16 %v3083
    %v3161 = vunpack.c.h.b16 %v3083
    %v3162 = vunpack.c.l.b16 %v3084
    %v3163 = vunpack.c.h.b16 %v3084
    %v3164 = vunpack.c.l.b16 %v3085
    %v3165 = vunpack.c.h.b16 %v3085
    %v3166 = vunpack.c.l.b16 %v3086
    %v3167 = vunpack.c.h.b16 %v3086
    %v3168 = vunpack.c.l.b16 %v3087
    %v3169 = vunpack.c.h.b16 %v3087
    %v3170 = vunpack.c.l.b16 %v3088
    %v3171 = vunpack.c.h.b16 %v3088
    %v3172 = vunpack.c.l.b16 %v3089
    %v3173 = vunpack.c.h.b16 %v3089
    %v3174 = vunpack.c.l.b16 %v3090
    %v3175 = vunpack.c.h.b16 %v3090
    %v3176 = vunpack.c.l.b16 %v3091
    %v3177 = vunpack.c.h.b16 %v3091
    %v3178 = vunpack.c.l.b16 %v3092
    %v3179 = vunpack.c.h.b16 %v3092
    %v3180 = vunpack.c.l.b16 %v3093
    %v3181 = vunpack.c.h.b16 %v3093
    %v3182 = vpack.c.b16 %v3134, %v3126
    %v3183 = vpack.c.b16 %v3135, %v3127
    %v3184 = vpack.c.b16 %v3136, %v3128
    %v3185 = vpack.c.b16 %v3137, %v3129
    %v3186 = vpack.c.b16 %v3138, %v3130
    %v3187 = vpack.c.b16 %v3139, %v3131
    %v3188 = vpack.c.b16 %v3140, %v3132
    %v3189 = vpack.c.b16 %v3141, %v3133
    %v3190 = vpack.c.b16 %v3150, %v3142
    %v3191 = vpack.c.b16 %v3151, %v3143
    %v3192 = vpack.c.b16 %v3152, %v3144
    %v3193 = vpack.c.b16 %v3153, %v3145
    %v3194 = vpack.c.b16 %v3154, %v3146
    %v3195 = vpack.c.b16 %v3155, %v3147
    %v3196 = vpack.c.b16 %v3156, %v3148
    %v3197 = vpack.c.b16 %v3157, %v3149
    %v3198 = vpack.c.b16 %v3166, %v3158
    %v3199 = vpack.c.b16 %v3167, %v3159
    %v3200 = vpack.c.b16 %v3168, %v3160
    %v3201 = vpack.c.b16 %v3169, %v3161
    %v3202 = vpack.c.b16 %v3170, %v3162
    %v3203 = vpack.c.b16 %v3171, %v3163
    %v3204 = vpack.c.b16 %v3172, %v3164
    %v3205 = vpack.c.b16 %v3173, %v3165
    %v3206 = vpack.c.b16 %v3174, %v3174
    %v3207 = vpack.c.b16 %v3175, %v3175
    %v3208 = vpack.c.b16 %v3176, %v3176
    %v3209 = vpack.c.b16 %v3177, %v3177
    %v3210 = vpack.c.b16 %v3178, %v3178
    %v3211 = vpack.c.b16 %v3179, %v3179
    %v3212 = vpack.c.b16 %v3180, %v3180
    %v3213 = vpack.c.b16 %v3181, %v3181
    %v3239 = vsel %vm188, %v3097, 0
    %v3242 = vsel %vm642, %v3206, 0
    %v3245 = vsel %vm642, %v3207, 0
    %v3248 = vsel %vm642, %v3208, 0
    %v3251 = vsel %vm642, %v3209, 0
    %v3254 = vsel %vm642, %v3210, 0
    %v3257 = vsel %vm642, %v3211, 0
    %v3260 = vsel %vm642, %v3212, 0
    %v3263 = vsel %vm642, %v3213, 0
    %3265 = vmatpush.bf16.msra.mxu0 0
    %3266 = vmatpush.bf16.msra.mxu0 0
    %3267 = vmatpush.bf16.msra.mxu0 0
    %3268 = vmatpush.bf16.msra.mxu0 0
    %3269 = vmatpush.bf16.msra.mxu0 %v3242
    %3270 = vmatpush.bf16.msra.mxu0 %v3198
    %3271 = vmatpush.bf16.msra.mxu0 %v3190
    %3272 = vmatpush.bf16.msra.mxu0 %v3182
    %3273 = vmatmul.bf16.gmra.mxu0 %v3239
    %v3274 = vpop.f32.mrf.mxu0
    %v3275 = vadd.f32 0.0, %v3274
    %v3276 = vpop.f32.mrf.mxu0
    %3277 = vdwg.mxu0
    %3278 = vmatpush.bf16.msra.mxu0 0
    %3279 = vmatpush.bf16.msra.mxu0 0
    %3280 = vmatpush.bf16.msra.mxu0 0
    %3281 = vmatpush.bf16.msra.mxu0 0
    %3282 = vmatpush.bf16.msra.mxu0 %v3245
    %3283 = vmatpush.bf16.msra.mxu0 %v3199
    %3284 = vmatpush.bf16.msra.mxu0 %v3191
    %3285 = vmatpush.bf16.msra.mxu0 %v3183
    %3286 = vmatmul.bf16.gmra.mxu0 %v3239
    %v3287 = vpop.f32.mrf.mxu0
    %v3288 = vadd.f32 0.0, %v3287
    %v3289 = vpop.f32.mrf.mxu0
    %3290 = vdwg.mxu0
    %3291 = vmatpush.bf16.msra.mxu0 0
    %3292 = vmatpush.bf16.msra.mxu0 0
    %3293 = vmatpush.bf16.msra.mxu0 0
    %3294 = vmatpush.bf16.msra.mxu0 0
    %3295 = vmatpush.bf16.msra.mxu0 %v3248
    %3296 = vmatpush.bf16.msra.mxu0 %v3200
    %3297 = vmatpush.bf16.msra.mxu0 %v3192
    %3298 = vmatpush.bf16.msra.mxu0 %v3184
    %3299 = vmatmul.bf16.gmra.mxu0 %v3239
    %v3300 = vpop.f32.mrf.mxu0
    %v3301 = vadd.f32 0.0, %v3300
    %v3302 = vpop.f32.mrf.mxu0
    %3303 = vdwg.mxu0
    %3304 = vmatpush.bf16.msra.mxu0 0
    %3305 = vmatpush.bf16.msra.mxu0 0
    %3306 = vmatpush.bf16.msra.mxu0 0
    %3307 = vmatpush.bf16.msra.mxu0 0
    %3308 = vmatpush.bf16.msra.mxu0 %v3251
    %3309 = vmatpush.bf16.msra.mxu0 %v3201
    %3310 = vmatpush.bf16.msra.mxu0 %v3193
    %3311 = vmatpush.bf16.msra.mxu0 %v3185
    %3312 = vmatmul.bf16.gmra.mxu0 %v3239
    %v3313 = vpop.f32.mrf.mxu0
    %v3314 = vadd.f32 0.0, %v3313
    %v3315 = vpop.f32.mrf.mxu0
    %3316 = vdwg.mxu0
    %3317 = vmatpush.bf16.msra.mxu0 0
    %3318 = vmatpush.bf16.msra.mxu0 0
    %3319 = vmatpush.bf16.msra.mxu0 0
    %3320 = vmatpush.bf16.msra.mxu0 0
    %3321 = vmatpush.bf16.msra.mxu0 %v3254
    %3322 = vmatpush.bf16.msra.mxu0 %v3202
    %3323 = vmatpush.bf16.msra.mxu0 %v3194
    %3324 = vmatpush.bf16.msra.mxu0 %v3186
    %3325 = vmatmul.bf16.gmra.mxu0 %v3239
    %v3326 = vpop.f32.mrf.mxu0
    %v3327 = vadd.f32 0.0, %v3326
    %v3328 = vpop.f32.mrf.mxu0
    %3329 = vdwg.mxu0
    %3330 = vmatpush.bf16.msra.mxu0 0
    %3331 = vmatpush.bf16.msra.mxu0 0
    %3332 = vmatpush.bf16.msra.mxu0 0
    %3333 = vmatpush.bf16.msra.mxu0 0
    %3334 = vmatpush.bf16.msra.mxu0 %v3257
    %3335 = vmatpush.bf16.msra.mxu0 %v3203
    %3336 = vmatpush.bf16.msra.mxu0 %v3195
    %3337 = vmatpush.bf16.msra.mxu0 %v3187
    %3338 = vmatmul.bf16.gmra.mxu0 %v3239
    %v3339 = vpop.f32.mrf.mxu0
    %v3340 = vadd.f32 0.0, %v3339
    %v3341 = vpop.f32.mrf.mxu0
    %3342 = vdwg.mxu0
    %3343 = vmatpush.bf16.msra.mxu0 0
    %3344 = vmatpush.bf16.msra.mxu0 0
    %3345 = vmatpush.bf16.msra.mxu0 0
    %3346 = vmatpush.bf16.msra.mxu0 0
    %3347 = vmatpush.bf16.msra.mxu0 %v3260
    %3348 = vmatpush.bf16.msra.mxu0 %v3204
    %3349 = vmatpush.bf16.msra.mxu0 %v3196
    %3350 = vmatpush.bf16.msra.mxu0 %v3188
    %3351 = vmatmul.bf16.gmra.mxu0 %v3239
    %v3352 = vpop.f32.mrf.mxu0
    %v3353 = vadd.f32 0.0, %v3352
    %v3354 = vpop.f32.mrf.mxu0
    %3355 = vdwg.mxu0
    %3356 = vmatpush.bf16.msra.mxu0 0
    %3357 = vmatpush.bf16.msra.mxu0 0
    %3358 = vmatpush.bf16.msra.mxu0 0
    %3359 = vmatpush.bf16.msra.mxu0 0
    %3360 = vmatpush.bf16.msra.mxu0 %v3263
    %3361 = vmatpush.bf16.msra.mxu0 %v3205
    %3362 = vmatpush.bf16.msra.mxu0 %v3197
    %3363 = vmatpush.bf16.msra.mxu0 %v3189
    %3364 = vmatmul.bf16.gmra.mxu0 %v3239
    %v3365 = vpop.f32.mrf.mxu0
    %v3366 = vadd.f32 0.0, %v3365
    %v3367 = vpop.f32.mrf.mxu0
    %3368 = vdwg.mxu0
    %v3369 = vadd.f32 %v3057, %v3275
    %v3370 = vadd.f32 %v3058, %v3288
    %v3371 = vadd.f32 %v3059, %v3301
    %v3372 = vadd.f32 %v3060, %v3314
    %v3373 = vadd.f32 %v3061, %v3327
    %v3374 = vadd.f32 %v3062, %v3340
    %v3375 = vadd.f32 %v3063, %v3353
    %v3376 = vadd.f32 %v3064, %v3366
    %s3377 = scalar_lea.vmem [#allocation5], 1568
    %v3378 = vld [vmem:[%s3377] sm:$0xff]
    %v3379 = vld [vmem:[%s3377 + $0x8] sm:$0xff]
    %v3380 = vld [vmem:[%s3377 + $0x10] sm:$0xff]
    %v3381 = vld [vmem:[%s3377 + $0x18] sm:$0xff]
    %v3382 = vld [vmem:[%s3377 + $0x20] sm:$0xff]
    %v3383 = vld [vmem:[%s3377 + $0x28] sm:$0xff]
    %v3384 = vld [vmem:[%s3377 + $0x30] sm:$0xff]
    %v3385 = vld [vmem:[%s3377 + $0x38] sm:$0xff]
    %v3386 = vld [vmem:[%s3377 + $0x40] sm:$0xff]
    %v3387 = vld [vmem:[%s3377 + $0x48] sm:$0xff]
    %v3388 = vld [vmem:[%s3377 + $0x50] sm:$0xff]
    %v3389 = vld [vmem:[%s3377 + $0x58] sm:$0xff]
    %v3390 = vld [vmem:[%s3377 + $0x60] sm:$0xff]
    %v3391 = vld [vmem:[%s3377 + $0x68] sm:$0xff]
    %v3392 = vld [vmem:[%s3377 + $0x70] sm:$0xff]
    %v3393 = vld [vmem:[%s3377 + $0x78] sm:$0xff]
    %v3394 = vld [vmem:[%s3377 + $0x80] sm:$0xff]
    %v3395 = vld [vmem:[%s3377 + $0x88] sm:$0xff]
    %v3396 = vld [vmem:[%s3377 + $0x90] sm:$0xff]
    %v3397 = vld [vmem:[%s3377 + $0x98] sm:$0xff]
    %v3398 = vld [vmem:[%s3377 + $0xa0] sm:$0xff]
    %v3399 = vld [vmem:[%s3377 + $0xa8] sm:$0xff]
    %v3400 = vld [vmem:[%s3377 + $0xb0] sm:$0xff]
    %v3401 = vld [vmem:[%s3377 + $0xb8] sm:$0xff]
    %v3402 = vld [vmem:[%s3377 + $0xc0] sm:$0x11]
    %v3403 = vld [vmem:[%s3377 + $0xc8] sm:$0x11]
    %v3404 = vld [vmem:[%s3377 + $0xd0] sm:$0x11]
    %v3405 = vld [vmem:[%s3377 + $0xd8] sm:$0x11]
    %v3406 = vrot.slane %v1266, 7
    %v3407 = vrot.slane %v1267, 6
    %v3408 = vsel %vm1269, %v3407, %v3406
    %v3409 = vpack.c.b16 %v3408, %v3408
    %v3438 = vunpack.c.l.b16 %v3378
    %v3439 = vunpack.c.h.b16 %v3378
    %v3440 = vunpack.c.l.b16 %v3379
    %v3441 = vunpack.c.h.b16 %v3379
    %v3442 = vunpack.c.l.b16 %v3380
    %v3443 = vunpack.c.h.b16 %v3380
    %v3444 = vunpack.c.l.b16 %v3381
    %v3445 = vunpack.c.h.b16 %v3381
    %v3446 = vunpack.c.l.b16 %v3382
    %v3447 = vunpack.c.h.b16 %v3382
    %v3448 = vunpack.c.l.b16 %v3383
    %v3449 = vunpack.c.h.b16 %v3383
    %v3450 = vunpack.c.l.b16 %v3384
    %v3451 = vunpack.c.h.b16 %v3384
    %v3452 = vunpack.c.l.b16 %v3385
    %v3453 = vunpack.c.h.b16 %v3385
    %v3454 = vunpack.c.l.b16 %v3386
    %v3455 = vunpack.c.h.b16 %v3386
    %v3456 = vunpack.c.l.b16 %v3387
    %v3457 = vunpack.c.h.b16 %v3387
    %v3458 = vunpack.c.l.b16 %v3388
    %v3459 = vunpack.c.h.b16 %v3388
    %v3460 = vunpack.c.l.b16 %v3389
    %v3461 = vunpack.c.h.b16 %v3389
    %v3462 = vunpack.c.l.b16 %v3390
    %v3463 = vunpack.c.h.b16 %v3390
    %v3464 = vunpack.c.l.b16 %v3391
    %v3465 = vunpack.c.h.b16 %v3391
    %v3466 = vunpack.c.l.b16 %v3392
    %v3467 = vunpack.c.h.b16 %v3392
    %v3468 = vunpack.c.l.b16 %v3393
    %v3469 = vunpack.c.h.b16 %v3393
    %v3470 = vunpack.c.l.b16 %v3394
    %v3471 = vunpack.c.h.b16 %v3394
    %v3472 = vunpack.c.l.b16 %v3395
    %v3473 = vunpack.c.h.b16 %v3395
    %v3474 = vunpack.c.l.b16 %v3396
    %v3475 = vunpack.c.h.b16 %v3396
    %v3476 = vunpack.c.l.b16 %v3397
    %v3477 = vunpack.c.h.b16 %v3397
    %v3478 = vunpack.c.l.b16 %v3398
    %v3479 = vunpack.c.h.b16 %v3398
    %v3480 = vunpack.c.l.b16 %v3399
    %v3481 = vunpack.c.h.b16 %v3399
    %v3482 = vunpack.c.l.b16 %v3400
    %v3483 = vunpack.c.h.b16 %v3400
    %v3484 = vunpack.c.l.b16 %v3401
    %v3485 = vunpack.c.h.b16 %v3401
    %v3486 = vunpack.c.l.b16 %v3402
    %v3487 = vunpack.c.h.b16 %v3402
    %v3488 = vunpack.c.l.b16 %v3403
    %v3489 = vunpack.c.h.b16 %v3403
    %v3490 = vunpack.c.l.b16 %v3404
    %v3491 = vunpack.c.h.b16 %v3404
    %v3492 = vunpack.c.l.b16 %v3405
    %v3493 = vunpack.c.h.b16 %v3405
    %v3494 = vpack.c.b16 %v3446, %v3438
    %v3495 = vpack.c.b16 %v3447, %v3439
    %v3496 = vpack.c.b16 %v3448, %v3440
    %v3497 = vpack.c.b16 %v3449, %v3441
    %v3498 = vpack.c.b16 %v3450, %v3442
    %v3499 = vpack.c.b16 %v3451, %v3443
    %v3500 = vpack.c.b16 %v3452, %v3444
    %v3501 = vpack.c.b16 %v3453, %v3445
    %v3502 = vpack.c.b16 %v3462, %v3454
    %v3503 = vpack.c.b16 %v3463, %v3455
    %v3504 = vpack.c.b16 %v3464, %v3456
    %v3505 = vpack.c.b16 %v3465, %v3457
    %v3506 = vpack.c.b16 %v3466, %v3458
    %v3507 = vpack.c.b16 %v3467, %v3459
    %v3508 = vpack.c.b16 %v3468, %v3460
    %v3509 = vpack.c.b16 %v3469, %v3461
    %v3510 = vpack.c.b16 %v3478, %v3470
    %v3511 = vpack.c.b16 %v3479, %v3471
    %v3512 = vpack.c.b16 %v3480, %v3472
    %v3513 = vpack.c.b16 %v3481, %v3473
    %v3514 = vpack.c.b16 %v3482, %v3474
    %v3515 = vpack.c.b16 %v3483, %v3475
    %v3516 = vpack.c.b16 %v3484, %v3476
    %v3517 = vpack.c.b16 %v3485, %v3477
    %v3518 = vpack.c.b16 %v3486, %v3486
    %v3519 = vpack.c.b16 %v3487, %v3487
    %v3520 = vpack.c.b16 %v3488, %v3488
    %v3521 = vpack.c.b16 %v3489, %v3489
    %v3522 = vpack.c.b16 %v3490, %v3490
    %v3523 = vpack.c.b16 %v3491, %v3491
    %v3524 = vpack.c.b16 %v3492, %v3492
    %v3525 = vpack.c.b16 %v3493, %v3493
    %v3551 = vsel %vm188, %v3409, 0
    %v3554 = vsel %vm642, %v3518, 0
    %v3557 = vsel %vm642, %v3519, 0
    %v3560 = vsel %vm642, %v3520, 0
    %v3563 = vsel %vm642, %v3521, 0
    %v3566 = vsel %vm642, %v3522, 0
    %v3569 = vsel %vm642, %v3523, 0
    %v3572 = vsel %vm642, %v3524, 0
    %v3575 = vsel %vm642, %v3525, 0
    %3577 = vmatpush.bf16.msra.mxu0 0
    %3578 = vmatpush.bf16.msra.mxu0 0
    %3579 = vmatpush.bf16.msra.mxu0 0
    %3580 = vmatpush.bf16.msra.mxu0 0
    %3581 = vmatpush.bf16.msra.mxu0 %v3554
    %3582 = vmatpush.bf16.msra.mxu0 %v3510
    %3583 = vmatpush.bf16.msra.mxu0 %v3502
    %3584 = vmatpush.bf16.msra.mxu0 %v3494
    %3585 = vmatmul.bf16.gmra.mxu0 %v3551
    %v3586 = vpop.f32.mrf.mxu0
    %v3587 = vadd.f32 0.0, %v3586
    %v3588 = vpop.f32.mrf.mxu0
    %3589 = vdwg.mxu0
    %3590 = vmatpush.bf16.msra.mxu0 0
    %3591 = vmatpush.bf16.msra.mxu0 0
    %3592 = vmatpush.bf16.msra.mxu0 0
    %3593 = vmatpush.bf16.msra.mxu0 0
    %3594 = vmatpush.bf16.msra.mxu0 %v3557
    %3595 = vmatpush.bf16.msra.mxu0 %v3511
    %3596 = vmatpush.bf16.msra.mxu0 %v3503
    %3597 = vmatpush.bf16.msra.mxu0 %v3495
    %3598 = vmatmul.bf16.gmra.mxu0 %v3551
    %v3599 = vpop.f32.mrf.mxu0
    %v3600 = vadd.f32 0.0, %v3599
    %v3601 = vpop.f32.mrf.mxu0
    %3602 = vdwg.mxu0
    %3603 = vmatpush.bf16.msra.mxu0 0
    %3604 = vmatpush.bf16.msra.mxu0 0
    %3605 = vmatpush.bf16.msra.mxu0 0
    %3606 = vmatpush.bf16.msra.mxu0 0
    %3607 = vmatpush.bf16.msra.mxu0 %v3560
    %3608 = vmatpush.bf16.msra.mxu0 %v3512
    %3609 = vmatpush.bf16.msra.mxu0 %v3504
    %3610 = vmatpush.bf16.msra.mxu0 %v3496
    %3611 = vmatmul.bf16.gmra.mxu0 %v3551
    %v3612 = vpop.f32.mrf.mxu0
    %v3613 = vadd.f32 0.0, %v3612
    %v3614 = vpop.f32.mrf.mxu0
    %3615 = vdwg.mxu0
    %3616 = vmatpush.bf16.msra.mxu0 0
    %3617 = vmatpush.bf16.msra.mxu0 0
    %3618 = vmatpush.bf16.msra.mxu0 0
    %3619 = vmatpush.bf16.msra.mxu0 0
    %3620 = vmatpush.bf16.msra.mxu0 %v3563
    %3621 = vmatpush.bf16.msra.mxu0 %v3513
    %3622 = vmatpush.bf16.msra.mxu0 %v3505
    %3623 = vmatpush.bf16.msra.mxu0 %v3497
    %3624 = vmatmul.bf16.gmra.mxu0 %v3551
    %v3625 = vpop.f32.mrf.mxu0
    %v3626 = vadd.f32 0.0, %v3625
    %v3627 = vpop.f32.mrf.mxu0
    %3628 = vdwg.mxu0
    %3629 = vmatpush.bf16.msra.mxu0 0
    %3630 = vmatpush.bf16.msra.mxu0 0
    %3631 = vmatpush.bf16.msra.mxu0 0
    %3632 = vmatpush.bf16.msra.mxu0 0
    %3633 = vmatpush.bf16.msra.mxu0 %v3566
    %3634 = vmatpush.bf16.msra.mxu0 %v3514
    %3635 = vmatpush.bf16.msra.mxu0 %v3506
    %3636 = vmatpush.bf16.msra.mxu0 %v3498
    %3637 = vmatmul.bf16.gmra.mxu0 %v3551
    %v3638 = vpop.f32.mrf.mxu0
    %v3639 = vadd.f32 0.0, %v3638
    %v3640 = vpop.f32.mrf.mxu0
    %3641 = vdwg.mxu0
    %3642 = vmatpush.bf16.msra.mxu0 0
    %3643 = vmatpush.bf16.msra.mxu0 0
    %3644 = vmatpush.bf16.msra.mxu0 0
    %3645 = vmatpush.bf16.msra.mxu0 0
    %3646 = vmatpush.bf16.msra.mxu0 %v3569
    %3647 = vmatpush.bf16.msra.mxu0 %v3515
    %3648 = vmatpush.bf16.msra.mxu0 %v3507
    %3649 = vmatpush.bf16.msra.mxu0 %v3499
    %3650 = vmatmul.bf16.gmra.mxu0 %v3551
    %v3651 = vpop.f32.mrf.mxu0
    %v3652 = vadd.f32 0.0, %v3651
    %v3653 = vpop.f32.mrf.mxu0
    %3654 = vdwg.mxu0
    %3655 = vmatpush.bf16.msra.mxu0 0
    %3656 = vmatpush.bf16.msra.mxu0 0
    %3657 = vmatpush.bf16.msra.mxu0 0
    %3658 = vmatpush.bf16.msra.mxu0 0
    %3659 = vmatpush.bf16.msra.mxu0 %v3572
    %3660 = vmatpush.bf16.msra.mxu0 %v3516
    %3661 = vmatpush.bf16.msra.mxu0 %v3508
    %3662 = vmatpush.bf16.msra.mxu0 %v3500
    %3663 = vmatmul.bf16.gmra.mxu0 %v3551
    %v3664 = vpop.f32.mrf.mxu0
    %v3665 = vadd.f32 0.0, %v3664
    %v3666 = vpop.f32.mrf.mxu0
    %3667 = vdwg.mxu0
    %3668 = vmatpush.bf16.msra.mxu0 0
    %3669 = vmatpush.bf16.msra.mxu0 0
    %3670 = vmatpush.bf16.msra.mxu0 0
    %3671 = vmatpush.bf16.msra.mxu0 0
    %3672 = vmatpush.bf16.msra.mxu0 %v3575
    %3673 = vmatpush.bf16.msra.mxu0 %v3517
    %3674 = vmatpush.bf16.msra.mxu0 %v3509
    %3675 = vmatpush.bf16.msra.mxu0 %v3501
    %3676 = vmatmul.bf16.gmra.mxu0 %v3551
    %v3677 = vpop.f32.mrf.mxu0
    %v3678 = vadd.f32 0.0, %v3677
    %v3679 = vpop.f32.mrf.mxu0
    %3680 = vdwg.mxu0
    %v3681 = vadd.f32 %v3369, %v3587
    %v3682 = vadd.f32 %v3370, %v3600
    %v3683 = vadd.f32 %v3371, %v3613
    %v3684 = vadd.f32 %v3372, %v3626
    %v3685 = vadd.f32 %v3373, %v3639
    %v3686 = vadd.f32 %v3374, %v3652
    %v3687 = vadd.f32 %v3375, %v3665
    %v3688 = vadd.f32 %v3376, %v3678
    %v3689 = vpack.c.bf16 %v1174, %v1174
    %v3690 = vpack.c.bf16 %v1203, %v1203
    %s3691 = scalar_lea.vmem [#allocation5], 1792
    %v3692 = vld [vmem:[%s3691] sm:$0xff]
    %v3693 = vld [vmem:[%s3691 + $0x8] sm:$0xff]
    %v3694 = vld [vmem:[%s3691 + $0x10] sm:$0xff]
    %v3695 = vld [vmem:[%s3691 + $0x18] sm:$0xff]
    %v3696 = vld [vmem:[%s3691 + $0x20] sm:$0xff]
    %v3697 = vld [vmem:[%s3691 + $0x28] sm:$0xff]
    %v3698 = vld [vmem:[%s3691 + $0x30] sm:$0xff]
    %v3699 = vld [vmem:[%s3691 + $0x38] sm:$0xff]
    %v3700 = vld [vmem:[%s3691 + $0x40] sm:$0xff]
    %v3701 = vld [vmem:[%s3691 + $0x48] sm:$0xff]
    %v3702 = vld [vmem:[%s3691 + $0x50] sm:$0xff]
    %v3703 = vld [vmem:[%s3691 + $0x58] sm:$0xff]
    %v3704 = vld [vmem:[%s3691 + $0x60] sm:$0xff]
    %v3705 = vld [vmem:[%s3691 + $0x68] sm:$0xff]
    %v3706 = vld [vmem:[%s3691 + $0x70] sm:$0xff]
    %v3707 = vld [vmem:[%s3691 + $0x78] sm:$0xff]
    %v3708 = vld [vmem:[%s3691 + $0x80] sm:$0xff]
    %v3709 = vld [vmem:[%s3691 + $0x88] sm:$0xff]
    %v3710 = vld [vmem:[%s3691 + $0x90] sm:$0xff]
    %v3711 = vld [vmem:[%s3691 + $0x98] sm:$0xff]
    %v3712 = vld [vmem:[%s3691 + $0xa0] sm:$0xff]
    %v3713 = vld [vmem:[%s3691 + $0xa8] sm:$0xff]
    %v3714 = vld [vmem:[%s3691 + $0xb0] sm:$0xff]
    %v3715 = vld [vmem:[%s3691 + $0xb8] sm:$0xff]
    %v3716 = vld [vmem:[%s3691 + $0xc0] sm:$0x11]
    %v3717 = vld [vmem:[%s3691 + $0xc8] sm:$0x11]
    %v3718 = vld [vmem:[%s3691 + $0xd0] sm:$0x11]
    %v3719 = vld [vmem:[%s3691 + $0xd8] sm:$0x11]
    %v3722 = vunpack.c.l.b16 %v3689
    %v3723 = vunpack.c.l.b16 %v3690
    %v3724 = vrot.slane %v3723, 7
    %v3725 = vsel %vm1269, %v3724, %v3722
    %v3726 = vpack.c.b16 %v3725, %v3725
    %v3755 = vunpack.c.l.b16 %v3692
    %v3756 = vunpack.c.h.b16 %v3692
    %v3757 = vunpack.c.l.b16 %v3693
    %v3758 = vunpack.c.h.b16 %v3693
    %v3759 = vunpack.c.l.b16 %v3694
    %v3760 = vunpack.c.h.b16 %v3694
    %v3761 = vunpack.c.l.b16 %v3695
    %v3762 = vunpack.c.h.b16 %v3695
    %v3763 = vunpack.c.l.b16 %v3696
    %v3764 = vunpack.c.h.b16 %v3696
    %v3765 = vunpack.c.l.b16 %v3697
    %v3766 = vunpack.c.h.b16 %v3697
    %v3767 = vunpack.c.l.b16 %v3698
    %v3768 = vunpack.c.h.b16 %v3698
    %v3769 = vunpack.c.l.b16 %v3699
    %v3770 = vunpack.c.h.b16 %v3699
    %v3771 = vunpack.c.l.b16 %v3700
    %v3772 = vunpack.c.h.b16 %v3700
    %v3773 = vunpack.c.l.b16 %v3701
    %v3774 = vunpack.c.h.b16 %v3701
    %v3775 = vunpack.c.l.b16 %v3702
    %v3776 = vunpack.c.h.b16 %v3702
    %v3777 = vunpack.c.l.b16 %v3703
    %v3778 = vunpack.c.h.b16 %v3703
    %v3779 = vunpack.c.l.b16 %v3704
    %v3780 = vunpack.c.h.b16 %v3704
    %v3781 = vunpack.c.l.b16 %v3705
    %v3782 = vunpack.c.h.b16 %v3705
    %v3783 = vunpack.c.l.b16 %v3706
    %v3784 = vunpack.c.h.b16 %v3706
    %v3785 = vunpack.c.l.b16 %v3707
    %v3786 = vunpack.c.h.b16 %v3707
    %v3787 = vunpack.c.l.b16 %v3708
    %v3788 = vunpack.c.h.b16 %v3708
    %v3789 = vunpack.c.l.b16 %v3709
    %v3790 = vunpack.c.h.b16 %v3709
    %v3791 = vunpack.c.l.b16 %v3710
    %v3792 = vunpack.c.h.b16 %v3710
    %v3793 = vunpack.c.l.b16 %v3711
    %v3794 = vunpack.c.h.b16 %v3711
    %v3795 = vunpack.c.l.b16 %v3712
    %v3796 = vunpack.c.h.b16 %v3712
    %v3797 = vunpack.c.l.b16 %v3713
    %v3798 = vunpack.c.h.b16 %v3713
    %v3799 = vunpack.c.l.b16 %v3714
    %v3800 = vunpack.c.h.b16 %v3714
    %v3801 = vunpack.c.l.b16 %v3715
    %v3802 = vunpack.c.h.b16 %v3715
    %v3803 = vunpack.c.l.b16 %v3716
    %v3804 = vunpack.c.h.b16 %v3716
    %v3805 = vunpack.c.l.b16 %v3717
    %v3806 = vunpack.c.h.b16 %v3717
    %v3807 = vunpack.c.l.b16 %v3718
    %v3808 = vunpack.c.h.b16 %v3718
    %v3809 = vunpack.c.l.b16 %v3719
    %v3810 = vunpack.c.h.b16 %v3719
    %v3811 = vpack.c.b16 %v3763, %v3755
    %v3812 = vpack.c.b16 %v3764, %v3756
    %v3813 = vpack.c.b16 %v3765, %v3757
    %v3814 = vpack.c.b16 %v3766, %v3758
    %v3815 = vpack.c.b16 %v3767, %v3759
    %v3816 = vpack.c.b16 %v3768, %v3760
    %v3817 = vpack.c.b16 %v3769, %v3761
    %v3818 = vpack.c.b16 %v3770, %v3762
    %v3819 = vpack.c.b16 %v3779, %v3771
    %v3820 = vpack.c.b16 %v3780, %v3772
    %v3821 = vpack.c.b16 %v3781, %v3773
    %v3822 = vpack.c.b16 %v3782, %v3774
    %v3823 = vpack.c.b16 %v3783, %v3775
    %v3824 = vpack.c.b16 %v3784, %v3776
    %v3825 = vpack.c.b16 %v3785, %v3777
    %v3826 = vpack.c.b16 %v3786, %v3778
    %v3827 = vpack.c.b16 %v3795, %v3787
    %v3828 = vpack.c.b16 %v3796, %v3788
    %v3829 = vpack.c.b16 %v3797, %v3789
    %v3830 = vpack.c.b16 %v3798, %v3790
    %v3831 = vpack.c.b16 %v3799, %v3791
    %v3832 = vpack.c.b16 %v3800, %v3792
    %v3833 = vpack.c.b16 %v3801, %v3793
    %v3834 = vpack.c.b16 %v3802, %v3794
    %v3835 = vpack.c.b16 %v3803, %v3803
    %v3836 = vpack.c.b16 %v3804, %v3804
    %v3837 = vpack.c.b16 %v3805, %v3805
    %v3838 = vpack.c.b16 %v3806, %v3806
    %v3839 = vpack.c.b16 %v3807, %v3807
    %v3840 = vpack.c.b16 %v3808, %v3808
    %v3841 = vpack.c.b16 %v3809, %v3809
    %v3842 = vpack.c.b16 %v3810, %v3810
    %v3868 = vsel %vm188, %v3726, 0
    %v3871 = vsel %vm642, %v3835, 0
    %v3874 = vsel %vm642, %v3836, 0
    %v3877 = vsel %vm642, %v3837, 0
    %v3880 = vsel %vm642, %v3838, 0
    %v3883 = vsel %vm642, %v3839, 0
    %v3886 = vsel %vm642, %v3840, 0
    %v3889 = vsel %vm642, %v3841, 0
    %v3892 = vsel %vm642, %v3842, 0
    %3894 = vmatpush.bf16.msra.mxu0 0
    %3895 = vmatpush.bf16.msra.mxu0 0
    %3896 = vmatpush.bf16.msra.mxu0 0
    %3897 = vmatpush.bf16.msra.mxu0 0
    %3898 = vmatpush.bf16.msra.mxu0 %v3871
    %3899 = vmatpush.bf16.msra.mxu0 %v3827
    %3900 = vmatpush.bf16.msra.mxu0 %v3819
    %3901 = vmatpush.bf16.msra.mxu0 %v3811
    %3902 = vmatmul.bf16.gmra.mxu0 %v3868
    %v3903 = vpop.f32.mrf.mxu0
    %v3904 = vadd.f32 0.0, %v3903
    %v3905 = vpop.f32.mrf.mxu0
    %3906 = vdwg.mxu0
    %3907 = vmatpush.bf16.msra.mxu0 0
    %3908 = vmatpush.bf16.msra.mxu0 0
    %3909 = vmatpush.bf16.msra.mxu0 0
    %3910 = vmatpush.bf16.msra.mxu0 0
    %3911 = vmatpush.bf16.msra.mxu0 %v3874
    %3912 = vmatpush.bf16.msra.mxu0 %v3828
    %3913 = vmatpush.bf16.msra.mxu0 %v3820
    %3914 = vmatpush.bf16.msra.mxu0 %v3812
    %3915 = vmatmul.bf16.gmra.mxu0 %v3868
    %v3916 = vpop.f32.mrf.mxu0
    %v3917 = vadd.f32 0.0, %v3916
    %v3918 = vpop.f32.mrf.mxu0
    %3919 = vdwg.mxu0
    %3920 = vmatpush.bf16.msra.mxu0 0
    %3921 = vmatpush.bf16.msra.mxu0 0
    %3922 = vmatpush.bf16.msra.mxu0 0
    %3923 = vmatpush.bf16.msra.mxu0 0
    %3924 = vmatpush.bf16.msra.mxu0 %v3877
    %3925 = vmatpush.bf16.msra.mxu0 %v3829
    %3926 = vmatpush.bf16.msra.mxu0 %v3821
    %3927 = vmatpush.bf16.msra.mxu0 %v3813
    %3928 = vmatmul.bf16.gmra.mxu0 %v3868
    %v3929 = vpop.f32.mrf.mxu0
    %v3930 = vadd.f32 0.0, %v3929
    %v3931 = vpop.f32.mrf.mxu0
    %3932 = vdwg.mxu0
    %3933 = vmatpush.bf16.msra.mxu0 0
    %3934 = vmatpush.bf16.msra.mxu0 0
    %3935 = vmatpush.bf16.msra.mxu0 0
    %3936 = vmatpush.bf16.msra.mxu0 0
    %3937 = vmatpush.bf16.msra.mxu0 %v3880
    %3938 = vmatpush.bf16.msra.mxu0 %v3830
    %3939 = vmatpush.bf16.msra.mxu0 %v3822
    %3940 = vmatpush.bf16.msra.mxu0 %v3814
    %3941 = vmatmul.bf16.gmra.mxu0 %v3868
    %v3942 = vpop.f32.mrf.mxu0
    %v3943 = vadd.f32 0.0, %v3942
    %v3944 = vpop.f32.mrf.mxu0
    %3945 = vdwg.mxu0
    %3946 = vmatpush.bf16.msra.mxu0 0
    %3947 = vmatpush.bf16.msra.mxu0 0
    %3948 = vmatpush.bf16.msra.mxu0 0
    %3949 = vmatpush.bf16.msra.mxu0 0
    %3950 = vmatpush.bf16.msra.mxu0 %v3883
    %3951 = vmatpush.bf16.msra.mxu0 %v3831
    %3952 = vmatpush.bf16.msra.mxu0 %v3823
    %3953 = vmatpush.bf16.msra.mxu0 %v3815
    %3954 = vmatmul.bf16.gmra.mxu0 %v3868
    %v3955 = vpop.f32.mrf.mxu0
    %v3956 = vadd.f32 0.0, %v3955
    %v3957 = vpop.f32.mrf.mxu0
    %3958 = vdwg.mxu0
    %3959 = vmatpush.bf16.msra.mxu0 0
    %3960 = vmatpush.bf16.msra.mxu0 0
    %3961 = vmatpush.bf16.msra.mxu0 0
    %3962 = vmatpush.bf16.msra.mxu0 0
    %3963 = vmatpush.bf16.msra.mxu0 %v3886
    %3964 = vmatpush.bf16.msra.mxu0 %v3832
    %3965 = vmatpush.bf16.msra.mxu0 %v3824
    %3966 = vmatpush.bf16.msra.mxu0 %v3816
    %3967 = vmatmul.bf16.gmra.mxu0 %v3868
    %v3968 = vpop.f32.mrf.mxu0
    %v3969 = vadd.f32 0.0, %v3968
    %v3970 = vpop.f32.mrf.mxu0
    %3971 = vdwg.mxu0
    %3972 = vmatpush.bf16.msra.mxu0 0
    %3973 = vmatpush.bf16.msra.mxu0 0
    %3974 = vmatpush.bf16.msra.mxu0 0
    %3975 = vmatpush.bf16.msra.mxu0 0
    %3976 = vmatpush.bf16.msra.mxu0 %v3889
    %3977 = vmatpush.bf16.msra.mxu0 %v3833
    %3978 = vmatpush.bf16.msra.mxu0 %v3825
    %3979 = vmatpush.bf16.msra.mxu0 %v3817
    %3980 = vmatmul.bf16.gmra.mxu0 %v3868
    %v3981 = vpop.f32.mrf.mxu0
    %v3982 = vadd.f32 0.0, %v3981
    %v3983 = vpop.f32.mrf.mxu0
    %3984 = vdwg.mxu0
    %3985 = vmatpush.bf16.msra.mxu0 0
    %3986 = vmatpush.bf16.msra.mxu0 0
    %3987 = vmatpush.bf16.msra.mxu0 0
    %3988 = vmatpush.bf16.msra.mxu0 0
    %3989 = vmatpush.bf16.msra.mxu0 %v3892
    %3990 = vmatpush.bf16.msra.mxu0 %v3834
    %3991 = vmatpush.bf16.msra.mxu0 %v3826
    %3992 = vmatpush.bf16.msra.mxu0 %v3818
    %3993 = vmatmul.bf16.gmra.mxu0 %v3868
    %v3994 = vpop.f32.mrf.mxu0
    %v3995 = vadd.f32 0.0, %v3994
    %v3996 = vpop.f32.mrf.mxu0
    %3997 = vdwg.mxu0
    %v3998 = vadd.f32 %v3681, %v3904
    %v3999 = vadd.f32 %v3682, %v3917
    %v4000 = vadd.f32 %v3683, %v3930
    %v4001 = vadd.f32 %v3684, %v3943
    %v4002 = vadd.f32 %v3685, %v3956
    %v4003 = vadd.f32 %v3686, %v3969
    %v4004 = vadd.f32 %v3687, %v3982
    %v4005 = vadd.f32 %v3688, %v3995
    %v4006 = vld [vmem:[#allocation7] sm:$0xff]
    %v4008 = vperm.slane %v4006, 0
    %v4009 = vperm.slane %v4006, 1
    %v4010 = vperm.slane %v4006, 2
    %v4011 = vperm.slane %v4006, 3
    %v4012 = vperm.slane %v4006, 4
    %v4013 = vperm.slane %v4006, 5
    %v4014 = vperm.slane %v4006, 6
    %v4015 = vperm.slane %v4006, 7
    %v4024 = vadd.f32 %v3998, %v4008
    %v4025 = vadd.f32 %v3999, %v4009
    %v4026 = vadd.f32 %v4000, %v4010
    %v4027 = vadd.f32 %v4001, %v4011
    %v4028 = vadd.f32 %v4002, %v4012
    %v4029 = vadd.f32 %v4003, %v4013
    %v4030 = vadd.f32 %v4004, %v4014
    %v4031 = vadd.f32 %v4005, %v4015
    %v4032 = vmax.f32 %v4024, 0.0
    %v4033 = vmax.f32 %v4025, 0.0
    %v4034 = vmax.f32 %v4026, 0.0
    %v4035 = vmax.f32 %v4027, 0.0
    %v4036 = vmax.f32 %v4028, 0.0
    %v4037 = vmax.f32 %v4029, 0.0
    %v4038 = vmax.f32 %v4030, 0.0
    %v4039 = vmax.f32 %v4031, 0.0
    %v4040 = vpack.c.bf16 %v4032, %v4032
    %v4041 = vpack.c.bf16 %v4033, %v4033
    %v4042 = vpack.c.bf16 %v4034, %v4034
    %v4043 = vpack.c.bf16 %v4035, %v4035
    %v4044 = vpack.c.bf16 %v4036, %v4036
    %v4045 = vpack.c.bf16 %v4037, %v4037
    %v4046 = vpack.c.bf16 %v4038, %v4038
    %v4047 = vpack.c.bf16 %v4039, %v4039
    %v4048 = vld [vmem:[#allocation8] sm:$0xff]
    %v4049 = vld [vmem:[#allocation8 + $0x8] sm:$0xff]
    %v4050 = vld [vmem:[#allocation8 + $0x10] sm:$0xff]
    %v4051 = vld [vmem:[#allocation8 + $0x18] sm:$0xff]
    %v4052 = vld [vmem:[#allocation8 + $0x20] sm:$0xff]
    %v4053 = vld [vmem:[#allocation8 + $0x28] sm:$0xff]
    %v4054 = vld [vmem:[#allocation8 + $0x30] sm:$0xff]
    %v4055 = vld [vmem:[#allocation8 + $0x38] sm:$0xff]
    %v4056 = vld [vmem:[#allocation8 + $0x40] sm:$0xff]
    %v4057 = vld [vmem:[#allocation8 + $0x48] sm:$0xff]
    %v4058 = vld [vmem:[#allocation8 + $0x50] sm:$0xff]
    %v4059 = vld [vmem:[#allocation8 + $0x58] sm:$0xff]
    %v4060 = vld [vmem:[#allocation8 + $0x60] sm:$0xff]
    %v4061 = vld [vmem:[#allocation8 + $0x68] sm:$0xff]
    %v4062 = vld [vmem:[#allocation8 + $0x70] sm:$0xff]
    %v4063 = vld [vmem:[#allocation8 + $0x78] sm:$0xff]
    %v4064 = vld [vmem:[#allocation8 + $0x80] sm:$0xff]
    %v4065 = vld [vmem:[#allocation8 + $0x88] sm:$0xff]
    %v4066 = vld [vmem:[#allocation8 + $0x90] sm:$0xff]
    %v4067 = vld [vmem:[#allocation8 + $0x98] sm:$0xff]
    %v4068 = vld [vmem:[#allocation8 + $0xa0] sm:$0xff]
    %v4069 = vld [vmem:[#allocation8 + $0xa8] sm:$0xff]
    %v4070 = vld [vmem:[#allocation8 + $0xb0] sm:$0xff]
    %v4071 = vld [vmem:[#allocation8 + $0xb8] sm:$0xff]
    %v4072 = vld [vmem:[#allocation8 + $0xc0] sm:$0xff]
    %v4073 = vld [vmem:[#allocation8 + $0xc8] sm:$0xff]
    %v4074 = vld [vmem:[#allocation8 + $0xd0] sm:$0xff]
    %v4075 = vld [vmem:[#allocation8 + $0xd8] sm:$0xff]
    %v4076 = vld [vmem:[#allocation8 + $0xe0] sm:$0xff]
    %v4077 = vld [vmem:[#allocation8 + $0xe8] sm:$0xff]
    %v4078 = vld [vmem:[#allocation8 + $0xf0] sm:$0xff]
    %v4079 = vld [vmem:[#allocation8 + $0xf8] sm:$0xff]
    %v4080 = vld [vmem:[#allocation8 + $0x100] sm:$0xff]
    %v4081 = vld [vmem:[#allocation8 + $0x108] sm:$0xff]
    %v4082 = vld [vmem:[#allocation8 + $0x110] sm:$0xff]
    %v4083 = vld [vmem:[#allocation8 + $0x118] sm:$0xff]
    %v4084 = vld [vmem:[#allocation8 + $0x120] sm:$0xff]
    %v4085 = vld [vmem:[#allocation8 + $0x128] sm:$0xff]
    %v4086 = vld [vmem:[#allocation8 + $0x130] sm:$0xff]
    %v4087 = vld [vmem:[#allocation8 + $0x138] sm:$0xff]
    %v4088 = vld [vmem:[#allocation8 + $0x140] sm:$0xff]
    %v4089 = vld [vmem:[#allocation8 + $0x148] sm:$0xff]
    %v4090 = vld [vmem:[#allocation8 + $0x150] sm:$0xff]
    %v4091 = vld [vmem:[#allocation8 + $0x158] sm:$0xff]
    %v4092 = vld [vmem:[#allocation8 + $0x160] sm:$0xff]
    %v4093 = vld [vmem:[#allocation8 + $0x168] sm:$0xff]
    %v4094 = vld [vmem:[#allocation8 + $0x170] sm:$0xff]
    %v4095 = vld [vmem:[#allocation8 + $0x178] sm:$0xff]
    %v4096 = vld [vmem:[#allocation8 + $0x180] sm:$0xff]
    %v4097 = vld [vmem:[#allocation8 + $0x188] sm:$0xff]
    %v4098 = vld [vmem:[#allocation8 + $0x190] sm:$0xff]
    %v4099 = vld [vmem:[#allocation8 + $0x198] sm:$0xff]
    %v4100 = vld [vmem:[#allocation8 + $0x1a0] sm:$0xff]
    %v4101 = vld [vmem:[#allocation8 + $0x1a8] sm:$0xff]
    %v4102 = vld [vmem:[#allocation8 + $0x1b0] sm:$0xff]
    %v4103 = vld [vmem:[#allocation8 + $0x1b8] sm:$0xff]
    %v4104 = vld [vmem:[#allocation8 + $0x1c0] sm:$0xff]
    %v4105 = vld [vmem:[#allocation8 + $0x1c8] sm:$0xff]
    %v4106 = vld [vmem:[#allocation8 + $0x1d0] sm:$0xff]
    %v4107 = vld [vmem:[#allocation8 + $0x1d8] sm:$0xff]
    %v4108 = vld [vmem:[#allocation8 + $0x1e0] sm:$0xff]
    %v4109 = vld [vmem:[#allocation8 + $0x1e8] sm:$0xff]
    %v4110 = vld [vmem:[#allocation8 + $0x1f0] sm:$0xff]
    %v4111 = vld [vmem:[#allocation8 + $0x1f8] sm:$0xff]
    %v4112 = vld [vmem:[#allocation8 + $0x200] sm:$0xff]
    %v4113 = vld [vmem:[#allocation8 + $0x208] sm:$0xff]
    %v4114 = vld [vmem:[#allocation8 + $0x210] sm:$0xff]
    %v4115 = vld [vmem:[#allocation8 + $0x218] sm:$0xff]
    %v4116 = vld [vmem:[#allocation8 + $0x220] sm:$0xff]
    %v4117 = vld [vmem:[#allocation8 + $0x228] sm:$0xff]
    %v4118 = vld [vmem:[#allocation8 + $0x230] sm:$0xff]
    %v4119 = vld [vmem:[#allocation8 + $0x238] sm:$0xff]
    %v4120 = vld [vmem:[#allocation8 + $0x240] sm:$0xff]
    %v4121 = vld [vmem:[#allocation8 + $0x248] sm:$0xff]
    %v4122 = vld [vmem:[#allocation8 + $0x250] sm:$0xff]
    %v4123 = vld [vmem:[#allocation8 + $0x258] sm:$0xff]
    %v4124 = vld [vmem:[#allocation8 + $0x260] sm:$0xff]
    %v4125 = vld [vmem:[#allocation8 + $0x268] sm:$0xff]
    %v4126 = vld [vmem:[#allocation8 + $0x270] sm:$0xff]
    %v4127 = vld [vmem:[#allocation8 + $0x278] sm:$0xff]
    %v4128 = vld [vmem:[#allocation8 + $0x280] sm:$0xff]
    %v4129 = vld [vmem:[#allocation8 + $0x288] sm:$0xff]
    %v4130 = vld [vmem:[#allocation8 + $0x290] sm:$0xff]
    %v4131 = vld [vmem:[#allocation8 + $0x298] sm:$0xff]
    %v4132 = vld [vmem:[#allocation8 + $0x2a0] sm:$0xff]
    %v4133 = vld [vmem:[#allocation8 + $0x2a8] sm:$0xff]
    %v4134 = vld [vmem:[#allocation8 + $0x2b0] sm:$0xff]
    %v4135 = vld [vmem:[#allocation8 + $0x2b8] sm:$0xff]
    %v4136 = vld [vmem:[#allocation8 + $0x2c0] sm:$0xff]
    %v4137 = vld [vmem:[#allocation8 + $0x2c8] sm:$0xff]
    %v4138 = vld [vmem:[#allocation8 + $0x2d0] sm:$0xff]
    %v4139 = vld [vmem:[#allocation8 + $0x2d8] sm:$0xff]
    %v4140 = vld [vmem:[#allocation8 + $0x2e0] sm:$0xff]
    %v4141 = vld [vmem:[#allocation8 + $0x2e8] sm:$0xff]
    %v4142 = vld [vmem:[#allocation8 + $0x2f0] sm:$0xff]
    %v4143 = vld [vmem:[#allocation8 + $0x2f8] sm:$0xff]
    %v4144 = vld [vmem:[#allocation8 + $0x300] sm:$0xff]
    %v4145 = vld [vmem:[#allocation8 + $0x308] sm:$0xff]
    %v4146 = vld [vmem:[#allocation8 + $0x310] sm:$0xff]
    %v4147 = vld [vmem:[#allocation8 + $0x318] sm:$0xff]
    %v4148 = vld [vmem:[#allocation8 + $0x320] sm:$0xff]
    %v4149 = vld [vmem:[#allocation8 + $0x328] sm:$0xff]
    %v4150 = vld [vmem:[#allocation8 + $0x330] sm:$0xff]
    %v4151 = vld [vmem:[#allocation8 + $0x338] sm:$0xff]
    %v4152 = vld [vmem:[#allocation8 + $0x340] sm:$0xff]
    %v4153 = vld [vmem:[#allocation8 + $0x348] sm:$0xff]
    %v4154 = vld [vmem:[#allocation8 + $0x350] sm:$0xff]
    %v4155 = vld [vmem:[#allocation8 + $0x358] sm:$0xff]
    %v4156 = vld [vmem:[#allocation8 + $0x360] sm:$0xff]
    %v4157 = vld [vmem:[#allocation8 + $0x368] sm:$0xff]
    %v4158 = vld [vmem:[#allocation8 + $0x370] sm:$0xff]
    %v4159 = vld [vmem:[#allocation8 + $0x378] sm:$0xff]
    %v4160 = vld [vmem:[#allocation8 + $0x380] sm:$0xff]
    %v4161 = vld [vmem:[#allocation8 + $0x388] sm:$0xff]
    %v4162 = vld [vmem:[#allocation8 + $0x390] sm:$0xff]
    %v4163 = vld [vmem:[#allocation8 + $0x398] sm:$0xff]
    %v4164 = vld [vmem:[#allocation8 + $0x3a0] sm:$0xff]
    %v4165 = vld [vmem:[#allocation8 + $0x3a8] sm:$0xff]
    %v4166 = vld [vmem:[#allocation8 + $0x3b0] sm:$0xff]
    %v4167 = vld [vmem:[#allocation8 + $0x3b8] sm:$0xff]
    %v4168 = vld [vmem:[#allocation8 + $0x3c0] sm:$0xff]
    %v4169 = vld [vmem:[#allocation8 + $0x3c8] sm:$0xff]
    %v4170 = vld [vmem:[#allocation8 + $0x3d0] sm:$0xff]
    %v4171 = vld [vmem:[#allocation8 + $0x3d8] sm:$0xff]
    %v4172 = vld [vmem:[#allocation8 + $0x3e0] sm:$0xff]
    %v4173 = vld [vmem:[#allocation8 + $0x3e8] sm:$0xff]
    %v4174 = vld [vmem:[#allocation8 + $0x3f0] sm:$0xff]
    %v4175 = vld [vmem:[#allocation8 + $0x3f8] sm:$0xff]
    %v4176 = vld [vmem:[#allocation8 + $0x400] sm:$0xff]
    %v4177 = vld [vmem:[#allocation8 + $0x408] sm:$0xff]
    %v4178 = vld [vmem:[#allocation8 + $0x410] sm:$0xff]
    %v4179 = vld [vmem:[#allocation8 + $0x418] sm:$0xff]
    %v4180 = vld [vmem:[#allocation8 + $0x420] sm:$0xff]
    %v4181 = vld [vmem:[#allocation8 + $0x428] sm:$0xff]
    %v4182 = vld [vmem:[#allocation8 + $0x430] sm:$0xff]
    %v4183 = vld [vmem:[#allocation8 + $0x438] sm:$0xff]
    %v4184 = vld [vmem:[#allocation8 + $0x440] sm:$0xff]
    %v4185 = vld [vmem:[#allocation8 + $0x448] sm:$0xff]
    %v4186 = vld [vmem:[#allocation8 + $0x450] sm:$0xff]
    %v4187 = vld [vmem:[#allocation8 + $0x458] sm:$0xff]
    %v4188 = vld [vmem:[#allocation8 + $0x460] sm:$0xff]
    %v4189 = vld [vmem:[#allocation8 + $0x468] sm:$0xff]
    %v4190 = vld [vmem:[#allocation8 + $0x470] sm:$0xff]
    %v4191 = vld [vmem:[#allocation8 + $0x478] sm:$0xff]
    %v4192 = vld [vmem:[#allocation8 + $0x480] sm:$0xff]
    %v4193 = vld [vmem:[#allocation8 + $0x488] sm:$0xff]
    %v4194 = vld [vmem:[#allocation8 + $0x490] sm:$0xff]
    %v4195 = vld [vmem:[#allocation8 + $0x498] sm:$0xff]
    %v4196 = vld [vmem:[#allocation8 + $0x4a0] sm:$0xff]
    %v4197 = vld [vmem:[#allocation8 + $0x4a8] sm:$0xff]
    %v4198 = vld [vmem:[#allocation8 + $0x4b0] sm:$0xff]
    %v4199 = vld [vmem:[#allocation8 + $0x4b8] sm:$0xff]
    %v4200 = vld [vmem:[#allocation8 + $0x4c0] sm:$0xff]
    %v4201 = vld [vmem:[#allocation8 + $0x4c8] sm:$0xff]
    %v4202 = vld [vmem:[#allocation8 + $0x4d0] sm:$0xff]
    %v4203 = vld [vmem:[#allocation8 + $0x4d8] sm:$0xff]
    %v4204 = vld [vmem:[#allocation8 + $0x4e0] sm:$0xff]
    %v4205 = vld [vmem:[#allocation8 + $0x4e8] sm:$0xff]
    %v4206 = vld [vmem:[#allocation8 + $0x4f0] sm:$0xff]
    %v4207 = vld [vmem:[#allocation8 + $0x4f8] sm:$0xff]
    %v4208 = vld [vmem:[#allocation8 + $0x500] sm:$0xff]
    %v4209 = vld [vmem:[#allocation8 + $0x508] sm:$0xff]
    %v4210 = vld [vmem:[#allocation8 + $0x510] sm:$0xff]
    %v4211 = vld [vmem:[#allocation8 + $0x518] sm:$0xff]
    %v4212 = vld [vmem:[#allocation8 + $0x520] sm:$0xff]
    %v4213 = vld [vmem:[#allocation8 + $0x528] sm:$0xff]
    %v4214 = vld [vmem:[#allocation8 + $0x530] sm:$0xff]
    %v4215 = vld [vmem:[#allocation8 + $0x538] sm:$0xff]
    %v4216 = vld [vmem:[#allocation8 + $0x540] sm:$0xff]
    %v4217 = vld [vmem:[#allocation8 + $0x548] sm:$0xff]
    %v4218 = vld [vmem:[#allocation8 + $0x550] sm:$0xff]
    %v4219 = vld [vmem:[#allocation8 + $0x558] sm:$0xff]
    %v4220 = vld [vmem:[#allocation8 + $0x560] sm:$0xff]
    %v4221 = vld [vmem:[#allocation8 + $0x568] sm:$0xff]
    %v4222 = vld [vmem:[#allocation8 + $0x570] sm:$0xff]
    %v4223 = vld [vmem:[#allocation8 + $0x578] sm:$0xff]
    %v4224 = vld [vmem:[#allocation8 + $0x580] sm:$0xff]
    %v4225 = vld [vmem:[#allocation8 + $0x588] sm:$0xff]
    %v4226 = vld [vmem:[#allocation8 + $0x590] sm:$0xff]
    %v4227 = vld [vmem:[#allocation8 + $0x598] sm:$0xff]
    %v4228 = vld [vmem:[#allocation8 + $0x5a0] sm:$0xff]
    %v4229 = vld [vmem:[#allocation8 + $0x5a8] sm:$0xff]
    %v4230 = vld [vmem:[#allocation8 + $0x5b0] sm:$0xff]
    %v4231 = vld [vmem:[#allocation8 + $0x5b8] sm:$0xff]
    %v4232 = vld [vmem:[#allocation8 + $0x5c0] sm:$0xff]
    %v4233 = vld [vmem:[#allocation8 + $0x5c8] sm:$0xff]
    %v4234 = vld [vmem:[#allocation8 + $0x5d0] sm:$0xff]
    %v4235 = vld [vmem:[#allocation8 + $0x5d8] sm:$0xff]
    %v4236 = vld [vmem:[#allocation8 + $0x5e0] sm:$0xff]
    %v4237 = vld [vmem:[#allocation8 + $0x5e8] sm:$0xff]
    %v4238 = vld [vmem:[#allocation8 + $0x5f0] sm:$0xff]
    %v4239 = vld [vmem:[#allocation8 + $0x5f8] sm:$0xff]
    %v4240 = vld [vmem:[#allocation8 + $0x600] sm:$0xff]
    %v4241 = vld [vmem:[#allocation8 + $0x608] sm:$0xff]
    %v4242 = vld [vmem:[#allocation8 + $0x610] sm:$0xff]
    %v4243 = vld [vmem:[#allocation8 + $0x618] sm:$0xff]
    %v4244 = vld [vmem:[#allocation8 + $0x620] sm:$0xff]
    %v4245 = vld [vmem:[#allocation8 + $0x628] sm:$0xff]
    %v4246 = vld [vmem:[#allocation8 + $0x630] sm:$0xff]
    %v4247 = vld [vmem:[#allocation8 + $0x638] sm:$0xff]
    %v4248 = vld [vmem:[#allocation8 + $0x640] sm:$0xff]
    %v4249 = vld [vmem:[#allocation8 + $0x648] sm:$0xff]
    %v4250 = vld [vmem:[#allocation8 + $0x650] sm:$0xff]
    %v4251 = vld [vmem:[#allocation8 + $0x658] sm:$0xff]
    %v4252 = vld [vmem:[#allocation8 + $0x660] sm:$0xff]
    %v4253 = vld [vmem:[#allocation8 + $0x668] sm:$0xff]
    %v4254 = vld [vmem:[#allocation8 + $0x670] sm:$0xff]
    %v4255 = vld [vmem:[#allocation8 + $0x678] sm:$0xff]
    %v4256 = vld [vmem:[#allocation8 + $0x680] sm:$0xff]
    %v4257 = vld [vmem:[#allocation8 + $0x688] sm:$0xff]
    %v4258 = vld [vmem:[#allocation8 + $0x690] sm:$0xff]
    %v4259 = vld [vmem:[#allocation8 + $0x698] sm:$0xff]
    %v4260 = vld [vmem:[#allocation8 + $0x6a0] sm:$0xff]
    %v4261 = vld [vmem:[#allocation8 + $0x6a8] sm:$0xff]
    %v4262 = vld [vmem:[#allocation8 + $0x6b0] sm:$0xff]
    %v4263 = vld [vmem:[#allocation8 + $0x6b8] sm:$0xff]
    %v4264 = vld [vmem:[#allocation8 + $0x6c0] sm:$0xff]
    %v4265 = vld [vmem:[#allocation8 + $0x6c8] sm:$0xff]
    %v4266 = vld [vmem:[#allocation8 + $0x6d0] sm:$0xff]
    %v4267 = vld [vmem:[#allocation8 + $0x6d8] sm:$0xff]
    %v4268 = vld [vmem:[#allocation8 + $0x6e0] sm:$0xff]
    %v4269 = vld [vmem:[#allocation8 + $0x6e8] sm:$0xff]
    %v4270 = vld [vmem:[#allocation8 + $0x6f0] sm:$0xff]
    %v4271 = vld [vmem:[#allocation8 + $0x6f8] sm:$0xff]
    %v4272 = vld [vmem:[#allocation8 + $0x700] sm:$0xff]
    %v4273 = vld [vmem:[#allocation8 + $0x708] sm:$0xff]
    %v4274 = vld [vmem:[#allocation8 + $0x710] sm:$0xff]
    %v4275 = vld [vmem:[#allocation8 + $0x718] sm:$0xff]
    %v4276 = vld [vmem:[#allocation8 + $0x720] sm:$0xff]
    %v4277 = vld [vmem:[#allocation8 + $0x728] sm:$0xff]
    %v4278 = vld [vmem:[#allocation8 + $0x730] sm:$0xff]
    %v4279 = vld [vmem:[#allocation8 + $0x738] sm:$0xff]
    %v4280 = vld [vmem:[#allocation8 + $0x740] sm:$0xff]
    %v4281 = vld [vmem:[#allocation8 + $0x748] sm:$0xff]
    %v4282 = vld [vmem:[#allocation8 + $0x750] sm:$0xff]
    %v4283 = vld [vmem:[#allocation8 + $0x758] sm:$0xff]
    %v4284 = vld [vmem:[#allocation8 + $0x760] sm:$0xff]
    %v4285 = vld [vmem:[#allocation8 + $0x768] sm:$0xff]
    %v4286 = vld [vmem:[#allocation8 + $0x770] sm:$0xff]
    %v4287 = vld [vmem:[#allocation8 + $0x778] sm:$0xff]
    %v4288 = vld [vmem:[#allocation8 + $0x780] sm:$0xff]
    %v4289 = vld [vmem:[#allocation8 + $0x788] sm:$0xff]
    %v4290 = vld [vmem:[#allocation8 + $0x790] sm:$0xff]
    %v4291 = vld [vmem:[#allocation8 + $0x798] sm:$0xff]
    %v4292 = vld [vmem:[#allocation8 + $0x7a0] sm:$0xff]
    %v4293 = vld [vmem:[#allocation8 + $0x7a8] sm:$0xff]
    %v4294 = vld [vmem:[#allocation8 + $0x7b0] sm:$0xff]
    %v4295 = vld [vmem:[#allocation8 + $0x7b8] sm:$0xff]
    %v4296 = vld [vmem:[#allocation8 + $0x7c0] sm:$0xff]
    %v4297 = vld [vmem:[#allocation8 + $0x7c8] sm:$0xff]
    %v4298 = vld [vmem:[#allocation8 + $0x7d0] sm:$0xff]
    %v4299 = vld [vmem:[#allocation8 + $0x7d8] sm:$0xff]
    %v4300 = vld [vmem:[#allocation8 + $0x7e0] sm:$0xff]
    %v4301 = vld [vmem:[#allocation8 + $0x7e8] sm:$0xff]
    %v4302 = vld [vmem:[#allocation8 + $0x7f0] sm:$0xff]
    %v4303 = vld [vmem:[#allocation8 + $0x7f8] sm:$0xff]
    %v4304 = vld [vmem:[#allocation8 + $0x800] sm:$0xff]
    %v4305 = vld [vmem:[#allocation8 + $0x808] sm:$0xff]
    %v4306 = vld [vmem:[#allocation8 + $0x810] sm:$0xff]
    %v4307 = vld [vmem:[#allocation8 + $0x818] sm:$0xff]
    %v4308 = vld [vmem:[#allocation8 + $0x820] sm:$0xff]
    %v4309 = vld [vmem:[#allocation8 + $0x828] sm:$0xff]
    %v4310 = vld [vmem:[#allocation8 + $0x830] sm:$0xff]
    %v4311 = vld [vmem:[#allocation8 + $0x838] sm:$0xff]
    %v4312 = vld [vmem:[#allocation8 + $0x840] sm:$0xff]
    %v4313 = vld [vmem:[#allocation8 + $0x848] sm:$0xff]
    %v4314 = vld [vmem:[#allocation8 + $0x850] sm:$0xff]
    %v4315 = vld [vmem:[#allocation8 + $0x858] sm:$0xff]
    %v4316 = vld [vmem:[#allocation8 + $0x860] sm:$0xff]
    %v4317 = vld [vmem:[#allocation8 + $0x868] sm:$0xff]
    %v4318 = vld [vmem:[#allocation8 + $0x870] sm:$0xff]
    %v4319 = vld [vmem:[#allocation8 + $0x878] sm:$0xff]
    %v4320 = vld [vmem:[#allocation8 + $0x880] sm:$0xff]
    %v4321 = vld [vmem:[#allocation8 + $0x888] sm:$0xff]
    %v4322 = vld [vmem:[#allocation8 + $0x890] sm:$0xff]
    %v4323 = vld [vmem:[#allocation8 + $0x898] sm:$0xff]
    %v4324 = vld [vmem:[#allocation8 + $0x8a0] sm:$0xff]
    %v4325 = vld [vmem:[#allocation8 + $0x8a8] sm:$0xff]
    %v4326 = vld [vmem:[#allocation8 + $0x8b0] sm:$0xff]
    %v4327 = vld [vmem:[#allocation8 + $0x8b8] sm:$0xff]
    %v4328 = vld [vmem:[#allocation8 + $0x8c0] sm:$0xff]
    %v4329 = vld [vmem:[#allocation8 + $0x8c8] sm:$0xff]
    %v4330 = vld [vmem:[#allocation8 + $0x8d0] sm:$0xff]
    %v4331 = vld [vmem:[#allocation8 + $0x8d8] sm:$0xff]
    %v4332 = vld [vmem:[#allocation8 + $0x8e0] sm:$0xff]
    %v4333 = vld [vmem:[#allocation8 + $0x8e8] sm:$0xff]
    %v4334 = vld [vmem:[#allocation8 + $0x8f0] sm:$0xff]
    %v4335 = vld [vmem:[#allocation8 + $0x8f8] sm:$0xff]
    %v4336 = vld [vmem:[#allocation8 + $0x900] sm:$0xff]
    %v4337 = vld [vmem:[#allocation8 + $0x908] sm:$0xff]
    %v4338 = vld [vmem:[#allocation8 + $0x910] sm:$0xff]
    %v4339 = vld [vmem:[#allocation8 + $0x918] sm:$0xff]
    %v4340 = vld [vmem:[#allocation8 + $0x920] sm:$0xff]
    %v4341 = vld [vmem:[#allocation8 + $0x928] sm:$0xff]
    %v4342 = vld [vmem:[#allocation8 + $0x930] sm:$0xff]
    %v4343 = vld [vmem:[#allocation8 + $0x938] sm:$0xff]
    %v4344 = vld [vmem:[#allocation8 + $0x940] sm:$0xff]
    %v4345 = vld [vmem:[#allocation8 + $0x948] sm:$0xff]
    %v4346 = vld [vmem:[#allocation8 + $0x950] sm:$0xff]
    %v4347 = vld [vmem:[#allocation8 + $0x958] sm:$0xff]
    %v4348 = vld [vmem:[#allocation8 + $0x960] sm:$0xff]
    %v4349 = vld [vmem:[#allocation8 + $0x968] sm:$0xff]
    %v4350 = vld [vmem:[#allocation8 + $0x970] sm:$0xff]
    %v4351 = vld [vmem:[#allocation8 + $0x978] sm:$0xff]
    %v4352 = vld [vmem:[#allocation8 + $0x980] sm:$0xff]
    %v4353 = vld [vmem:[#allocation8 + $0x988] sm:$0xff]
    %v4354 = vld [vmem:[#allocation8 + $0x990] sm:$0xff]
    %v4355 = vld [vmem:[#allocation8 + $0x998] sm:$0xff]
    %v4356 = vld [vmem:[#allocation8 + $0x9a0] sm:$0xff]
    %v4357 = vld [vmem:[#allocation8 + $0x9a8] sm:$0xff]
    %v4358 = vld [vmem:[#allocation8 + $0x9b0] sm:$0xff]
    %v4359 = vld [vmem:[#allocation8 + $0x9b8] sm:$0xff]
    %v4360 = vld [vmem:[#allocation8 + $0x9c0] sm:$0xff]
    %v4361 = vld [vmem:[#allocation8 + $0x9c8] sm:$0xff]
    %v4362 = vld [vmem:[#allocation8 + $0x9d0] sm:$0xff]
    %v4363 = vld [vmem:[#allocation8 + $0x9d8] sm:$0xff]
    %v4364 = vld [vmem:[#allocation8 + $0x9e0] sm:$0xff]
    %v4365 = vld [vmem:[#allocation8 + $0x9e8] sm:$0xff]
    %v4366 = vld [vmem:[#allocation8 + $0x9f0] sm:$0xff]
    %v4367 = vld [vmem:[#allocation8 + $0x9f8] sm:$0xff]
    %v4368 = vld [vmem:[#allocation8 + $0xa00] sm:$0xff]
    %v4369 = vld [vmem:[#allocation8 + $0xa08] sm:$0xff]
    %v4370 = vld [vmem:[#allocation8 + $0xa10] sm:$0xff]
    %v4371 = vld [vmem:[#allocation8 + $0xa18] sm:$0xff]
    %v4372 = vld [vmem:[#allocation8 + $0xa20] sm:$0xff]
    %v4373 = vld [vmem:[#allocation8 + $0xa28] sm:$0xff]
    %v4374 = vld [vmem:[#allocation8 + $0xa30] sm:$0xff]
    %v4375 = vld [vmem:[#allocation8 + $0xa38] sm:$0xff]
    %v4376 = vld [vmem:[#allocation8 + $0xa40] sm:$0xff]
    %v4377 = vld [vmem:[#allocation8 + $0xa48] sm:$0xff]
    %v4378 = vld [vmem:[#allocation8 + $0xa50] sm:$0xff]
    %v4379 = vld [vmem:[#allocation8 + $0xa58] sm:$0xff]
    %v4380 = vld [vmem:[#allocation8 + $0xa60] sm:$0xff]
    %v4381 = vld [vmem:[#allocation8 + $0xa68] sm:$0xff]
    %v4382 = vld [vmem:[#allocation8 + $0xa70] sm:$0xff]
    %v4383 = vld [vmem:[#allocation8 + $0xa78] sm:$0xff]
    %v4384 = vld [vmem:[#allocation8 + $0xa80] sm:$0xff]
    %v4385 = vld [vmem:[#allocation8 + $0xa88] sm:$0xff]
    %v4386 = vld [vmem:[#allocation8 + $0xa90] sm:$0xff]
    %v4387 = vld [vmem:[#allocation8 + $0xa98] sm:$0xff]
    %v4388 = vld [vmem:[#allocation8 + $0xaa0] sm:$0xff]
    %v4389 = vld [vmem:[#allocation8 + $0xaa8] sm:$0xff]
    %v4390 = vld [vmem:[#allocation8 + $0xab0] sm:$0xff]
    %v4391 = vld [vmem:[#allocation8 + $0xab8] sm:$0xff]
    %v4392 = vld [vmem:[#allocation8 + $0xac0] sm:$0xff]
    %v4393 = vld [vmem:[#allocation8 + $0xac8] sm:$0xff]
    %v4394 = vld [vmem:[#allocation8 + $0xad0] sm:$0xff]
    %v4395 = vld [vmem:[#allocation8 + $0xad8] sm:$0xff]
    %v4396 = vld [vmem:[#allocation8 + $0xae0] sm:$0xff]
    %v4397 = vld [vmem:[#allocation8 + $0xae8] sm:$0xff]
    %v4398 = vld [vmem:[#allocation8 + $0xaf0] sm:$0xff]
    %v4399 = vld [vmem:[#allocation8 + $0xaf8] sm:$0xff]
    %v4400 = vld [vmem:[#allocation8 + $0xb00] sm:$0xff]
    %v4401 = vld [vmem:[#allocation8 + $0xb08] sm:$0xff]
    %v4402 = vld [vmem:[#allocation8 + $0xb10] sm:$0xff]
    %v4403 = vld [vmem:[#allocation8 + $0xb18] sm:$0xff]
    %v4404 = vld [vmem:[#allocation8 + $0xb20] sm:$0xff]
    %v4405 = vld [vmem:[#allocation8 + $0xb28] sm:$0xff]
    %v4406 = vld [vmem:[#allocation8 + $0xb30] sm:$0xff]
    %v4407 = vld [vmem:[#allocation8 + $0xb38] sm:$0xff]
    %v4408 = vld [vmem:[#allocation8 + $0xb40] sm:$0xff]
    %v4409 = vld [vmem:[#allocation8 + $0xb48] sm:$0xff]
    %v4410 = vld [vmem:[#allocation8 + $0xb50] sm:$0xff]
    %v4411 = vld [vmem:[#allocation8 + $0xb58] sm:$0xff]
    %v4412 = vld [vmem:[#allocation8 + $0xb60] sm:$0xff]
    %v4413 = vld [vmem:[#allocation8 + $0xb68] sm:$0xff]
    %v4414 = vld [vmem:[#allocation8 + $0xb70] sm:$0xff]
    %v4415 = vld [vmem:[#allocation8 + $0xb78] sm:$0xff]
    %v4416 = vld [vmem:[#allocation8 + $0xb80] sm:$0xff]
    %v4417 = vld [vmem:[#allocation8 + $0xb88] sm:$0xff]
    %v4418 = vld [vmem:[#allocation8 + $0xb90] sm:$0xff]
    %v4419 = vld [vmem:[#allocation8 + $0xb98] sm:$0xff]
    %v4420 = vld [vmem:[#allocation8 + $0xba0] sm:$0xff]
    %v4421 = vld [vmem:[#allocation8 + $0xba8] sm:$0xff]
    %v4422 = vld [vmem:[#allocation8 + $0xbb0] sm:$0xff]
    %v4423 = vld [vmem:[#allocation8 + $0xbb8] sm:$0xff]
    %v4424 = vld [vmem:[#allocation8 + $0xbc0] sm:$0xff]
    %v4425 = vld [vmem:[#allocation8 + $0xbc8] sm:$0xff]
    %v4426 = vld [vmem:[#allocation8 + $0xbd0] sm:$0xff]
    %v4427 = vld [vmem:[#allocation8 + $0xbd8] sm:$0xff]
    %v4428 = vld [vmem:[#allocation8 + $0xbe0] sm:$0xff]
    %v4429 = vld [vmem:[#allocation8 + $0xbe8] sm:$0xff]
    %v4430 = vld [vmem:[#allocation8 + $0xbf0] sm:$0xff]
    %v4431 = vld [vmem:[#allocation8 + $0xbf8] sm:$0xff]
    %v4432 = vld [vmem:[#allocation8 + $0xc00] sm:$0xff]
    %v4433 = vld [vmem:[#allocation8 + $0xc08] sm:$0xff]
    %v4434 = vld [vmem:[#allocation8 + $0xc10] sm:$0xff]
    %v4435 = vld [vmem:[#allocation8 + $0xc18] sm:$0xff]
    %v4436 = vld [vmem:[#allocation8 + $0xc20] sm:$0xff]
    %v4437 = vld [vmem:[#allocation8 + $0xc28] sm:$0xff]
    %v4438 = vld [vmem:[#allocation8 + $0xc30] sm:$0xff]
    %v4439 = vld [vmem:[#allocation8 + $0xc38] sm:$0xff]
    %v4440 = vld [vmem:[#allocation8 + $0xc40] sm:$0xff]
    %v4441 = vld [vmem:[#allocation8 + $0xc48] sm:$0xff]
    %v4442 = vld [vmem:[#allocation8 + $0xc50] sm:$0xff]
    %v4443 = vld [vmem:[#allocation8 + $0xc58] sm:$0xff]
    %v4444 = vld [vmem:[#allocation8 + $0xc60] sm:$0xff]
    %v4445 = vld [vmem:[#allocation8 + $0xc68] sm:$0xff]
    %v4446 = vld [vmem:[#allocation8 + $0xc70] sm:$0xff]
    %v4447 = vld [vmem:[#allocation8 + $0xc78] sm:$0xff]
    %v4448 = vld [vmem:[#allocation8 + $0xc80] sm:$0xff]
    %v4449 = vld [vmem:[#allocation8 + $0xc88] sm:$0xff]
    %v4450 = vld [vmem:[#allocation8 + $0xc90] sm:$0xff]
    %v4451 = vld [vmem:[#allocation8 + $0xc98] sm:$0xff]
    %v4452 = vld [vmem:[#allocation8 + $0xca0] sm:$0xff]
    %v4453 = vld [vmem:[#allocation8 + $0xca8] sm:$0xff]
    %v4454 = vld [vmem:[#allocation8 + $0xcb0] sm:$0xff]
    %v4455 = vld [vmem:[#allocation8 + $0xcb8] sm:$0xff]
    %v4456 = vld [vmem:[#allocation8 + $0xcc0] sm:$0xff]
    %v4457 = vld [vmem:[#allocation8 + $0xcc8] sm:$0xff]
    %v4458 = vld [vmem:[#allocation8 + $0xcd0] sm:$0xff]
    %v4459 = vld [vmem:[#allocation8 + $0xcd8] sm:$0xff]
    %v4460 = vld [vmem:[#allocation8 + $0xce0] sm:$0xff]
    %v4461 = vld [vmem:[#allocation8 + $0xce8] sm:$0xff]
    %v4462 = vld [vmem:[#allocation8 + $0xcf0] sm:$0xff]
    %v4463 = vld [vmem:[#allocation8 + $0xcf8] sm:$0xff]
    %v4464 = vld [vmem:[#allocation8 + $0xd00] sm:$0xff]
    %v4465 = vld [vmem:[#allocation8 + $0xd08] sm:$0xff]
    %v4466 = vld [vmem:[#allocation8 + $0xd10] sm:$0xff]
    %v4467 = vld [vmem:[#allocation8 + $0xd18] sm:$0xff]
    %v4468 = vld [vmem:[#allocation8 + $0xd20] sm:$0xff]
    %v4469 = vld [vmem:[#allocation8 + $0xd28] sm:$0xff]
    %v4470 = vld [vmem:[#allocation8 + $0xd30] sm:$0xff]
    %v4471 = vld [vmem:[#allocation8 + $0xd38] sm:$0xff]
    %v4472 = vld [vmem:[#allocation8 + $0xd40] sm:$0xff]
    %v4473 = vld [vmem:[#allocation8 + $0xd48] sm:$0xff]
    %v4474 = vld [vmem:[#allocation8 + $0xd50] sm:$0xff]
    %v4475 = vld [vmem:[#allocation8 + $0xd58] sm:$0xff]
    %v4476 = vld [vmem:[#allocation8 + $0xd60] sm:$0xff]
    %v4477 = vld [vmem:[#allocation8 + $0xd68] sm:$0xff]
    %v4478 = vld [vmem:[#allocation8 + $0xd70] sm:$0xff]
    %v4479 = vld [vmem:[#allocation8 + $0xd78] sm:$0xff]
    %v4480 = vld [vmem:[#allocation8 + $0xd80] sm:$0xff]
    %v4481 = vld [vmem:[#allocation8 + $0xd88] sm:$0xff]
    %v4482 = vld [vmem:[#allocation8 + $0xd90] sm:$0xff]
    %v4483 = vld [vmem:[#allocation8 + $0xd98] sm:$0xff]
    %v4484 = vld [vmem:[#allocation8 + $0xda0] sm:$0xff]
    %v4485 = vld [vmem:[#allocation8 + $0xda8] sm:$0xff]
    %v4486 = vld [vmem:[#allocation8 + $0xdb0] sm:$0xff]
    %v4487 = vld [vmem:[#allocation8 + $0xdb8] sm:$0xff]
    %v4488 = vld [vmem:[#allocation8 + $0xdc0] sm:$0xff]
    %v4489 = vld [vmem:[#allocation8 + $0xdc8] sm:$0xff]
    %v4490 = vld [vmem:[#allocation8 + $0xdd0] sm:$0xff]
    %v4491 = vld [vmem:[#allocation8 + $0xdd8] sm:$0xff]
    %v4492 = vld [vmem:[#allocation8 + $0xde0] sm:$0xff]
    %v4493 = vld [vmem:[#allocation8 + $0xde8] sm:$0xff]
    %v4494 = vld [vmem:[#allocation8 + $0xdf0] sm:$0xff]
    %v4495 = vld [vmem:[#allocation8 + $0xdf8] sm:$0xff]
    %v4496 = vld [vmem:[#allocation8 + $0xe00] sm:$0xff]
    %v4497 = vld [vmem:[#allocation8 + $0xe08] sm:$0xff]
    %v4498 = vld [vmem:[#allocation8 + $0xe10] sm:$0xff]
    %v4499 = vld [vmem:[#allocation8 + $0xe18] sm:$0xff]
    %v4500 = vld [vmem:[#allocation8 + $0xe20] sm:$0xff]
    %v4501 = vld [vmem:[#allocation8 + $0xe28] sm:$0xff]
    %v4502 = vld [vmem:[#allocation8 + $0xe30] sm:$0xff]
    %v4503 = vld [vmem:[#allocation8 + $0xe38] sm:$0xff]
    %v4504 = vld [vmem:[#allocation8 + $0xe40] sm:$0xff]
    %v4505 = vld [vmem:[#allocation8 + $0xe48] sm:$0xff]
    %v4506 = vld [vmem:[#allocation8 + $0xe50] sm:$0xff]
    %v4507 = vld [vmem:[#allocation8 + $0xe58] sm:$0xff]
    %v4508 = vld [vmem:[#allocation8 + $0xe60] sm:$0xff]
    %v4509 = vld [vmem:[#allocation8 + $0xe68] sm:$0xff]
    %v4510 = vld [vmem:[#allocation8 + $0xe70] sm:$0xff]
    %v4511 = vld [vmem:[#allocation8 + $0xe78] sm:$0xff]
    %v4512 = vld [vmem:[#allocation8 + $0xe80] sm:$0xff]
    %v4513 = vld [vmem:[#allocation8 + $0xe88] sm:$0xff]
    %v4514 = vld [vmem:[#allocation8 + $0xe90] sm:$0xff]
    %v4515 = vld [vmem:[#allocation8 + $0xe98] sm:$0xff]
    %v4516 = vld [vmem:[#allocation8 + $0xea0] sm:$0xff]
    %v4517 = vld [vmem:[#allocation8 + $0xea8] sm:$0xff]
    %v4518 = vld [vmem:[#allocation8 + $0xeb0] sm:$0xff]
    %v4519 = vld [vmem:[#allocation8 + $0xeb8] sm:$0xff]
    %v4520 = vld [vmem:[#allocation8 + $0xec0] sm:$0xff]
    %v4521 = vld [vmem:[#allocation8 + $0xec8] sm:$0xff]
    %v4522 = vld [vmem:[#allocation8 + $0xed0] sm:$0xff]
    %v4523 = vld [vmem:[#allocation8 + $0xed8] sm:$0xff]
    %v4524 = vld [vmem:[#allocation8 + $0xee0] sm:$0xff]
    %v4525 = vld [vmem:[#allocation8 + $0xee8] sm:$0xff]
    %v4526 = vld [vmem:[#allocation8 + $0xef0] sm:$0xff]
    %v4527 = vld [vmem:[#allocation8 + $0xef8] sm:$0xff]
    %v4528 = vld [vmem:[#allocation8 + $0xf00] sm:$0xff]
    %v4529 = vld [vmem:[#allocation8 + $0xf08] sm:$0xff]
    %v4530 = vld [vmem:[#allocation8 + $0xf10] sm:$0xff]
    %v4531 = vld [vmem:[#allocation8 + $0xf18] sm:$0xff]
    %v4532 = vld [vmem:[#allocation8 + $0xf20] sm:$0xff]
    %v4533 = vld [vmem:[#allocation8 + $0xf28] sm:$0xff]
    %v4534 = vld [vmem:[#allocation8 + $0xf30] sm:$0xff]
    %v4535 = vld [vmem:[#allocation8 + $0xf38] sm:$0xff]
    %v4536 = vld [vmem:[#allocation8 + $0xf40] sm:$0xff]
    %v4537 = vld [vmem:[#allocation8 + $0xf48] sm:$0xff]
    %v4538 = vld [vmem:[#allocation8 + $0xf50] sm:$0xff]
    %v4539 = vld [vmem:[#allocation8 + $0xf58] sm:$0xff]
    %v4540 = vld [vmem:[#allocation8 + $0xf60] sm:$0xff]
    %v4541 = vld [vmem:[#allocation8 + $0xf68] sm:$0xff]
    %v4542 = vld [vmem:[#allocation8 + $0xf70] sm:$0xff]
    %v4543 = vld [vmem:[#allocation8 + $0xf78] sm:$0xff]
    %v4544 = vld [vmem:[#allocation8 + $0xf80] sm:$0xff]
    %v4545 = vld [vmem:[#allocation8 + $0xf88] sm:$0xff]
    %v4546 = vld [vmem:[#allocation8 + $0xf90] sm:$0xff]
    %v4547 = vld [vmem:[#allocation8 + $0xf98] sm:$0xff]
    %v4548 = vld [vmem:[#allocation8 + $0xfa0] sm:$0xff]
    %v4549 = vld [vmem:[#allocation8 + $0xfa8] sm:$0xff]
    %v4550 = vld [vmem:[#allocation8 + $0xfb0] sm:$0xff]
    %v4551 = vld [vmem:[#allocation8 + $0xfb8] sm:$0xff]
    %v4552 = vld [vmem:[#allocation8 + $0xfc0] sm:$0xff]
    %v4553 = vld [vmem:[#allocation8 + $0xfc8] sm:$0xff]
    %v4554 = vld [vmem:[#allocation8 + $0xfd0] sm:$0xff]
    %v4555 = vld [vmem:[#allocation8 + $0xfd8] sm:$0xff]
    %v4556 = vld [vmem:[#allocation8 + $0xfe0] sm:$0xff]
    %v4557 = vld [vmem:[#allocation8 + $0xfe8] sm:$0xff]
    %v4558 = vld [vmem:[#allocation8 + $0xff0] sm:$0xff]
    %v4559 = vld [vmem:[#allocation8 + $0xff8] sm:$0xff]
    %v4560 = vld [vmem:[#allocation10] sm:$0xff]
    %v4562 = vperm.slane %v4560, 0
    %v4563 = vperm.slane %v4560, 1
    %v4564 = vperm.slane %v4560, 2
    %v4565 = vperm.slane %v4560, 3
    %v4566 = vperm.slane %v4560, 4
    %v4567 = vperm.slane %v4560, 5
    %v4568 = vperm.slane %v4560, 6
    %v4569 = vperm.slane %v4560, 7
    %v5090 = vunpack.c.l.b16 %v4048
    %v5091 = vunpack.c.h.b16 %v4048
    %v5092 = vunpack.c.l.b16 %v4049
    %v5093 = vunpack.c.h.b16 %v4049
    %v5094 = vunpack.c.l.b16 %v4050
    %v5095 = vunpack.c.h.b16 %v4050
    %v5096 = vunpack.c.l.b16 %v4051
    %v5097 = vunpack.c.h.b16 %v4051
    %v5098 = vunpack.c.l.b16 %v4052
    %v5099 = vunpack.c.h.b16 %v4052
    %v5100 = vunpack.c.l.b16 %v4053
    %v5101 = vunpack.c.h.b16 %v4053
    %v5102 = vunpack.c.l.b16 %v4054
    %v5103 = vunpack.c.h.b16 %v4054
    %v5104 = vunpack.c.l.b16 %v4055
    %v5105 = vunpack.c.h.b16 %v4055
    %v5106 = vunpack.c.l.b16 %v4056
    %v5107 = vunpack.c.h.b16 %v4056
    %v5108 = vunpack.c.l.b16 %v4057
    %v5109 = vunpack.c.h.b16 %v4057
    %v5110 = vunpack.c.l.b16 %v4058
    %v5111 = vunpack.c.h.b16 %v4058
    %v5112 = vunpack.c.l.b16 %v4059
    %v5113 = vunpack.c.h.b16 %v4059
    %v5114 = vunpack.c.l.b16 %v4060
    %v5115 = vunpack.c.h.b16 %v4060
    %v5116 = vunpack.c.l.b16 %v4061
    %v5117 = vunpack.c.h.b16 %v4061
    %v5118 = vunpack.c.l.b16 %v4062
    %v5119 = vunpack.c.h.b16 %v4062
    %v5120 = vunpack.c.l.b16 %v4063
    %v5121 = vunpack.c.h.b16 %v4063
    %v5122 = vunpack.c.l.b16 %v4064
    %v5123 = vunpack.c.h.b16 %v4064
    %v5124 = vunpack.c.l.b16 %v4065
    %v5125 = vunpack.c.h.b16 %v4065
    %v5126 = vunpack.c.l.b16 %v4066
    %v5127 = vunpack.c.h.b16 %v4066
    %v5128 = vunpack.c.l.b16 %v4067
    %v5129 = vunpack.c.h.b16 %v4067
    %v5130 = vunpack.c.l.b16 %v4068
    %v5131 = vunpack.c.h.b16 %v4068
    %v5132 = vunpack.c.l.b16 %v4069
    %v5133 = vunpack.c.h.b16 %v4069
    %v5134 = vunpack.c.l.b16 %v4070
    %v5135 = vunpack.c.h.b16 %v4070
    %v5136 = vunpack.c.l.b16 %v4071
    %v5137 = vunpack.c.h.b16 %v4071
    %v5138 = vunpack.c.l.b16 %v4072
    %v5139 = vunpack.c.h.b16 %v4072
    %v5140 = vunpack.c.l.b16 %v4073
    %v5141 = vunpack.c.h.b16 %v4073
    %v5142 = vunpack.c.l.b16 %v4074
    %v5143 = vunpack.c.h.b16 %v4074
    %v5144 = vunpack.c.l.b16 %v4075
    %v5145 = vunpack.c.h.b16 %v4075
    %v5146 = vunpack.c.l.b16 %v4076
    %v5147 = vunpack.c.h.b16 %v4076
    %v5148 = vunpack.c.l.b16 %v4077
    %v5149 = vunpack.c.h.b16 %v4077
    %v5150 = vunpack.c.l.b16 %v4078
    %v5151 = vunpack.c.h.b16 %v4078
    %v5152 = vunpack.c.l.b16 %v4079
    %v5153 = vunpack.c.h.b16 %v4079
    %v5154 = vunpack.c.l.b16 %v4080
    %v5155 = vunpack.c.h.b16 %v4080
    %v5156 = vunpack.c.l.b16 %v4081
    %v5157 = vunpack.c.h.b16 %v4081
    %v5158 = vunpack.c.l.b16 %v4082
    %v5159 = vunpack.c.h.b16 %v4082
    %v5160 = vunpack.c.l.b16 %v4083
    %v5161 = vunpack.c.h.b16 %v4083
    %v5162 = vunpack.c.l.b16 %v4084
    %v5163 = vunpack.c.h.b16 %v4084
    %v5164 = vunpack.c.l.b16 %v4085
    %v5165 = vunpack.c.h.b16 %v4085
    %v5166 = vunpack.c.l.b16 %v4086
    %v5167 = vunpack.c.h.b16 %v4086
    %v5168 = vunpack.c.l.b16 %v4087
    %v5169 = vunpack.c.h.b16 %v4087
    %v5170 = vunpack.c.l.b16 %v4088
    %v5171 = vunpack.c.h.b16 %v4088
    %v5172 = vunpack.c.l.b16 %v4089
    %v5173 = vunpack.c.h.b16 %v4089
    %v5174 = vunpack.c.l.b16 %v4090
    %v5175 = vunpack.c.h.b16 %v4090
    %v5176 = vunpack.c.l.b16 %v4091
    %v5177 = vunpack.c.h.b16 %v4091
    %v5178 = vunpack.c.l.b16 %v4092
    %v5179 = vunpack.c.h.b16 %v4092
    %v5180 = vunpack.c.l.b16 %v4093
    %v5181 = vunpack.c.h.b16 %v4093
    %v5182 = vunpack.c.l.b16 %v4094
    %v5183 = vunpack.c.h.b16 %v4094
    %v5184 = vunpack.c.l.b16 %v4095
    %v5185 = vunpack.c.h.b16 %v4095
    %v5186 = vunpack.c.l.b16 %v4096
    %v5187 = vunpack.c.h.b16 %v4096
    %v5188 = vunpack.c.l.b16 %v4097
    %v5189 = vunpack.c.h.b16 %v4097
    %v5190 = vunpack.c.l.b16 %v4098
    %v5191 = vunpack.c.h.b16 %v4098
    %v5192 = vunpack.c.l.b16 %v4099
    %v5193 = vunpack.c.h.b16 %v4099
    %v5194 = vunpack.c.l.b16 %v4100
    %v5195 = vunpack.c.h.b16 %v4100
    %v5196 = vunpack.c.l.b16 %v4101
    %v5197 = vunpack.c.h.b16 %v4101
    %v5198 = vunpack.c.l.b16 %v4102
    %v5199 = vunpack.c.h.b16 %v4102
    %v5200 = vunpack.c.l.b16 %v4103
    %v5201 = vunpack.c.h.b16 %v4103
    %v5202 = vunpack.c.l.b16 %v4104
    %v5203 = vunpack.c.h.b16 %v4104
    %v5204 = vunpack.c.l.b16 %v4105
    %v5205 = vunpack.c.h.b16 %v4105
    %v5206 = vunpack.c.l.b16 %v4106
    %v5207 = vunpack.c.h.b16 %v4106
    %v5208 = vunpack.c.l.b16 %v4107
    %v5209 = vunpack.c.h.b16 %v4107
    %v5210 = vunpack.c.l.b16 %v4108
    %v5211 = vunpack.c.h.b16 %v4108
    %v5212 = vunpack.c.l.b16 %v4109
    %v5213 = vunpack.c.h.b16 %v4109
    %v5214 = vunpack.c.l.b16 %v4110
    %v5215 = vunpack.c.h.b16 %v4110
    %v5216 = vunpack.c.l.b16 %v4111
    %v5217 = vunpack.c.h.b16 %v4111
    %v5218 = vunpack.c.l.b16 %v4112
    %v5219 = vunpack.c.h.b16 %v4112
    %v5220 = vunpack.c.l.b16 %v4113
    %v5221 = vunpack.c.h.b16 %v4113
    %v5222 = vunpack.c.l.b16 %v4114
    %v5223 = vunpack.c.h.b16 %v4114
    %v5224 = vunpack.c.l.b16 %v4115
    %v5225 = vunpack.c.h.b16 %v4115
    %v5226 = vunpack.c.l.b16 %v4116
    %v5227 = vunpack.c.h.b16 %v4116
    %v5228 = vunpack.c.l.b16 %v4117
    %v5229 = vunpack.c.h.b16 %v4117
    %v5230 = vunpack.c.l.b16 %v4118
    %v5231 = vunpack.c.h.b16 %v4118
    %v5232 = vunpack.c.l.b16 %v4119
    %v5233 = vunpack.c.h.b16 %v4119
    %v5234 = vunpack.c.l.b16 %v4120
    %v5235 = vunpack.c.h.b16 %v4120
    %v5236 = vunpack.c.l.b16 %v4121
    %v5237 = vunpack.c.h.b16 %v4121
    %v5238 = vunpack.c.l.b16 %v4122
    %v5239 = vunpack.c.h.b16 %v4122
    %v5240 = vunpack.c.l.b16 %v4123
    %v5241 = vunpack.c.h.b16 %v4123
    %v5242 = vunpack.c.l.b16 %v4124
    %v5243 = vunpack.c.h.b16 %v4124
    %v5244 = vunpack.c.l.b16 %v4125
    %v5245 = vunpack.c.h.b16 %v4125
    %v5246 = vunpack.c.l.b16 %v4126
    %v5247 = vunpack.c.h.b16 %v4126
    %v5248 = vunpack.c.l.b16 %v4127
    %v5249 = vunpack.c.h.b16 %v4127
    %v5250 = vunpack.c.l.b16 %v4128
    %v5251 = vunpack.c.h.b16 %v4128
    %v5252 = vunpack.c.l.b16 %v4129
    %v5253 = vunpack.c.h.b16 %v4129
    %v5254 = vunpack.c.l.b16 %v4130
    %v5255 = vunpack.c.h.b16 %v4130
    %v5256 = vunpack.c.l.b16 %v4131
    %v5257 = vunpack.c.h.b16 %v4131
    %v5258 = vunpack.c.l.b16 %v4132
    %v5259 = vunpack.c.h.b16 %v4132
    %v5260 = vunpack.c.l.b16 %v4133
    %v5261 = vunpack.c.h.b16 %v4133
    %v5262 = vunpack.c.l.b16 %v4134
    %v5263 = vunpack.c.h.b16 %v4134
    %v5264 = vunpack.c.l.b16 %v4135
    %v5265 = vunpack.c.h.b16 %v4135
    %v5266 = vunpack.c.l.b16 %v4136
    %v5267 = vunpack.c.h.b16 %v4136
    %v5268 = vunpack.c.l.b16 %v4137
    %v5269 = vunpack.c.h.b16 %v4137
    %v5270 = vunpack.c.l.b16 %v4138
    %v5271 = vunpack.c.h.b16 %v4138
    %v5272 = vunpack.c.l.b16 %v4139
    %v5273 = vunpack.c.h.b16 %v4139
    %v5274 = vunpack.c.l.b16 %v4140
    %v5275 = vunpack.c.h.b16 %v4140
    %v5276 = vunpack.c.l.b16 %v4141
    %v5277 = vunpack.c.h.b16 %v4141
    %v5278 = vunpack.c.l.b16 %v4142
    %v5279 = vunpack.c.h.b16 %v4142
    %v5280 = vunpack.c.l.b16 %v4143
    %v5281 = vunpack.c.h.b16 %v4143
    %v5282 = vunpack.c.l.b16 %v4144
    %v5283 = vunpack.c.h.b16 %v4144
    %v5284 = vunpack.c.l.b16 %v4145
    %v5285 = vunpack.c.h.b16 %v4145
    %v5286 = vunpack.c.l.b16 %v4146
    %v5287 = vunpack.c.h.b16 %v4146
    %v5288 = vunpack.c.l.b16 %v4147
    %v5289 = vunpack.c.h.b16 %v4147
    %v5290 = vunpack.c.l.b16 %v4148
    %v5291 = vunpack.c.h.b16 %v4148
    %v5292 = vunpack.c.l.b16 %v4149
    %v5293 = vunpack.c.h.b16 %v4149
    %v5294 = vunpack.c.l.b16 %v4150
    %v5295 = vunpack.c.h.b16 %v4150
    %v5296 = vunpack.c.l.b16 %v4151
    %v5297 = vunpack.c.h.b16 %v4151
    %v5298 = vunpack.c.l.b16 %v4152
    %v5299 = vunpack.c.h.b16 %v4152
    %v5300 = vunpack.c.l.b16 %v4153
    %v5301 = vunpack.c.h.b16 %v4153
    %v5302 = vunpack.c.l.b16 %v4154
    %v5303 = vunpack.c.h.b16 %v4154
    %v5304 = vunpack.c.l.b16 %v4155
    %v5305 = vunpack.c.h.b16 %v4155
    %v5306 = vunpack.c.l.b16 %v4156
    %v5307 = vunpack.c.h.b16 %v4156
    %v5308 = vunpack.c.l.b16 %v4157
    %v5309 = vunpack.c.h.b16 %v4157
    %v5310 = vunpack.c.l.b16 %v4158
    %v5311 = vunpack.c.h.b16 %v4158
    %v5312 = vunpack.c.l.b16 %v4159
    %v5313 = vunpack.c.h.b16 %v4159
    %v5314 = vunpack.c.l.b16 %v4160
    %v5315 = vunpack.c.h.b16 %v4160
    %v5316 = vunpack.c.l.b16 %v4161
    %v5317 = vunpack.c.h.b16 %v4161
    %v5318 = vunpack.c.l.b16 %v4162
    %v5319 = vunpack.c.h.b16 %v4162
    %v5320 = vunpack.c.l.b16 %v4163
    %v5321 = vunpack.c.h.b16 %v4163
    %v5322 = vunpack.c.l.b16 %v4164
    %v5323 = vunpack.c.h.b16 %v4164
    %v5324 = vunpack.c.l.b16 %v4165
    %v5325 = vunpack.c.h.b16 %v4165
    %v5326 = vunpack.c.l.b16 %v4166
    %v5327 = vunpack.c.h.b16 %v4166
    %v5328 = vunpack.c.l.b16 %v4167
    %v5329 = vunpack.c.h.b16 %v4167
    %v5330 = vunpack.c.l.b16 %v4168
    %v5331 = vunpack.c.h.b16 %v4168
    %v5332 = vunpack.c.l.b16 %v4169
    %v5333 = vunpack.c.h.b16 %v4169
    %v5334 = vunpack.c.l.b16 %v4170
    %v5335 = vunpack.c.h.b16 %v4170
    %v5336 = vunpack.c.l.b16 %v4171
    %v5337 = vunpack.c.h.b16 %v4171
    %v5338 = vunpack.c.l.b16 %v4172
    %v5339 = vunpack.c.h.b16 %v4172
    %v5340 = vunpack.c.l.b16 %v4173
    %v5341 = vunpack.c.h.b16 %v4173
    %v5342 = vunpack.c.l.b16 %v4174
    %v5343 = vunpack.c.h.b16 %v4174
    %v5344 = vunpack.c.l.b16 %v4175
    %v5345 = vunpack.c.h.b16 %v4175
    %v5346 = vunpack.c.l.b16 %v4176
    %v5347 = vunpack.c.h.b16 %v4176
    %v5348 = vunpack.c.l.b16 %v4177
    %v5349 = vunpack.c.h.b16 %v4177
    %v5350 = vunpack.c.l.b16 %v4178
    %v5351 = vunpack.c.h.b16 %v4178
    %v5352 = vunpack.c.l.b16 %v4179
    %v5353 = vunpack.c.h.b16 %v4179
    %v5354 = vunpack.c.l.b16 %v4180
    %v5355 = vunpack.c.h.b16 %v4180
    %v5356 = vunpack.c.l.b16 %v4181
    %v5357 = vunpack.c.h.b16 %v4181
    %v5358 = vunpack.c.l.b16 %v4182
    %v5359 = vunpack.c.h.b16 %v4182
    %v5360 = vunpack.c.l.b16 %v4183
    %v5361 = vunpack.c.h.b16 %v4183
    %v5362 = vunpack.c.l.b16 %v4184
    %v5363 = vunpack.c.h.b16 %v4184
    %v5364 = vunpack.c.l.b16 %v4185
    %v5365 = vunpack.c.h.b16 %v4185
    %v5366 = vunpack.c.l.b16 %v4186
    %v5367 = vunpack.c.h.b16 %v4186
    %v5368 = vunpack.c.l.b16 %v4187
    %v5369 = vunpack.c.h.b16 %v4187
    %v5370 = vunpack.c.l.b16 %v4188
    %v5371 = vunpack.c.h.b16 %v4188
    %v5372 = vunpack.c.l.b16 %v4189
    %v5373 = vunpack.c.h.b16 %v4189
    %v5374 = vunpack.c.l.b16 %v4190
    %v5375 = vunpack.c.h.b16 %v4190
    %v5376 = vunpack.c.l.b16 %v4191
    %v5377 = vunpack.c.h.b16 %v4191
    %v5378 = vunpack.c.l.b16 %v4192
    %v5379 = vunpack.c.h.b16 %v4192
    %v5380 = vunpack.c.l.b16 %v4193
    %v5381 = vunpack.c.h.b16 %v4193
    %v5382 = vunpack.c.l.b16 %v4194
    %v5383 = vunpack.c.h.b16 %v4194
    %v5384 = vunpack.c.l.b16 %v4195
    %v5385 = vunpack.c.h.b16 %v4195
    %v5386 = vunpack.c.l.b16 %v4196
    %v5387 = vunpack.c.h.b16 %v4196
    %v5388 = vunpack.c.l.b16 %v4197
    %v5389 = vunpack.c.h.b16 %v4197
    %v5390 = vunpack.c.l.b16 %v4198
    %v5391 = vunpack.c.h.b16 %v4198
    %v5392 = vunpack.c.l.b16 %v4199
    %v5393 = vunpack.c.h.b16 %v4199
    %v5394 = vunpack.c.l.b16 %v4200
    %v5395 = vunpack.c.h.b16 %v4200
    %v5396 = vunpack.c.l.b16 %v4201
    %v5397 = vunpack.c.h.b16 %v4201
    %v5398 = vunpack.c.l.b16 %v4202
    %v5399 = vunpack.c.h.b16 %v4202
    %v5400 = vunpack.c.l.b16 %v4203
    %v5401 = vunpack.c.h.b16 %v4203
    %v5402 = vunpack.c.l.b16 %v4204
    %v5403 = vunpack.c.h.b16 %v4204
    %v5404 = vunpack.c.l.b16 %v4205
    %v5405 = vunpack.c.h.b16 %v4205
    %v5406 = vunpack.c.l.b16 %v4206
    %v5407 = vunpack.c.h.b16 %v4206
    %v5408 = vunpack.c.l.b16 %v4207
    %v5409 = vunpack.c.h.b16 %v4207
    %v5410 = vunpack.c.l.b16 %v4208
    %v5411 = vunpack.c.h.b16 %v4208
    %v5412 = vunpack.c.l.b16 %v4209
    %v5413 = vunpack.c.h.b16 %v4209
    %v5414 = vunpack.c.l.b16 %v4210
    %v5415 = vunpack.c.h.b16 %v4210
    %v5416 = vunpack.c.l.b16 %v4211
    %v5417 = vunpack.c.h.b16 %v4211
    %v5418 = vunpack.c.l.b16 %v4212
    %v5419 = vunpack.c.h.b16 %v4212
    %v5420 = vunpack.c.l.b16 %v4213
    %v5421 = vunpack.c.h.b16 %v4213
    %v5422 = vunpack.c.l.b16 %v4214
    %v5423 = vunpack.c.h.b16 %v4214
    %v5424 = vunpack.c.l.b16 %v4215
    %v5425 = vunpack.c.h.b16 %v4215
    %v5426 = vunpack.c.l.b16 %v4216
    %v5427 = vunpack.c.h.b16 %v4216
    %v5428 = vunpack.c.l.b16 %v4217
    %v5429 = vunpack.c.h.b16 %v4217
    %v5430 = vunpack.c.l.b16 %v4218
    %v5431 = vunpack.c.h.b16 %v4218
    %v5432 = vunpack.c.l.b16 %v4219
    %v5433 = vunpack.c.h.b16 %v4219
    %v5434 = vunpack.c.l.b16 %v4220
    %v5435 = vunpack.c.h.b16 %v4220
    %v5436 = vunpack.c.l.b16 %v4221
    %v5437 = vunpack.c.h.b16 %v4221
    %v5438 = vunpack.c.l.b16 %v4222
    %v5439 = vunpack.c.h.b16 %v4222
    %v5440 = vunpack.c.l.b16 %v4223
    %v5441 = vunpack.c.h.b16 %v4223
    %v5442 = vunpack.c.l.b16 %v4224
    %v5443 = vunpack.c.h.b16 %v4224
    %v5444 = vunpack.c.l.b16 %v4225
    %v5445 = vunpack.c.h.b16 %v4225
    %v5446 = vunpack.c.l.b16 %v4226
    %v5447 = vunpack.c.h.b16 %v4226
    %v5448 = vunpack.c.l.b16 %v4227
    %v5449 = vunpack.c.h.b16 %v4227
    %v5450 = vunpack.c.l.b16 %v4228
    %v5451 = vunpack.c.h.b16 %v4228
    %v5452 = vunpack.c.l.b16 %v4229
    %v5453 = vunpack.c.h.b16 %v4229
    %v5454 = vunpack.c.l.b16 %v4230
    %v5455 = vunpack.c.h.b16 %v4230
    %v5456 = vunpack.c.l.b16 %v4231
    %v5457 = vunpack.c.h.b16 %v4231
    %v5458 = vunpack.c.l.b16 %v4232
    %v5459 = vunpack.c.h.b16 %v4232
    %v5460 = vunpack.c.l.b16 %v4233
    %v5461 = vunpack.c.h.b16 %v4233
    %v5462 = vunpack.c.l.b16 %v4234
    %v5463 = vunpack.c.h.b16 %v4234
    %v5464 = vunpack.c.l.b16 %v4235
    %v5465 = vunpack.c.h.b16 %v4235
    %v5466 = vunpack.c.l.b16 %v4236
    %v5467 = vunpack.c.h.b16 %v4236
    %v5468 = vunpack.c.l.b16 %v4237
    %v5469 = vunpack.c.h.b16 %v4237
    %v5470 = vunpack.c.l.b16 %v4238
    %v5471 = vunpack.c.h.b16 %v4238
    %v5472 = vunpack.c.l.b16 %v4239
    %v5473 = vunpack.c.h.b16 %v4239
    %v5474 = vunpack.c.l.b16 %v4240
    %v5475 = vunpack.c.h.b16 %v4240
    %v5476 = vunpack.c.l.b16 %v4241
    %v5477 = vunpack.c.h.b16 %v4241
    %v5478 = vunpack.c.l.b16 %v4242
    %v5479 = vunpack.c.h.b16 %v4242
    %v5480 = vunpack.c.l.b16 %v4243
    %v5481 = vunpack.c.h.b16 %v4243
    %v5482 = vunpack.c.l.b16 %v4244
    %v5483 = vunpack.c.h.b16 %v4244
    %v5484 = vunpack.c.l.b16 %v4245
    %v5485 = vunpack.c.h.b16 %v4245
    %v5486 = vunpack.c.l.b16 %v4246
    %v5487 = vunpack.c.h.b16 %v4246
    %v5488 = vunpack.c.l.b16 %v4247
    %v5489 = vunpack.c.h.b16 %v4247
    %v5490 = vunpack.c.l.b16 %v4248
    %v5491 = vunpack.c.h.b16 %v4248
    %v5492 = vunpack.c.l.b16 %v4249
    %v5493 = vunpack.c.h.b16 %v4249
    %v5494 = vunpack.c.l.b16 %v4250
    %v5495 = vunpack.c.h.b16 %v4250
    %v5496 = vunpack.c.l.b16 %v4251
    %v5497 = vunpack.c.h.b16 %v4251
    %v5498 = vunpack.c.l.b16 %v4252
    %v5499 = vunpack.c.h.b16 %v4252
    %v5500 = vunpack.c.l.b16 %v4253
    %v5501 = vunpack.c.h.b16 %v4253
    %v5502 = vunpack.c.l.b16 %v4254
    %v5503 = vunpack.c.h.b16 %v4254
    %v5504 = vunpack.c.l.b16 %v4255
    %v5505 = vunpack.c.h.b16 %v4255
    %v5506 = vunpack.c.l.b16 %v4256
    %v5507 = vunpack.c.h.b16 %v4256
    %v5508 = vunpack.c.l.b16 %v4257
    %v5509 = vunpack.c.h.b16 %v4257
    %v5510 = vunpack.c.l.b16 %v4258
    %v5511 = vunpack.c.h.b16 %v4258
    %v5512 = vunpack.c.l.b16 %v4259
    %v5513 = vunpack.c.h.b16 %v4259
    %v5514 = vunpack.c.l.b16 %v4260
    %v5515 = vunpack.c.h.b16 %v4260
    %v5516 = vunpack.c.l.b16 %v4261
    %v5517 = vunpack.c.h.b16 %v4261
    %v5518 = vunpack.c.l.b16 %v4262
    %v5519 = vunpack.c.h.b16 %v4262
    %v5520 = vunpack.c.l.b16 %v4263
    %v5521 = vunpack.c.h.b16 %v4263
    %v5522 = vunpack.c.l.b16 %v4264
    %v5523 = vunpack.c.h.b16 %v4264
    %v5524 = vunpack.c.l.b16 %v4265
    %v5525 = vunpack.c.h.b16 %v4265
    %v5526 = vunpack.c.l.b16 %v4266
    %v5527 = vunpack.c.h.b16 %v4266
    %v5528 = vunpack.c.l.b16 %v4267
    %v5529 = vunpack.c.h.b16 %v4267
    %v5530 = vunpack.c.l.b16 %v4268
    %v5531 = vunpack.c.h.b16 %v4268
    %v5532 = vunpack.c.l.b16 %v4269
    %v5533 = vunpack.c.h.b16 %v4269
    %v5534 = vunpack.c.l.b16 %v4270
    %v5535 = vunpack.c.h.b16 %v4270
    %v5536 = vunpack.c.l.b16 %v4271
    %v5537 = vunpack.c.h.b16 %v4271
    %v5538 = vunpack.c.l.b16 %v4272
    %v5539 = vunpack.c.h.b16 %v4272
    %v5540 = vunpack.c.l.b16 %v4273
    %v5541 = vunpack.c.h.b16 %v4273
    %v5542 = vunpack.c.l.b16 %v4274
    %v5543 = vunpack.c.h.b16 %v4274
    %v5544 = vunpack.c.l.b16 %v4275
    %v5545 = vunpack.c.h.b16 %v4275
    %v5546 = vunpack.c.l.b16 %v4276
    %v5547 = vunpack.c.h.b16 %v4276
    %v5548 = vunpack.c.l.b16 %v4277
    %v5549 = vunpack.c.h.b16 %v4277
    %v5550 = vunpack.c.l.b16 %v4278
    %v5551 = vunpack.c.h.b16 %v4278
    %v5552 = vunpack.c.l.b16 %v4279
    %v5553 = vunpack.c.h.b16 %v4279
    %v5554 = vunpack.c.l.b16 %v4280
    %v5555 = vunpack.c.h.b16 %v4280
    %v5556 = vunpack.c.l.b16 %v4281
    %v5557 = vunpack.c.h.b16 %v4281
    %v5558 = vunpack.c.l.b16 %v4282
    %v5559 = vunpack.c.h.b16 %v4282
    %v5560 = vunpack.c.l.b16 %v4283
    %v5561 = vunpack.c.h.b16 %v4283
    %v5562 = vunpack.c.l.b16 %v4284
    %v5563 = vunpack.c.h.b16 %v4284
    %v5564 = vunpack.c.l.b16 %v4285
    %v5565 = vunpack.c.h.b16 %v4285
    %v5566 = vunpack.c.l.b16 %v4286
    %v5567 = vunpack.c.h.b16 %v4286
    %v5568 = vunpack.c.l.b16 %v4287
    %v5569 = vunpack.c.h.b16 %v4287
    %v5570 = vunpack.c.l.b16 %v4288
    %v5571 = vunpack.c.h.b16 %v4288
    %v5572 = vunpack.c.l.b16 %v4289
    %v5573 = vunpack.c.h.b16 %v4289
    %v5574 = vunpack.c.l.b16 %v4290
    %v5575 = vunpack.c.h.b16 %v4290
    %v5576 = vunpack.c.l.b16 %v4291
    %v5577 = vunpack.c.h.b16 %v4291
    %v5578 = vunpack.c.l.b16 %v4292
    %v5579 = vunpack.c.h.b16 %v4292
    %v5580 = vunpack.c.l.b16 %v4293
    %v5581 = vunpack.c.h.b16 %v4293
    %v5582 = vunpack.c.l.b16 %v4294
    %v5583 = vunpack.c.h.b16 %v4294
    %v5584 = vunpack.c.l.b16 %v4295
    %v5585 = vunpack.c.h.b16 %v4295
    %v5586 = vunpack.c.l.b16 %v4296
    %v5587 = vunpack.c.h.b16 %v4296
    %v5588 = vunpack.c.l.b16 %v4297
    %v5589 = vunpack.c.h.b16 %v4297
    %v5590 = vunpack.c.l.b16 %v4298
    %v5591 = vunpack.c.h.b16 %v4298
    %v5592 = vunpack.c.l.b16 %v4299
    %v5593 = vunpack.c.h.b16 %v4299
    %v5594 = vunpack.c.l.b16 %v4300
    %v5595 = vunpack.c.h.b16 %v4300
    %v5596 = vunpack.c.l.b16 %v4301
    %v5597 = vunpack.c.h.b16 %v4301
    %v5598 = vunpack.c.l.b16 %v4302
    %v5599 = vunpack.c.h.b16 %v4302
    %v5600 = vunpack.c.l.b16 %v4303
    %v5601 = vunpack.c.h.b16 %v4303
    %v5602 = vunpack.c.l.b16 %v4304
    %v5603 = vunpack.c.h.b16 %v4304
    %v5604 = vunpack.c.l.b16 %v4305
    %v5605 = vunpack.c.h.b16 %v4305
    %v5606 = vunpack.c.l.b16 %v4306
    %v5607 = vunpack.c.h.b16 %v4306
    %v5608 = vunpack.c.l.b16 %v4307
    %v5609 = vunpack.c.h.b16 %v4307
    %v5610 = vunpack.c.l.b16 %v4308
    %v5611 = vunpack.c.h.b16 %v4308
    %v5612 = vunpack.c.l.b16 %v4309
    %v5613 = vunpack.c.h.b16 %v4309
    %v5614 = vunpack.c.l.b16 %v4310
    %v5615 = vunpack.c.h.b16 %v4310
    %v5616 = vunpack.c.l.b16 %v4311
    %v5617 = vunpack.c.h.b16 %v4311
    %v5618 = vunpack.c.l.b16 %v4312
    %v5619 = vunpack.c.h.b16 %v4312
    %v5620 = vunpack.c.l.b16 %v4313
    %v5621 = vunpack.c.h.b16 %v4313
    %v5622 = vunpack.c.l.b16 %v4314
    %v5623 = vunpack.c.h.b16 %v4314
    %v5624 = vunpack.c.l.b16 %v4315
    %v5625 = vunpack.c.h.b16 %v4315
    %v5626 = vunpack.c.l.b16 %v4316
    %v5627 = vunpack.c.h.b16 %v4316
    %v5628 = vunpack.c.l.b16 %v4317
    %v5629 = vunpack.c.h.b16 %v4317
    %v5630 = vunpack.c.l.b16 %v4318
    %v5631 = vunpack.c.h.b16 %v4318
    %v5632 = vunpack.c.l.b16 %v4319
    %v5633 = vunpack.c.h.b16 %v4319
    %v5634 = vunpack.c.l.b16 %v4320
    %v5635 = vunpack.c.h.b16 %v4320
    %v5636 = vunpack.c.l.b16 %v4321
    %v5637 = vunpack.c.h.b16 %v4321
    %v5638 = vunpack.c.l.b16 %v4322
    %v5639 = vunpack.c.h.b16 %v4322
    %v5640 = vunpack.c.l.b16 %v4323
    %v5641 = vunpack.c.h.b16 %v4323
    %v5642 = vunpack.c.l.b16 %v4324
    %v5643 = vunpack.c.h.b16 %v4324
    %v5644 = vunpack.c.l.b16 %v4325
    %v5645 = vunpack.c.h.b16 %v4325
    %v5646 = vunpack.c.l.b16 %v4326
    %v5647 = vunpack.c.h.b16 %v4326
    %v5648 = vunpack.c.l.b16 %v4327
    %v5649 = vunpack.c.h.b16 %v4327
    %v5650 = vunpack.c.l.b16 %v4328
    %v5651 = vunpack.c.h.b16 %v4328
    %v5652 = vunpack.c.l.b16 %v4329
    %v5653 = vunpack.c.h.b16 %v4329
    %v5654 = vunpack.c.l.b16 %v4330
    %v5655 = vunpack.c.h.b16 %v4330
    %v5656 = vunpack.c.l.b16 %v4331
    %v5657 = vunpack.c.h.b16 %v4331
    %v5658 = vunpack.c.l.b16 %v4332
    %v5659 = vunpack.c.h.b16 %v4332
    %v5660 = vunpack.c.l.b16 %v4333
    %v5661 = vunpack.c.h.b16 %v4333
    %v5662 = vunpack.c.l.b16 %v4334
    %v5663 = vunpack.c.h.b16 %v4334
    %v5664 = vunpack.c.l.b16 %v4335
    %v5665 = vunpack.c.h.b16 %v4335
    %v5666 = vunpack.c.l.b16 %v4336
    %v5667 = vunpack.c.h.b16 %v4336
    %v5668 = vunpack.c.l.b16 %v4337
    %v5669 = vunpack.c.h.b16 %v4337
    %v5670 = vunpack.c.l.b16 %v4338
    %v5671 = vunpack.c.h.b16 %v4338
    %v5672 = vunpack.c.l.b16 %v4339
    %v5673 = vunpack.c.h.b16 %v4339
    %v5674 = vunpack.c.l.b16 %v4340
    %v5675 = vunpack.c.h.b16 %v4340
    %v5676 = vunpack.c.l.b16 %v4341
    %v5677 = vunpack.c.h.b16 %v4341
    %v5678 = vunpack.c.l.b16 %v4342
    %v5679 = vunpack.c.h.b16 %v4342
    %v5680 = vunpack.c.l.b16 %v4343
    %v5681 = vunpack.c.h.b16 %v4343
    %v5682 = vunpack.c.l.b16 %v4344
    %v5683 = vunpack.c.h.b16 %v4344
    %v5684 = vunpack.c.l.b16 %v4345
    %v5685 = vunpack.c.h.b16 %v4345
    %v5686 = vunpack.c.l.b16 %v4346
    %v5687 = vunpack.c.h.b16 %v4346
    %v5688 = vunpack.c.l.b16 %v4347
    %v5689 = vunpack.c.h.b16 %v4347
    %v5690 = vunpack.c.l.b16 %v4348
    %v5691 = vunpack.c.h.b16 %v4348
    %v5692 = vunpack.c.l.b16 %v4349
    %v5693 = vunpack.c.h.b16 %v4349
    %v5694 = vunpack.c.l.b16 %v4350
    %v5695 = vunpack.c.h.b16 %v4350
    %v5696 = vunpack.c.l.b16 %v4351
    %v5697 = vunpack.c.h.b16 %v4351
    %v5698 = vunpack.c.l.b16 %v4352
    %v5699 = vunpack.c.h.b16 %v4352
    %v5700 = vunpack.c.l.b16 %v4353
    %v5701 = vunpack.c.h.b16 %v4353
    %v5702 = vunpack.c.l.b16 %v4354
    %v5703 = vunpack.c.h.b16 %v4354
    %v5704 = vunpack.c.l.b16 %v4355
    %v5705 = vunpack.c.h.b16 %v4355
    %v5706 = vunpack.c.l.b16 %v4356
    %v5707 = vunpack.c.h.b16 %v4356
    %v5708 = vunpack.c.l.b16 %v4357
    %v5709 = vunpack.c.h.b16 %v4357
    %v5710 = vunpack.c.l.b16 %v4358
    %v5711 = vunpack.c.h.b16 %v4358
    %v5712 = vunpack.c.l.b16 %v4359
    %v5713 = vunpack.c.h.b16 %v4359
    %v5714 = vunpack.c.l.b16 %v4360
    %v5715 = vunpack.c.h.b16 %v4360
    %v5716 = vunpack.c.l.b16 %v4361
    %v5717 = vunpack.c.h.b16 %v4361
    %v5718 = vunpack.c.l.b16 %v4362
    %v5719 = vunpack.c.h.b16 %v4362
    %v5720 = vunpack.c.l.b16 %v4363
    %v5721 = vunpack.c.h.b16 %v4363
    %v5722 = vunpack.c.l.b16 %v4364
    %v5723 = vunpack.c.h.b16 %v4364
    %v5724 = vunpack.c.l.b16 %v4365
    %v5725 = vunpack.c.h.b16 %v4365
    %v5726 = vunpack.c.l.b16 %v4366
    %v5727 = vunpack.c.h.b16 %v4366
    %v5728 = vunpack.c.l.b16 %v4367
    %v5729 = vunpack.c.h.b16 %v4367
    %v5730 = vunpack.c.l.b16 %v4368
    %v5731 = vunpack.c.h.b16 %v4368
    %v5732 = vunpack.c.l.b16 %v4369
    %v5733 = vunpack.c.h.b16 %v4369
    %v5734 = vunpack.c.l.b16 %v4370
    %v5735 = vunpack.c.h.b16 %v4370
    %v5736 = vunpack.c.l.b16 %v4371
    %v5737 = vunpack.c.h.b16 %v4371
    %v5738 = vunpack.c.l.b16 %v4372
    %v5739 = vunpack.c.h.b16 %v4372
    %v5740 = vunpack.c.l.b16 %v4373
    %v5741 = vunpack.c.h.b16 %v4373
    %v5742 = vunpack.c.l.b16 %v4374
    %v5743 = vunpack.c.h.b16 %v4374
    %v5744 = vunpack.c.l.b16 %v4375
    %v5745 = vunpack.c.h.b16 %v4375
    %v5746 = vunpack.c.l.b16 %v4376
    %v5747 = vunpack.c.h.b16 %v4376
    %v5748 = vunpack.c.l.b16 %v4377
    %v5749 = vunpack.c.h.b16 %v4377
    %v5750 = vunpack.c.l.b16 %v4378
    %v5751 = vunpack.c.h.b16 %v4378
    %v5752 = vunpack.c.l.b16 %v4379
    %v5753 = vunpack.c.h.b16 %v4379
    %v5754 = vunpack.c.l.b16 %v4380
    %v5755 = vunpack.c.h.b16 %v4380
    %v5756 = vunpack.c.l.b16 %v4381
    %v5757 = vunpack.c.h.b16 %v4381
    %v5758 = vunpack.c.l.b16 %v4382
    %v5759 = vunpack.c.h.b16 %v4382
    %v5760 = vunpack.c.l.b16 %v4383
    %v5761 = vunpack.c.h.b16 %v4383
    %v5762 = vunpack.c.l.b16 %v4384
    %v5763 = vunpack.c.h.b16 %v4384
    %v5764 = vunpack.c.l.b16 %v4385
    %v5765 = vunpack.c.h.b16 %v4385
    %v5766 = vunpack.c.l.b16 %v4386
    %v5767 = vunpack.c.h.b16 %v4386
    %v5768 = vunpack.c.l.b16 %v4387
    %v5769 = vunpack.c.h.b16 %v4387
    %v5770 = vunpack.c.l.b16 %v4388
    %v5771 = vunpack.c.h.b16 %v4388
    %v5772 = vunpack.c.l.b16 %v4389
    %v5773 = vunpack.c.h.b16 %v4389
    %v5774 = vunpack.c.l.b16 %v4390
    %v5775 = vunpack.c.h.b16 %v4390
    %v5776 = vunpack.c.l.b16 %v4391
    %v5777 = vunpack.c.h.b16 %v4391
    %v5778 = vunpack.c.l.b16 %v4392
    %v5779 = vunpack.c.h.b16 %v4392
    %v5780 = vunpack.c.l.b16 %v4393
    %v5781 = vunpack.c.h.b16 %v4393
    %v5782 = vunpack.c.l.b16 %v4394
    %v5783 = vunpack.c.h.b16 %v4394
    %v5784 = vunpack.c.l.b16 %v4395
    %v5785 = vunpack.c.h.b16 %v4395
    %v5786 = vunpack.c.l.b16 %v4396
    %v5787 = vunpack.c.h.b16 %v4396
    %v5788 = vunpack.c.l.b16 %v4397
    %v5789 = vunpack.c.h.b16 %v4397
    %v5790 = vunpack.c.l.b16 %v4398
    %v5791 = vunpack.c.h.b16 %v4398
    %v5792 = vunpack.c.l.b16 %v4399
    %v5793 = vunpack.c.h.b16 %v4399
    %v5794 = vunpack.c.l.b16 %v4400
    %v5795 = vunpack.c.h.b16 %v4400
    %v5796 = vunpack.c.l.b16 %v4401
    %v5797 = vunpack.c.h.b16 %v4401
    %v5798 = vunpack.c.l.b16 %v4402
    %v5799 = vunpack.c.h.b16 %v4402
    %v5800 = vunpack.c.l.b16 %v4403
    %v5801 = vunpack.c.h.b16 %v4403
    %v5802 = vunpack.c.l.b16 %v4404
    %v5803 = vunpack.c.h.b16 %v4404
    %v5804 = vunpack.c.l.b16 %v4405
    %v5805 = vunpack.c.h.b16 %v4405
    %v5806 = vunpack.c.l.b16 %v4406
    %v5807 = vunpack.c.h.b16 %v4406
    %v5808 = vunpack.c.l.b16 %v4407
    %v5809 = vunpack.c.h.b16 %v4407
    %v5810 = vunpack.c.l.b16 %v4408
    %v5811 = vunpack.c.h.b16 %v4408
    %v5812 = vunpack.c.l.b16 %v4409
    %v5813 = vunpack.c.h.b16 %v4409
    %v5814 = vunpack.c.l.b16 %v4410
    %v5815 = vunpack.c.h.b16 %v4410
    %v5816 = vunpack.c.l.b16 %v4411
    %v5817 = vunpack.c.h.b16 %v4411
    %v5818 = vunpack.c.l.b16 %v4412
    %v5819 = vunpack.c.h.b16 %v4412
    %v5820 = vunpack.c.l.b16 %v4413
    %v5821 = vunpack.c.h.b16 %v4413
    %v5822 = vunpack.c.l.b16 %v4414
    %v5823 = vunpack.c.h.b16 %v4414
    %v5824 = vunpack.c.l.b16 %v4415
    %v5825 = vunpack.c.h.b16 %v4415
    %v5826 = vunpack.c.l.b16 %v4416
    %v5827 = vunpack.c.h.b16 %v4416
    %v5828 = vunpack.c.l.b16 %v4417
    %v5829 = vunpack.c.h.b16 %v4417
    %v5830 = vunpack.c.l.b16 %v4418
    %v5831 = vunpack.c.h.b16 %v4418
    %v5832 = vunpack.c.l.b16 %v4419
    %v5833 = vunpack.c.h.b16 %v4419
    %v5834 = vunpack.c.l.b16 %v4420
    %v5835 = vunpack.c.h.b16 %v4420
    %v5836 = vunpack.c.l.b16 %v4421
    %v5837 = vunpack.c.h.b16 %v4421
    %v5838 = vunpack.c.l.b16 %v4422
    %v5839 = vunpack.c.h.b16 %v4422
    %v5840 = vunpack.c.l.b16 %v4423
    %v5841 = vunpack.c.h.b16 %v4423
    %v5842 = vunpack.c.l.b16 %v4424
    %v5843 = vunpack.c.h.b16 %v4424
    %v5844 = vunpack.c.l.b16 %v4425
    %v5845 = vunpack.c.h.b16 %v4425
    %v5846 = vunpack.c.l.b16 %v4426
    %v5847 = vunpack.c.h.b16 %v4426
    %v5848 = vunpack.c.l.b16 %v4427
    %v5849 = vunpack.c.h.b16 %v4427
    %v5850 = vunpack.c.l.b16 %v4428
    %v5851 = vunpack.c.h.b16 %v4428
    %v5852 = vunpack.c.l.b16 %v4429
    %v5853 = vunpack.c.h.b16 %v4429
    %v5854 = vunpack.c.l.b16 %v4430
    %v5855 = vunpack.c.h.b16 %v4430
    %v5856 = vunpack.c.l.b16 %v4431
    %v5857 = vunpack.c.h.b16 %v4431
    %v5858 = vunpack.c.l.b16 %v4432
    %v5859 = vunpack.c.h.b16 %v4432
    %v5860 = vunpack.c.l.b16 %v4433
    %v5861 = vunpack.c.h.b16 %v4433
    %v5862 = vunpack.c.l.b16 %v4434
    %v5863 = vunpack.c.h.b16 %v4434
    %v5864 = vunpack.c.l.b16 %v4435
    %v5865 = vunpack.c.h.b16 %v4435
    %v5866 = vunpack.c.l.b16 %v4436
    %v5867 = vunpack.c.h.b16 %v4436
    %v5868 = vunpack.c.l.b16 %v4437
    %v5869 = vunpack.c.h.b16 %v4437
    %v5870 = vunpack.c.l.b16 %v4438
    %v5871 = vunpack.c.h.b16 %v4438
    %v5872 = vunpack.c.l.b16 %v4439
    %v5873 = vunpack.c.h.b16 %v4439
    %v5874 = vunpack.c.l.b16 %v4440
    %v5875 = vunpack.c.h.b16 %v4440
    %v5876 = vunpack.c.l.b16 %v4441
    %v5877 = vunpack.c.h.b16 %v4441
    %v5878 = vunpack.c.l.b16 %v4442
    %v5879 = vunpack.c.h.b16 %v4442
    %v5880 = vunpack.c.l.b16 %v4443
    %v5881 = vunpack.c.h.b16 %v4443
    %v5882 = vunpack.c.l.b16 %v4444
    %v5883 = vunpack.c.h.b16 %v4444
    %v5884 = vunpack.c.l.b16 %v4445
    %v5885 = vunpack.c.h.b16 %v4445
    %v5886 = vunpack.c.l.b16 %v4446
    %v5887 = vunpack.c.h.b16 %v4446
    %v5888 = vunpack.c.l.b16 %v4447
    %v5889 = vunpack.c.h.b16 %v4447
    %v5890 = vunpack.c.l.b16 %v4448
    %v5891 = vunpack.c.h.b16 %v4448
    %v5892 = vunpack.c.l.b16 %v4449
    %v5893 = vunpack.c.h.b16 %v4449
    %v5894 = vunpack.c.l.b16 %v4450
    %v5895 = vunpack.c.h.b16 %v4450
    %v5896 = vunpack.c.l.b16 %v4451
    %v5897 = vunpack.c.h.b16 %v4451
    %v5898 = vunpack.c.l.b16 %v4452
    %v5899 = vunpack.c.h.b16 %v4452
    %v5900 = vunpack.c.l.b16 %v4453
    %v5901 = vunpack.c.h.b16 %v4453
    %v5902 = vunpack.c.l.b16 %v4454
    %v5903 = vunpack.c.h.b16 %v4454
    %v5904 = vunpack.c.l.b16 %v4455
    %v5905 = vunpack.c.h.b16 %v4455
    %v5906 = vunpack.c.l.b16 %v4456
    %v5907 = vunpack.c.h.b16 %v4456
    %v5908 = vunpack.c.l.b16 %v4457
    %v5909 = vunpack.c.h.b16 %v4457
    %v5910 = vunpack.c.l.b16 %v4458
    %v5911 = vunpack.c.h.b16 %v4458
    %v5912 = vunpack.c.l.b16 %v4459
    %v5913 = vunpack.c.h.b16 %v4459
    %v5914 = vunpack.c.l.b16 %v4460
    %v5915 = vunpack.c.h.b16 %v4460
    %v5916 = vunpack.c.l.b16 %v4461
    %v5917 = vunpack.c.h.b16 %v4461
    %v5918 = vunpack.c.l.b16 %v4462
    %v5919 = vunpack.c.h.b16 %v4462
    %v5920 = vunpack.c.l.b16 %v4463
    %v5921 = vunpack.c.h.b16 %v4463
    %v5922 = vunpack.c.l.b16 %v4464
    %v5923 = vunpack.c.h.b16 %v4464
    %v5924 = vunpack.c.l.b16 %v4465
    %v5925 = vunpack.c.h.b16 %v4465
    %v5926 = vunpack.c.l.b16 %v4466
    %v5927 = vunpack.c.h.b16 %v4466
    %v5928 = vunpack.c.l.b16 %v4467
    %v5929 = vunpack.c.h.b16 %v4467
    %v5930 = vunpack.c.l.b16 %v4468
    %v5931 = vunpack.c.h.b16 %v4468
    %v5932 = vunpack.c.l.b16 %v4469
    %v5933 = vunpack.c.h.b16 %v4469
    %v5934 = vunpack.c.l.b16 %v4470
    %v5935 = vunpack.c.h.b16 %v4470
    %v5936 = vunpack.c.l.b16 %v4471
    %v5937 = vunpack.c.h.b16 %v4471
    %v5938 = vunpack.c.l.b16 %v4472
    %v5939 = vunpack.c.h.b16 %v4472
    %v5940 = vunpack.c.l.b16 %v4473
    %v5941 = vunpack.c.h.b16 %v4473
    %v5942 = vunpack.c.l.b16 %v4474
    %v5943 = vunpack.c.h.b16 %v4474
    %v5944 = vunpack.c.l.b16 %v4475
    %v5945 = vunpack.c.h.b16 %v4475
    %v5946 = vunpack.c.l.b16 %v4476
    %v5947 = vunpack.c.h.b16 %v4476
    %v5948 = vunpack.c.l.b16 %v4477
    %v5949 = vunpack.c.h.b16 %v4477
    %v5950 = vunpack.c.l.b16 %v4478
    %v5951 = vunpack.c.h.b16 %v4478
    %v5952 = vunpack.c.l.b16 %v4479
    %v5953 = vunpack.c.h.b16 %v4479
    %v5954 = vunpack.c.l.b16 %v4480
    %v5955 = vunpack.c.h.b16 %v4480
    %v5956 = vunpack.c.l.b16 %v4481
    %v5957 = vunpack.c.h.b16 %v4481
    %v5958 = vunpack.c.l.b16 %v4482
    %v5959 = vunpack.c.h.b16 %v4482
    %v5960 = vunpack.c.l.b16 %v4483
    %v5961 = vunpack.c.h.b16 %v4483
    %v5962 = vunpack.c.l.b16 %v4484
    %v5963 = vunpack.c.h.b16 %v4484
    %v5964 = vunpack.c.l.b16 %v4485
    %v5965 = vunpack.c.h.b16 %v4485
    %v5966 = vunpack.c.l.b16 %v4486
    %v5967 = vunpack.c.h.b16 %v4486
    %v5968 = vunpack.c.l.b16 %v4487
    %v5969 = vunpack.c.h.b16 %v4487
    %v5970 = vunpack.c.l.b16 %v4488
    %v5971 = vunpack.c.h.b16 %v4488
    %v5972 = vunpack.c.l.b16 %v4489
    %v5973 = vunpack.c.h.b16 %v4489
    %v5974 = vunpack.c.l.b16 %v4490
    %v5975 = vunpack.c.h.b16 %v4490
    %v5976 = vunpack.c.l.b16 %v4491
    %v5977 = vunpack.c.h.b16 %v4491
    %v5978 = vunpack.c.l.b16 %v4492
    %v5979 = vunpack.c.h.b16 %v4492
    %v5980 = vunpack.c.l.b16 %v4493
    %v5981 = vunpack.c.h.b16 %v4493
    %v5982 = vunpack.c.l.b16 %v4494
    %v5983 = vunpack.c.h.b16 %v4494
    %v5984 = vunpack.c.l.b16 %v4495
    %v5985 = vunpack.c.h.b16 %v4495
    %v5986 = vunpack.c.l.b16 %v4496
    %v5987 = vunpack.c.h.b16 %v4496
    %v5988 = vunpack.c.l.b16 %v4497
    %v5989 = vunpack.c.h.b16 %v4497
    %v5990 = vunpack.c.l.b16 %v4498
    %v5991 = vunpack.c.h.b16 %v4498
    %v5992 = vunpack.c.l.b16 %v4499
    %v5993 = vunpack.c.h.b16 %v4499
    %v5994 = vunpack.c.l.b16 %v4500
    %v5995 = vunpack.c.h.b16 %v4500
    %v5996 = vunpack.c.l.b16 %v4501
    %v5997 = vunpack.c.h.b16 %v4501
    %v5998 = vunpack.c.l.b16 %v4502
    %v5999 = vunpack.c.h.b16 %v4502
    %v6000 = vunpack.c.l.b16 %v4503
    %v6001 = vunpack.c.h.b16 %v4503
    %v6002 = vunpack.c.l.b16 %v4504
    %v6003 = vunpack.c.h.b16 %v4504
    %v6004 = vunpack.c.l.b16 %v4505
    %v6005 = vunpack.c.h.b16 %v4505
    %v6006 = vunpack.c.l.b16 %v4506
    %v6007 = vunpack.c.h.b16 %v4506
    %v6008 = vunpack.c.l.b16 %v4507
    %v6009 = vunpack.c.h.b16 %v4507
    %v6010 = vunpack.c.l.b16 %v4508
    %v6011 = vunpack.c.h.b16 %v4508
    %v6012 = vunpack.c.l.b16 %v4509
    %v6013 = vunpack.c.h.b16 %v4509
    %v6014 = vunpack.c.l.b16 %v4510
    %v6015 = vunpack.c.h.b16 %v4510
    %v6016 = vunpack.c.l.b16 %v4511
    %v6017 = vunpack.c.h.b16 %v4511
    %v6018 = vunpack.c.l.b16 %v4512
    %v6019 = vunpack.c.h.b16 %v4512
    %v6020 = vunpack.c.l.b16 %v4513
    %v6021 = vunpack.c.h.b16 %v4513
    %v6022 = vunpack.c.l.b16 %v4514
    %v6023 = vunpack.c.h.b16 %v4514
    %v6024 = vunpack.c.l.b16 %v4515
    %v6025 = vunpack.c.h.b16 %v4515
    %v6026 = vunpack.c.l.b16 %v4516
    %v6027 = vunpack.c.h.b16 %v4516
    %v6028 = vunpack.c.l.b16 %v4517
    %v6029 = vunpack.c.h.b16 %v4517
    %v6030 = vunpack.c.l.b16 %v4518
    %v6031 = vunpack.c.h.b16 %v4518
    %v6032 = vunpack.c.l.b16 %v4519
    %v6033 = vunpack.c.h.b16 %v4519
    %v6034 = vunpack.c.l.b16 %v4520
    %v6035 = vunpack.c.h.b16 %v4520
    %v6036 = vunpack.c.l.b16 %v4521
    %v6037 = vunpack.c.h.b16 %v4521
    %v6038 = vunpack.c.l.b16 %v4522
    %v6039 = vunpack.c.h.b16 %v4522
    %v6040 = vunpack.c.l.b16 %v4523
    %v6041 = vunpack.c.h.b16 %v4523
    %v6042 = vunpack.c.l.b16 %v4524
    %v6043 = vunpack.c.h.b16 %v4524
    %v6044 = vunpack.c.l.b16 %v4525
    %v6045 = vunpack.c.h.b16 %v4525
    %v6046 = vunpack.c.l.b16 %v4526
    %v6047 = vunpack.c.h.b16 %v4526
    %v6048 = vunpack.c.l.b16 %v4527
    %v6049 = vunpack.c.h.b16 %v4527
    %v6050 = vunpack.c.l.b16 %v4528
    %v6051 = vunpack.c.h.b16 %v4528
    %v6052 = vunpack.c.l.b16 %v4529
    %v6053 = vunpack.c.h.b16 %v4529
    %v6054 = vunpack.c.l.b16 %v4530
    %v6055 = vunpack.c.h.b16 %v4530
    %v6056 = vunpack.c.l.b16 %v4531
    %v6057 = vunpack.c.h.b16 %v4531
    %v6058 = vunpack.c.l.b16 %v4532
    %v6059 = vunpack.c.h.b16 %v4532
    %v6060 = vunpack.c.l.b16 %v4533
    %v6061 = vunpack.c.h.b16 %v4533
    %v6062 = vunpack.c.l.b16 %v4534
    %v6063 = vunpack.c.h.b16 %v4534
    %v6064 = vunpack.c.l.b16 %v4535
    %v6065 = vunpack.c.h.b16 %v4535
    %v6066 = vunpack.c.l.b16 %v4536
    %v6067 = vunpack.c.h.b16 %v4536
    %v6068 = vunpack.c.l.b16 %v4537
    %v6069 = vunpack.c.h.b16 %v4537
    %v6070 = vunpack.c.l.b16 %v4538
    %v6071 = vunpack.c.h.b16 %v4538
    %v6072 = vunpack.c.l.b16 %v4539
    %v6073 = vunpack.c.h.b16 %v4539
    %v6074 = vunpack.c.l.b16 %v4540
    %v6075 = vunpack.c.h.b16 %v4540
    %v6076 = vunpack.c.l.b16 %v4541
    %v6077 = vunpack.c.h.b16 %v4541
    %v6078 = vunpack.c.l.b16 %v4542
    %v6079 = vunpack.c.h.b16 %v4542
    %v6080 = vunpack.c.l.b16 %v4543
    %v6081 = vunpack.c.h.b16 %v4543
    %v6082 = vunpack.c.l.b16 %v4544
    %v6083 = vunpack.c.h.b16 %v4544
    %v6084 = vunpack.c.l.b16 %v4545
    %v6085 = vunpack.c.h.b16 %v4545
    %v6086 = vunpack.c.l.b16 %v4546
    %v6087 = vunpack.c.h.b16 %v4546
    %v6088 = vunpack.c.l.b16 %v4547
    %v6089 = vunpack.c.h.b16 %v4547
    %v6090 = vunpack.c.l.b16 %v4548
    %v6091 = vunpack.c.h.b16 %v4548
    %v6092 = vunpack.c.l.b16 %v4549
    %v6093 = vunpack.c.h.b16 %v4549
    %v6094 = vunpack.c.l.b16 %v4550
    %v6095 = vunpack.c.h.b16 %v4550
    %v6096 = vunpack.c.l.b16 %v4551
    %v6097 = vunpack.c.h.b16 %v4551
    %v6098 = vunpack.c.l.b16 %v4552
    %v6099 = vunpack.c.h.b16 %v4552
    %v6100 = vunpack.c.l.b16 %v4553
    %v6101 = vunpack.c.h.b16 %v4553
    %v6102 = vunpack.c.l.b16 %v4554
    %v6103 = vunpack.c.h.b16 %v4554
    %v6104 = vunpack.c.l.b16 %v4555
    %v6105 = vunpack.c.h.b16 %v4555
    %v6106 = vunpack.c.l.b16 %v4556
    %v6107 = vunpack.c.h.b16 %v4556
    %v6108 = vunpack.c.l.b16 %v4557
    %v6109 = vunpack.c.h.b16 %v4557
    %v6110 = vunpack.c.l.b16 %v4558
    %v6111 = vunpack.c.h.b16 %v4558
    %v6112 = vunpack.c.l.b16 %v4559
    %v6113 = vunpack.c.h.b16 %v4559
    %v6114 = vpack.c.b16 %v5098, %v5090
    %v6115 = vpack.c.b16 %v5099, %v5091
    %v6116 = vpack.c.b16 %v5100, %v5092
    %v6117 = vpack.c.b16 %v5101, %v5093
    %v6118 = vpack.c.b16 %v5102, %v5094
    %v6119 = vpack.c.b16 %v5103, %v5095
    %v6120 = vpack.c.b16 %v5104, %v5096
    %v6121 = vpack.c.b16 %v5105, %v5097
    %v6122 = vpack.c.b16 %v5114, %v5106
    %v6123 = vpack.c.b16 %v5115, %v5107
    %v6124 = vpack.c.b16 %v5116, %v5108
    %v6125 = vpack.c.b16 %v5117, %v5109
    %v6126 = vpack.c.b16 %v5118, %v5110
    %v6127 = vpack.c.b16 %v5119, %v5111
    %v6128 = vpack.c.b16 %v5120, %v5112
    %v6129 = vpack.c.b16 %v5121, %v5113
    %v6130 = vpack.c.b16 %v5130, %v5122
    %v6131 = vpack.c.b16 %v5131, %v5123
    %v6132 = vpack.c.b16 %v5132, %v5124
    %v6133 = vpack.c.b16 %v5133, %v5125
    %v6134 = vpack.c.b16 %v5134, %v5126
    %v6135 = vpack.c.b16 %v5135, %v5127
    %v6136 = vpack.c.b16 %v5136, %v5128
    %v6137 = vpack.c.b16 %v5137, %v5129
    %v6138 = vpack.c.b16 %v5146, %v5138
    %v6139 = vpack.c.b16 %v5147, %v5139
    %v6140 = vpack.c.b16 %v5148, %v5140
    %v6141 = vpack.c.b16 %v5149, %v5141
    %v6142 = vpack.c.b16 %v5150, %v5142
    %v6143 = vpack.c.b16 %v5151, %v5143
    %v6144 = vpack.c.b16 %v5152, %v5144
    %v6145 = vpack.c.b16 %v5153, %v5145
    %v6146 = vpack.c.b16 %v5162, %v5154
    %v6147 = vpack.c.b16 %v5163, %v5155
    %v6148 = vpack.c.b16 %v5164, %v5156
    %v6149 = vpack.c.b16 %v5165, %v5157
    %v6150 = vpack.c.b16 %v5166, %v5158
    %v6151 = vpack.c.b16 %v5167, %v5159
    %v6152 = vpack.c.b16 %v5168, %v5160
    %v6153 = vpack.c.b16 %v5169, %v5161
    %v6154 = vpack.c.b16 %v5178, %v5170
    %v6155 = vpack.c.b16 %v5179, %v5171
    %v6156 = vpack.c.b16 %v5180, %v5172
    %v6157 = vpack.c.b16 %v5181, %v5173
    %v6158 = vpack.c.b16 %v5182, %v5174
    %v6159 = vpack.c.b16 %v5183, %v5175
    %v6160 = vpack.c.b16 %v5184, %v5176
    %v6161 = vpack.c.b16 %v5185, %v5177
    %v6162 = vpack.c.b16 %v5194, %v5186
    %v6163 = vpack.c.b16 %v5195, %v5187
    %v6164 = vpack.c.b16 %v5196, %v5188
    %v6165 = vpack.c.b16 %v5197, %v5189
    %v6166 = vpack.c.b16 %v5198, %v5190
    %v6167 = vpack.c.b16 %v5199, %v5191
    %v6168 = vpack.c.b16 %v5200, %v5192
    %v6169 = vpack.c.b16 %v5201, %v5193
    %v6170 = vpack.c.b16 %v5210, %v5202
    %v6171 = vpack.c.b16 %v5211, %v5203
    %v6172 = vpack.c.b16 %v5212, %v5204
    %v6173 = vpack.c.b16 %v5213, %v5205
    %v6174 = vpack.c.b16 %v5214, %v5206
    %v6175 = vpack.c.b16 %v5215, %v5207
    %v6176 = vpack.c.b16 %v5216, %v5208
    %v6177 = vpack.c.b16 %v5217, %v5209
    %v6178 = vpack.c.b16 %v5226, %v5218
    %v6179 = vpack.c.b16 %v5227, %v5219
    %v6180 = vpack.c.b16 %v5228, %v5220
    %v6181 = vpack.c.b16 %v5229, %v5221
    %v6182 = vpack.c.b16 %v5230, %v5222
    %v6183 = vpack.c.b16 %v5231, %v5223
    %v6184 = vpack.c.b16 %v5232, %v5224
    %v6185 = vpack.c.b16 %v5233, %v5225
    %v6186 = vpack.c.b16 %v5242, %v5234
    %v6187 = vpack.c.b16 %v5243, %v5235
    %v6188 = vpack.c.b16 %v5244, %v5236
    %v6189 = vpack.c.b16 %v5245, %v5237
    %v6190 = vpack.c.b16 %v5246, %v5238
    %v6191 = vpack.c.b16 %v5247, %v5239
    %v6192 = vpack.c.b16 %v5248, %v5240
    %v6193 = vpack.c.b16 %v5249, %v5241
    %v6194 = vpack.c.b16 %v5258, %v5250
    %v6195 = vpack.c.b16 %v5259, %v5251
    %v6196 = vpack.c.b16 %v5260, %v5252
    %v6197 = vpack.c.b16 %v5261, %v5253
    %v6198 = vpack.c.b16 %v5262, %v5254
    %v6199 = vpack.c.b16 %v5263, %v5255
    %v6200 = vpack.c.b16 %v5264, %v5256
    %v6201 = vpack.c.b16 %v5265, %v5257
    %v6202 = vpack.c.b16 %v5274, %v5266
    %v6203 = vpack.c.b16 %v5275, %v5267
    %v6204 = vpack.c.b16 %v5276, %v5268
    %v6205 = vpack.c.b16 %v5277, %v5269
    %v6206 = vpack.c.b16 %v5278, %v5270
    %v6207 = vpack.c.b16 %v5279, %v5271
    %v6208 = vpack.c.b16 %v5280, %v5272
    %v6209 = vpack.c.b16 %v5281, %v5273
    %v6210 = vpack.c.b16 %v5290, %v5282
    %v6211 = vpack.c.b16 %v5291, %v5283
    %v6212 = vpack.c.b16 %v5292, %v5284
    %v6213 = vpack.c.b16 %v5293, %v5285
    %v6214 = vpack.c.b16 %v5294, %v5286
    %v6215 = vpack.c.b16 %v5295, %v5287
    %v6216 = vpack.c.b16 %v5296, %v5288
    %v6217 = vpack.c.b16 %v5297, %v5289
    %v6218 = vpack.c.b16 %v5306, %v5298
    %v6219 = vpack.c.b16 %v5307, %v5299
    %v6220 = vpack.c.b16 %v5308, %v5300
    %v6221 = vpack.c.b16 %v5309, %v5301
    %v6222 = vpack.c.b16 %v5310, %v5302
    %v6223 = vpack.c.b16 %v5311, %v5303
    %v6224 = vpack.c.b16 %v5312, %v5304
    %v6225 = vpack.c.b16 %v5313, %v5305
    %v6226 = vpack.c.b16 %v5322, %v5314
    %v6227 = vpack.c.b16 %v5323, %v5315
    %v6228 = vpack.c.b16 %v5324, %v5316
    %v6229 = vpack.c.b16 %v5325, %v5317
    %v6230 = vpack.c.b16 %v5326, %v5318
    %v6231 = vpack.c.b16 %v5327, %v5319
    %v6232 = vpack.c.b16 %v5328, %v5320
    %v6233 = vpack.c.b16 %v5329, %v5321
    %v6234 = vpack.c.b16 %v5338, %v5330
    %v6235 = vpack.c.b16 %v5339, %v5331
    %v6236 = vpack.c.b16 %v5340, %v5332
    %v6237 = vpack.c.b16 %v5341, %v5333
    %v6238 = vpack.c.b16 %v5342, %v5334
    %v6239 = vpack.c.b16 %v5343, %v5335
    %v6240 = vpack.c.b16 %v5344, %v5336
    %v6241 = vpack.c.b16 %v5345, %v5337
    %v6242 = vpack.c.b16 %v5354, %v5346
    %v6243 = vpack.c.b16 %v5355, %v5347
    %v6244 = vpack.c.b16 %v5356, %v5348
    %v6245 = vpack.c.b16 %v5357, %v5349
    %v6246 = vpack.c.b16 %v5358, %v5350
    %v6247 = vpack.c.b16 %v5359, %v5351
    %v6248 = vpack.c.b16 %v5360, %v5352
    %v6249 = vpack.c.b16 %v5361, %v5353
    %v6250 = vpack.c.b16 %v5370, %v5362
    %v6251 = vpack.c.b16 %v5371, %v5363
    %v6252 = vpack.c.b16 %v5372, %v5364
    %v6253 = vpack.c.b16 %v5373, %v5365
    %v6254 = vpack.c.b16 %v5374, %v5366
    %v6255 = vpack.c.b16 %v5375, %v5367
    %v6256 = vpack.c.b16 %v5376, %v5368
    %v6257 = vpack.c.b16 %v5377, %v5369
    %v6258 = vpack.c.b16 %v5386, %v5378
    %v6259 = vpack.c.b16 %v5387, %v5379
    %v6260 = vpack.c.b16 %v5388, %v5380
    %v6261 = vpack.c.b16 %v5389, %v5381
    %v6262 = vpack.c.b16 %v5390, %v5382
    %v6263 = vpack.c.b16 %v5391, %v5383
    %v6264 = vpack.c.b16 %v5392, %v5384
    %v6265 = vpack.c.b16 %v5393, %v5385
    %v6266 = vpack.c.b16 %v5402, %v5394
    %v6267 = vpack.c.b16 %v5403, %v5395
    %v6268 = vpack.c.b16 %v5404, %v5396
    %v6269 = vpack.c.b16 %v5405, %v5397
    %v6270 = vpack.c.b16 %v5406, %v5398
    %v6271 = vpack.c.b16 %v5407, %v5399
    %v6272 = vpack.c.b16 %v5408, %v5400
    %v6273 = vpack.c.b16 %v5409, %v5401
    %v6274 = vpack.c.b16 %v5418, %v5410
    %v6275 = vpack.c.b16 %v5419, %v5411
    %v6276 = vpack.c.b16 %v5420, %v5412
    %v6277 = vpack.c.b16 %v5421, %v5413
    %v6278 = vpack.c.b16 %v5422, %v5414
    %v6279 = vpack.c.b16 %v5423, %v5415
    %v6280 = vpack.c.b16 %v5424, %v5416
    %v6281 = vpack.c.b16 %v5425, %v5417
    %v6282 = vpack.c.b16 %v5434, %v5426
    %v6283 = vpack.c.b16 %v5435, %v5427
    %v6284 = vpack.c.b16 %v5436, %v5428
    %v6285 = vpack.c.b16 %v5437, %v5429
    %v6286 = vpack.c.b16 %v5438, %v5430
    %v6287 = vpack.c.b16 %v5439, %v5431
    %v6288 = vpack.c.b16 %v5440, %v5432
    %v6289 = vpack.c.b16 %v5441, %v5433
    %v6290 = vpack.c.b16 %v5450, %v5442
    %v6291 = vpack.c.b16 %v5451, %v5443
    %v6292 = vpack.c.b16 %v5452, %v5444
    %v6293 = vpack.c.b16 %v5453, %v5445
    %v6294 = vpack.c.b16 %v5454, %v5446
    %v6295 = vpack.c.b16 %v5455, %v5447
    %v6296 = vpack.c.b16 %v5456, %v5448
    %v6297 = vpack.c.b16 %v5457, %v5449
    %v6298 = vpack.c.b16 %v5466, %v5458
    %v6299 = vpack.c.b16 %v5467, %v5459
    %v6300 = vpack.c.b16 %v5468, %v5460
    %v6301 = vpack.c.b16 %v5469, %v5461
    %v6302 = vpack.c.b16 %v5470, %v5462
    %v6303 = vpack.c.b16 %v5471, %v5463
    %v6304 = vpack.c.b16 %v5472, %v5464
    %v6305 = vpack.c.b16 %v5473, %v5465
    %v6306 = vpack.c.b16 %v5482, %v5474
    %v6307 = vpack.c.b16 %v5483, %v5475
    %v6308 = vpack.c.b16 %v5484, %v5476
    %v6309 = vpack.c.b16 %v5485, %v5477
    %v6310 = vpack.c.b16 %v5486, %v5478
    %v6311 = vpack.c.b16 %v5487, %v5479
    %v6312 = vpack.c.b16 %v5488, %v5480
    %v6313 = vpack.c.b16 %v5489, %v5481
    %v6314 = vpack.c.b16 %v5498, %v5490
    %v6315 = vpack.c.b16 %v5499, %v5491
    %v6316 = vpack.c.b16 %v5500, %v5492
    %v6317 = vpack.c.b16 %v5501, %v5493
    %v6318 = vpack.c.b16 %v5502, %v5494
    %v6319 = vpack.c.b16 %v5503, %v5495
    %v6320 = vpack.c.b16 %v5504, %v5496
    %v6321 = vpack.c.b16 %v5505, %v5497
    %v6322 = vpack.c.b16 %v5514, %v5506
    %v6323 = vpack.c.b16 %v5515, %v5507
    %v6324 = vpack.c.b16 %v5516, %v5508
    %v6325 = vpack.c.b16 %v5517, %v5509
    %v6326 = vpack.c.b16 %v5518, %v5510
    %v6327 = vpack.c.b16 %v5519, %v5511
    %v6328 = vpack.c.b16 %v5520, %v5512
    %v6329 = vpack.c.b16 %v5521, %v5513
    %v6330 = vpack.c.b16 %v5530, %v5522
    %v6331 = vpack.c.b16 %v5531, %v5523
    %v6332 = vpack.c.b16 %v5532, %v5524
    %v6333 = vpack.c.b16 %v5533, %v5525
    %v6334 = vpack.c.b16 %v5534, %v5526
    %v6335 = vpack.c.b16 %v5535, %v5527
    %v6336 = vpack.c.b16 %v5536, %v5528
    %v6337 = vpack.c.b16 %v5537, %v5529
    %v6338 = vpack.c.b16 %v5546, %v5538
    %v6339 = vpack.c.b16 %v5547, %v5539
    %v6340 = vpack.c.b16 %v5548, %v5540
    %v6341 = vpack.c.b16 %v5549, %v5541
    %v6342 = vpack.c.b16 %v5550, %v5542
    %v6343 = vpack.c.b16 %v5551, %v5543
    %v6344 = vpack.c.b16 %v5552, %v5544
    %v6345 = vpack.c.b16 %v5553, %v5545
    %v6346 = vpack.c.b16 %v5562, %v5554
    %v6347 = vpack.c.b16 %v5563, %v5555
    %v6348 = vpack.c.b16 %v5564, %v5556
    %v6349 = vpack.c.b16 %v5565, %v5557
    %v6350 = vpack.c.b16 %v5566, %v5558
    %v6351 = vpack.c.b16 %v5567, %v5559
    %v6352 = vpack.c.b16 %v5568, %v5560
    %v6353 = vpack.c.b16 %v5569, %v5561
    %v6354 = vpack.c.b16 %v5578, %v5570
    %v6355 = vpack.c.b16 %v5579, %v5571
    %v6356 = vpack.c.b16 %v5580, %v5572
    %v6357 = vpack.c.b16 %v5581, %v5573
    %v6358 = vpack.c.b16 %v5582, %v5574
    %v6359 = vpack.c.b16 %v5583, %v5575
    %v6360 = vpack.c.b16 %v5584, %v5576
    %v6361 = vpack.c.b16 %v5585, %v5577
    %v6362 = vpack.c.b16 %v5594, %v5586
    %v6363 = vpack.c.b16 %v5595, %v5587
    %v6364 = vpack.c.b16 %v5596, %v5588
    %v6365 = vpack.c.b16 %v5597, %v5589
    %v6366 = vpack.c.b16 %v5598, %v5590
    %v6367 = vpack.c.b16 %v5599, %v5591
    %v6368 = vpack.c.b16 %v5600, %v5592
    %v6369 = vpack.c.b16 %v5601, %v5593
    %v6370 = vpack.c.b16 %v5610, %v5602
    %v6371 = vpack.c.b16 %v5611, %v5603
    %v6372 = vpack.c.b16 %v5612, %v5604
    %v6373 = vpack.c.b16 %v5613, %v5605
    %v6374 = vpack.c.b16 %v5614, %v5606
    %v6375 = vpack.c.b16 %v5615, %v5607
    %v6376 = vpack.c.b16 %v5616, %v5608
    %v6377 = vpack.c.b16 %v5617, %v5609
    %v6378 = vpack.c.b16 %v5626, %v5618
    %v6379 = vpack.c.b16 %v5627, %v5619
    %v6380 = vpack.c.b16 %v5628, %v5620
    %v6381 = vpack.c.b16 %v5629, %v5621
    %v6382 = vpack.c.b16 %v5630, %v5622
    %v6383 = vpack.c.b16 %v5631, %v5623
    %v6384 = vpack.c.b16 %v5632, %v5624
    %v6385 = vpack.c.b16 %v5633, %v5625
    %v6386 = vpack.c.b16 %v5642, %v5634
    %v6387 = vpack.c.b16 %v5643, %v5635
    %v6388 = vpack.c.b16 %v5644, %v5636
    %v6389 = vpack.c.b16 %v5645, %v5637
    %v6390 = vpack.c.b16 %v5646, %v5638
    %v6391 = vpack.c.b16 %v5647, %v5639
    %v6392 = vpack.c.b16 %v5648, %v5640
    %v6393 = vpack.c.b16 %v5649, %v5641
    %v6394 = vpack.c.b16 %v5658, %v5650
    %v6395 = vpack.c.b16 %v5659, %v5651
    %v6396 = vpack.c.b16 %v5660, %v5652
    %v6397 = vpack.c.b16 %v5661, %v5653
    %v6398 = vpack.c.b16 %v5662, %v5654
    %v6399 = vpack.c.b16 %v5663, %v5655
    %v6400 = vpack.c.b16 %v5664, %v5656
    %v6401 = vpack.c.b16 %v5665, %v5657
    %v6402 = vpack.c.b16 %v5674, %v5666
    %v6403 = vpack.c.b16 %v5675, %v5667
    %v6404 = vpack.c.b16 %v5676, %v5668
    %v6405 = vpack.c.b16 %v5677, %v5669
    %v6406 = vpack.c.b16 %v5678, %v5670
    %v6407 = vpack.c.b16 %v5679, %v5671
    %v6408 = vpack.c.b16 %v5680, %v5672
    %v6409 = vpack.c.b16 %v5681, %v5673
    %v6410 = vpack.c.b16 %v5690, %v5682
    %v6411 = vpack.c.b16 %v5691, %v5683
    %v6412 = vpack.c.b16 %v5692, %v5684
    %v6413 = vpack.c.b16 %v5693, %v5685
    %v6414 = vpack.c.b16 %v5694, %v5686
    %v6415 = vpack.c.b16 %v5695, %v5687
    %v6416 = vpack.c.b16 %v5696, %v5688
    %v6417 = vpack.c.b16 %v5697, %v5689
    %v6418 = vpack.c.b16 %v5706, %v5698
    %v6419 = vpack.c.b16 %v5707, %v5699
    %v6420 = vpack.c.b16 %v5708, %v5700
    %v6421 = vpack.c.b16 %v5709, %v5701
    %v6422 = vpack.c.b16 %v5710, %v5702
    %v6423 = vpack.c.b16 %v5711, %v5703
    %v6424 = vpack.c.b16 %v5712, %v5704
    %v6425 = vpack.c.b16 %v5713, %v5705
    %v6426 = vpack.c.b16 %v5722, %v5714
    %v6427 = vpack.c.b16 %v5723, %v5715
    %v6428 = vpack.c.b16 %v5724, %v5716
    %v6429 = vpack.c.b16 %v5725, %v5717
    %v6430 = vpack.c.b16 %v5726, %v5718
    %v6431 = vpack.c.b16 %v5727, %v5719
    %v6432 = vpack.c.b16 %v5728, %v5720
    %v6433 = vpack.c.b16 %v5729, %v5721
    %v6434 = vpack.c.b16 %v5738, %v5730
    %v6435 = vpack.c.b16 %v5739, %v5731
    %v6436 = vpack.c.b16 %v5740, %v5732
    %v6437 = vpack.c.b16 %v5741, %v5733
    %v6438 = vpack.c.b16 %v5742, %v5734
    %v6439 = vpack.c.b16 %v5743, %v5735
    %v6440 = vpack.c.b16 %v5744, %v5736
    %v6441 = vpack.c.b16 %v5745, %v5737
    %v6442 = vpack.c.b16 %v5754, %v5746
    %v6443 = vpack.c.b16 %v5755, %v5747
    %v6444 = vpack.c.b16 %v5756, %v5748
    %v6445 = vpack.c.b16 %v5757, %v5749
    %v6446 = vpack.c.b16 %v5758, %v5750
    %v6447 = vpack.c.b16 %v5759, %v5751
    %v6448 = vpack.c.b16 %v5760, %v5752
    %v6449 = vpack.c.b16 %v5761, %v5753
    %v6450 = vpack.c.b16 %v5770, %v5762
    %v6451 = vpack.c.b16 %v5771, %v5763
    %v6452 = vpack.c.b16 %v5772, %v5764
    %v6453 = vpack.c.b16 %v5773, %v5765
    %v6454 = vpack.c.b16 %v5774, %v5766
    %v6455 = vpack.c.b16 %v5775, %v5767
    %v6456 = vpack.c.b16 %v5776, %v5768
    %v6457 = vpack.c.b16 %v5777, %v5769
    %v6458 = vpack.c.b16 %v5786, %v5778
    %v6459 = vpack.c.b16 %v5787, %v5779
    %v6460 = vpack.c.b16 %v5788, %v5780
    %v6461 = vpack.c.b16 %v5789, %v5781
    %v6462 = vpack.c.b16 %v5790, %v5782
    %v6463 = vpack.c.b16 %v5791, %v5783
    %v6464 = vpack.c.b16 %v5792, %v5784
    %v6465 = vpack.c.b16 %v5793, %v5785
    %v6466 = vpack.c.b16 %v5802, %v5794
    %v6467 = vpack.c.b16 %v5803, %v5795
    %v6468 = vpack.c.b16 %v5804, %v5796
    %v6469 = vpack.c.b16 %v5805, %v5797
    %v6470 = vpack.c.b16 %v5806, %v5798
    %v6471 = vpack.c.b16 %v5807, %v5799
    %v6472 = vpack.c.b16 %v5808, %v5800
    %v6473 = vpack.c.b16 %v5809, %v5801
    %v6474 = vpack.c.b16 %v5818, %v5810
    %v6475 = vpack.c.b16 %v5819, %v5811
    %v6476 = vpack.c.b16 %v5820, %v5812
    %v6477 = vpack.c.b16 %v5821, %v5813
    %v6478 = vpack.c.b16 %v5822, %v5814
    %v6479 = vpack.c.b16 %v5823, %v5815
    %v6480 = vpack.c.b16 %v5824, %v5816
    %v6481 = vpack.c.b16 %v5825, %v5817
    %v6482 = vpack.c.b16 %v5834, %v5826
    %v6483 = vpack.c.b16 %v5835, %v5827
    %v6484 = vpack.c.b16 %v5836, %v5828
    %v6485 = vpack.c.b16 %v5837, %v5829
    %v6486 = vpack.c.b16 %v5838, %v5830
    %v6487 = vpack.c.b16 %v5839, %v5831
    %v6488 = vpack.c.b16 %v5840, %v5832
    %v6489 = vpack.c.b16 %v5841, %v5833
    %v6490 = vpack.c.b16 %v5850, %v5842
    %v6491 = vpack.c.b16 %v5851, %v5843
    %v6492 = vpack.c.b16 %v5852, %v5844
    %v6493 = vpack.c.b16 %v5853, %v5845
    %v6494 = vpack.c.b16 %v5854, %v5846
    %v6495 = vpack.c.b16 %v5855, %v5847
    %v6496 = vpack.c.b16 %v5856, %v5848
    %v6497 = vpack.c.b16 %v5857, %v5849
    %v6498 = vpack.c.b16 %v5866, %v5858
    %v6499 = vpack.c.b16 %v5867, %v5859
    %v6500 = vpack.c.b16 %v5868, %v5860
    %v6501 = vpack.c.b16 %v5869, %v5861
    %v6502 = vpack.c.b16 %v5870, %v5862
    %v6503 = vpack.c.b16 %v5871, %v5863
    %v6504 = vpack.c.b16 %v5872, %v5864
    %v6505 = vpack.c.b16 %v5873, %v5865
    %v6506 = vpack.c.b16 %v5882, %v5874
    %v6507 = vpack.c.b16 %v5883, %v5875
    %v6508 = vpack.c.b16 %v5884, %v5876
    %v6509 = vpack.c.b16 %v5885, %v5877
    %v6510 = vpack.c.b16 %v5886, %v5878
    %v6511 = vpack.c.b16 %v5887, %v5879
    %v6512 = vpack.c.b16 %v5888, %v5880
    %v6513 = vpack.c.b16 %v5889, %v5881
    %v6514 = vpack.c.b16 %v5898, %v5890
    %v6515 = vpack.c.b16 %v5899, %v5891
    %v6516 = vpack.c.b16 %v5900, %v5892
    %v6517 = vpack.c.b16 %v5901, %v5893
    %v6518 = vpack.c.b16 %v5902, %v5894
    %v6519 = vpack.c.b16 %v5903, %v5895
    %v6520 = vpack.c.b16 %v5904, %v5896
    %v6521 = vpack.c.b16 %v5905, %v5897
    %v6522 = vpack.c.b16 %v5914, %v5906
    %v6523 = vpack.c.b16 %v5915, %v5907
    %v6524 = vpack.c.b16 %v5916, %v5908
    %v6525 = vpack.c.b16 %v5917, %v5909
    %v6526 = vpack.c.b16 %v5918, %v5910
    %v6527 = vpack.c.b16 %v5919, %v5911
    %v6528 = vpack.c.b16 %v5920, %v5912
    %v6529 = vpack.c.b16 %v5921, %v5913
    %v6530 = vpack.c.b16 %v5930, %v5922
    %v6531 = vpack.c.b16 %v5931, %v5923
    %v6532 = vpack.c.b16 %v5932, %v5924
    %v6533 = vpack.c.b16 %v5933, %v5925
    %v6534 = vpack.c.b16 %v5934, %v5926
    %v6535 = vpack.c.b16 %v5935, %v5927
    %v6536 = vpack.c.b16 %v5936, %v5928
    %v6537 = vpack.c.b16 %v5937, %v5929
    %v6538 = vpack.c.b16 %v5946, %v5938
    %v6539 = vpack.c.b16 %v5947, %v5939
    %v6540 = vpack.c.b16 %v5948, %v5940
    %v6541 = vpack.c.b16 %v5949, %v5941
    %v6542 = vpack.c.b16 %v5950, %v5942
    %v6543 = vpack.c.b16 %v5951, %v5943
    %v6544 = vpack.c.b16 %v5952, %v5944
    %v6545 = vpack.c.b16 %v5953, %v5945
    %v6546 = vpack.c.b16 %v5962, %v5954
    %v6547 = vpack.c.b16 %v5963, %v5955
    %v6548 = vpack.c.b16 %v5964, %v5956
    %v6549 = vpack.c.b16 %v5965, %v5957
    %v6550 = vpack.c.b16 %v5966, %v5958
    %v6551 = vpack.c.b16 %v5967, %v5959
    %v6552 = vpack.c.b16 %v5968, %v5960
    %v6553 = vpack.c.b16 %v5969, %v5961
    %v6554 = vpack.c.b16 %v5978, %v5970
    %v6555 = vpack.c.b16 %v5979, %v5971
    %v6556 = vpack.c.b16 %v5980, %v5972
    %v6557 = vpack.c.b16 %v5981, %v5973
    %v6558 = vpack.c.b16 %v5982, %v5974
    %v6559 = vpack.c.b16 %v5983, %v5975
    %v6560 = vpack.c.b16 %v5984, %v5976
    %v6561 = vpack.c.b16 %v5985, %v5977
    %v6562 = vpack.c.b16 %v5994, %v5986
    %v6563 = vpack.c.b16 %v5995, %v5987
    %v6564 = vpack.c.b16 %v5996, %v5988
    %v6565 = vpack.c.b16 %v5997, %v5989
    %v6566 = vpack.c.b16 %v5998, %v5990
    %v6567 = vpack.c.b16 %v5999, %v5991
    %v6568 = vpack.c.b16 %v6000, %v5992
    %v6569 = vpack.c.b16 %v6001, %v5993
    %v6570 = vpack.c.b16 %v6010, %v6002
    %v6571 = vpack.c.b16 %v6011, %v6003
    %v6572 = vpack.c.b16 %v6012, %v6004
    %v6573 = vpack.c.b16 %v6013, %v6005
    %v6574 = vpack.c.b16 %v6014, %v6006
    %v6575 = vpack.c.b16 %v6015, %v6007
    %v6576 = vpack.c.b16 %v6016, %v6008
    %v6577 = vpack.c.b16 %v6017, %v6009
    %v6578 = vpack.c.b16 %v6026, %v6018
    %v6579 = vpack.c.b16 %v6027, %v6019
    %v6580 = vpack.c.b16 %v6028, %v6020
    %v6581 = vpack.c.b16 %v6029, %v6021
    %v6582 = vpack.c.b16 %v6030, %v6022
    %v6583 = vpack.c.b16 %v6031, %v6023
    %v6584 = vpack.c.b16 %v6032, %v6024
    %v6585 = vpack.c.b16 %v6033, %v6025
    %v6586 = vpack.c.b16 %v6042, %v6034
    %v6587 = vpack.c.b16 %v6043, %v6035
    %v6588 = vpack.c.b16 %v6044, %v6036
    %v6589 = vpack.c.b16 %v6045, %v6037
    %v6590 = vpack.c.b16 %v6046, %v6038
    %v6591 = vpack.c.b16 %v6047, %v6039
    %v6592 = vpack.c.b16 %v6048, %v6040
    %v6593 = vpack.c.b16 %v6049, %v6041
    %v6594 = vpack.c.b16 %v6058, %v6050
    %v6595 = vpack.c.b16 %v6059, %v6051
    %v6596 = vpack.c.b16 %v6060, %v6052
    %v6597 = vpack.c.b16 %v6061, %v6053
    %v6598 = vpack.c.b16 %v6062, %v6054
    %v6599 = vpack.c.b16 %v6063, %v6055
    %v6600 = vpack.c.b16 %v6064, %v6056
    %v6601 = vpack.c.b16 %v6065, %v6057
    %v6602 = vpack.c.b16 %v6074, %v6066
    %v6603 = vpack.c.b16 %v6075, %v6067
    %v6604 = vpack.c.b16 %v6076, %v6068
    %v6605 = vpack.c.b16 %v6077, %v6069
    %v6606 = vpack.c.b16 %v6078, %v6070
    %v6607 = vpack.c.b16 %v6079, %v6071
    %v6608 = vpack.c.b16 %v6080, %v6072
    %v6609 = vpack.c.b16 %v6081, %v6073
    %v6610 = vpack.c.b16 %v6090, %v6082
    %v6611 = vpack.c.b16 %v6091, %v6083
    %v6612 = vpack.c.b16 %v6092, %v6084
    %v6613 = vpack.c.b16 %v6093, %v6085
    %v6614 = vpack.c.b16 %v6094, %v6086
    %v6615 = vpack.c.b16 %v6095, %v6087
    %v6616 = vpack.c.b16 %v6096, %v6088
    %v6617 = vpack.c.b16 %v6097, %v6089
    %v6618 = vpack.c.b16 %v6106, %v6098
    %v6619 = vpack.c.b16 %v6107, %v6099
    %v6620 = vpack.c.b16 %v6108, %v6100
    %v6621 = vpack.c.b16 %v6109, %v6101
    %v6622 = vpack.c.b16 %v6110, %v6102
    %v6623 = vpack.c.b16 %v6111, %v6103
    %v6624 = vpack.c.b16 %v6112, %v6104
    %v6625 = vpack.c.b16 %v6113, %v6105
    %7138 = vmatpush.bf16.msra.mxu0 %v6170
    %7139 = vmatpush.bf16.msra.mxu0 %v6162
    %7140 = vmatpush.bf16.msra.mxu0 %v6154
    %7141 = vmatpush.bf16.msra.mxu0 %v6146
    %7142 = vmatpush.bf16.msra.mxu0 %v6138
    %7143 = vmatpush.bf16.msra.mxu0 %v6130
    %7144 = vmatpush.bf16.msra.mxu0 %v6122
    %7145 = vmatpush.bf16.msra.mxu0 %v6114
    %7146 = vmatmul.bf16.gmra.mxu0 %v4040
    %v7147 = vpop.f32.mrf.mxu0
    %v7148 = vadd.f32 %v4562, %v7147
    %v7149 = vpop.f32.mrf.mxu0
    %7150 = vdwg.mxu0
    %7151 = vmatpush.bf16.msra.mxu0 %v6234
    %7152 = vmatpush.bf16.msra.mxu0 %v6226
    %7153 = vmatpush.bf16.msra.mxu0 %v6218
    %7154 = vmatpush.bf16.msra.mxu0 %v6210
    %7155 = vmatpush.bf16.msra.mxu0 %v6202
    %7156 = vmatpush.bf16.msra.mxu0 %v6194
    %7157 = vmatpush.bf16.msra.mxu0 %v6186
    %7158 = vmatpush.bf16.msra.mxu0 %v6178
    %7159 = vmatmul.bf16.gmra.mxu0 %v4041
    %v7160 = vpop.f32.mrf.mxu0
    %v7161 = vadd.f32 %v7148, %v7160
    %v7162 = vpop.f32.mrf.mxu0
    %7163 = vdwg.mxu0
    %7164 = vmatpush.bf16.msra.mxu0 %v6298
    %7165 = vmatpush.bf16.msra.mxu0 %v6290
    %7166 = vmatpush.bf16.msra.mxu0 %v6282
    %7167 = vmatpush.bf16.msra.mxu0 %v6274
    %7168 = vmatpush.bf16.msra.mxu0 %v6266
    %7169 = vmatpush.bf16.msra.mxu0 %v6258
    %7170 = vmatpush.bf16.msra.mxu0 %v6250
    %7171 = vmatpush.bf16.msra.mxu0 %v6242
    %7172 = vmatmul.bf16.gmra.mxu0 %v4042
    %v7173 = vpop.f32.mrf.mxu0
    %v7174 = vadd.f32 %v7161, %v7173
    %v7175 = vpop.f32.mrf.mxu0
    %7176 = vdwg.mxu0
    %7177 = vmatpush.bf16.msra.mxu0 %v6362
    %7178 = vmatpush.bf16.msra.mxu0 %v6354
    %7179 = vmatpush.bf16.msra.mxu0 %v6346
    %7180 = vmatpush.bf16.msra.mxu0 %v6338
    %7181 = vmatpush.bf16.msra.mxu0 %v6330
    %7182 = vmatpush.bf16.msra.mxu0 %v6322
    %7183 = vmatpush.bf16.msra.mxu0 %v6314
    %7184 = vmatpush.bf16.msra.mxu0 %v6306
    %7185 = vmatmul.bf16.gmra.mxu0 %v4043
    %v7186 = vpop.f32.mrf.mxu0
    %v7187 = vadd.f32 %v7174, %v7186
    %v7188 = vpop.f32.mrf.mxu0
    %7189 = vdwg.mxu0
    %7190 = vmatpush.bf16.msra.mxu0 %v6426
    %7191 = vmatpush.bf16.msra.mxu0 %v6418
    %7192 = vmatpush.bf16.msra.mxu0 %v6410
    %7193 = vmatpush.bf16.msra.mxu0 %v6402
    %7194 = vmatpush.bf16.msra.mxu0 %v6394
    %7195 = vmatpush.bf16.msra.mxu0 %v6386
    %7196 = vmatpush.bf16.msra.mxu0 %v6378
    %7197 = vmatpush.bf16.msra.mxu0 %v6370
    %7198 = vmatmul.bf16.gmra.mxu0 %v4044
    %v7199 = vpop.f32.mrf.mxu0
    %v7200 = vadd.f32 %v7187, %v7199
    %v7201 = vpop.f32.mrf.mxu0
    %7202 = vdwg.mxu0
    %7203 = vmatpush.bf16.msra.mxu0 %v6490
    %7204 = vmatpush.bf16.msra.mxu0 %v6482
    %7205 = vmatpush.bf16.msra.mxu0 %v6474
    %7206 = vmatpush.bf16.msra.mxu0 %v6466
    %7207 = vmatpush.bf16.msra.mxu0 %v6458
    %7208 = vmatpush.bf16.msra.mxu0 %v6450
    %7209 = vmatpush.bf16.msra.mxu0 %v6442
    %7210 = vmatpush.bf16.msra.mxu0 %v6434
    %7211 = vmatmul.bf16.gmra.mxu0 %v4045
    %v7212 = vpop.f32.mrf.mxu0
    %v7213 = vadd.f32 %v7200, %v7212
    %v7214 = vpop.f32.mrf.mxu0
    %7215 = vdwg.mxu0
    %7216 = vmatpush.bf16.msra.mxu0 %v6554
    %7217 = vmatpush.bf16.msra.mxu0 %v6546
    %7218 = vmatpush.bf16.msra.mxu0 %v6538
    %7219 = vmatpush.bf16.msra.mxu0 %v6530
    %7220 = vmatpush.bf16.msra.mxu0 %v6522
    %7221 = vmatpush.bf16.msra.mxu0 %v6514
    %7222 = vmatpush.bf16.msra.mxu0 %v6506
    %7223 = vmatpush.bf16.msra.mxu0 %v6498
    %7224 = vmatmul.bf16.gmra.mxu0 %v4046
    %v7225 = vpop.f32.mrf.mxu0
    %v7226 = vadd.f32 %v7213, %v7225
    %v7227 = vpop.f32.mrf.mxu0
    %7228 = vdwg.mxu0
    %7229 = vmatpush.bf16.msra.mxu0 %v6618
    %7230 = vmatpush.bf16.msra.mxu0 %v6610
    %7231 = vmatpush.bf16.msra.mxu0 %v6602
    %7232 = vmatpush.bf16.msra.mxu0 %v6594
    %7233 = vmatpush.bf16.msra.mxu0 %v6586
    %7234 = vmatpush.bf16.msra.mxu0 %v6578
    %7235 = vmatpush.bf16.msra.mxu0 %v6570
    %7236 = vmatpush.bf16.msra.mxu0 %v6562
    %7237 = vmatmul.bf16.gmra.mxu0 %v4047
    %v7238 = vpop.f32.mrf.mxu0
    %v7239 = vadd.f32 %v7226, %v7238
    %v7240 = vpop.f32.mrf.mxu0
    %7241 = vdwg.mxu0
    %7242 = vmatpush.bf16.msra.mxu0 %v6171
    %7243 = vmatpush.bf16.msra.mxu0 %v6163
    %7244 = vmatpush.bf16.msra.mxu0 %v6155
    %7245 = vmatpush.bf16.msra.mxu0 %v6147
    %7246 = vmatpush.bf16.msra.mxu0 %v6139
    %7247 = vmatpush.bf16.msra.mxu0 %v6131
    %7248 = vmatpush.bf16.msra.mxu0 %v6123
    %7249 = vmatpush.bf16.msra.mxu0 %v6115
    %7250 = vmatmul.bf16.gmra.mxu0 %v4040
    %v7251 = vpop.f32.mrf.mxu0
    %v7252 = vadd.f32 %v4563, %v7251
    %v7253 = vpop.f32.mrf.mxu0
    %7254 = vdwg.mxu0
    %7255 = vmatpush.bf16.msra.mxu0 %v6235
    %7256 = vmatpush.bf16.msra.mxu0 %v6227
    %7257 = vmatpush.bf16.msra.mxu0 %v6219
    %7258 = vmatpush.bf16.msra.mxu0 %v6211
    %7259 = vmatpush.bf16.msra.mxu0 %v6203
    %7260 = vmatpush.bf16.msra.mxu0 %v6195
    %7261 = vmatpush.bf16.msra.mxu0 %v6187
    %7262 = vmatpush.bf16.msra.mxu0 %v6179
    %7263 = vmatmul.bf16.gmra.mxu0 %v4041
    %v7264 = vpop.f32.mrf.mxu0
    %v7265 = vadd.f32 %v7252, %v7264
    %v7266 = vpop.f32.mrf.mxu0
    %7267 = vdwg.mxu0
    %7268 = vmatpush.bf16.msra.mxu0 %v6299
    %7269 = vmatpush.bf16.msra.mxu0 %v6291
    %7270 = vmatpush.bf16.msra.mxu0 %v6283
    %7271 = vmatpush.bf16.msra.mxu0 %v6275
    %7272 = vmatpush.bf16.msra.mxu0 %v6267
    %7273 = vmatpush.bf16.msra.mxu0 %v6259
    %7274 = vmatpush.bf16.msra.mxu0 %v6251
    %7275 = vmatpush.bf16.msra.mxu0 %v6243
    %7276 = vmatmul.bf16.gmra.mxu0 %v4042
    %v7277 = vpop.f32.mrf.mxu0
    %v7278 = vadd.f32 %v7265, %v7277
    %v7279 = vpop.f32.mrf.mxu0
    %7280 = vdwg.mxu0
    %7281 = vmatpush.bf16.msra.mxu0 %v6363
    %7282 = vmatpush.bf16.msra.mxu0 %v6355
    %7283 = vmatpush.bf16.msra.mxu0 %v6347
    %7284 = vmatpush.bf16.msra.mxu0 %v6339
    %7285 = vmatpush.bf16.msra.mxu0 %v6331
    %7286 = vmatpush.bf16.msra.mxu0 %v6323
    %7287 = vmatpush.bf16.msra.mxu0 %v6315
    %7288 = vmatpush.bf16.msra.mxu0 %v6307
    %7289 = vmatmul.bf16.gmra.mxu0 %v4043
    %v7290 = vpop.f32.mrf.mxu0
    %v7291 = vadd.f32 %v7278, %v7290
    %v7292 = vpop.f32.mrf.mxu0
    %7293 = vdwg.mxu0
    %7294 = vmatpush.bf16.msra.mxu0 %v6427
    %7295 = vmatpush.bf16.msra.mxu0 %v6419
    %7296 = vmatpush.bf16.msra.mxu0 %v6411
    %7297 = vmatpush.bf16.msra.mxu0 %v6403
    %7298 = vmatpush.bf16.msra.mxu0 %v6395
    %7299 = vmatpush.bf16.msra.mxu0 %v6387
    %7300 = vmatpush.bf16.msra.mxu0 %v6379
    %7301 = vmatpush.bf16.msra.mxu0 %v6371
    %7302 = vmatmul.bf16.gmra.mxu0 %v4044
    %v7303 = vpop.f32.mrf.mxu0
    %v7304 = vadd.f32 %v7291, %v7303
    %v7305 = vpop.f32.mrf.mxu0
    %7306 = vdwg.mxu0
    %7307 = vmatpush.bf16.msra.mxu0 %v6491
    %7308 = vmatpush.bf16.msra.mxu0 %v6483
    %7309 = vmatpush.bf16.msra.mxu0 %v6475
    %7310 = vmatpush.bf16.msra.mxu0 %v6467
    %7311 = vmatpush.bf16.msra.mxu0 %v6459
    %7312 = vmatpush.bf16.msra.mxu0 %v6451
    %7313 = vmatpush.bf16.msra.mxu0 %v6443
    %7314 = vmatpush.bf16.msra.mxu0 %v6435
    %7315 = vmatmul.bf16.gmra.mxu0 %v4045
    %v7316 = vpop.f32.mrf.mxu0
    %v7317 = vadd.f32 %v7304, %v7316
    %v7318 = vpop.f32.mrf.mxu0
    %7319 = vdwg.mxu0
    %7320 = vmatpush.bf16.msra.mxu0 %v6555
    %7321 = vmatpush.bf16.msra.mxu0 %v6547
    %7322 = vmatpush.bf16.msra.mxu0 %v6539
    %7323 = vmatpush.bf16.msra.mxu0 %v6531
    %7324 = vmatpush.bf16.msra.mxu0 %v6523
    %7325 = vmatpush.bf16.msra.mxu0 %v6515
    %7326 = vmatpush.bf16.msra.mxu0 %v6507
    %7327 = vmatpush.bf16.msra.mxu0 %v6499
    %7328 = vmatmul.bf16.gmra.mxu0 %v4046
    %v7329 = vpop.f32.mrf.mxu0
    %v7330 = vadd.f32 %v7317, %v7329
    %v7331 = vpop.f32.mrf.mxu0
    %7332 = vdwg.mxu0
    %7333 = vmatpush.bf16.msra.mxu0 %v6619
    %7334 = vmatpush.bf16.msra.mxu0 %v6611
    %7335 = vmatpush.bf16.msra.mxu0 %v6603
    %7336 = vmatpush.bf16.msra.mxu0 %v6595
    %7337 = vmatpush.bf16.msra.mxu0 %v6587
    %7338 = vmatpush.bf16.msra.mxu0 %v6579
    %7339 = vmatpush.bf16.msra.mxu0 %v6571
    %7340 = vmatpush.bf16.msra.mxu0 %v6563
    %7341 = vmatmul.bf16.gmra.mxu0 %v4047
    %v7342 = vpop.f32.mrf.mxu0
    %v7343 = vadd.f32 %v7330, %v7342
    %v7344 = vpop.f32.mrf.mxu0
    %7345 = vdwg.mxu0
    %7346 = vmatpush.bf16.msra.mxu0 %v6172
    %7347 = vmatpush.bf16.msra.mxu0 %v6164
    %7348 = vmatpush.bf16.msra.mxu0 %v6156
    %7349 = vmatpush.bf16.msra.mxu0 %v6148
    %7350 = vmatpush.bf16.msra.mxu0 %v6140
    %7351 = vmatpush.bf16.msra.mxu0 %v6132
    %7352 = vmatpush.bf16.msra.mxu0 %v6124
    %7353 = vmatpush.bf16.msra.mxu0 %v6116
    %7354 = vmatmul.bf16.gmra.mxu0 %v4040
    %v7355 = vpop.f32.mrf.mxu0
    %v7356 = vadd.f32 %v4564, %v7355
    %v7357 = vpop.f32.mrf.mxu0
    %7358 = vdwg.mxu0
    %7359 = vmatpush.bf16.msra.mxu0 %v6236
    %7360 = vmatpush.bf16.msra.mxu0 %v6228
    %7361 = vmatpush.bf16.msra.mxu0 %v6220
    %7362 = vmatpush.bf16.msra.mxu0 %v6212
    %7363 = vmatpush.bf16.msra.mxu0 %v6204
    %7364 = vmatpush.bf16.msra.mxu0 %v6196
    %7365 = vmatpush.bf16.msra.mxu0 %v6188
    %7366 = vmatpush.bf16.msra.mxu0 %v6180
    %7367 = vmatmul.bf16.gmra.mxu0 %v4041
    %v7368 = vpop.f32.mrf.mxu0
    %v7369 = vadd.f32 %v7356, %v7368
    %v7370 = vpop.f32.mrf.mxu0
    %7371 = vdwg.mxu0
    %7372 = vmatpush.bf16.msra.mxu0 %v6300
    %7373 = vmatpush.bf16.msra.mxu0 %v6292
    %7374 = vmatpush.bf16.msra.mxu0 %v6284
    %7375 = vmatpush.bf16.msra.mxu0 %v6276
    %7376 = vmatpush.bf16.msra.mxu0 %v6268
    %7377 = vmatpush.bf16.msra.mxu0 %v6260
    %7378 = vmatpush.bf16.msra.mxu0 %v6252
    %7379 = vmatpush.bf16.msra.mxu0 %v6244
    %7380 = vmatmul.bf16.gmra.mxu0 %v4042
    %v7381 = vpop.f32.mrf.mxu0
    %v7382 = vadd.f32 %v7369, %v7381
    %v7383 = vpop.f32.mrf.mxu0
    %7384 = vdwg.mxu0
    %7385 = vmatpush.bf16.msra.mxu0 %v6364
    %7386 = vmatpush.bf16.msra.mxu0 %v6356
    %7387 = vmatpush.bf16.msra.mxu0 %v6348
    %7388 = vmatpush.bf16.msra.mxu0 %v6340
    %7389 = vmatpush.bf16.msra.mxu0 %v6332
    %7390 = vmatpush.bf16.msra.mxu0 %v6324
    %7391 = vmatpush.bf16.msra.mxu0 %v6316
    %7392 = vmatpush.bf16.msra.mxu0 %v6308
    %7393 = vmatmul.bf16.gmra.mxu0 %v4043
    %v7394 = vpop.f32.mrf.mxu0
    %v7395 = vadd.f32 %v7382, %v7394
    %v7396 = vpop.f32.mrf.mxu0
    %7397 = vdwg.mxu0
    %7398 = vmatpush.bf16.msra.mxu0 %v6428
    %7399 = vmatpush.bf16.msra.mxu0 %v6420
    %7400 = vmatpush.bf16.msra.mxu0 %v6412
    %7401 = vmatpush.bf16.msra.mxu0 %v6404
    %7402 = vmatpush.bf16.msra.mxu0 %v6396
    %7403 = vmatpush.bf16.msra.mxu0 %v6388
    %7404 = vmatpush.bf16.msra.mxu0 %v6380
    %7405 = vmatpush.bf16.msra.mxu0 %v6372
    %7406 = vmatmul.bf16.gmra.mxu0 %v4044
    %v7407 = vpop.f32.mrf.mxu0
    %v7408 = vadd.f32 %v7395, %v7407
    %v7409 = vpop.f32.mrf.mxu0
    %7410 = vdwg.mxu0
    %7411 = vmatpush.bf16.msra.mxu0 %v6492
    %7412 = vmatpush.bf16.msra.mxu0 %v6484
    %7413 = vmatpush.bf16.msra.mxu0 %v6476
    %7414 = vmatpush.bf16.msra.mxu0 %v6468
    %7415 = vmatpush.bf16.msra.mxu0 %v6460
    %7416 = vmatpush.bf16.msra.mxu0 %v6452
    %7417 = vmatpush.bf16.msra.mxu0 %v6444
    %7418 = vmatpush.bf16.msra.mxu0 %v6436
    %7419 = vmatmul.bf16.gmra.mxu0 %v4045
    %v7420 = vpop.f32.mrf.mxu0
    %v7421 = vadd.f32 %v7408, %v7420
    %v7422 = vpop.f32.mrf.mxu0
    %7423 = vdwg.mxu0
    %7424 = vmatpush.bf16.msra.mxu0 %v6556
    %7425 = vmatpush.bf16.msra.mxu0 %v6548
    %7426 = vmatpush.bf16.msra.mxu0 %v6540
    %7427 = vmatpush.bf16.msra.mxu0 %v6532
    %7428 = vmatpush.bf16.msra.mxu0 %v6524
    %7429 = vmatpush.bf16.msra.mxu0 %v6516
    %7430 = vmatpush.bf16.msra.mxu0 %v6508
    %7431 = vmatpush.bf16.msra.mxu0 %v6500
    %7432 = vmatmul.bf16.gmra.mxu0 %v4046
    %v7433 = vpop.f32.mrf.mxu0
    %v7434 = vadd.f32 %v7421, %v7433
    %v7435 = vpop.f32.mrf.mxu0
    %7436 = vdwg.mxu0
    %7437 = vmatpush.bf16.msra.mxu0 %v6620
    %7438 = vmatpush.bf16.msra.mxu0 %v6612
    %7439 = vmatpush.bf16.msra.mxu0 %v6604
    %7440 = vmatpush.bf16.msra.mxu0 %v6596
    %7441 = vmatpush.bf16.msra.mxu0 %v6588
    %7442 = vmatpush.bf16.msra.mxu0 %v6580
    %7443 = vmatpush.bf16.msra.mxu0 %v6572
    %7444 = vmatpush.bf16.msra.mxu0 %v6564
    %7445 = vmatmul.bf16.gmra.mxu0 %v4047
    %v7446 = vpop.f32.mrf.mxu0
    %v7447 = vadd.f32 %v7434, %v7446
    %v7448 = vpop.f32.mrf.mxu0
    %7449 = vdwg.mxu0
    %7450 = vmatpush.bf16.msra.mxu0 %v6173
    %7451 = vmatpush.bf16.msra.mxu0 %v6165
    %7452 = vmatpush.bf16.msra.mxu0 %v6157
    %7453 = vmatpush.bf16.msra.mxu0 %v6149
    %7454 = vmatpush.bf16.msra.mxu0 %v6141
    %7455 = vmatpush.bf16.msra.mxu0 %v6133
    %7456 = vmatpush.bf16.msra.mxu0 %v6125
    %7457 = vmatpush.bf16.msra.mxu0 %v6117
    %7458 = vmatmul.bf16.gmra.mxu0 %v4040
    %v7459 = vpop.f32.mrf.mxu0
    %v7460 = vadd.f32 %v4565, %v7459
    %v7461 = vpop.f32.mrf.mxu0
    %7462 = vdwg.mxu0
    %7463 = vmatpush.bf16.msra.mxu0 %v6237
    %7464 = vmatpush.bf16.msra.mxu0 %v6229
    %7465 = vmatpush.bf16.msra.mxu0 %v6221
    %7466 = vmatpush.bf16.msra.mxu0 %v6213
    %7467 = vmatpush.bf16.msra.mxu0 %v6205
    %7468 = vmatpush.bf16.msra.mxu0 %v6197
    %7469 = vmatpush.bf16.msra.mxu0 %v6189
    %7470 = vmatpush.bf16.msra.mxu0 %v6181
    %7471 = vmatmul.bf16.gmra.mxu0 %v4041
    %v7472 = vpop.f32.mrf.mxu0
    %v7473 = vadd.f32 %v7460, %v7472
    %v7474 = vpop.f32.mrf.mxu0
    %7475 = vdwg.mxu0
    %7476 = vmatpush.bf16.msra.mxu0 %v6301
    %7477 = vmatpush.bf16.msra.mxu0 %v6293
    %7478 = vmatpush.bf16.msra.mxu0 %v6285
    %7479 = vmatpush.bf16.msra.mxu0 %v6277
    %7480 = vmatpush.bf16.msra.mxu0 %v6269
    %7481 = vmatpush.bf16.msra.mxu0 %v6261
    %7482 = vmatpush.bf16.msra.mxu0 %v6253
    %7483 = vmatpush.bf16.msra.mxu0 %v6245
    %7484 = vmatmul.bf16.gmra.mxu0 %v4042
    %v7485 = vpop.f32.mrf.mxu0
    %v7486 = vadd.f32 %v7473, %v7485
    %v7487 = vpop.f32.mrf.mxu0
    %7488 = vdwg.mxu0
    %7489 = vmatpush.bf16.msra.mxu0 %v6365
    %7490 = vmatpush.bf16.msra.mxu0 %v6357
    %7491 = vmatpush.bf16.msra.mxu0 %v6349
    %7492 = vmatpush.bf16.msra.mxu0 %v6341
    %7493 = vmatpush.bf16.msra.mxu0 %v6333
    %7494 = vmatpush.bf16.msra.mxu0 %v6325
    %7495 = vmatpush.bf16.msra.mxu0 %v6317
    %7496 = vmatpush.bf16.msra.mxu0 %v6309
    %7497 = vmatmul.bf16.gmra.mxu0 %v4043
    %v7498 = vpop.f32.mrf.mxu0
    %v7499 = vadd.f32 %v7486, %v7498
    %v7500 = vpop.f32.mrf.mxu0
    %7501 = vdwg.mxu0
    %7502 = vmatpush.bf16.msra.mxu0 %v6429
    %7503 = vmatpush.bf16.msra.mxu0 %v6421
    %7504 = vmatpush.bf16.msra.mxu0 %v6413
    %7505 = vmatpush.bf16.msra.mxu0 %v6405
    %7506 = vmatpush.bf16.msra.mxu0 %v6397
    %7507 = vmatpush.bf16.msra.mxu0 %v6389
    %7508 = vmatpush.bf16.msra.mxu0 %v6381
    %7509 = vmatpush.bf16.msra.mxu0 %v6373
    %7510 = vmatmul.bf16.gmra.mxu0 %v4044
    %v7511 = vpop.f32.mrf.mxu0
    %v7512 = vadd.f32 %v7499, %v7511
    %v7513 = vpop.f32.mrf.mxu0
    %7514 = vdwg.mxu0
    %7515 = vmatpush.bf16.msra.mxu0 %v6493
    %7516 = vmatpush.bf16.msra.mxu0 %v6485
    %7517 = vmatpush.bf16.msra.mxu0 %v6477
    %7518 = vmatpush.bf16.msra.mxu0 %v6469
    %7519 = vmatpush.bf16.msra.mxu0 %v6461
    %7520 = vmatpush.bf16.msra.mxu0 %v6453
    %7521 = vmatpush.bf16.msra.mxu0 %v6445
    %7522 = vmatpush.bf16.msra.mxu0 %v6437
    %7523 = vmatmul.bf16.gmra.mxu0 %v4045
    %v7524 = vpop.f32.mrf.mxu0
    %v7525 = vadd.f32 %v7512, %v7524
    %v7526 = vpop.f32.mrf.mxu0
    %7527 = vdwg.mxu0
    %7528 = vmatpush.bf16.msra.mxu0 %v6557
    %7529 = vmatpush.bf16.msra.mxu0 %v6549
    %7530 = vmatpush.bf16.msra.mxu0 %v6541
    %7531 = vmatpush.bf16.msra.mxu0 %v6533
    %7532 = vmatpush.bf16.msra.mxu0 %v6525
    %7533 = vmatpush.bf16.msra.mxu0 %v6517
    %7534 = vmatpush.bf16.msra.mxu0 %v6509
    %7535 = vmatpush.bf16.msra.mxu0 %v6501
    %7536 = vmatmul.bf16.gmra.mxu0 %v4046
    %v7537 = vpop.f32.mrf.mxu0
    %v7538 = vadd.f32 %v7525, %v7537
    %v7539 = vpop.f32.mrf.mxu0
    %7540 = vdwg.mxu0
    %7541 = vmatpush.bf16.msra.mxu0 %v6621
    %7542 = vmatpush.bf16.msra.mxu0 %v6613
    %7543 = vmatpush.bf16.msra.mxu0 %v6605
    %7544 = vmatpush.bf16.msra.mxu0 %v6597
    %7545 = vmatpush.bf16.msra.mxu0 %v6589
    %7546 = vmatpush.bf16.msra.mxu0 %v6581
    %7547 = vmatpush.bf16.msra.mxu0 %v6573
    %7548 = vmatpush.bf16.msra.mxu0 %v6565
    %7549 = vmatmul.bf16.gmra.mxu0 %v4047
    %v7550 = vpop.f32.mrf.mxu0
    %v7551 = vadd.f32 %v7538, %v7550
    %v7552 = vpop.f32.mrf.mxu0
    %7553 = vdwg.mxu0
    %7554 = vmatpush.bf16.msra.mxu0 %v6174
    %7555 = vmatpush.bf16.msra.mxu0 %v6166
    %7556 = vmatpush.bf16.msra.mxu0 %v6158
    %7557 = vmatpush.bf16.msra.mxu0 %v6150
    %7558 = vmatpush.bf16.msra.mxu0 %v6142
    %7559 = vmatpush.bf16.msra.mxu0 %v6134
    %7560 = vmatpush.bf16.msra.mxu0 %v6126
    %7561 = vmatpush.bf16.msra.mxu0 %v6118
    %7562 = vmatmul.bf16.gmra.mxu0 %v4040
    %v7563 = vpop.f32.mrf.mxu0
    %v7564 = vadd.f32 %v4566, %v7563
    %v7565 = vpop.f32.mrf.mxu0
    %7566 = vdwg.mxu0
    %7567 = vmatpush.bf16.msra.mxu0 %v6238
    %7568 = vmatpush.bf16.msra.mxu0 %v6230
    %7569 = vmatpush.bf16.msra.mxu0 %v6222
    %7570 = vmatpush.bf16.msra.mxu0 %v6214
    %7571 = vmatpush.bf16.msra.mxu0 %v6206
    %7572 = vmatpush.bf16.msra.mxu0 %v6198
    %7573 = vmatpush.bf16.msra.mxu0 %v6190
    %7574 = vmatpush.bf16.msra.mxu0 %v6182
    %7575 = vmatmul.bf16.gmra.mxu0 %v4041
    %v7576 = vpop.f32.mrf.mxu0
    %v7577 = vadd.f32 %v7564, %v7576
    %v7578 = vpop.f32.mrf.mxu0
    %7579 = vdwg.mxu0
    %7580 = vmatpush.bf16.msra.mxu0 %v6302
    %7581 = vmatpush.bf16.msra.mxu0 %v6294
    %7582 = vmatpush.bf16.msra.mxu0 %v6286
    %7583 = vmatpush.bf16.msra.mxu0 %v6278
    %7584 = vmatpush.bf16.msra.mxu0 %v6270
    %7585 = vmatpush.bf16.msra.mxu0 %v6262
    %7586 = vmatpush.bf16.msra.mxu0 %v6254
    %7587 = vmatpush.bf16.msra.mxu0 %v6246
    %7588 = vmatmul.bf16.gmra.mxu0 %v4042
    %v7589 = vpop.f32.mrf.mxu0
    %v7590 = vadd.f32 %v7577, %v7589
    %v7591 = vpop.f32.mrf.mxu0
    %7592 = vdwg.mxu0
    %7593 = vmatpush.bf16.msra.mxu0 %v6366
    %7594 = vmatpush.bf16.msra.mxu0 %v6358
    %7595 = vmatpush.bf16.msra.mxu0 %v6350
    %7596 = vmatpush.bf16.msra.mxu0 %v6342
    %7597 = vmatpush.bf16.msra.mxu0 %v6334
    %7598 = vmatpush.bf16.msra.mxu0 %v6326
    %7599 = vmatpush.bf16.msra.mxu0 %v6318
    %7600 = vmatpush.bf16.msra.mxu0 %v6310
    %7601 = vmatmul.bf16.gmra.mxu0 %v4043
    %v7602 = vpop.f32.mrf.mxu0
    %v7603 = vadd.f32 %v7590, %v7602
    %v7604 = vpop.f32.mrf.mxu0
    %7605 = vdwg.mxu0
    %7606 = vmatpush.bf16.msra.mxu0 %v6430
    %7607 = vmatpush.bf16.msra.mxu0 %v6422
    %7608 = vmatpush.bf16.msra.mxu0 %v6414
    %7609 = vmatpush.bf16.msra.mxu0 %v6406
    %7610 = vmatpush.bf16.msra.mxu0 %v6398
    %7611 = vmatpush.bf16.msra.mxu0 %v6390
    %7612 = vmatpush.bf16.msra.mxu0 %v6382
    %7613 = vmatpush.bf16.msra.mxu0 %v6374
    %7614 = vmatmul.bf16.gmra.mxu0 %v4044
    %v7615 = vpop.f32.mrf.mxu0
    %v7616 = vadd.f32 %v7603, %v7615
    %v7617 = vpop.f32.mrf.mxu0
    %7618 = vdwg.mxu0
    %7619 = vmatpush.bf16.msra.mxu0 %v6494
    %7620 = vmatpush.bf16.msra.mxu0 %v6486
    %7621 = vmatpush.bf16.msra.mxu0 %v6478
    %7622 = vmatpush.bf16.msra.mxu0 %v6470
    %7623 = vmatpush.bf16.msra.mxu0 %v6462
    %7624 = vmatpush.bf16.msra.mxu0 %v6454
    %7625 = vmatpush.bf16.msra.mxu0 %v6446
    %7626 = vmatpush.bf16.msra.mxu0 %v6438
    %7627 = vmatmul.bf16.gmra.mxu0 %v4045
    %v7628 = vpop.f32.mrf.mxu0
    %v7629 = vadd.f32 %v7616, %v7628
    %v7630 = vpop.f32.mrf.mxu0
    %7631 = vdwg.mxu0
    %7632 = vmatpush.bf16.msra.mxu0 %v6558
    %7633 = vmatpush.bf16.msra.mxu0 %v6550
    %7634 = vmatpush.bf16.msra.mxu0 %v6542
    %7635 = vmatpush.bf16.msra.mxu0 %v6534
    %7636 = vmatpush.bf16.msra.mxu0 %v6526
    %7637 = vmatpush.bf16.msra.mxu0 %v6518
    %7638 = vmatpush.bf16.msra.mxu0 %v6510
    %7639 = vmatpush.bf16.msra.mxu0 %v6502
    %7640 = vmatmul.bf16.gmra.mxu0 %v4046
    %v7641 = vpop.f32.mrf.mxu0
    %v7642 = vadd.f32 %v7629, %v7641
    %v7643 = vpop.f32.mrf.mxu0
    %7644 = vdwg.mxu0
    %7645 = vmatpush.bf16.msra.mxu0 %v6622
    %7646 = vmatpush.bf16.msra.mxu0 %v6614
    %7647 = vmatpush.bf16.msra.mxu0 %v6606
    %7648 = vmatpush.bf16.msra.mxu0 %v6598
    %7649 = vmatpush.bf16.msra.mxu0 %v6590
    %7650 = vmatpush.bf16.msra.mxu0 %v6582
    %7651 = vmatpush.bf16.msra.mxu0 %v6574
    %7652 = vmatpush.bf16.msra.mxu0 %v6566
    %7653 = vmatmul.bf16.gmra.mxu0 %v4047
    %v7654 = vpop.f32.mrf.mxu0
    %v7655 = vadd.f32 %v7642, %v7654
    %v7656 = vpop.f32.mrf.mxu0
    %7657 = vdwg.mxu0
    %7658 = vmatpush.bf16.msra.mxu0 %v6175
    %7659 = vmatpush.bf16.msra.mxu0 %v6167
    %7660 = vmatpush.bf16.msra.mxu0 %v6159
    %7661 = vmatpush.bf16.msra.mxu0 %v6151
    %7662 = vmatpush.bf16.msra.mxu0 %v6143
    %7663 = vmatpush.bf16.msra.mxu0 %v6135
    %7664 = vmatpush.bf16.msra.mxu0 %v6127
    %7665 = vmatpush.bf16.msra.mxu0 %v6119
    %7666 = vmatmul.bf16.gmra.mxu0 %v4040
    %v7667 = vpop.f32.mrf.mxu0
    %v7668 = vadd.f32 %v4567, %v7667
    %v7669 = vpop.f32.mrf.mxu0
    %7670 = vdwg.mxu0
    %7671 = vmatpush.bf16.msra.mxu0 %v6239
    %7672 = vmatpush.bf16.msra.mxu0 %v6231
    %7673 = vmatpush.bf16.msra.mxu0 %v6223
    %7674 = vmatpush.bf16.msra.mxu0 %v6215
    %7675 = vmatpush.bf16.msra.mxu0 %v6207
    %7676 = vmatpush.bf16.msra.mxu0 %v6199
    %7677 = vmatpush.bf16.msra.mxu0 %v6191
    %7678 = vmatpush.bf16.msra.mxu0 %v6183
    %7679 = vmatmul.bf16.gmra.mxu0 %v4041
    %v7680 = vpop.f32.mrf.mxu0
    %v7681 = vadd.f32 %v7668, %v7680
    %v7682 = vpop.f32.mrf.mxu0
    %7683 = vdwg.mxu0
    %7684 = vmatpush.bf16.msra.mxu0 %v6303
    %7685 = vmatpush.bf16.msra.mxu0 %v6295
    %7686 = vmatpush.bf16.msra.mxu0 %v6287
    %7687 = vmatpush.bf16.msra.mxu0 %v6279
    %7688 = vmatpush.bf16.msra.mxu0 %v6271
    %7689 = vmatpush.bf16.msra.mxu0 %v6263
    %7690 = vmatpush.bf16.msra.mxu0 %v6255
    %7691 = vmatpush.bf16.msra.mxu0 %v6247
    %7692 = vmatmul.bf16.gmra.mxu0 %v4042
    %v7693 = vpop.f32.mrf.mxu0
    %v7694 = vadd.f32 %v7681, %v7693
    %v7695 = vpop.f32.mrf.mxu0
    %7696 = vdwg.mxu0
    %7697 = vmatpush.bf16.msra.mxu0 %v6367
    %7698 = vmatpush.bf16.msra.mxu0 %v6359
    %7699 = vmatpush.bf16.msra.mxu0 %v6351
    %7700 = vmatpush.bf16.msra.mxu0 %v6343
    %7701 = vmatpush.bf16.msra.mxu0 %v6335
    %7702 = vmatpush.bf16.msra.mxu0 %v6327
    %7703 = vmatpush.bf16.msra.mxu0 %v6319
    %7704 = vmatpush.bf16.msra.mxu0 %v6311
    %7705 = vmatmul.bf16.gmra.mxu0 %v4043
    %v7706 = vpop.f32.mrf.mxu0
    %v7707 = vadd.f32 %v7694, %v7706
    %v7708 = vpop.f32.mrf.mxu0
    %7709 = vdwg.mxu0
    %7710 = vmatpush.bf16.msra.mxu0 %v6431
    %7711 = vmatpush.bf16.msra.mxu0 %v6423
    %7712 = vmatpush.bf16.msra.mxu0 %v6415
    %7713 = vmatpush.bf16.msra.mxu0 %v6407
    %7714 = vmatpush.bf16.msra.mxu0 %v6399
    %7715 = vmatpush.bf16.msra.mxu0 %v6391
    %7716 = vmatpush.bf16.msra.mxu0 %v6383
    %7717 = vmatpush.bf16.msra.mxu0 %v6375
    %7718 = vmatmul.bf16.gmra.mxu0 %v4044
    %v7719 = vpop.f32.mrf.mxu0
    %v7720 = vadd.f32 %v7707, %v7719
    %v7721 = vpop.f32.mrf.mxu0
    %7722 = vdwg.mxu0
    %7723 = vmatpush.bf16.msra.mxu0 %v6495
    %7724 = vmatpush.bf16.msra.mxu0 %v6487
    %7725 = vmatpush.bf16.msra.mxu0 %v6479
    %7726 = vmatpush.bf16.msra.mxu0 %v6471
    %7727 = vmatpush.bf16.msra.mxu0 %v6463
    %7728 = vmatpush.bf16.msra.mxu0 %v6455
    %7729 = vmatpush.bf16.msra.mxu0 %v6447
    %7730 = vmatpush.bf16.msra.mxu0 %v6439
    %7731 = vmatmul.bf16.gmra.mxu0 %v4045
    %v7732 = vpop.f32.mrf.mxu0
    %v7733 = vadd.f32 %v7720, %v7732
    %v7734 = vpop.f32.mrf.mxu0
    %7735 = vdwg.mxu0
    %7736 = vmatpush.bf16.msra.mxu0 %v6559
    %7737 = vmatpush.bf16.msra.mxu0 %v6551
    %7738 = vmatpush.bf16.msra.mxu0 %v6543
    %7739 = vmatpush.bf16.msra.mxu0 %v6535
    %7740 = vmatpush.bf16.msra.mxu0 %v6527
    %7741 = vmatpush.bf16.msra.mxu0 %v6519
    %7742 = vmatpush.bf16.msra.mxu0 %v6511
    %7743 = vmatpush.bf16.msra.mxu0 %v6503
    %7744 = vmatmul.bf16.gmra.mxu0 %v4046
    %v7745 = vpop.f32.mrf.mxu0
    %v7746 = vadd.f32 %v7733, %v7745
    %v7747 = vpop.f32.mrf.mxu0
    %7748 = vdwg.mxu0
    %7749 = vmatpush.bf16.msra.mxu0 %v6623
    %7750 = vmatpush.bf16.msra.mxu0 %v6615
    %7751 = vmatpush.bf16.msra.mxu0 %v6607
    %7752 = vmatpush.bf16.msra.mxu0 %v6599
    %7753 = vmatpush.bf16.msra.mxu0 %v6591
    %7754 = vmatpush.bf16.msra.mxu0 %v6583
    %7755 = vmatpush.bf16.msra.mxu0 %v6575
    %7756 = vmatpush.bf16.msra.mxu0 %v6567
    %7757 = vmatmul.bf16.gmra.mxu0 %v4047
    %v7758 = vpop.f32.mrf.mxu0
    %v7759 = vadd.f32 %v7746, %v7758
    %v7760 = vpop.f32.mrf.mxu0
    %7761 = vdwg.mxu0
    %7762 = vmatpush.bf16.msra.mxu0 %v6176
    %7763 = vmatpush.bf16.msra.mxu0 %v6168
    %7764 = vmatpush.bf16.msra.mxu0 %v6160
    %7765 = vmatpush.bf16.msra.mxu0 %v6152
    %7766 = vmatpush.bf16.msra.mxu0 %v6144
    %7767 = vmatpush.bf16.msra.mxu0 %v6136
    %7768 = vmatpush.bf16.msra.mxu0 %v6128
    %7769 = vmatpush.bf16.msra.mxu0 %v6120
    %7770 = vmatmul.bf16.gmra.mxu0 %v4040
    %v7771 = vpop.f32.mrf.mxu0
    %v7772 = vadd.f32 %v4568, %v7771
    %v7773 = vpop.f32.mrf.mxu0
    %7774 = vdwg.mxu0
    %7775 = vmatpush.bf16.msra.mxu0 %v6240
    %7776 = vmatpush.bf16.msra.mxu0 %v6232
    %7777 = vmatpush.bf16.msra.mxu0 %v6224
    %7778 = vmatpush.bf16.msra.mxu0 %v6216
    %7779 = vmatpush.bf16.msra.mxu0 %v6208
    %7780 = vmatpush.bf16.msra.mxu0 %v6200
    %7781 = vmatpush.bf16.msra.mxu0 %v6192
    %7782 = vmatpush.bf16.msra.mxu0 %v6184
    %7783 = vmatmul.bf16.gmra.mxu0 %v4041
    %v7784 = vpop.f32.mrf.mxu0
    %v7785 = vadd.f32 %v7772, %v7784
    %v7786 = vpop.f32.mrf.mxu0
    %7787 = vdwg.mxu0
    %7788 = vmatpush.bf16.msra.mxu0 %v6304
    %7789 = vmatpush.bf16.msra.mxu0 %v6296
    %7790 = vmatpush.bf16.msra.mxu0 %v6288
    %7791 = vmatpush.bf16.msra.mxu0 %v6280
    %7792 = vmatpush.bf16.msra.mxu0 %v6272
    %7793 = vmatpush.bf16.msra.mxu0 %v6264
    %7794 = vmatpush.bf16.msra.mxu0 %v6256
    %7795 = vmatpush.bf16.msra.mxu0 %v6248
    %7796 = vmatmul.bf16.gmra.mxu0 %v4042
    %v7797 = vpop.f32.mrf.mxu0
    %v7798 = vadd.f32 %v7785, %v7797
    %v7799 = vpop.f32.mrf.mxu0
    %7800 = vdwg.mxu0
    %7801 = vmatpush.bf16.msra.mxu0 %v6368
    %7802 = vmatpush.bf16.msra.mxu0 %v6360
    %7803 = vmatpush.bf16.msra.mxu0 %v6352
    %7804 = vmatpush.bf16.msra.mxu0 %v6344
    %7805 = vmatpush.bf16.msra.mxu0 %v6336
    %7806 = vmatpush.bf16.msra.mxu0 %v6328
    %7807 = vmatpush.bf16.msra.mxu0 %v6320
    %7808 = vmatpush.bf16.msra.mxu0 %v6312
    %7809 = vmatmul.bf16.gmra.mxu0 %v4043
    %v7810 = vpop.f32.mrf.mxu0
    %v7811 = vadd.f32 %v7798, %v7810
    %v7812 = vpop.f32.mrf.mxu0
    %7813 = vdwg.mxu0
    %7814 = vmatpush.bf16.msra.mxu0 %v6432
    %7815 = vmatpush.bf16.msra.mxu0 %v6424
    %7816 = vmatpush.bf16.msra.mxu0 %v6416
    %7817 = vmatpush.bf16.msra.mxu0 %v6408
    %7818 = vmatpush.bf16.msra.mxu0 %v6400
    %7819 = vmatpush.bf16.msra.mxu0 %v6392
    %7820 = vmatpush.bf16.msra.mxu0 %v6384
    %7821 = vmatpush.bf16.msra.mxu0 %v6376
    %7822 = vmatmul.bf16.gmra.mxu0 %v4044
    %v7823 = vpop.f32.mrf.mxu0
    %v7824 = vadd.f32 %v7811, %v7823
    %v7825 = vpop.f32.mrf.mxu0
    %7826 = vdwg.mxu0
    %7827 = vmatpush.bf16.msra.mxu0 %v6496
    %7828 = vmatpush.bf16.msra.mxu0 %v6488
    %7829 = vmatpush.bf16.msra.mxu0 %v6480
    %7830 = vmatpush.bf16.msra.mxu0 %v6472
    %7831 = vmatpush.bf16.msra.mxu0 %v6464
    %7832 = vmatpush.bf16.msra.mxu0 %v6456
    %7833 = vmatpush.bf16.msra.mxu0 %v6448
    %7834 = vmatpush.bf16.msra.mxu0 %v6440
    %7835 = vmatmul.bf16.gmra.mxu0 %v4045
    %v7836 = vpop.f32.mrf.mxu0
    %v7837 = vadd.f32 %v7824, %v7836
    %v7838 = vpop.f32.mrf.mxu0
    %7839 = vdwg.mxu0
    %7840 = vmatpush.bf16.msra.mxu0 %v6560
    %7841 = vmatpush.bf16.msra.mxu0 %v6552
    %7842 = vmatpush.bf16.msra.mxu0 %v6544
    %7843 = vmatpush.bf16.msra.mxu0 %v6536
    %7844 = vmatpush.bf16.msra.mxu0 %v6528
    %7845 = vmatpush.bf16.msra.mxu0 %v6520
    %7846 = vmatpush.bf16.msra.mxu0 %v6512
    %7847 = vmatpush.bf16.msra.mxu0 %v6504
    %7848 = vmatmul.bf16.gmra.mxu0 %v4046
    %v7849 = vpop.f32.mrf.mxu0
    %v7850 = vadd.f32 %v7837, %v7849
    %v7851 = vpop.f32.mrf.mxu0
    %7852 = vdwg.mxu0
    %7853 = vmatpush.bf16.msra.mxu0 %v6624
    %7854 = vmatpush.bf16.msra.mxu0 %v6616
    %7855 = vmatpush.bf16.msra.mxu0 %v6608
    %7856 = vmatpush.bf16.msra.mxu0 %v6600
    %7857 = vmatpush.bf16.msra.mxu0 %v6592
    %7858 = vmatpush.bf16.msra.mxu0 %v6584
    %7859 = vmatpush.bf16.msra.mxu0 %v6576
    %7860 = vmatpush.bf16.msra.mxu0 %v6568
    %7861 = vmatmul.bf16.gmra.mxu0 %v4047
    %v7862 = vpop.f32.mrf.mxu0
    %v7863 = vadd.f32 %v7850, %v7862
    %v7864 = vpop.f32.mrf.mxu0
    %7865 = vdwg.mxu0
    %7866 = vmatpush.bf16.msra.mxu0 %v6177
    %7867 = vmatpush.bf16.msra.mxu0 %v6169
    %7868 = vmatpush.bf16.msra.mxu0 %v6161
    %7869 = vmatpush.bf16.msra.mxu0 %v6153
    %7870 = vmatpush.bf16.msra.mxu0 %v6145
    %7871 = vmatpush.bf16.msra.mxu0 %v6137
    %7872 = vmatpush.bf16.msra.mxu0 %v6129
    %7873 = vmatpush.bf16.msra.mxu0 %v6121
    %7874 = vmatmul.bf16.gmra.mxu0 %v4040
    %v7875 = vpop.f32.mrf.mxu0
    %v7876 = vadd.f32 %v4569, %v7875
    %v7877 = vpop.f32.mrf.mxu0
    %7878 = vdwg.mxu0
    %7879 = vmatpush.bf16.msra.mxu0 %v6241
    %7880 = vmatpush.bf16.msra.mxu0 %v6233
    %7881 = vmatpush.bf16.msra.mxu0 %v6225
    %7882 = vmatpush.bf16.msra.mxu0 %v6217
    %7883 = vmatpush.bf16.msra.mxu0 %v6209
    %7884 = vmatpush.bf16.msra.mxu0 %v6201
    %7885 = vmatpush.bf16.msra.mxu0 %v6193
    %7886 = vmatpush.bf16.msra.mxu0 %v6185
    %7887 = vmatmul.bf16.gmra.mxu0 %v4041
    %v7888 = vpop.f32.mrf.mxu0
    %v7889 = vadd.f32 %v7876, %v7888
    %v7890 = vpop.f32.mrf.mxu0
    %7891 = vdwg.mxu0
    %7892 = vmatpush.bf16.msra.mxu0 %v6305
    %7893 = vmatpush.bf16.msra.mxu0 %v6297
    %7894 = vmatpush.bf16.msra.mxu0 %v6289
    %7895 = vmatpush.bf16.msra.mxu0 %v6281
    %7896 = vmatpush.bf16.msra.mxu0 %v6273
    %7897 = vmatpush.bf16.msra.mxu0 %v6265
    %7898 = vmatpush.bf16.msra.mxu0 %v6257
    %7899 = vmatpush.bf16.msra.mxu0 %v6249
    %7900 = vmatmul.bf16.gmra.mxu0 %v4042
    %v7901 = vpop.f32.mrf.mxu0
    %v7902 = vadd.f32 %v7889, %v7901
    %v7903 = vpop.f32.mrf.mxu0
    %7904 = vdwg.mxu0
    %7905 = vmatpush.bf16.msra.mxu0 %v6369
    %7906 = vmatpush.bf16.msra.mxu0 %v6361
    %7907 = vmatpush.bf16.msra.mxu0 %v6353
    %7908 = vmatpush.bf16.msra.mxu0 %v6345
    %7909 = vmatpush.bf16.msra.mxu0 %v6337
    %7910 = vmatpush.bf16.msra.mxu0 %v6329
    %7911 = vmatpush.bf16.msra.mxu0 %v6321
    %7912 = vmatpush.bf16.msra.mxu0 %v6313
    %7913 = vmatmul.bf16.gmra.mxu0 %v4043
    %v7914 = vpop.f32.mrf.mxu0
    %v7915 = vadd.f32 %v7902, %v7914
    %v7916 = vpop.f32.mrf.mxu0
    %7917 = vdwg.mxu0
    %7918 = vmatpush.bf16.msra.mxu0 %v6433
    %7919 = vmatpush.bf16.msra.mxu0 %v6425
    %7920 = vmatpush.bf16.msra.mxu0 %v6417
    %7921 = vmatpush.bf16.msra.mxu0 %v6409
    %7922 = vmatpush.bf16.msra.mxu0 %v6401
    %7923 = vmatpush.bf16.msra.mxu0 %v6393
    %7924 = vmatpush.bf16.msra.mxu0 %v6385
    %7925 = vmatpush.bf16.msra.mxu0 %v6377
    %7926 = vmatmul.bf16.gmra.mxu0 %v4044
    %v7927 = vpop.f32.mrf.mxu0
    %v7928 = vadd.f32 %v7915, %v7927
    %v7929 = vpop.f32.mrf.mxu0
    %7930 = vdwg.mxu0
    %7931 = vmatpush.bf16.msra.mxu0 %v6497
    %7932 = vmatpush.bf16.msra.mxu0 %v6489
    %7933 = vmatpush.bf16.msra.mxu0 %v6481
    %7934 = vmatpush.bf16.msra.mxu0 %v6473
    %7935 = vmatpush.bf16.msra.mxu0 %v6465
    %7936 = vmatpush.bf16.msra.mxu0 %v6457
    %7937 = vmatpush.bf16.msra.mxu0 %v6449
    %7938 = vmatpush.bf16.msra.mxu0 %v6441
    %7939 = vmatmul.bf16.gmra.mxu0 %v4045
    %v7940 = vpop.f32.mrf.mxu0
    %v7941 = vadd.f32 %v7928, %v7940
    %v7942 = vpop.f32.mrf.mxu0
    %7943 = vdwg.mxu0
    %7944 = vmatpush.bf16.msra.mxu0 %v6561
    %7945 = vmatpush.bf16.msra.mxu0 %v6553
    %7946 = vmatpush.bf16.msra.mxu0 %v6545
    %7947 = vmatpush.bf16.msra.mxu0 %v6537
    %7948 = vmatpush.bf16.msra.mxu0 %v6529
    %7949 = vmatpush.bf16.msra.mxu0 %v6521
    %7950 = vmatpush.bf16.msra.mxu0 %v6513
    %7951 = vmatpush.bf16.msra.mxu0 %v6505
    %7952 = vmatmul.bf16.gmra.mxu0 %v4046
    %v7953 = vpop.f32.mrf.mxu0
    %v7954 = vadd.f32 %v7941, %v7953
    %v7955 = vpop.f32.mrf.mxu0
    %7956 = vdwg.mxu0
    %7957 = vmatpush.bf16.msra.mxu0 %v6625
    %7958 = vmatpush.bf16.msra.mxu0 %v6617
    %7959 = vmatpush.bf16.msra.mxu0 %v6609
    %7960 = vmatpush.bf16.msra.mxu0 %v6601
    %7961 = vmatpush.bf16.msra.mxu0 %v6593
    %7962 = vmatpush.bf16.msra.mxu0 %v6585
    %7963 = vmatpush.bf16.msra.mxu0 %v6577
    %7964 = vmatpush.bf16.msra.mxu0 %v6569
    %7965 = vmatmul.bf16.gmra.mxu0 %v4047
    %v7966 = vpop.f32.mrf.mxu0
    %v7967 = vadd.f32 %v7954, %v7966
    %v7968 = vpop.f32.mrf.mxu0
    %7969 = vdwg.mxu0
    %v7970 = vmax.f32 %v7239, 0.0
    %v7971 = vmax.f32 %v7343, 0.0
    %v7972 = vmax.f32 %v7447, 0.0
    %v7973 = vmax.f32 %v7551, 0.0
    %v7974 = vmax.f32 %v7655, 0.0
    %v7975 = vmax.f32 %v7759, 0.0
    %v7976 = vmax.f32 %v7863, 0.0
    %v7977 = vmax.f32 %v7967, 0.0
    %v7978 = vld [vmem:[#allocation2] sm:$0x3]
    %v7979 = vld [vmem:[#allocation11] sm:$0xff]
    %v7980 = vld [vmem:[#allocation11 + $0x8] sm:$0xff]
    %v7981 = vld [vmem:[#allocation11 + $0x10] sm:$0xff]
    %v7982 = vld [vmem:[#allocation11 + $0x18] sm:$0xff]
    %v7983 = vld [vmem:[#allocation11 + $0x20] sm:$0xff]
    %v7984 = vld [vmem:[#allocation11 + $0x28] sm:$0xff]
    %v7985 = vld [vmem:[#allocation11 + $0x30] sm:$0xff]
    %v7986 = vld [vmem:[#allocation11 + $0x38] sm:$0xf]
    %v7987 = vld [vmem:[#allocation13] sm:$0x1]
    %v7989 = vperm.slane %v7987, 0
    %vm7991 = vcmask 490496
    %v7993 = vsel %vm7991, %v7978, 0
    %vm7995 = vcmask 1043456
    %v7997 = vsel %vm7995, %v7986, 0
    %7999 = vmatpush.msra.mxu0 0.0
    %8000 = vmatpush.msra.mxu0 0.0
    %8001 = vmatpush.msra.mxu0 0.0
    %8002 = vmatpush.msra.mxu0 0.0
    %8003 = vmatpush.msra.mxu0 0.0
    %8004 = vmatpush.msra.mxu0 0.0
    %8005 = vmatpush.msra.mxu0 0.0
    %8006 = vmatpush.msra.mxu0 0.0
    %8007 = vmatpush.msra.mxu0 %v7997
    %8008 = vmatpush.msra.mxu0 %v7985
    %8009 = vmatpush.msra.mxu0 %v7984
    %8010 = vmatpush.msra.mxu0 %v7983
    %8011 = vmatpush.msra.mxu0 %v7982
    %8012 = vmatpush.msra.mxu0 %v7981
    %8013 = vmatpush.msra.mxu0 %v7980
    %8014 = vmatpush.msra.mxu0 %v7979
    %8015 = vmatmul.f32.gmra.mxu0 %v7993
    %v8016 = vpop.f32.mrf.mxu0
    %v8017 = vadd.f32 %v7989, %v8016
    %8018 = vdwg.mxu0
    %v8019 = vpack.c.bf16 %v7970, %v7970
    %v8020 = vpack.c.bf16 %v7971, %v7971
    %v8021 = vpack.c.bf16 %v7972, %v7972
    %v8022 = vpack.c.bf16 %v7973, %v7973
    %v8023 = vpack.c.bf16 %v7974, %v7974
    %v8024 = vpack.c.bf16 %v7975, %v7975
    %v8025 = vpack.c.bf16 %v7976, %v7976
    %v8026 = vpack.c.bf16 %v7977, %v7977
    %v8027 = vld [vmem:[%s13] sm:$0xf]
    %v8028 = vld [vmem:[%s13 + $0x4] sm:$0xf]
    %v8029 = vld [vmem:[%s13 + $0x8] sm:$0xf]
    %v8030 = vld [vmem:[%s13 + $0xc] sm:$0xf]
    %v8031 = vld [vmem:[%s13 + $0x10] sm:$0xf]
    %v8032 = vld [vmem:[%s13 + $0x14] sm:$0xf]
    %v8033 = vld [vmem:[%s13 + $0x18] sm:$0xf]
    %v8034 = vld [vmem:[%s13 + $0x1c] sm:$0xf]
    %v8035 = vld [vmem:[%s13 + $0x20] sm:$0xf]
    %v8036 = vld [vmem:[%s13 + $0x24] sm:$0xf]
    %v8037 = vld [vmem:[%s13 + $0x28] sm:$0xf]
    %v8038 = vld [vmem:[%s13 + $0x2c] sm:$0xf]
    %v8039 = vld [vmem:[%s13 + $0x30] sm:$0xf]
    %v8040 = vld [vmem:[%s13 + $0x34] sm:$0xf]
    %v8041 = vld [vmem:[%s13 + $0x38] sm:$0xf]
    %v8042 = vld [vmem:[%s13 + $0x3c] sm:$0xf]
    %v8043 = vld [vmem:[%s13 + $0x40] sm:$0xf]
    %v8044 = vld [vmem:[%s13 + $0x44] sm:$0xf]
    %v8045 = vld [vmem:[%s13 + $0x48] sm:$0xf]
    %v8046 = vld [vmem:[%s13 + $0x4c] sm:$0xf]
    %v8047 = vld [vmem:[%s13 + $0x50] sm:$0xf]
    %v8048 = vld [vmem:[%s13 + $0x54] sm:$0xf]
    %v8049 = vld [vmem:[%s13 + $0x58] sm:$0xf]
    %v8050 = vld [vmem:[%s13 + $0x5c] sm:$0xf]
    %v8051 = vld [vmem:[%s13 + $0x60] sm:$0xf]
    %v8052 = vld [vmem:[%s13 + $0x64] sm:$0xf]
    %v8053 = vld [vmem:[%s13 + $0x68] sm:$0xf]
    %v8054 = vld [vmem:[%s13 + $0x6c] sm:$0xf]
    %v8055 = vld [vmem:[%s13 + $0x70] sm:$0xf]
    %v8056 = vld [vmem:[%s13 + $0x74] sm:$0xf]
    %v8057 = vld [vmem:[%s13 + $0x78] sm:$0xf]
    %v8058 = vld [vmem:[%s13 + $0x7c] sm:$0xf]
    %v8059 = vld [vmem:[%s13 + $0x80] sm:$0xf]
    %v8060 = vld [vmem:[%s13 + $0x84] sm:$0xf]
    %v8061 = vld [vmem:[%s13 + $0x88] sm:$0xf]
    %v8062 = vld [vmem:[%s13 + $0x8c] sm:$0xf]
    %v8063 = vld [vmem:[%s13 + $0x90] sm:$0xf]
    %v8064 = vld [vmem:[%s13 + $0x94] sm:$0xf]
    %v8065 = vld [vmem:[%s13 + $0x98] sm:$0xf]
    %v8066 = vld [vmem:[%s13 + $0x9c] sm:$0xf]
    %v8067 = vld [vmem:[%s13 + $0xa0] sm:$0xf]
    %v8068 = vld [vmem:[%s13 + $0xa4] sm:$0xf]
    %v8069 = vld [vmem:[%s13 + $0xa8] sm:$0xf]
    %v8070 = vld [vmem:[%s13 + $0xac] sm:$0xf]
    %v8071 = vld [vmem:[%s13 + $0xb0] sm:$0xf]
    %v8072 = vld [vmem:[%s13 + $0xb4] sm:$0xf]
    %v8073 = vld [vmem:[%s13 + $0xb8] sm:$0xf]
    %v8074 = vld [vmem:[%s13 + $0xbc] sm:$0xf]
    %v8075 = vld [vmem:[%s13 + $0xc0] sm:$0xf]
    %v8076 = vld [vmem:[%s13 + $0xc4] sm:$0xf]
    %v8077 = vld [vmem:[%s13 + $0xc8] sm:$0xf]
    %v8078 = vld [vmem:[%s13 + $0xcc] sm:$0xf]
    %v8079 = vld [vmem:[%s13 + $0xd0] sm:$0xf]
    %v8080 = vld [vmem:[%s13 + $0xd4] sm:$0xf]
    %v8081 = vld [vmem:[%s13 + $0xd8] sm:$0xf]
    %v8082 = vld [vmem:[%s13 + $0xdc] sm:$0xf]
    %v8083 = vld [vmem:[%s13 + $0xe0] sm:$0xf]
    %v8084 = vld [vmem:[%s13 + $0xe4] sm:$0xf]
    %v8085 = vld [vmem:[%s13 + $0xe8] sm:$0xf]
    %v8086 = vld [vmem:[%s13 + $0xec] sm:$0xf]
    %v8087 = vld [vmem:[%s13 + $0xf0] sm:$0xf]
    %v8088 = vld [vmem:[%s13 + $0xf4] sm:$0xf]
    %v8089 = vld [vmem:[%s13 + $0xf8] sm:$0xf]
    %v8090 = vld [vmem:[%s13 + $0xfc] sm:$0xf]
    %v8091 = vld [vmem:[%s13 + $0x100] sm:$0xf]
    %v8092 = vld [vmem:[%s13 + $0x104] sm:$0xf]
    %v8093 = vld [vmem:[%s13 + $0x108] sm:$0xf]
    %v8094 = vld [vmem:[%s13 + $0x10c] sm:$0xf]
    %v8095 = vld [vmem:[%s13 + $0x110] sm:$0xf]
    %v8096 = vld [vmem:[%s13 + $0x114] sm:$0xf]
    %v8097 = vld [vmem:[%s13 + $0x118] sm:$0xf]
    %v8098 = vld [vmem:[%s13 + $0x11c] sm:$0xf]
    %v8099 = vld [vmem:[%s13 + $0x120] sm:$0xf]
    %v8100 = vld [vmem:[%s13 + $0x124] sm:$0xf]
    %v8101 = vld [vmem:[%s13 + $0x128] sm:$0xf]
    %v8102 = vld [vmem:[%s13 + $0x12c] sm:$0xf]
    %v8103 = vld [vmem:[%s13 + $0x130] sm:$0xf]
    %v8104 = vld [vmem:[%s13 + $0x134] sm:$0xf]
    %v8105 = vld [vmem:[%s13 + $0x138] sm:$0xf]
    %v8106 = vld [vmem:[%s13 + $0x13c] sm:$0xf]
    %v8107 = vld [vmem:[%s13 + $0x140] sm:$0xf]
    %v8108 = vld [vmem:[%s13 + $0x144] sm:$0xf]
    %v8109 = vld [vmem:[%s13 + $0x148] sm:$0xf]
    %v8110 = vld [vmem:[%s13 + $0x14c] sm:$0xf]
    %v8111 = vld [vmem:[%s13 + $0x150] sm:$0xf]
    %v8112 = vld [vmem:[%s13 + $0x154] sm:$0xf]
    %v8113 = vld [vmem:[%s13 + $0x158] sm:$0xf]
    %v8114 = vld [vmem:[%s13 + $0x15c] sm:$0xf]
    %v8115 = vld [vmem:[%s13 + $0x160] sm:$0xf]
    %v8116 = vld [vmem:[%s13 + $0x164] sm:$0xf]
    %v8117 = vld [vmem:[%s13 + $0x168] sm:$0xf]
    %v8118 = vld [vmem:[%s13 + $0x16c] sm:$0xf]
    %v8119 = vld [vmem:[%s13 + $0x170] sm:$0xf]
    %v8120 = vld [vmem:[%s13 + $0x174] sm:$0xf]
    %v8121 = vld [vmem:[%s13 + $0x178] sm:$0xf]
    %v8122 = vld [vmem:[%s13 + $0x17c] sm:$0xf]
    %v8123 = vld [vmem:[%s13 + $0x180] sm:$0xf]
    %v8124 = vld [vmem:[%s13 + $0x184] sm:$0xf]
    %v8125 = vld [vmem:[%s13 + $0x188] sm:$0xf]
    %v8126 = vld [vmem:[%s13 + $0x18c] sm:$0xf]
    %v8127 = vld [vmem:[%s13 + $0x190] sm:$0xf]
    %v8128 = vld [vmem:[%s13 + $0x194] sm:$0xf]
    %v8129 = vld [vmem:[%s13 + $0x198] sm:$0xf]
    %v8130 = vld [vmem:[%s13 + $0x19c] sm:$0xf]
    %v8131 = vld [vmem:[%s13 + $0x1a0] sm:$0xf]
    %v8132 = vld [vmem:[%s13 + $0x1a4] sm:$0xf]
    %v8133 = vld [vmem:[%s13 + $0x1a8] sm:$0xf]
    %v8134 = vld [vmem:[%s13 + $0x1ac] sm:$0xf]
    %v8135 = vld [vmem:[%s13 + $0x1b0] sm:$0xf]
    %v8136 = vld [vmem:[%s13 + $0x1b4] sm:$0xf]
    %v8137 = vld [vmem:[%s13 + $0x1b8] sm:$0xf]
    %v8138 = vld [vmem:[%s13 + $0x1bc] sm:$0xf]
    %v8139 = vld [vmem:[%s13 + $0x1c0] sm:$0xf]
    %v8140 = vld [vmem:[%s13 + $0x1c4] sm:$0xf]
    %v8141 = vld [vmem:[%s13 + $0x1c8] sm:$0xf]
    %v8142 = vld [vmem:[%s13 + $0x1cc] sm:$0xf]
    %v8143 = vld [vmem:[%s13 + $0x1d0] sm:$0xf]
    %v8144 = vld [vmem:[%s13 + $0x1d4] sm:$0xf]
    %v8145 = vld [vmem:[%s13 + $0x1d8] sm:$0xf]
    %v8146 = vld [vmem:[%s13 + $0x1dc] sm:$0xf]
    %v8147 = vld [vmem:[%s13 + $0x1e0] sm:$0xf]
    %v8148 = vld [vmem:[%s13 + $0x1e4] sm:$0xf]
    %v8149 = vld [vmem:[%s13 + $0x1e8] sm:$0xf]
    %v8150 = vld [vmem:[%s13 + $0x1ec] sm:$0xf]
    %v8151 = vld [vmem:[%s13 + $0x1f0] sm:$0xf]
    %v8152 = vld [vmem:[%s13 + $0x1f4] sm:$0xf]
    %v8153 = vld [vmem:[%s13 + $0x1f8] sm:$0xf]
    %v8154 = vld [vmem:[%s13 + $0x1fc] sm:$0xf]
    %v8155 = vld [vmem:[%s14] sm:$0xff]
    %v8156 = vld [vmem:[%s14 + $0x8] sm:$0xff]
    %v8157 = vld [vmem:[%s14 + $0x10] sm:$0xff]
    %v8158 = vld [vmem:[%s14 + $0x18] sm:$0xff]
    %v8159 = vld [vmem:[%s14 + $0x20] sm:$0xff]
    %v8160 = vld [vmem:[%s14 + $0x28] sm:$0xff]
    %v8161 = vld [vmem:[%s14 + $0x30] sm:$0xff]
    %v8162 = vld [vmem:[%s14 + $0x38] sm:$0xf]
    %v8164 = vsel %vm7991, %v8017, 0
    %v8167 = vsel %vm7995, %v8162, 0
    %8169 = vmatpush.msra.mxu0 0.0
    %8170 = vmatpush.msra.mxu0 0.0
    %8171 = vmatpush.msra.mxu0 0.0
    %8172 = vmatpush.msra.mxu0 0.0
    %8173 = vmatpush.msra.mxu0 0.0
    %8174 = vmatpush.msra.mxu0 0.0
    %8175 = vmatpush.msra.mxu0 0.0
    %8176 = vmatpush.msra.mxu0 0.0
    %8177 = vmatpush.msra.mxu0 %v8167
    %8178 = vmatpush.msra.mxu0 %v8161
    %8179 = vmatpush.msra.mxu0 %v8160
    %8180 = vmatpush.msra.mxu0 %v8159
    %8181 = vmatpush.msra.mxu0 %v8158
    %8182 = vmatpush.msra.mxu0 %v8157
    %8183 = vmatpush.msra.mxu0 %v8156
    %8184 = vmatpush.msra.mxu0 %v8155
    %8185 = vmatmul.f32.gmra.mxu0 %v8164
    %v8186 = vpop.f32.mrf.mxu0
    %v8187 = vadd.f32 0.0, %v8186
    %8188 = vdwg.mxu0
    %v8317 = vunpack.c.l.b16 %v8027
    %v8318 = vunpack.c.l.b16 %v8028
    %v8319 = vunpack.c.l.b16 %v8029
    %v8320 = vunpack.c.l.b16 %v8030
    %v8321 = vunpack.c.l.b16 %v8031
    %v8322 = vunpack.c.l.b16 %v8032
    %v8323 = vunpack.c.l.b16 %v8033
    %v8324 = vunpack.c.l.b16 %v8034
    %v8325 = vunpack.c.l.b16 %v8035
    %v8326 = vunpack.c.l.b16 %v8036
    %v8327 = vunpack.c.l.b16 %v8037
    %v8328 = vunpack.c.l.b16 %v8038
    %v8329 = vunpack.c.l.b16 %v8039
    %v8330 = vunpack.c.l.b16 %v8040
    %v8331 = vunpack.c.l.b16 %v8041
    %v8332 = vunpack.c.l.b16 %v8042
    %v8333 = vunpack.c.l.b16 %v8043
    %v8334 = vunpack.c.l.b16 %v8044
    %v8335 = vunpack.c.l.b16 %v8045
    %v8336 = vunpack.c.l.b16 %v8046
    %v8337 = vunpack.c.l.b16 %v8047
    %v8338 = vunpack.c.l.b16 %v8048
    %v8339 = vunpack.c.l.b16 %v8049
    %v8340 = vunpack.c.l.b16 %v8050
    %v8341 = vunpack.c.l.b16 %v8051
    %v8342 = vunpack.c.l.b16 %v8052
    %v8343 = vunpack.c.l.b16 %v8053
    %v8344 = vunpack.c.l.b16 %v8054
    %v8345 = vunpack.c.l.b16 %v8055
    %v8346 = vunpack.c.l.b16 %v8056
    %v8347 = vunpack.c.l.b16 %v8057
    %v8348 = vunpack.c.l.b16 %v8058
    %v8349 = vunpack.c.l.b16 %v8059
    %v8350 = vunpack.c.l.b16 %v8060
    %v8351 = vunpack.c.l.b16 %v8061
    %v8352 = vunpack.c.l.b16 %v8062
    %v8353 = vunpack.c.l.b16 %v8063
    %v8354 = vunpack.c.l.b16 %v8064
    %v8355 = vunpack.c.l.b16 %v8065
    %v8356 = vunpack.c.l.b16 %v8066
    %v8357 = vunpack.c.l.b16 %v8067
    %v8358 = vunpack.c.l.b16 %v8068
    %v8359 = vunpack.c.l.b16 %v8069
    %v8360 = vunpack.c.l.b16 %v8070
    %v8361 = vunpack.c.l.b16 %v8071
    %v8362 = vunpack.c.l.b16 %v8072
    %v8363 = vunpack.c.l.b16 %v8073
    %v8364 = vunpack.c.l.b16 %v8074
    %v8365 = vunpack.c.l.b16 %v8075
    %v8366 = vunpack.c.l.b16 %v8076
    %v8367 = vunpack.c.l.b16 %v8077
    %v8368 = vunpack.c.l.b16 %v8078
    %v8369 = vunpack.c.l.b16 %v8079
    %v8370 = vunpack.c.l.b16 %v8080
    %v8371 = vunpack.c.l.b16 %v8081
    %v8372 = vunpack.c.l.b16 %v8082
    %v8373 = vunpack.c.l.b16 %v8083
    %v8374 = vunpack.c.l.b16 %v8084
    %v8375 = vunpack.c.l.b16 %v8085
    %v8376 = vunpack.c.l.b16 %v8086
    %v8377 = vunpack.c.l.b16 %v8087
    %v8378 = vunpack.c.l.b16 %v8088
    %v8379 = vunpack.c.l.b16 %v8089
    %v8380 = vunpack.c.l.b16 %v8090
    %v8381 = vunpack.c.l.b16 %v8091
    %v8382 = vunpack.c.l.b16 %v8092
    %v8383 = vunpack.c.l.b16 %v8093
    %v8384 = vunpack.c.l.b16 %v8094
    %v8385 = vunpack.c.l.b16 %v8095
    %v8386 = vunpack.c.l.b16 %v8096
    %v8387 = vunpack.c.l.b16 %v8097
    %v8388 = vunpack.c.l.b16 %v8098
    %v8389 = vunpack.c.l.b16 %v8099
    %v8390 = vunpack.c.l.b16 %v8100
    %v8391 = vunpack.c.l.b16 %v8101
    %v8392 = vunpack.c.l.b16 %v8102
    %v8393 = vunpack.c.l.b16 %v8103
    %v8394 = vunpack.c.l.b16 %v8104
    %v8395 = vunpack.c.l.b16 %v8105
    %v8396 = vunpack.c.l.b16 %v8106
    %v8397 = vunpack.c.l.b16 %v8107
    %v8398 = vunpack.c.l.b16 %v8108
    %v8399 = vunpack.c.l.b16 %v8109
    %v8400 = vunpack.c.l.b16 %v8110
    %v8401 = vunpack.c.l.b16 %v8111
    %v8402 = vunpack.c.l.b16 %v8112
    %v8403 = vunpack.c.l.b16 %v8113
    %v8404 = vunpack.c.l.b16 %v8114
    %v8405 = vunpack.c.l.b16 %v8115
    %v8406 = vunpack.c.l.b16 %v8116
    %v8407 = vunpack.c.l.b16 %v8117
    %v8408 = vunpack.c.l.b16 %v8118
    %v8409 = vunpack.c.l.b16 %v8119
    %v8410 = vunpack.c.l.b16 %v8120
    %v8411 = vunpack.c.l.b16 %v8121
    %v8412 = vunpack.c.l.b16 %v8122
    %v8413 = vunpack.c.l.b16 %v8123
    %v8414 = vunpack.c.l.b16 %v8124
    %v8415 = vunpack.c.l.b16 %v8125
    %v8416 = vunpack.c.l.b16 %v8126
    %v8417 = vunpack.c.l.b16 %v8127
    %v8418 = vunpack.c.l.b16 %v8128
    %v8419 = vunpack.c.l.b16 %v8129
    %v8420 = vunpack.c.l.b16 %v8130
    %v8421 = vunpack.c.l.b16 %v8131
    %v8422 = vunpack.c.l.b16 %v8132
    %v8423 = vunpack.c.l.b16 %v8133
    %v8424 = vunpack.c.l.b16 %v8134
    %v8425 = vunpack.c.l.b16 %v8135
    %v8426 = vunpack.c.l.b16 %v8136
    %v8427 = vunpack.c.l.b16 %v8137
    %v8428 = vunpack.c.l.b16 %v8138
    %v8429 = vunpack.c.l.b16 %v8139
    %v8430 = vunpack.c.l.b16 %v8140
    %v8431 = vunpack.c.l.b16 %v8141
    %v8432 = vunpack.c.l.b16 %v8142
    %v8433 = vunpack.c.l.b16 %v8143
    %v8434 = vunpack.c.l.b16 %v8144
    %v8435 = vunpack.c.l.b16 %v8145
    %v8436 = vunpack.c.l.b16 %v8146
    %v8437 = vunpack.c.l.b16 %v8147
    %v8438 = vunpack.c.l.b16 %v8148
    %v8439 = vunpack.c.l.b16 %v8149
    %v8440 = vunpack.c.l.b16 %v8150
    %v8441 = vunpack.c.l.b16 %v8151
    %v8442 = vunpack.c.l.b16 %v8152
    %v8443 = vunpack.c.l.b16 %v8153
    %v8444 = vunpack.c.l.b16 %v8154
    %v8445 = vpack.c.b16 %v8318, %v8317
    %v8446 = vpack.c.b16 %v8320, %v8319
    %v8447 = vpack.c.b16 %v8322, %v8321
    %v8448 = vpack.c.b16 %v8324, %v8323
    %v8449 = vpack.c.b16 %v8326, %v8325
    %v8450 = vpack.c.b16 %v8328, %v8327
    %v8451 = vpack.c.b16 %v8330, %v8329
    %v8452 = vpack.c.b16 %v8332, %v8331
    %v8453 = vpack.c.b16 %v8334, %v8333
    %v8454 = vpack.c.b16 %v8336, %v8335
    %v8455 = vpack.c.b16 %v8338, %v8337
    %v8456 = vpack.c.b16 %v8340, %v8339
    %v8457 = vpack.c.b16 %v8342, %v8341
    %v8458 = vpack.c.b16 %v8344, %v8343
    %v8459 = vpack.c.b16 %v8346, %v8345
    %v8460 = vpack.c.b16 %v8348, %v8347
    %v8461 = vpack.c.b16 %v8350, %v8349
    %v8462 = vpack.c.b16 %v8352, %v8351
    %v8463 = vpack.c.b16 %v8354, %v8353
    %v8464 = vpack.c.b16 %v8356, %v8355
    %v8465 = vpack.c.b16 %v8358, %v8357
    %v8466 = vpack.c.b16 %v8360, %v8359
    %v8467 = vpack.c.b16 %v8362, %v8361
    %v8468 = vpack.c.b16 %v8364, %v8363
    %v8469 = vpack.c.b16 %v8366, %v8365
    %v8470 = vpack.c.b16 %v8368, %v8367
    %v8471 = vpack.c.b16 %v8370, %v8369
    %v8472 = vpack.c.b16 %v8372, %v8371
    %v8473 = vpack.c.b16 %v8374, %v8373
    %v8474 = vpack.c.b16 %v8376, %v8375
    %v8475 = vpack.c.b16 %v8378, %v8377
    %v8476 = vpack.c.b16 %v8380, %v8379
    %v8477 = vpack.c.b16 %v8382, %v8381
    %v8478 = vpack.c.b16 %v8384, %v8383
    %v8479 = vpack.c.b16 %v8386, %v8385
    %v8480 = vpack.c.b16 %v8388, %v8387
    %v8481 = vpack.c.b16 %v8390, %v8389
    %v8482 = vpack.c.b16 %v8392, %v8391
    %v8483 = vpack.c.b16 %v8394, %v8393
    %v8484 = vpack.c.b16 %v8396, %v8395
    %v8485 = vpack.c.b16 %v8398, %v8397
    %v8486 = vpack.c.b16 %v8400, %v8399
    %v8487 = vpack.c.b16 %v8402, %v8401
    %v8488 = vpack.c.b16 %v8404, %v8403
    %v8489 = vpack.c.b16 %v8406, %v8405
    %v8490 = vpack.c.b16 %v8408, %v8407
    %v8491 = vpack.c.b16 %v8410, %v8409
    %v8492 = vpack.c.b16 %v8412, %v8411
    %v8493 = vpack.c.b16 %v8414, %v8413
    %v8494 = vpack.c.b16 %v8416, %v8415
    %v8495 = vpack.c.b16 %v8418, %v8417
    %v8496 = vpack.c.b16 %v8420, %v8419
    %v8497 = vpack.c.b16 %v8422, %v8421
    %v8498 = vpack.c.b16 %v8424, %v8423
    %v8499 = vpack.c.b16 %v8426, %v8425
    %v8500 = vpack.c.b16 %v8428, %v8427
    %v8501 = vpack.c.b16 %v8430, %v8429
    %v8502 = vpack.c.b16 %v8432, %v8431
    %v8503 = vpack.c.b16 %v8434, %v8433
    %v8504 = vpack.c.b16 %v8436, %v8435
    %v8505 = vpack.c.b16 %v8438, %v8437
    %v8506 = vpack.c.b16 %v8440, %v8439
    %v8507 = vpack.c.b16 %v8442, %v8441
    %v8508 = vpack.c.b16 %v8444, %v8443
    %8573 = vmatpush.bf16.msra.mxu0 %v8452
    %8574 = vmatpush.bf16.msra.mxu0 %v8451
    %8575 = vmatpush.bf16.msra.mxu0 %v8450
    %8576 = vmatpush.bf16.msra.mxu0 %v8449
    %8577 = vmatpush.bf16.msra.mxu0 %v8448
    %8578 = vmatpush.bf16.msra.mxu0 %v8447
    %8579 = vmatpush.bf16.msra.mxu0 %v8446
    %8580 = vmatpush.bf16.msra.mxu0 %v8445
    %8581 = vmatmul.bf16.gmra.mxu0 %v8019
    %v8582 = vpop.f32.mrf.mxu0
    %v8583 = vadd.f32 %v8187, %v8582
    %v8584 = vpop.f32.mrf.mxu0
    %8585 = vdwg.mxu0
    %8586 = vmatpush.bf16.msra.mxu0 %v8460
    %8587 = vmatpush.bf16.msra.mxu0 %v8459
    %8588 = vmatpush.bf16.msra.mxu0 %v8458
    %8589 = vmatpush.bf16.msra.mxu0 %v8457
    %8590 = vmatpush.bf16.msra.mxu0 %v8456
    %8591 = vmatpush.bf16.msra.mxu0 %v8455
    %8592 = vmatpush.bf16.msra.mxu0 %v8454
    %8593 = vmatpush.bf16.msra.mxu0 %v8453
    %8594 = vmatmul.bf16.gmra.mxu0 %v8020
    %v8595 = vpop.f32.mrf.mxu0
    %v8596 = vadd.f32 %v8583, %v8595
    %v8597 = vpop.f32.mrf.mxu0
    %8598 = vdwg.mxu0
    %8599 = vmatpush.bf16.msra.mxu0 %v8468
    %8600 = vmatpush.bf16.msra.mxu0 %v8467
    %8601 = vmatpush.bf16.msra.mxu0 %v8466
    %8602 = vmatpush.bf16.msra.mxu0 %v8465
    %8603 = vmatpush.bf16.msra.mxu0 %v8464
    %8604 = vmatpush.bf16.msra.mxu0 %v8463
    %8605 = vmatpush.bf16.msra.mxu0 %v8462
    %8606 = vmatpush.bf16.msra.mxu0 %v8461
    %8607 = vmatmul.bf16.gmra.mxu0 %v8021
    %v8608 = vpop.f32.mrf.mxu0
    %v8609 = vadd.f32 %v8596, %v8608
    %v8610 = vpop.f32.mrf.mxu0
    %8611 = vdwg.mxu0
    %8612 = vmatpush.bf16.msra.mxu0 %v8476
    %8613 = vmatpush.bf16.msra.mxu0 %v8475
    %8614 = vmatpush.bf16.msra.mxu0 %v8474
    %8615 = vmatpush.bf16.msra.mxu0 %v8473
    %8616 = vmatpush.bf16.msra.mxu0 %v8472
    %8617 = vmatpush.bf16.msra.mxu0 %v8471
    %8618 = vmatpush.bf16.msra.mxu0 %v8470
    %8619 = vmatpush.bf16.msra.mxu0 %v8469
    %8620 = vmatmul.bf16.gmra.mxu0 %v8022
    %v8621 = vpop.f32.mrf.mxu0
    %v8622 = vadd.f32 %v8609, %v8621
    %v8623 = vpop.f32.mrf.mxu0
    %8624 = vdwg.mxu0
    %8625 = vmatpush.bf16.msra.mxu0 %v8484
    %8626 = vmatpush.bf16.msra.mxu0 %v8483
    %8627 = vmatpush.bf16.msra.mxu0 %v8482
    %8628 = vmatpush.bf16.msra.mxu0 %v8481
    %8629 = vmatpush.bf16.msra.mxu0 %v8480
    %8630 = vmatpush.bf16.msra.mxu0 %v8479
    %8631 = vmatpush.bf16.msra.mxu0 %v8478
    %8632 = vmatpush.bf16.msra.mxu0 %v8477
    %8633 = vmatmul.bf16.gmra.mxu0 %v8023
    %v8634 = vpop.f32.mrf.mxu0
    %v8635 = vadd.f32 %v8622, %v8634
    %v8636 = vpop.f32.mrf.mxu0
    %8637 = vdwg.mxu0
    %8638 = vmatpush.bf16.msra.mxu0 %v8492
    %8639 = vmatpush.bf16.msra.mxu0 %v8491
    %8640 = vmatpush.bf16.msra.mxu0 %v8490
    %8641 = vmatpush.bf16.msra.mxu0 %v8489
    %8642 = vmatpush.bf16.msra.mxu0 %v8488
    %8643 = vmatpush.bf16.msra.mxu0 %v8487
    %8644 = vmatpush.bf16.msra.mxu0 %v8486
    %8645 = vmatpush.bf16.msra.mxu0 %v8485
    %8646 = vmatmul.bf16.gmra.mxu0 %v8024
    %v8647 = vpop.f32.mrf.mxu0
    %v8648 = vadd.f32 %v8635, %v8647
    %v8649 = vpop.f32.mrf.mxu0
    %8650 = vdwg.mxu0
    %8651 = vmatpush.bf16.msra.mxu0 %v8500
    %8652 = vmatpush.bf16.msra.mxu0 %v8499
    %8653 = vmatpush.bf16.msra.mxu0 %v8498
    %8654 = vmatpush.bf16.msra.mxu0 %v8497
    %8655 = vmatpush.bf16.msra.mxu0 %v8496
    %8656 = vmatpush.bf16.msra.mxu0 %v8495
    %8657 = vmatpush.bf16.msra.mxu0 %v8494
    %8658 = vmatpush.bf16.msra.mxu0 %v8493
    %8659 = vmatmul.bf16.gmra.mxu0 %v8025
    %v8660 = vpop.f32.mrf.mxu0
    %v8661 = vadd.f32 %v8648, %v8660
    %v8662 = vpop.f32.mrf.mxu0
    %8663 = vdwg.mxu0
    %8664 = vmatpush.bf16.msra.mxu0 %v8508
    %8665 = vmatpush.bf16.msra.mxu0 %v8507
    %8666 = vmatpush.bf16.msra.mxu0 %v8506
    %8667 = vmatpush.bf16.msra.mxu0 %v8505
    %8668 = vmatpush.bf16.msra.mxu0 %v8504
    %8669 = vmatpush.bf16.msra.mxu0 %v8503
    %8670 = vmatpush.bf16.msra.mxu0 %v8502
    %8671 = vmatpush.bf16.msra.mxu0 %v8501
    %8672 = vmatmul.bf16.gmra.mxu0 %v8026
    %v8673 = vpop.f32.mrf.mxu0
    %v8674 = vadd.f32 %v8661, %v8673
    %v8675 = vpop.f32.mrf.mxu0
    %8676 = vdwg.mxu0
    %v8677 = vld [vmem:[#allocation14] sm:$0x1]
    %v8679 = vperm.slane %v8677, 0
    %v8681 = vadd.f32 %v8674, %v8679
    %vm8682 = vcmask 33792
    %8683 = vst.msk [vmem:[#allocation16] sm:$0x3] %vm8682, %v8681
    // Predicated region
    $region98: #{model_forward.1} parent=1 // pred_check
      _
    $region99: #{model_forward.1} parent=1 // pred_check_branch
      %8685 = sbr.rel (0) target = $region101
    $region100: #{model_forward.1} parent=1 // pred_region
      %8687 = vsyncadd [#allocation4], 0
      %s8689 = sshll.u32 [#allocation16], 4
      %s8690 = int_to_ptr.vmem [resolvable:$true] %s8689
      %s8691 = sshll.u32 %s16, 4
      %s8692 = int_to_ptr.hbm [resolvable:$true] %s8691
      %8694 = dma.vmem_to_hbm [thread:$0]  %s8690, 32, %s8692, [#allocation4]
    $region101: #{model_forward.1} parent=1 // pred_fallthru
      _
    // Predicated region
    $region102: #{model_forward.1} parent=1 // pred_check
      _
    $region103: #{model_forward.1} parent=1 // pred_check_branch
      %8696 = sbr.rel (0) target = $region105
    $region104: #{model_forward.1} parent=1 // pred_region
      %8698 = dma.done [#allocation4], 32
    $region105: #{model_forward.1} parent=1 // pred_fallthru
      _
    %8699 = vsyncpa [#allocation3], 1
    %8700 = vsyncpa [#allocation6], 1
    %8701 = vsyncpa [#allocation9], 1
    %8702 = vsyncpa [#allocation12], 1
    %8703 = vsyncpa [#allocation15], 1
    %8704 = vsyncpa [#allocation4], 1

</llo_original>
